<compile_context>
chip_gen: v7x
topology: tpu7x:2x2x1
jax: 0.10.0
libtpu: 0.0.40
codegen_flags: <defaults>
</compile_context>

<pallas_src>
import jax
import jax.numpy as jnp
import numpy as np
from jax.experimental import pallas as pl
from jax.experimental.pallas import tpu as pltpu


# ------------------------------ fused kernel ------------------------------ #

def _hourglass_kernel(x_ref, w1_ref, b1_ref, w2_ref, b2_ref,
                      wd_ref, bd_ref, w3_ref, b3_ref, out_ref):
    f32 = jnp.float32

    # conv1 as one (768 -> 1536) matmul; columns ordered [pool-phase, pos, ch].
    y1 = jnp.dot(x_ref[...], w1_ref[...], preferred_element_type=f32)   # (B,1536)

    # fused 2x2/2 maxpool: elementwise max of the four 384-lane phase blocks
    # (bias + relu commute with the max, so they are applied once afterwards).
    pooled = jnp.maximum(jnp.maximum(y1[:, 0:384], y1[:, 384:768]),
                         jnp.maximum(y1[:, 768:1152], y1[:, 1152:1536]))
    h1 = jnp.maximum(pooled + b1_ref[...], 0.0)                          # (B,384)

    # conv2 + bias + relu  (384 -> 768)
    h2 = jnp.maximum(
        jnp.dot(h1, w2_ref[...], preferred_element_type=f32) + b2_ref[...], 0.0)

    # deconv (ConvTranspose2d k=3, s=2, p=1, op=1) + bias + relu  (768 -> 1536)
    h3 = jnp.maximum(
        jnp.dot(h2, wd_ref[...], preferred_element_type=f32) + bd_ref[...], 0.0)

    # conv3 + bias  (1536 -> 256); columns ordered (oy, ox), channel = 1.
    out = jnp.dot(h3, w3_ref[...], preferred_element_type=f32) + b3_ref[...]
    out_ref[...] = out.astype(out_ref.dtype)


# -------------------- host-side weight-matrix construction ----------------- #

def _conv_matrix(w_oihw, in_hw, out_coords):
    """Dense M with flat_out = flat_in @ M for a 3x3 stride-1 pad-1 conv.
    flat_in ordered (iy, ix, cin); output columns ordered (out_coords idx, cout)."""
    w = np.asarray(w_oihw, np.float32)               # (Cout, Cin, 3, 3)
    cout, cin = w.shape[0], w.shape[1]
    h, wd = in_hw
    m = np.zeros((h * wd * cin, len(out_coords) * cout), np.float32)
    for o_idx, (oy, ox) in enumerate(out_coords):
        for ky in range(3):
            iy = oy + ky - 1
            if not 0 <= iy < h:
                continue
            for kx in range(3):
                ix = ox + kx - 1
                if not 0 <= ix < wd:
                    continue
                ipos = iy * wd + ix
                m[ipos * cin:(ipos + 1) * cin,
                  o_idx * cout:(o_idx + 1) * cout] = w[:, :, ky, kx].T
    return m


def _deconv_matrix(w_iohw, in_hw, out_hw):
    """Dense M with flat_out = flat_in @ M for ConvTranspose2d
    (k=3, stride=2, padding=1, output_padding=1).
    flat_in ordered (iy, ix, cin); flat_out ordered (oy, ox, cout)."""
    w = np.asarray(w_iohw, np.float32)               # (Cin, Cout, 3, 3)
    cin, cout = w.shape[0], w.shape[1]
    hi, wi = in_hw
    ho, wo = out_hw
    m = np.zeros((hi * wi * cin, ho * wo * cout), np.float32)
    for iy in range(hi):
        for ix in range(wi):
            ipos = iy * wi + ix
            for ky in range(3):
                oy = 2 * iy - 1 + ky
                if not 0 <= oy < ho:
                    continue
                for kx in range(3):
                    ox = 2 * ix - 1 + kx
                    if not 0 <= ox < wo:
                        continue
                    opos = oy * wo + ox
                    m[ipos * cin:(ipos + 1) * cin,
                      opos * cout:(opos + 1) * cout] = w[:, :, ky, kx]
    return m


def prepare_params(p):
    """One-time host-side repacking of the PyTorch-layout weights into dense,
    lane-friendly matrices consumed by the Pallas kernel."""
    # conv1 output columns grouped by 2x2-pool phase so the in-kernel maxpool
    # is a max over four 128-aligned 384-lane blocks:
    #   col = (py*2+px)*384 + (qy*8+qx)*6 + cout, spatial pos = (2qy+py, 2qx+px)
    conv1_coords = [(2 * qy + py, 2 * qx + px)
                    for py in range(2) for px in range(2)
                    for qy in range(8) for qx in range(8)]
    conv2_coords = [(y, x) for y in range(8) for x in range(8)]
    conv3_coords = [(y, x) for y in range(16) for x in range(16)]

    w1m = _conv_matrix(p["w1"], (16, 16), conv1_coords)      # (768, 1536)
    w2m = _conv_matrix(p["w2"], (8, 8), conv2_coords)        # (384, 768)
    wdm = _deconv_matrix(p["wd"], (8, 8), (16, 16))          # (768, 1536)
    w3m = _conv_matrix(p["w3"], (16, 16), conv3_coords)      # (1536, 256)

    def tile_bias(b, reps):
        return np.tile(np.asarray(b, np.float32), reps)[None, :]

    return dict(
        w1=jnp.asarray(w1m), b1=jnp.asarray(tile_bias(p["b1"], 64)),     # (1,384)
        w2=jnp.asarray(w2m), b2=jnp.asarray(tile_bias(p["b2"], 64)),     # (1,768)
        wd=jnp.asarray(wdm), bd=jnp.asarray(tile_bias(p["bd"], 256)),    # (1,1536)
        w3=jnp.asarray(w3m), b3=jnp.asarray(tile_bias(p["b3"], 256)),    # (1,256)
    )


# --------------------------------- wrapper --------------------------------- #

def _cdiv(a, b):
    return (a + b - 1) // b


def hourglass_forward(x_nchw, prepped):
    N = x_nchw.shape[0]
    # Rows per grid step: multiple of 8 (sublane alignment), capped at 128
    # (saturates the v5e 128-row MXU); keeps >= 2 grid steps once N > 8.
    B = min(128, 8 * _cdiv(N, 16))
    Np = _cdiv(N, B) * B

    # Layout plumbing (tiny, one-time): NCHW -> lane-dense flat (N, 768).
    x = jnp.transpose(x_nchw, (0, 2, 3, 1)).astype(jnp.float32).reshape(N, 768)
    if Np != N:
        x = jnp.pad(x, ((0, Np - N), (0, 0)))

    order = ("w1", "b1", "w2", "b2", "wd", "bd", "w3", "b3")
    const_map = lambda i: (0, 0)    # weights: same block every step -> loaded once

    out = pl.pallas_call(
        _hourglass_kernel,
        out_shape=jax.ShapeDtypeStruct((Np, 256), jnp.float32),
        grid_spec=pltpu.PrefetchScalarGridSpec(
            num_scalar_prefetch=0,
            grid=(Np // B,),
            in_specs=[pl.BlockSpec((B, 768), lambda i: (i, 0))] +
                     [pl.BlockSpec(prepped[k].shape, const_map) for k in order],
            out_specs=pl.BlockSpec((B, 256), lambda i: (i, 0)),
        ),
        compiler_params=pltpu.CompilerParams(
            dimension_semantics=("parallel",),
            vmem_limit_bytes=48 * 1024 * 1024),
    )(x, *[prepped[k] for k in order])

    # Output columns are ordered (oy, ox) with a single channel.
    return out[:N].reshape(N, 1, 16, 16)


# ------------------------------ params & check ----------------------------- #

def init_params(key):
    ks = jax.random.split(key, 8)

    def u(k, shape, fan_in):
        bound = 1.0 / np.sqrt(fan_in)
        return jax.random.uniform(k, shape, jnp.float32, -bound, bound)

    return dict(
        # Conv2d weights: (out, in, kH, kW); ConvTranspose2d: (in, out, kH, kW)
        w1=u(ks[0], (6, 3, 3, 3), 3 * 9),    b1=u(ks[1], (6,), 3 * 9),
        w2=u(ks[2], (12, 6, 3, 3), 6 * 9),   b2=u(ks[3], (12,), 6 * 9),
        wd=u(ks[4], (12, 6, 3, 3), 12 * 9),  bd=u(ks[5], (6,), 12 * 9),
        w3=u(ks[6], (1, 6, 3, 3), 6 * 9),    b3=u(ks[7], (1,), 6 * 9),
    )


def ref_forward(x_nchw, p):
    # pure-JAX reference (XLA convs) for a correctness check
    def conv(x, w, b):
        y = jax.lax.conv_general_dilated(
            x, w, (1, 1), [(1, 1), (1, 1)],
            dimension_numbers=("NCHW", "OIHW", "NCHW"))
        return y + b.reshape(1, -1, 1, 1)

    x = jax.nn.relu(conv(x_nchw, p["w1"], p["b1"]))
    x = jax.lax.reduce_window(x, -jnp.inf, jax.lax.max,
                              (1, 1, 2, 2), (1, 1, 2, 2), "VALID")
    x = jax.nn.relu(conv(x, p["w2"], p["b2"]))
    w_eq = jnp.transpose(jnp.flip(p["wd"], axis=(2, 3)), (1, 0, 2, 3))
    y = jax.lax.conv_general_dilated(
        x, w_eq, (1, 1), [(1, 2), (1, 2)], lhs_dilation=(2, 2),
        dimension_numbers=("NCHW", "OIHW", "NCHW"))
    x = jax.nn.relu(y + p["bd"].reshape(1, -1, 1, 1))
    x = conv(x, p["w3"], p["b3"])
    return x


if __name__ == "__main__":
    key = jax.random.PRNGKey(0)
    kp, kx = jax.random.split(key)
    params = init_params(kp)
    x = jax.random.normal(kx, (2, 3, 16, 16), jnp.float32)

    prepped = prepare_params(params)            # one-time host-side repack
    out = jax.block_until_ready(jax.jit(hourglass_forward)(x, prepped))
    assert out.shape == (2, 1, 16, 16), out.shape

    ref = jax.block_until_ready(ref_forward(x, params))
    np.testing.assert_allclose(np.asarray(out), np.asarray(ref),
                               atol=2e-3, rtol=2e-3)
    print("KERNEL_OK")
</pallas_src>

<mosaic_0001>
module attributes {stable_mosaic.version = 11 : i64} {
  func.func @_hourglass_kernel(%arg0: i32, %arg1: memref<8x768xf32, #tpu.memory_space<vmem>>, %arg2: memref<768x1536xf32, #tpu.memory_space<vmem>>, %arg3: memref<1x384xf32, #tpu.memory_space<vmem>>, %arg4: memref<384x768xf32, #tpu.memory_space<vmem>>, %arg5: memref<1x768xf32, #tpu.memory_space<vmem>>, %arg6: memref<768x1536xf32, #tpu.memory_space<vmem>>, %arg7: memref<1x1536xf32, #tpu.memory_space<vmem>>, %arg8: memref<1536x256xf32, #tpu.memory_space<vmem>>, %arg9: memref<1x256xf32, #tpu.memory_space<vmem>>, %arg10: memref<8x256xf32, #tpu.memory_space<vmem>>) attributes {dimension_semantics = [#tpu.dimension_semantics<parallel>], iteration_bounds = array<i64: 1>, scalar_prefetch = 0 : i64, scratch_operands = 0 : i64, tpu.core_type = #tpu.core_type<tc>, window_params = [{transform_indices = @transform_0, window_bounds = array<i64: 8, 768>}, {pipeline_mode = #tpu.pipeline_mode<synchronous>, transform_indices = @transform_1, window_bounds = array<i64: 768, 1536>}, {pipeline_mode = #tpu.pipeline_mode<synchronous>, transform_indices = @transform_2, window_bounds = array<i64: 1, 384>}, {pipeline_mode = #tpu.pipeline_mode<synchronous>, transform_indices = @transform_3, window_bounds = array<i64: 384, 768>}, {pipeline_mode = #tpu.pipeline_mode<synchronous>, transform_indices = @transform_4, window_bounds = array<i64: 1, 768>}, {pipeline_mode = #tpu.pipeline_mode<synchronous>, transform_indices = @transform_5, window_bounds = array<i64: 768, 1536>}, {pipeline_mode = #tpu.pipeline_mode<synchronous>, transform_indices = @transform_6, window_bounds = array<i64: 1, 1536>}, {pipeline_mode = #tpu.pipeline_mode<synchronous>, transform_indices = @transform_7, window_bounds = array<i64: 1536, 256>}, {pipeline_mode = #tpu.pipeline_mode<synchronous>, transform_indices = @transform_8, window_bounds = array<i64: 1, 256>}, {transform_indices = @transform_9, window_bounds = array<i64: 8, 256>}]} {
    %c0 = arith.constant 0 : index
    %c0_0 = arith.constant 0 : index
    %0 = vector.load %arg1[%c0, %c0_0] : memref<8x768xf32, #tpu.memory_space<vmem>>, vector<8x768xf32>
    %c0_1 = arith.constant 0 : index
    %c0_2 = arith.constant 0 : index
    %1 = vector.load %arg2[%c0_1, %c0_2] : memref<768x1536xf32, #tpu.memory_space<vmem>>, vector<768x1536xf32>
    %cst = arith.constant dense<0.000000e+00> : vector<8x1536xf32>
    %2 = tpu.matmul %0, %1, %cst {dimension_numbers = #tpu.dot_dimension_numbers<[1], [0], [0], [1], [0, 0, 1, 1], [], []>} : vector<8x768xf32>, vector<768x1536xf32>, vector<8x1536xf32> -> vector<8x1536xf32>
    %3 = vector.extract_strided_slice %2 {offsets = [0, 0], sizes = [8, 384], strides = [1, 1]} : vector<8x1536xf32> to vector<8x384xf32>
    %4 = vector.extract_strided_slice %2 {offsets = [0, 384], sizes = [8, 384], strides = [1, 1]} : vector<8x1536xf32> to vector<8x384xf32>
    %5 = arith.maximumf %3, %4 : vector<8x384xf32>
    %6 = vector.extract_strided_slice %2 {offsets = [0, 768], sizes = [8, 384], strides = [1, 1]} : vector<8x1536xf32> to vector<8x384xf32>
    %7 = vector.extract_strided_slice %2 {offsets = [0, 1152], sizes = [8, 384], strides = [1, 1]} : vector<8x1536xf32> to vector<8x384xf32>
    %8 = arith.maximumf %6, %7 : vector<8x384xf32>
    %9 = arith.maximumf %5, %8 : vector<8x384xf32>
    %c0_3 = arith.constant 0 : index
    %c0_4 = arith.constant 0 : index
    %10 = vector.load %arg3[%c0_3, %c0_4] : memref<1x384xf32, #tpu.memory_space<vmem>>, vector<1x384xf32>
    %11 = vector.broadcast %10 : vector<1x384xf32> to vector<8x384xf32>
    %12 = arith.addf %9, %11 : vector<8x384xf32>
    %cst_5 = arith.constant 0.000000e+00 : f32
    %13 = vector.broadcast %cst_5 : f32 to vector<8x384xf32>
    %14 = arith.maximumf %12, %13 : vector<8x384xf32>
    %c0_6 = arith.constant 0 : index
    %c0_7 = arith.constant 0 : index
    %15 = vector.load %arg4[%c0_6, %c0_7] : memref<384x768xf32, #tpu.memory_space<vmem>>, vector<384x768xf32>
    %cst_8 = arith.constant dense<0.000000e+00> : vector<8x768xf32>
    %16 = tpu.matmul %14, %15, %cst_8 {dimension_numbers = #tpu.dot_dimension_numbers<[1], [0], [0], [1], [0, 0, 1, 1], [], []>} : vector<8x384xf32>, vector<384x768xf32>, vector<8x768xf32> -> vector<8x768xf32>
    %c0_9 = arith.constant 0 : index
    %c0_10 = arith.constant 0 : index
    %17 = vector.load %arg5[%c0_9, %c0_10] : memref<1x768xf32, #tpu.memory_space<vmem>>, vector<1x768xf32>
    %18 = vector.broadcast %17 : vector<1x768xf32> to vector<8x768xf32>
    %19 = arith.addf %16, %18 : vector<8x768xf32>
    %cst_11 = arith.constant 0.000000e+00 : f32
    %20 = vector.broadcast %cst_11 : f32 to vector<8x768xf32>
    %21 = arith.maximumf %19, %20 : vector<8x768xf32>
    %c0_12 = arith.constant 0 : index
    %c0_13 = arith.constant 0 : index
    %22 = vector.load %arg6[%c0_12, %c0_13] : memref<768x1536xf32, #tpu.memory_space<vmem>>, vector<768x1536xf32>
    %cst_14 = arith.constant dense<0.000000e+00> : vector<8x1536xf32>
    %23 = tpu.matmul %21, %22, %cst_14 {dimension_numbers = #tpu.dot_dimension_numbers<[1], [0], [0], [1], [0, 0, 1, 1], [], []>} : vector<8x768xf32>, vector<768x1536xf32>, vector<8x1536xf32> -> vector<8x1536xf32>
    %c0_15 = arith.constant 0 : index
    %c0_16 = arith.constant 0 : index
    %24 = vector.load %arg7[%c0_15, %c0_16] : memref<1x1536xf32, #tpu.memory_space<vmem>>, vector<1x1536xf32>
    %25 = vector.broadcast %24 : vector<1x1536xf32> to vector<8x1536xf32>
    %26 = arith.addf %23, %25 : vector<8x1536xf32>
    %cst_17 = arith.constant 0.000000e+00 : f32
    %27 = vector.broadcast %cst_17 : f32 to vector<8x1536xf32>
    %28 = arith.maximumf %26, %27 : vector<8x1536xf32>
    %c0_18 = arith.constant 0 : index
    %c0_19 = arith.constant 0 : index
    %29 = vector.load %arg8[%c0_18, %c0_19] : memref<1536x256xf32, #tpu.memory_space<vmem>>, vector<1536x256xf32>
    %cst_20 = arith.constant dense<0.000000e+00> : vector<8x256xf32>
    %30 = tpu.matmul %28, %29, %cst_20 {dimension_numbers = #tpu.dot_dimension_numbers<[1], [0], [0], [1], [0, 0, 1, 1], [], []>} : vector<8x1536xf32>, vector<1536x256xf32>, vector<8x256xf32> -> vector<8x256xf32>
    %c0_21 = arith.constant 0 : index
    %c0_22 = arith.constant 0 : index
    %31 = vector.load %arg9[%c0_21, %c0_22] : memref<1x256xf32, #tpu.memory_space<vmem>>, vector<1x256xf32>
    %32 = vector.broadcast %31 : vector<1x256xf32> to vector<8x256xf32>
    %33 = arith.addf %30, %32 : vector<8x256xf32>
    %c0_23 = arith.constant 0 : index
    %c0_24 = arith.constant 0 : index
    %34 = vector.load %arg10[%c0_23, %c0_24] : memref<8x256xf32, #tpu.memory_space<vmem>>, vector<8x256xf32>
    tpu.vector_store %arg10[%c0_23, %c0_24], %33 {strides = array<i32>} : memref<8x256xf32, #tpu.memory_space<vmem>>, vector<8x256xf32>,
    return
  }
  func.func @transform_0(%arg0: i32) -> (i32, i32) {
    %c0_i32 = arith.constant 0 : i32
    %c0_i32_0 = arith.constant 0 : i32
    return %arg0, %c0_i32 : i32, i32
  }
  func.func @transform_1(%arg0: i32) -> (i32, i32) {
    %c0_i32 = arith.constant 0 : i32
    %c0_i32_0 = arith.constant 0 : i32
    %c0_i32_1 = arith.constant 0 : i32
    return %c0_i32, %c0_i32_0 : i32, i32
  }
  func.func @transform_2(%arg0: i32) -> (i32, i32) {
    %c0_i32 = arith.constant 0 : i32
    %c0_i32_0 = arith.constant 0 : i32
    %c0_i32_1 = arith.constant 0 : i32
    return %c0_i32, %c0_i32_0 : i32, i32
  }
  func.func @transform_3(%arg0: i32) -> (i32, i32) {
    %c0_i32 = arith.constant 0 : i32
    %c0_i32_0 = arith.constant 0 : i32
    %c0_i32_1 = arith.constant 0 : i32
    return %c0_i32, %c0_i32_0 : i32, i32
  }
  func.func @transform_4(%arg0: i32) -> (i32, i32) {
    %c0_i32 = arith.constant 0 : i32
    %c0_i32_0 = arith.constant 0 : i32
    %c0_i32_1 = arith.constant 0 : i32
    return %c0_i32, %c0_i32_0 : i32, i32
  }
  func.func @transform_5(%arg0: i32) -> (i32, i32) {
    %c0_i32 = arith.constant 0 : i32
    %c0_i32_0 = arith.constant 0 : i32
    %c0_i32_1 = arith.constant 0 : i32
    return %c0_i32, %c0_i32_0 : i32, i32
  }
  func.func @transform_6(%arg0: i32) -> (i32, i32) {
    %c0_i32 = arith.constant 0 : i32
    %c0_i32_0 = arith.constant 0 : i32
    %c0_i32_1 = arith.constant 0 : i32
    return %c0_i32, %c0_i32_0 : i32, i32
  }
  func.func @transform_7(%arg0: i32) -> (i32, i32) {
    %c0_i32 = arith.constant 0 : i32
    %c0_i32_0 = arith.constant 0 : i32
    %c0_i32_1 = arith.constant 0 : i32
    return %c0_i32, %c0_i32_0 : i32, i32
  }
  func.func @transform_8(%arg0: i32) -> (i32, i32) {
    %c0_i32 = arith.constant 0 : i32
    %c0_i32_0 = arith.constant 0 : i32
    %c0_i32_1 = arith.constant 0 : i32
    return %c0_i32, %c0_i32_0 : i32, i32
  }
  func.func @transform_9(%arg0: i32) -> (i32, i32) {
    %c0_i32 = arith.constant 0 : i32
    %c0_i32_0 = arith.constant 0 : i32
    return %arg0, %c0_i32 : i32, i32
  }
}

</mosaic_0001>

<llo_original>
// kernel: hourglass_forward.1
$region0: #{hourglass_forward.1}
  #allocation0 [shape = 'u32[]', space=smem, size = 0x4, offset = 0x4, fixed_abs, tag = 'smem constant byte address 0x4 - core index']
  #allocation1 [shape = 'u32[144,128]{1,0:T(1,128)}', space=vmem, size = 0x12000, scoped, tag = 'internal scratch']
  %s0 = inlined_call_operand.vmem [shape: f32[8,768], index: 0, kind: input, shape index: {}]
  %s1 = inlined_call_operand.hbm [shape: f32[768,1536], index: 1, kind: input, shape index: {}]
  %s2 = inlined_call_operand.hbm [shape: f32[1,384], index: 2, kind: input, shape index: {}]
  %s3 = inlined_call_operand.hbm [shape: f32[384,768], index: 3, kind: input, shape index: {}]
  %s4 = inlined_call_operand.hbm [shape: f32[1,768], index: 4, kind: input, shape index: {}]
  %s5 = inlined_call_operand.hbm [shape: f32[768,1536], index: 5, kind: input, shape index: {}]
  %s6 = inlined_call_operand.hbm [shape: f32[1,1536], index: 6, kind: input, shape index: {}]
  %s7 = inlined_call_operand.hbm [shape: f32[1536,256], index: 7, kind: input, shape index: {}]
  %s8 = inlined_call_operand.hbm [shape: f32[1,256], index: 8, kind: input, shape index: {}]
  %s9 = inlined_call_operand.vmem [shape: f32[8,256], index: 9, kind: output, shape index: {}]
  %s10 = sld [smem:[#allocation0]]
  $region78: #{hourglass_forward.1} parent=0
    _
  %s12 = ssub.s32 1, %s10
  %s13 = scalar_select 0, %s12, %s10
  $region1: #{hourglass_forward.1} parent=0
    #allocation2 [shape = 'u8[4718592]{0}', space=vmem, size = 0x480000, scoped, tag = 'input window, operand 1, single buffered']
    #allocation3 [shape = 's32[1]{0}', space=sflag, size = 0x4, scoped, tag = 'scoped memory for hourglass_forward.1']
    #allocation4 [shape = 'u8[1536]{0}', space=vmem, size = 0x800, scoped, tag = 'input window, operand 2, single buffered']
    #allocation5 [shape = 's32[1]{0}', space=sflag, size = 0x4, scoped, tag = 'scoped memory for hourglass_forward.1']
    #allocation6 [shape = 'u8[1179648]{0}', space=vmem, size = 0x120000, scoped, tag = 'input window, operand 3, single buffered']
    #allocation7 [shape = 'u8[3072]{0}', space=vmem, size = 0xc00, scoped, tag = 'input window, operand 4, single buffered']
    #allocation8 [shape = 's32[1]{0}', space=sflag, size = 0x4, scoped, tag = 'scoped memory for hourglass_forward.1']
    #allocation9 [shape = 'u8[4718592]{0}', space=vmem, size = 0x480000, scoped, tag = 'input window, operand 5, single buffered']
    #allocation10 [shape = 'u8[6144]{0}', space=vmem, size = 0x1800, scoped, tag = 'input window, operand 6, single buffered']
    #allocation11 [shape = 's32[1]{0}', space=sflag, size = 0x4, scoped, tag = 'scoped memory for hourglass_forward.1']
    #allocation12 [shape = 'u8[1572864]{0}', space=vmem, size = 0x180000, scoped, tag = 'input window, operand 7, single buffered']
    #allocation13 [shape = 'u8[1024]{0}', space=vmem, size = 0x400, scoped, tag = 'input window, operand 8, single buffered']
    #allocation14 [shape = 's32[1]{0}', space=sflag, size = 0x4, scoped, tag = 'scoped memory for hourglass_forward.1']
    %14 = vsyncpa [#allocation3], 0
    %15 = vsyncpa [#allocation5], 0
    %16 = vsyncpa [#allocation8], 0
    %17 = vsyncpa [#allocation11], 0
    %18 = vsyncpa [#allocation14], 0
    // Predicated region
    $region2: #{hourglass_forward.1} parent=1 // pred_check
      _
    $region3: #{hourglass_forward.1} parent=1 // pred_check_branch
      %20 = sbr.rel (0) target = $region5
    $region4: #{hourglass_forward.1} parent=1 // pred_region
      _
    $region5: #{hourglass_forward.1} parent=1 // pred_fallthru
      _
    // Predicated region
    $region6: #{hourglass_forward.1} parent=1 // pred_check
      _
    $region7: #{hourglass_forward.1} parent=1 // pred_check_branch
      %22 = sbr.rel (0) target = $region9
    $region8: #{hourglass_forward.1} parent=1 // pred_region
      %s24 = ssub.s32 147456, 147456
      %25 = vsyncadd [#allocation3], %s24
      %s26 = sshll.u32 [#allocation2], 4
      %s27 = int_to_ptr.vmem [resolvable:$true] %s26
      %32 = dma.hbm_to_vmem [thread:$0]  %s1, 147456, %s27, [#allocation3], 1536, 1536, 96
    $region9: #{hourglass_forward.1} parent=1 // pred_fallthru
      _
    // Predicated region
    $region10: #{hourglass_forward.1} parent=1 // pred_check
      _
    $region11: #{hourglass_forward.1} parent=1 // pred_check_branch
      %34 = sbr.rel (0) target = $region13
    $region12: #{hourglass_forward.1} parent=1 // pred_region
      %s36 = ssub.s32 48, 48
      %37 = vsyncadd [#allocation5], %s36
      %s39 = sshll.u32 [#allocation4], 4
      %s40 = int_to_ptr.vmem [resolvable:$true] %s39
      %42 = dma.hbm_to_vmem [thread:$0]  %s2, 48, %s40, [#allocation5]
    $region13: #{hourglass_forward.1} parent=1 // pred_fallthru
      _
    // Predicated region
    $region14: #{hourglass_forward.1} parent=1 // pred_check
      _
    $region15: #{hourglass_forward.1} parent=1 // pred_check_branch
      %44 = sbr.rel (0) target = $region17
    $region16: #{hourglass_forward.1} parent=1 // pred_region
      %s46 = ssub.s32 36864, 36864
      %47 = vsyncadd [#allocation5], %s46
      %s48 = sshll.u32 [#allocation6], 4
      %s49 = int_to_ptr.vmem [resolvable:$true] %s48
      %54 = dma.hbm_to_vmem [thread:$0]  %s3, 36864, %s49, [#allocation5], 768, 768, 48
    $region17: #{hourglass_forward.1} parent=1 // pred_fallthru
      _
    // Predicated region
    $region18: #{hourglass_forward.1} parent=1 // pred_check
      _
    $region19: #{hourglass_forward.1} parent=1 // pred_check_branch
      %56 = sbr.rel (0) target = $region21
    $region20: #{hourglass_forward.1} parent=1 // pred_region
      %s58 = ssub.s32 96, 96
      %59 = vsyncadd [#allocation8], %s58
      %s61 = sshll.u32 [#allocation7], 4
      %s62 = int_to_ptr.vmem [resolvable:$true] %s61
      %64 = dma.hbm_to_vmem [thread:$0]  %s4, 96, %s62, [#allocation8]
    $region21: #{hourglass_forward.1} parent=1 // pred_fallthru
      _
    // Predicated region
    $region22: #{hourglass_forward.1} parent=1 // pred_check
      _
    $region23: #{hourglass_forward.1} parent=1 // pred_check_branch
      %66 = sbr.rel (0) target = $region25
    $region24: #{hourglass_forward.1} parent=1 // pred_region
      %s68 = ssub.s32 147456, 147456
      %69 = vsyncadd [#allocation8], %s68
      %s70 = sshll.u32 [#allocation9], 4
      %s71 = int_to_ptr.vmem [resolvable:$true] %s70
      %76 = dma.hbm_to_vmem [thread:$0]  %s5, 147456, %s71, [#allocation8], 1536, 1536, 96
    $region25: #{hourglass_forward.1} parent=1 // pred_fallthru
      _
    // Predicated region
    $region26: #{hourglass_forward.1} parent=1 // pred_check
      _
    $region27: #{hourglass_forward.1} parent=1 // pred_check_branch
      %78 = sbr.rel (0) target = $region29
    $region28: #{hourglass_forward.1} parent=1 // pred_region
      %s80 = ssub.s32 192, 192
      %81 = vsyncadd [#allocation11], %s80
      %s83 = sshll.u32 [#allocation10], 4
      %s84 = int_to_ptr.vmem [resolvable:$true] %s83
      %86 = dma.hbm_to_vmem [thread:$0]  %s6, 192, %s84, [#allocation11]
    $region29: #{hourglass_forward.1} parent=1 // pred_fallthru
      _
    // Predicated region
    $region30: #{hourglass_forward.1} parent=1 // pred_check
      _
    $region31: #{hourglass_forward.1} parent=1 // pred_check_branch
      %88 = sbr.rel (0) target = $region33
    $region32: #{hourglass_forward.1} parent=1 // pred_region
      %s90 = ssub.s32 49152, 49152
      %91 = vsyncadd [#allocation11], %s90
      %s92 = sshll.u32 [#allocation12], 4
      %s93 = int_to_ptr.vmem [resolvable:$true] %s92
      %98 = dma.hbm_to_vmem [thread:$0]  %s7, 49152, %s93, [#allocation11], 256, 256, 16
    $region33: #{hourglass_forward.1} parent=1 // pred_fallthru
      _
    // Predicated region
    $region34: #{hourglass_forward.1} parent=1 // pred_check
      _
    $region35: #{hourglass_forward.1} parent=1 // pred_check_branch
      %100 = sbr.rel (0) target = $region37
    $region36: #{hourglass_forward.1} parent=1 // pred_region
      %s102 = ssub.s32 32, 32
      %103 = vsyncadd [#allocation14], %s102
      %s105 = sshll.u32 [#allocation13], 4
      %s106 = int_to_ptr.vmem [resolvable:$true] %s105
      %108 = dma.hbm_to_vmem [thread:$0]  %s8, 32, %s106, [#allocation14]
    $region37: #{hourglass_forward.1} parent=1 // pred_fallthru
      _
    // Predicated region
    $region38: #{hourglass_forward.1} parent=1 // pred_check
      _
    $region39: #{hourglass_forward.1} parent=1 // pred_check_branch
      %110 = sbr.rel (0) target = $region41
    $region40: #{hourglass_forward.1} parent=1 // pred_region
      %111 = dma.done [#allocation3], 147456
    $region41: #{hourglass_forward.1} parent=1 // pred_fallthru
      _
    // Predicated region
    $region42: #{hourglass_forward.1} parent=1 // pred_check
      _
    $region43: #{hourglass_forward.1} parent=1 // pred_check_branch
      %113 = sbr.rel (0) target = $region45
    $region44: #{hourglass_forward.1} parent=1 // pred_region
      %114 = dma.done [#allocation5], 48
    $region45: #{hourglass_forward.1} parent=1 // pred_fallthru
      _
    // Predicated region
    $region46: #{hourglass_forward.1} parent=1 // pred_check
      _
    $region47: #{hourglass_forward.1} parent=1 // pred_check_branch
      %116 = sbr.rel (0) target = $region49
    $region48: #{hourglass_forward.1} parent=1 // pred_region
      %117 = dma.done [#allocation5], 36864
    $region49: #{hourglass_forward.1} parent=1 // pred_fallthru
      _
    // Predicated region
    $region50: #{hourglass_forward.1} parent=1 // pred_check
      _
    $region51: #{hourglass_forward.1} parent=1 // pred_check_branch
      %119 = sbr.rel (0) target = $region53
    $region52: #{hourglass_forward.1} parent=1 // pred_region
      %120 = dma.done [#allocation8], 96
    $region53: #{hourglass_forward.1} parent=1 // pred_fallthru
      _
    // Predicated region
    $region54: #{hourglass_forward.1} parent=1 // pred_check
      _
    $region55: #{hourglass_forward.1} parent=1 // pred_check_branch
      %122 = sbr.rel (0) target = $region57
    $region56: #{hourglass_forward.1} parent=1 // pred_region
      %123 = dma.done [#allocation8], 147456
    $region57: #{hourglass_forward.1} parent=1 // pred_fallthru
      _
    // Predicated region
    $region58: #{hourglass_forward.1} parent=1 // pred_check
      _
    $region59: #{hourglass_forward.1} parent=1 // pred_check_branch
      %125 = sbr.rel (0) target = $region61
    $region60: #{hourglass_forward.1} parent=1 // pred_region
      %126 = dma.done [#allocation11], 192
    $region61: #{hourglass_forward.1} parent=1 // pred_fallthru
      _
    // Predicated region
    $region62: #{hourglass_forward.1} parent=1 // pred_check
      _
    $region63: #{hourglass_forward.1} parent=1 // pred_check_branch
      %128 = sbr.rel (0) target = $region65
    $region64: #{hourglass_forward.1} parent=1 // pred_region
      %129 = dma.done [#allocation11], 49152
    $region65: #{hourglass_forward.1} parent=1 // pred_fallthru
      _
    // Predicated region
    $region66: #{hourglass_forward.1} parent=1 // pred_check
      _
    $region67: #{hourglass_forward.1} parent=1 // pred_check_branch
      %131 = sbr.rel (0) target = $region69
    $region68: #{hourglass_forward.1} parent=1 // pred_region
      %132 = dma.done [#allocation14], 32
    $region69: #{hourglass_forward.1} parent=1 // pred_fallthru
      _
    %v133 = vld [vmem:[%s0] sm:$0xff]
    %v134 = vld [vmem:[%s0 + $0x8] sm:$0xff]
    %v135 = vld [vmem:[%s0 + $0x10] sm:$0xff]
    %v136 = vld [vmem:[%s0 + $0x18] sm:$0xff]
    %v137 = vld [vmem:[%s0 + $0x20] sm:$0xff]
    %v138 = vld [vmem:[%s0 + $0x28] sm:$0xff]
    %v139 = vld [vmem:[#allocation2] sm:$0xff]
    %v140 = vld [vmem:[#allocation2 + $0x8] sm:$0xff]
    %v141 = vld [vmem:[#allocation2 + $0x10] sm:$0xff]
    %v142 = vld [vmem:[#allocation2 + $0x18] sm:$0xff]
    %v143 = vld [vmem:[#allocation2 + $0x20] sm:$0xff]
    %v144 = vld [vmem:[#allocation2 + $0x28] sm:$0xff]
    %v145 = vld [vmem:[#allocation2 + $0x30] sm:$0xff]
    %v146 = vld [vmem:[#allocation2 + $0x38] sm:$0xff]
    %v147 = vld [vmem:[#allocation2 + $0x40] sm:$0xff]
    %v148 = vld [vmem:[#allocation2 + $0x48] sm:$0xff]
    %v149 = vld [vmem:[#allocation2 + $0x50] sm:$0xff]
    %v150 = vld [vmem:[#allocation2 + $0x58] sm:$0xff]
    %v151 = vld [vmem:[#allocation2 + $0x60] sm:$0xff]
    %v152 = vld [vmem:[#allocation2 + $0x68] sm:$0xff]
    %v153 = vld [vmem:[#allocation2 + $0x70] sm:$0xff]
    %v154 = vld [vmem:[#allocation2 + $0x78] sm:$0xff]
    %v155 = vld [vmem:[#allocation2 + $0x80] sm:$0xff]
    %v156 = vld [vmem:[#allocation2 + $0x88] sm:$0xff]
    %v157 = vld [vmem:[#allocation2 + $0x90] sm:$0xff]
    %v158 = vld [vmem:[#allocation2 + $0x98] sm:$0xff]
    %v159 = vld [vmem:[#allocation2 + $0xa0] sm:$0xff]
    %v160 = vld [vmem:[#allocation2 + $0xa8] sm:$0xff]
    %v161 = vld [vmem:[#allocation2 + $0xb0] sm:$0xff]
    %v162 = vld [vmem:[#allocation2 + $0xb8] sm:$0xff]
    %v163 = vld [vmem:[#allocation2 + $0xc0] sm:$0xff]
    %v164 = vld [vmem:[#allocation2 + $0xc8] sm:$0xff]
    %v165 = vld [vmem:[#allocation2 + $0xd0] sm:$0xff]
    %v166 = vld [vmem:[#allocation2 + $0xd8] sm:$0xff]
    %v167 = vld [vmem:[#allocation2 + $0xe0] sm:$0xff]
    %v168 = vld [vmem:[#allocation2 + $0xe8] sm:$0xff]
    %v169 = vld [vmem:[#allocation2 + $0xf0] sm:$0xff]
    %v170 = vld [vmem:[#allocation2 + $0xf8] sm:$0xff]
    %v171 = vld [vmem:[#allocation2 + $0x100] sm:$0xff]
    %v172 = vld [vmem:[#allocation2 + $0x108] sm:$0xff]
    %v173 = vld [vmem:[#allocation2 + $0x110] sm:$0xff]
    %v174 = vld [vmem:[#allocation2 + $0x118] sm:$0xff]
    %v175 = vld [vmem:[#allocation2 + $0x120] sm:$0xff]
    %v176 = vld [vmem:[#allocation2 + $0x128] sm:$0xff]
    %v177 = vld [vmem:[#allocation2 + $0x130] sm:$0xff]
    %v178 = vld [vmem:[#allocation2 + $0x138] sm:$0xff]
    %v179 = vld [vmem:[#allocation2 + $0x140] sm:$0xff]
    %v180 = vld [vmem:[#allocation2 + $0x148] sm:$0xff]
    %v181 = vld [vmem:[#allocation2 + $0x150] sm:$0xff]
    %v182 = vld [vmem:[#allocation2 + $0x158] sm:$0xff]
    %v183 = vld [vmem:[#allocation2 + $0x160] sm:$0xff]
    %v184 = vld [vmem:[#allocation2 + $0x168] sm:$0xff]
    %v185 = vld [vmem:[#allocation2 + $0x170] sm:$0xff]
    %v186 = vld [vmem:[#allocation2 + $0x178] sm:$0xff]
    %v187 = vld [vmem:[#allocation2 + $0x180] sm:$0xff]
    %v188 = vld [vmem:[#allocation2 + $0x188] sm:$0xff]
    %v189 = vld [vmem:[#allocation2 + $0x190] sm:$0xff]
    %v190 = vld [vmem:[#allocation2 + $0x198] sm:$0xff]
    %v191 = vld [vmem:[#allocation2 + $0x1a0] sm:$0xff]
    %v192 = vld [vmem:[#allocation2 + $0x1a8] sm:$0xff]
    %v193 = vld [vmem:[#allocation2 + $0x1b0] sm:$0xff]
    %v194 = vld [vmem:[#allocation2 + $0x1b8] sm:$0xff]
    %v195 = vld [vmem:[#allocation2 + $0x1c0] sm:$0xff]
    %v196 = vld [vmem:[#allocation2 + $0x1c8] sm:$0xff]
    %v197 = vld [vmem:[#allocation2 + $0x1d0] sm:$0xff]
    %v198 = vld [vmem:[#allocation2 + $0x1d8] sm:$0xff]
    %v199 = vld [vmem:[#allocation2 + $0x1e0] sm:$0xff]
    %v200 = vld [vmem:[#allocation2 + $0x1e8] sm:$0xff]
    %v201 = vld [vmem:[#allocation2 + $0x1f0] sm:$0xff]
    %v202 = vld [vmem:[#allocation2 + $0x1f8] sm:$0xff]
    %v203 = vld [vmem:[#allocation2 + $0x200] sm:$0xff]
    %v204 = vld [vmem:[#allocation2 + $0x208] sm:$0xff]
    %v205 = vld [vmem:[#allocation2 + $0x210] sm:$0xff]
    %v206 = vld [vmem:[#allocation2 + $0x218] sm:$0xff]
    %v207 = vld [vmem:[#allocation2 + $0x220] sm:$0xff]
    %v208 = vld [vmem:[#allocation2 + $0x228] sm:$0xff]
    %v209 = vld [vmem:[#allocation2 + $0x230] sm:$0xff]
    %v210 = vld [vmem:[#allocation2 + $0x238] sm:$0xff]
    %v211 = vld [vmem:[#allocation2 + $0x240] sm:$0xff]
    %v212 = vld [vmem:[#allocation2 + $0x248] sm:$0xff]
    %v213 = vld [vmem:[#allocation2 + $0x250] sm:$0xff]
    %v214 = vld [vmem:[#allocation2 + $0x258] sm:$0xff]
    %v215 = vld [vmem:[#allocation2 + $0x260] sm:$0xff]
    %v216 = vld [vmem:[#allocation2 + $0x268] sm:$0xff]
    %v217 = vld [vmem:[#allocation2 + $0x270] sm:$0xff]
    %v218 = vld [vmem:[#allocation2 + $0x278] sm:$0xff]
    %v219 = vld [vmem:[#allocation2 + $0x280] sm:$0xff]
    %v220 = vld [vmem:[#allocation2 + $0x288] sm:$0xff]
    %v221 = vld [vmem:[#allocation2 + $0x290] sm:$0xff]
    %v222 = vld [vmem:[#allocation2 + $0x298] sm:$0xff]
    %v223 = vld [vmem:[#allocation2 + $0x2a0] sm:$0xff]
    %v224 = vld [vmem:[#allocation2 + $0x2a8] sm:$0xff]
    %v225 = vld [vmem:[#allocation2 + $0x2b0] sm:$0xff]
    %v226 = vld [vmem:[#allocation2 + $0x2b8] sm:$0xff]
    %v227 = vld [vmem:[#allocation2 + $0x2c0] sm:$0xff]
    %v228 = vld [vmem:[#allocation2 + $0x2c8] sm:$0xff]
    %v229 = vld [vmem:[#allocation2 + $0x2d0] sm:$0xff]
    %v230 = vld [vmem:[#allocation2 + $0x2d8] sm:$0xff]
    %v231 = vld [vmem:[#allocation2 + $0x2e0] sm:$0xff]
    %v232 = vld [vmem:[#allocation2 + $0x2e8] sm:$0xff]
    %v233 = vld [vmem:[#allocation2 + $0x2f0] sm:$0xff]
    %v234 = vld [vmem:[#allocation2 + $0x2f8] sm:$0xff]
    %v235 = vld [vmem:[#allocation2 + $0x300] sm:$0xff]
    %v236 = vld [vmem:[#allocation2 + $0x308] sm:$0xff]
    %v237 = vld [vmem:[#allocation2 + $0x310] sm:$0xff]
    %v238 = vld [vmem:[#allocation2 + $0x318] sm:$0xff]
    %v239 = vld [vmem:[#allocation2 + $0x320] sm:$0xff]
    %v240 = vld [vmem:[#allocation2 + $0x328] sm:$0xff]
    %v241 = vld [vmem:[#allocation2 + $0x330] sm:$0xff]
    %v242 = vld [vmem:[#allocation2 + $0x338] sm:$0xff]
    %v243 = vld [vmem:[#allocation2 + $0x340] sm:$0xff]
    %v244 = vld [vmem:[#allocation2 + $0x348] sm:$0xff]
    %v245 = vld [vmem:[#allocation2 + $0x350] sm:$0xff]
    %v246 = vld [vmem:[#allocation2 + $0x358] sm:$0xff]
    %v247 = vld [vmem:[#allocation2 + $0x360] sm:$0xff]
    %v248 = vld [vmem:[#allocation2 + $0x368] sm:$0xff]
    %v249 = vld [vmem:[#allocation2 + $0x370] sm:$0xff]
    %v250 = vld [vmem:[#allocation2 + $0x378] sm:$0xff]
    %v251 = vld [vmem:[#allocation2 + $0x380] sm:$0xff]
    %v252 = vld [vmem:[#allocation2 + $0x388] sm:$0xff]
    %v253 = vld [vmem:[#allocation2 + $0x390] sm:$0xff]
    %v254 = vld [vmem:[#allocation2 + $0x398] sm:$0xff]
    %v255 = vld [vmem:[#allocation2 + $0x3a0] sm:$0xff]
    %v256 = vld [vmem:[#allocation2 + $0x3a8] sm:$0xff]
    %v257 = vld [vmem:[#allocation2 + $0x3b0] sm:$0xff]
    %v258 = vld [vmem:[#allocation2 + $0x3b8] sm:$0xff]
    %v259 = vld [vmem:[#allocation2 + $0x3c0] sm:$0xff]
    %v260 = vld [vmem:[#allocation2 + $0x3c8] sm:$0xff]
    %v261 = vld [vmem:[#allocation2 + $0x3d0] sm:$0xff]
    %v262 = vld [vmem:[#allocation2 + $0x3d8] sm:$0xff]
    %v263 = vld [vmem:[#allocation2 + $0x3e0] sm:$0xff]
    %v264 = vld [vmem:[#allocation2 + $0x3e8] sm:$0xff]
    %v265 = vld [vmem:[#allocation2 + $0x3f0] sm:$0xff]
    %v266 = vld [vmem:[#allocation2 + $0x3f8] sm:$0xff]
    %v267 = vld [vmem:[#allocation2 + $0x400] sm:$0xff]
    %v268 = vld [vmem:[#allocation2 + $0x408] sm:$0xff]
    %v269 = vld [vmem:[#allocation2 + $0x410] sm:$0xff]
    %v270 = vld [vmem:[#allocation2 + $0x418] sm:$0xff]
    %v271 = vld [vmem:[#allocation2 + $0x420] sm:$0xff]
    %v272 = vld [vmem:[#allocation2 + $0x428] sm:$0xff]
    %v273 = vld [vmem:[#allocation2 + $0x430] sm:$0xff]
    %v274 = vld [vmem:[#allocation2 + $0x438] sm:$0xff]
    %v275 = vld [vmem:[#allocation2 + $0x440] sm:$0xff]
    %v276 = vld [vmem:[#allocation2 + $0x448] sm:$0xff]
    %v277 = vld [vmem:[#allocation2 + $0x450] sm:$0xff]
    %v278 = vld [vmem:[#allocation2 + $0x458] sm:$0xff]
    %v279 = vld [vmem:[#allocation2 + $0x460] sm:$0xff]
    %v280 = vld [vmem:[#allocation2 + $0x468] sm:$0xff]
    %v281 = vld [vmem:[#allocation2 + $0x470] sm:$0xff]
    %v282 = vld [vmem:[#allocation2 + $0x478] sm:$0xff]
    %v283 = vld [vmem:[#allocation2 + $0x480] sm:$0xff]
    %v284 = vld [vmem:[#allocation2 + $0x488] sm:$0xff]
    %v285 = vld [vmem:[#allocation2 + $0x490] sm:$0xff]
    %v286 = vld [vmem:[#allocation2 + $0x498] sm:$0xff]
    %v287 = vld [vmem:[#allocation2 + $0x4a0] sm:$0xff]
    %v288 = vld [vmem:[#allocation2 + $0x4a8] sm:$0xff]
    %v289 = vld [vmem:[#allocation2 + $0x4b0] sm:$0xff]
    %v290 = vld [vmem:[#allocation2 + $0x4b8] sm:$0xff]
    %v291 = vld [vmem:[#allocation2 + $0x4c0] sm:$0xff]
    %v292 = vld [vmem:[#allocation2 + $0x4c8] sm:$0xff]
    %v293 = vld [vmem:[#allocation2 + $0x4d0] sm:$0xff]
    %v294 = vld [vmem:[#allocation2 + $0x4d8] sm:$0xff]
    %v295 = vld [vmem:[#allocation2 + $0x4e0] sm:$0xff]
    %v296 = vld [vmem:[#allocation2 + $0x4e8] sm:$0xff]
    %v297 = vld [vmem:[#allocation2 + $0x4f0] sm:$0xff]
    %v298 = vld [vmem:[#allocation2 + $0x4f8] sm:$0xff]
    %v299 = vld [vmem:[#allocation2 + $0x500] sm:$0xff]
    %v300 = vld [vmem:[#allocation2 + $0x508] sm:$0xff]
    %v301 = vld [vmem:[#allocation2 + $0x510] sm:$0xff]
    %v302 = vld [vmem:[#allocation2 + $0x518] sm:$0xff]
    %v303 = vld [vmem:[#allocation2 + $0x520] sm:$0xff]
    %v304 = vld [vmem:[#allocation2 + $0x528] sm:$0xff]
    %v305 = vld [vmem:[#allocation2 + $0x530] sm:$0xff]
    %v306 = vld [vmem:[#allocation2 + $0x538] sm:$0xff]
    %v307 = vld [vmem:[#allocation2 + $0x540] sm:$0xff]
    %v308 = vld [vmem:[#allocation2 + $0x548] sm:$0xff]
    %v309 = vld [vmem:[#allocation2 + $0x550] sm:$0xff]
    %v310 = vld [vmem:[#allocation2 + $0x558] sm:$0xff]
    %v311 = vld [vmem:[#allocation2 + $0x560] sm:$0xff]
    %v312 = vld [vmem:[#allocation2 + $0x568] sm:$0xff]
    %v313 = vld [vmem:[#allocation2 + $0x570] sm:$0xff]
    %v314 = vld [vmem:[#allocation2 + $0x578] sm:$0xff]
    %v315 = vld [vmem:[#allocation2 + $0x580] sm:$0xff]
    %v316 = vld [vmem:[#allocation2 + $0x588] sm:$0xff]
    %v317 = vld [vmem:[#allocation2 + $0x590] sm:$0xff]
    %v318 = vld [vmem:[#allocation2 + $0x598] sm:$0xff]
    %v319 = vld [vmem:[#allocation2 + $0x5a0] sm:$0xff]
    %v320 = vld [vmem:[#allocation2 + $0x5a8] sm:$0xff]
    %v321 = vld [vmem:[#allocation2 + $0x5b0] sm:$0xff]
    %v322 = vld [vmem:[#allocation2 + $0x5b8] sm:$0xff]
    %v323 = vld [vmem:[#allocation2 + $0x5c0] sm:$0xff]
    %v324 = vld [vmem:[#allocation2 + $0x5c8] sm:$0xff]
    %v325 = vld [vmem:[#allocation2 + $0x5d0] sm:$0xff]
    %v326 = vld [vmem:[#allocation2 + $0x5d8] sm:$0xff]
    %v327 = vld [vmem:[#allocation2 + $0x5e0] sm:$0xff]
    %v328 = vld [vmem:[#allocation2 + $0x5e8] sm:$0xff]
    %v329 = vld [vmem:[#allocation2 + $0x5f0] sm:$0xff]
    %v330 = vld [vmem:[#allocation2 + $0x5f8] sm:$0xff]
    %v331 = vld [vmem:[#allocation2 + $0x600] sm:$0xff]
    %v332 = vld [vmem:[#allocation2 + $0x608] sm:$0xff]
    %v333 = vld [vmem:[#allocation2 + $0x610] sm:$0xff]
    %v334 = vld [vmem:[#allocation2 + $0x618] sm:$0xff]
    %v335 = vld [vmem:[#allocation2 + $0x620] sm:$0xff]
    %v336 = vld [vmem:[#allocation2 + $0x628] sm:$0xff]
    %v337 = vld [vmem:[#allocation2 + $0x630] sm:$0xff]
    %v338 = vld [vmem:[#allocation2 + $0x638] sm:$0xff]
    %v339 = vld [vmem:[#allocation2 + $0x640] sm:$0xff]
    %v340 = vld [vmem:[#allocation2 + $0x648] sm:$0xff]
    %v341 = vld [vmem:[#allocation2 + $0x650] sm:$0xff]
    %v342 = vld [vmem:[#allocation2 + $0x658] sm:$0xff]
    %v343 = vld [vmem:[#allocation2 + $0x660] sm:$0xff]
    %v344 = vld [vmem:[#allocation2 + $0x668] sm:$0xff]
    %v345 = vld [vmem:[#allocation2 + $0x670] sm:$0xff]
    %v346 = vld [vmem:[#allocation2 + $0x678] sm:$0xff]
    %v347 = vld [vmem:[#allocation2 + $0x680] sm:$0xff]
    %v348 = vld [vmem:[#allocation2 + $0x688] sm:$0xff]
    %v349 = vld [vmem:[#allocation2 + $0x690] sm:$0xff]
    %v350 = vld [vmem:[#allocation2 + $0x698] sm:$0xff]
    %v351 = vld [vmem:[#allocation2 + $0x6a0] sm:$0xff]
    %v352 = vld [vmem:[#allocation2 + $0x6a8] sm:$0xff]
    %v353 = vld [vmem:[#allocation2 + $0x6b0] sm:$0xff]
    %v354 = vld [vmem:[#allocation2 + $0x6b8] sm:$0xff]
    %v355 = vld [vmem:[#allocation2 + $0x6c0] sm:$0xff]
    %v356 = vld [vmem:[#allocation2 + $0x6c8] sm:$0xff]
    %v357 = vld [vmem:[#allocation2 + $0x6d0] sm:$0xff]
    %v358 = vld [vmem:[#allocation2 + $0x6d8] sm:$0xff]
    %v359 = vld [vmem:[#allocation2 + $0x6e0] sm:$0xff]
    %v360 = vld [vmem:[#allocation2 + $0x6e8] sm:$0xff]
    %v361 = vld [vmem:[#allocation2 + $0x6f0] sm:$0xff]
    %v362 = vld [vmem:[#allocation2 + $0x6f8] sm:$0xff]
    %v363 = vld [vmem:[#allocation2 + $0x700] sm:$0xff]
    %v364 = vld [vmem:[#allocation2 + $0x708] sm:$0xff]
    %v365 = vld [vmem:[#allocation2 + $0x710] sm:$0xff]
    %v366 = vld [vmem:[#allocation2 + $0x718] sm:$0xff]
    %v367 = vld [vmem:[#allocation2 + $0x720] sm:$0xff]
    %v368 = vld [vmem:[#allocation2 + $0x728] sm:$0xff]
    %v369 = vld [vmem:[#allocation2 + $0x730] sm:$0xff]
    %v370 = vld [vmem:[#allocation2 + $0x738] sm:$0xff]
    %v371 = vld [vmem:[#allocation2 + $0x740] sm:$0xff]
    %v372 = vld [vmem:[#allocation2 + $0x748] sm:$0xff]
    %v373 = vld [vmem:[#allocation2 + $0x750] sm:$0xff]
    %v374 = vld [vmem:[#allocation2 + $0x758] sm:$0xff]
    %v375 = vld [vmem:[#allocation2 + $0x760] sm:$0xff]
    %v376 = vld [vmem:[#allocation2 + $0x768] sm:$0xff]
    %v377 = vld [vmem:[#allocation2 + $0x770] sm:$0xff]
    %v378 = vld [vmem:[#allocation2 + $0x778] sm:$0xff]
    %v379 = vld [vmem:[#allocation2 + $0x780] sm:$0xff]
    %v380 = vld [vmem:[#allocation2 + $0x788] sm:$0xff]
    %v381 = vld [vmem:[#allocation2 + $0x790] sm:$0xff]
    %v382 = vld [vmem:[#allocation2 + $0x798] sm:$0xff]
    %v383 = vld [vmem:[#allocation2 + $0x7a0] sm:$0xff]
    %v384 = vld [vmem:[#allocation2 + $0x7a8] sm:$0xff]
    %v385 = vld [vmem:[#allocation2 + $0x7b0] sm:$0xff]
    %v386 = vld [vmem:[#allocation2 + $0x7b8] sm:$0xff]
    %v387 = vld [vmem:[#allocation2 + $0x7c0] sm:$0xff]
    %v388 = vld [vmem:[#allocation2 + $0x7c8] sm:$0xff]
    %v389 = vld [vmem:[#allocation2 + $0x7d0] sm:$0xff]
    %v390 = vld [vmem:[#allocation2 + $0x7d8] sm:$0xff]
    %v391 = vld [vmem:[#allocation2 + $0x7e0] sm:$0xff]
    %v392 = vld [vmem:[#allocation2 + $0x7e8] sm:$0xff]
    %v393 = vld [vmem:[#allocation2 + $0x7f0] sm:$0xff]
    %v394 = vld [vmem:[#allocation2 + $0x7f8] sm:$0xff]
    %v395 = vld [vmem:[#allocation2 + $0x800] sm:$0xff]
    %v396 = vld [vmem:[#allocation2 + $0x808] sm:$0xff]
    %v397 = vld [vmem:[#allocation2 + $0x810] sm:$0xff]
    %v398 = vld [vmem:[#allocation2 + $0x818] sm:$0xff]
    %v399 = vld [vmem:[#allocation2 + $0x820] sm:$0xff]
    %v400 = vld [vmem:[#allocation2 + $0x828] sm:$0xff]
    %v401 = vld [vmem:[#allocation2 + $0x830] sm:$0xff]
    %v402 = vld [vmem:[#allocation2 + $0x838] sm:$0xff]
    %v403 = vld [vmem:[#allocation2 + $0x840] sm:$0xff]
    %v404 = vld [vmem:[#allocation2 + $0x848] sm:$0xff]
    %v405 = vld [vmem:[#allocation2 + $0x850] sm:$0xff]
    %v406 = vld [vmem:[#allocation2 + $0x858] sm:$0xff]
    %v407 = vld [vmem:[#allocation2 + $0x860] sm:$0xff]
    %v408 = vld [vmem:[#allocation2 + $0x868] sm:$0xff]
    %v409 = vld [vmem:[#allocation2 + $0x870] sm:$0xff]
    %v410 = vld [vmem:[#allocation2 + $0x878] sm:$0xff]
    %v411 = vld [vmem:[#allocation2 + $0x880] sm:$0xff]
    %v412 = vld [vmem:[#allocation2 + $0x888] sm:$0xff]
    %v413 = vld [vmem:[#allocation2 + $0x890] sm:$0xff]
    %v414 = vld [vmem:[#allocation2 + $0x898] sm:$0xff]
    %v415 = vld [vmem:[#allocation2 + $0x8a0] sm:$0xff]
    %v416 = vld [vmem:[#allocation2 + $0x8a8] sm:$0xff]
    %v417 = vld [vmem:[#allocation2 + $0x8b0] sm:$0xff]
    %v418 = vld [vmem:[#allocation2 + $0x8b8] sm:$0xff]
    %v419 = vld [vmem:[#allocation2 + $0x8c0] sm:$0xff]
    %v420 = vld [vmem:[#allocation2 + $0x8c8] sm:$0xff]
    %v421 = vld [vmem:[#allocation2 + $0x8d0] sm:$0xff]
    %v422 = vld [vmem:[#allocation2 + $0x8d8] sm:$0xff]
    %v423 = vld [vmem:[#allocation2 + $0x8e0] sm:$0xff]
    %v424 = vld [vmem:[#allocation2 + $0x8e8] sm:$0xff]
    %v425 = vld [vmem:[#allocation2 + $0x8f0] sm:$0xff]
    %v426 = vld [vmem:[#allocation2 + $0x8f8] sm:$0xff]
    %v427 = vld [vmem:[#allocation2 + $0x900] sm:$0xff]
    %v428 = vld [vmem:[#allocation2 + $0x908] sm:$0xff]
    %v429 = vld [vmem:[#allocation2 + $0x910] sm:$0xff]
    %v430 = vld [vmem:[#allocation2 + $0x918] sm:$0xff]
    %v431 = vld [vmem:[#allocation2 + $0x920] sm:$0xff]
    %v432 = vld [vmem:[#allocation2 + $0x928] sm:$0xff]
    %v433 = vld [vmem:[#allocation2 + $0x930] sm:$0xff]
    %v434 = vld [vmem:[#allocation2 + $0x938] sm:$0xff]
    %v435 = vld [vmem:[#allocation2 + $0x940] sm:$0xff]
    %v436 = vld [vmem:[#allocation2 + $0x948] sm:$0xff]
    %v437 = vld [vmem:[#allocation2 + $0x950] sm:$0xff]
    %v438 = vld [vmem:[#allocation2 + $0x958] sm:$0xff]
    %v439 = vld [vmem:[#allocation2 + $0x960] sm:$0xff]
    %v440 = vld [vmem:[#allocation2 + $0x968] sm:$0xff]
    %v441 = vld [vmem:[#allocation2 + $0x970] sm:$0xff]
    %v442 = vld [vmem:[#allocation2 + $0x978] sm:$0xff]
    %v443 = vld [vmem:[#allocation2 + $0x980] sm:$0xff]
    %v444 = vld [vmem:[#allocation2 + $0x988] sm:$0xff]
    %v445 = vld [vmem:[#allocation2 + $0x990] sm:$0xff]
    %v446 = vld [vmem:[#allocation2 + $0x998] sm:$0xff]
    %v447 = vld [vmem:[#allocation2 + $0x9a0] sm:$0xff]
    %v448 = vld [vmem:[#allocation2 + $0x9a8] sm:$0xff]
    %v449 = vld [vmem:[#allocation2 + $0x9b0] sm:$0xff]
    %v450 = vld [vmem:[#allocation2 + $0x9b8] sm:$0xff]
    %v451 = vld [vmem:[#allocation2 + $0x9c0] sm:$0xff]
    %v452 = vld [vmem:[#allocation2 + $0x9c8] sm:$0xff]
    %v453 = vld [vmem:[#allocation2 + $0x9d0] sm:$0xff]
    %v454 = vld [vmem:[#allocation2 + $0x9d8] sm:$0xff]
    %v455 = vld [vmem:[#allocation2 + $0x9e0] sm:$0xff]
    %v456 = vld [vmem:[#allocation2 + $0x9e8] sm:$0xff]
    %v457 = vld [vmem:[#allocation2 + $0x9f0] sm:$0xff]
    %v458 = vld [vmem:[#allocation2 + $0x9f8] sm:$0xff]
    %v459 = vld [vmem:[#allocation2 + $0xa00] sm:$0xff]
    %v460 = vld [vmem:[#allocation2 + $0xa08] sm:$0xff]
    %v461 = vld [vmem:[#allocation2 + $0xa10] sm:$0xff]
    %v462 = vld [vmem:[#allocation2 + $0xa18] sm:$0xff]
    %v463 = vld [vmem:[#allocation2 + $0xa20] sm:$0xff]
    %v464 = vld [vmem:[#allocation2 + $0xa28] sm:$0xff]
    %v465 = vld [vmem:[#allocation2 + $0xa30] sm:$0xff]
    %v466 = vld [vmem:[#allocation2 + $0xa38] sm:$0xff]
    %v467 = vld [vmem:[#allocation2 + $0xa40] sm:$0xff]
    %v468 = vld [vmem:[#allocation2 + $0xa48] sm:$0xff]
    %v469 = vld [vmem:[#allocation2 + $0xa50] sm:$0xff]
    %v470 = vld [vmem:[#allocation2 + $0xa58] sm:$0xff]
    %v471 = vld [vmem:[#allocation2 + $0xa60] sm:$0xff]
    %v472 = vld [vmem:[#allocation2 + $0xa68] sm:$0xff]
    %v473 = vld [vmem:[#allocation2 + $0xa70] sm:$0xff]
    %v474 = vld [vmem:[#allocation2 + $0xa78] sm:$0xff]
    %v475 = vld [vmem:[#allocation2 + $0xa80] sm:$0xff]
    %v476 = vld [vmem:[#allocation2 + $0xa88] sm:$0xff]
    %v477 = vld [vmem:[#allocation2 + $0xa90] sm:$0xff]
    %v478 = vld [vmem:[#allocation2 + $0xa98] sm:$0xff]
    %v479 = vld [vmem:[#allocation2 + $0xaa0] sm:$0xff]
    %v480 = vld [vmem:[#allocation2 + $0xaa8] sm:$0xff]
    %v481 = vld [vmem:[#allocation2 + $0xab0] sm:$0xff]
    %v482 = vld [vmem:[#allocation2 + $0xab8] sm:$0xff]
    %v483 = vld [vmem:[#allocation2 + $0xac0] sm:$0xff]
    %v484 = vld [vmem:[#allocation2 + $0xac8] sm:$0xff]
    %v485 = vld [vmem:[#allocation2 + $0xad0] sm:$0xff]
    %v486 = vld [vmem:[#allocation2 + $0xad8] sm:$0xff]
    %v487 = vld [vmem:[#allocation2 + $0xae0] sm:$0xff]
    %v488 = vld [vmem:[#allocation2 + $0xae8] sm:$0xff]
    %v489 = vld [vmem:[#allocation2 + $0xaf0] sm:$0xff]
    %v490 = vld [vmem:[#allocation2 + $0xaf8] sm:$0xff]
    %v491 = vld [vmem:[#allocation2 + $0xb00] sm:$0xff]
    %v492 = vld [vmem:[#allocation2 + $0xb08] sm:$0xff]
    %v493 = vld [vmem:[#allocation2 + $0xb10] sm:$0xff]
    %v494 = vld [vmem:[#allocation2 + $0xb18] sm:$0xff]
    %v495 = vld [vmem:[#allocation2 + $0xb20] sm:$0xff]
    %v496 = vld [vmem:[#allocation2 + $0xb28] sm:$0xff]
    %v497 = vld [vmem:[#allocation2 + $0xb30] sm:$0xff]
    %v498 = vld [vmem:[#allocation2 + $0xb38] sm:$0xff]
    %v499 = vld [vmem:[#allocation2 + $0xb40] sm:$0xff]
    %v500 = vld [vmem:[#allocation2 + $0xb48] sm:$0xff]
    %v501 = vld [vmem:[#allocation2 + $0xb50] sm:$0xff]
    %v502 = vld [vmem:[#allocation2 + $0xb58] sm:$0xff]
    %v503 = vld [vmem:[#allocation2 + $0xb60] sm:$0xff]
    %v504 = vld [vmem:[#allocation2 + $0xb68] sm:$0xff]
    %v505 = vld [vmem:[#allocation2 + $0xb70] sm:$0xff]
    %v506 = vld [vmem:[#allocation2 + $0xb78] sm:$0xff]
    %v507 = vld [vmem:[#allocation2 + $0xb80] sm:$0xff]
    %v508 = vld [vmem:[#allocation2 + $0xb88] sm:$0xff]
    %v509 = vld [vmem:[#allocation2 + $0xb90] sm:$0xff]
    %v510 = vld [vmem:[#allocation2 + $0xb98] sm:$0xff]
    %v511 = vld [vmem:[#allocation2 + $0xba0] sm:$0xff]
    %v512 = vld [vmem:[#allocation2 + $0xba8] sm:$0xff]
    %v513 = vld [vmem:[#allocation2 + $0xbb0] sm:$0xff]
    %v514 = vld [vmem:[#allocation2 + $0xbb8] sm:$0xff]
    %v515 = vld [vmem:[#allocation2 + $0xbc0] sm:$0xff]
    %v516 = vld [vmem:[#allocation2 + $0xbc8] sm:$0xff]
    %v517 = vld [vmem:[#allocation2 + $0xbd0] sm:$0xff]
    %v518 = vld [vmem:[#allocation2 + $0xbd8] sm:$0xff]
    %v519 = vld [vmem:[#allocation2 + $0xbe0] sm:$0xff]
    %v520 = vld [vmem:[#allocation2 + $0xbe8] sm:$0xff]
    %v521 = vld [vmem:[#allocation2 + $0xbf0] sm:$0xff]
    %v522 = vld [vmem:[#allocation2 + $0xbf8] sm:$0xff]
    %v523 = vld [vmem:[#allocation2 + $0xc00] sm:$0xff]
    %v524 = vld [vmem:[#allocation2 + $0xc08] sm:$0xff]
    %v525 = vld [vmem:[#allocation2 + $0xc10] sm:$0xff]
    %v526 = vld [vmem:[#allocation2 + $0xc18] sm:$0xff]
    %v527 = vld [vmem:[#allocation2 + $0xc20] sm:$0xff]
    %v528 = vld [vmem:[#allocation2 + $0xc28] sm:$0xff]
    %v529 = vld [vmem:[#allocation2 + $0xc30] sm:$0xff]
    %v530 = vld [vmem:[#allocation2 + $0xc38] sm:$0xff]
    %v531 = vld [vmem:[#allocation2 + $0xc40] sm:$0xff]
    %v532 = vld [vmem:[#allocation2 + $0xc48] sm:$0xff]
    %v533 = vld [vmem:[#allocation2 + $0xc50] sm:$0xff]
    %v534 = vld [vmem:[#allocation2 + $0xc58] sm:$0xff]
    %v535 = vld [vmem:[#allocation2 + $0xc60] sm:$0xff]
    %v536 = vld [vmem:[#allocation2 + $0xc68] sm:$0xff]
    %v537 = vld [vmem:[#allocation2 + $0xc70] sm:$0xff]
    %v538 = vld [vmem:[#allocation2 + $0xc78] sm:$0xff]
    %v539 = vld [vmem:[#allocation2 + $0xc80] sm:$0xff]
    %v540 = vld [vmem:[#allocation2 + $0xc88] sm:$0xff]
    %v541 = vld [vmem:[#allocation2 + $0xc90] sm:$0xff]
    %v542 = vld [vmem:[#allocation2 + $0xc98] sm:$0xff]
    %v543 = vld [vmem:[#allocation2 + $0xca0] sm:$0xff]
    %v544 = vld [vmem:[#allocation2 + $0xca8] sm:$0xff]
    %v545 = vld [vmem:[#allocation2 + $0xcb0] sm:$0xff]
    %v546 = vld [vmem:[#allocation2 + $0xcb8] sm:$0xff]
    %v547 = vld [vmem:[#allocation2 + $0xcc0] sm:$0xff]
    %v548 = vld [vmem:[#allocation2 + $0xcc8] sm:$0xff]
    %v549 = vld [vmem:[#allocation2 + $0xcd0] sm:$0xff]
    %v550 = vld [vmem:[#allocation2 + $0xcd8] sm:$0xff]
    %v551 = vld [vmem:[#allocation2 + $0xce0] sm:$0xff]
    %v552 = vld [vmem:[#allocation2 + $0xce8] sm:$0xff]
    %v553 = vld [vmem:[#allocation2 + $0xcf0] sm:$0xff]
    %v554 = vld [vmem:[#allocation2 + $0xcf8] sm:$0xff]
    %v555 = vld [vmem:[#allocation2 + $0xd00] sm:$0xff]
    %v556 = vld [vmem:[#allocation2 + $0xd08] sm:$0xff]
    %v557 = vld [vmem:[#allocation2 + $0xd10] sm:$0xff]
    %v558 = vld [vmem:[#allocation2 + $0xd18] sm:$0xff]
    %v559 = vld [vmem:[#allocation2 + $0xd20] sm:$0xff]
    %v560 = vld [vmem:[#allocation2 + $0xd28] sm:$0xff]
    %v561 = vld [vmem:[#allocation2 + $0xd30] sm:$0xff]
    %v562 = vld [vmem:[#allocation2 + $0xd38] sm:$0xff]
    %v563 = vld [vmem:[#allocation2 + $0xd40] sm:$0xff]
    %v564 = vld [vmem:[#allocation2 + $0xd48] sm:$0xff]
    %v565 = vld [vmem:[#allocation2 + $0xd50] sm:$0xff]
    %v566 = vld [vmem:[#allocation2 + $0xd58] sm:$0xff]
    %v567 = vld [vmem:[#allocation2 + $0xd60] sm:$0xff]
    %v568 = vld [vmem:[#allocation2 + $0xd68] sm:$0xff]
    %v569 = vld [vmem:[#allocation2 + $0xd70] sm:$0xff]
    %v570 = vld [vmem:[#allocation2 + $0xd78] sm:$0xff]
    %v571 = vld [vmem:[#allocation2 + $0xd80] sm:$0xff]
    %v572 = vld [vmem:[#allocation2 + $0xd88] sm:$0xff]
    %v573 = vld [vmem:[#allocation2 + $0xd90] sm:$0xff]
    %v574 = vld [vmem:[#allocation2 + $0xd98] sm:$0xff]
    %v575 = vld [vmem:[#allocation2 + $0xda0] sm:$0xff]
    %v576 = vld [vmem:[#allocation2 + $0xda8] sm:$0xff]
    %v577 = vld [vmem:[#allocation2 + $0xdb0] sm:$0xff]
    %v578 = vld [vmem:[#allocation2 + $0xdb8] sm:$0xff]
    %v579 = vld [vmem:[#allocation2 + $0xdc0] sm:$0xff]
    %v580 = vld [vmem:[#allocation2 + $0xdc8] sm:$0xff]
    %v581 = vld [vmem:[#allocation2 + $0xdd0] sm:$0xff]
    %v582 = vld [vmem:[#allocation2 + $0xdd8] sm:$0xff]
    %v583 = vld [vmem:[#allocation2 + $0xde0] sm:$0xff]
    %v584 = vld [vmem:[#allocation2 + $0xde8] sm:$0xff]
    %v585 = vld [vmem:[#allocation2 + $0xdf0] sm:$0xff]
    %v586 = vld [vmem:[#allocation2 + $0xdf8] sm:$0xff]
    %v587 = vld [vmem:[#allocation2 + $0xe00] sm:$0xff]
    %v588 = vld [vmem:[#allocation2 + $0xe08] sm:$0xff]
    %v589 = vld [vmem:[#allocation2 + $0xe10] sm:$0xff]
    %v590 = vld [vmem:[#allocation2 + $0xe18] sm:$0xff]
    %v591 = vld [vmem:[#allocation2 + $0xe20] sm:$0xff]
    %v592 = vld [vmem:[#allocation2 + $0xe28] sm:$0xff]
    %v593 = vld [vmem:[#allocation2 + $0xe30] sm:$0xff]
    %v594 = vld [vmem:[#allocation2 + $0xe38] sm:$0xff]
    %v595 = vld [vmem:[#allocation2 + $0xe40] sm:$0xff]
    %v596 = vld [vmem:[#allocation2 + $0xe48] sm:$0xff]
    %v597 = vld [vmem:[#allocation2 + $0xe50] sm:$0xff]
    %v598 = vld [vmem:[#allocation2 + $0xe58] sm:$0xff]
    %v599 = vld [vmem:[#allocation2 + $0xe60] sm:$0xff]
    %v600 = vld [vmem:[#allocation2 + $0xe68] sm:$0xff]
    %v601 = vld [vmem:[#allocation2 + $0xe70] sm:$0xff]
    %v602 = vld [vmem:[#allocation2 + $0xe78] sm:$0xff]
    %v603 = vld [vmem:[#allocation2 + $0xe80] sm:$0xff]
    %v604 = vld [vmem:[#allocation2 + $0xe88] sm:$0xff]
    %v605 = vld [vmem:[#allocation2 + $0xe90] sm:$0xff]
    %v606 = vld [vmem:[#allocation2 + $0xe98] sm:$0xff]
    %v607 = vld [vmem:[#allocation2 + $0xea0] sm:$0xff]
    %v608 = vld [vmem:[#allocation2 + $0xea8] sm:$0xff]
    %v609 = vld [vmem:[#allocation2 + $0xeb0] sm:$0xff]
    %v610 = vld [vmem:[#allocation2 + $0xeb8] sm:$0xff]
    %v611 = vld [vmem:[#allocation2 + $0xec0] sm:$0xff]
    %v612 = vld [vmem:[#allocation2 + $0xec8] sm:$0xff]
    %v613 = vld [vmem:[#allocation2 + $0xed0] sm:$0xff]
    %v614 = vld [vmem:[#allocation2 + $0xed8] sm:$0xff]
    %v615 = vld [vmem:[#allocation2 + $0xee0] sm:$0xff]
    %v616 = vld [vmem:[#allocation2 + $0xee8] sm:$0xff]
    %v617 = vld [vmem:[#allocation2 + $0xef0] sm:$0xff]
    %v618 = vld [vmem:[#allocation2 + $0xef8] sm:$0xff]
    %v619 = vld [vmem:[#allocation2 + $0xf00] sm:$0xff]
    %v620 = vld [vmem:[#allocation2 + $0xf08] sm:$0xff]
    %v621 = vld [vmem:[#allocation2 + $0xf10] sm:$0xff]
    %v622 = vld [vmem:[#allocation2 + $0xf18] sm:$0xff]
    %v623 = vld [vmem:[#allocation2 + $0xf20] sm:$0xff]
    %v624 = vld [vmem:[#allocation2 + $0xf28] sm:$0xff]
    %v625 = vld [vmem:[#allocation2 + $0xf30] sm:$0xff]
    %v626 = vld [vmem:[#allocation2 + $0xf38] sm:$0xff]
    %v627 = vld [vmem:[#allocation2 + $0xf40] sm:$0xff]
    %v628 = vld [vmem:[#allocation2 + $0xf48] sm:$0xff]
    %v629 = vld [vmem:[#allocation2 + $0xf50] sm:$0xff]
    %v630 = vld [vmem:[#allocation2 + $0xf58] sm:$0xff]
    %v631 = vld [vmem:[#allocation2 + $0xf60] sm:$0xff]
    %v632 = vld [vmem:[#allocation2 + $0xf68] sm:$0xff]
    %v633 = vld [vmem:[#allocation2 + $0xf70] sm:$0xff]
    %v634 = vld [vmem:[#allocation2 + $0xf78] sm:$0xff]
    %v635 = vld [vmem:[#allocation2 + $0xf80] sm:$0xff]
    %v636 = vld [vmem:[#allocation2 + $0xf88] sm:$0xff]
    %v637 = vld [vmem:[#allocation2 + $0xf90] sm:$0xff]
    %v638 = vld [vmem:[#allocation2 + $0xf98] sm:$0xff]
    %v639 = vld [vmem:[#allocation2 + $0xfa0] sm:$0xff]
    %v640 = vld [vmem:[#allocation2 + $0xfa8] sm:$0xff]
    %v641 = vld [vmem:[#allocation2 + $0xfb0] sm:$0xff]
    %v642 = vld [vmem:[#allocation2 + $0xfb8] sm:$0xff]
    %v643 = vld [vmem:[#allocation2 + $0xfc0] sm:$0xff]
    %v644 = vld [vmem:[#allocation2 + $0xfc8] sm:$0xff]
    %v645 = vld [vmem:[#allocation2 + $0xfd0] sm:$0xff]
    %v646 = vld [vmem:[#allocation2 + $0xfd8] sm:$0xff]
    %v647 = vld [vmem:[#allocation2 + $0xfe0] sm:$0xff]
    %v648 = vld [vmem:[#allocation2 + $0xfe8] sm:$0xff]
    %v649 = vld [vmem:[#allocation2 + $0xff0] sm:$0xff]
    %v650 = vld [vmem:[#allocation2 + $0xff8] sm:$0xff]
    %v651 = vld [vmem:[#allocation2 + $0x1000] sm:$0xff]
    %v652 = vld [vmem:[#allocation2 + $0x1008] sm:$0xff]
    %v653 = vld [vmem:[#allocation2 + $0x1010] sm:$0xff]
    %v654 = vld [vmem:[#allocation2 + $0x1018] sm:$0xff]
    %v655 = vld [vmem:[#allocation2 + $0x1020] sm:$0xff]
    %v656 = vld [vmem:[#allocation2 + $0x1028] sm:$0xff]
    %v657 = vld [vmem:[#allocation2 + $0x1030] sm:$0xff]
    %v658 = vld [vmem:[#allocation2 + $0x1038] sm:$0xff]
    %v659 = vld [vmem:[#allocation2 + $0x1040] sm:$0xff]
    %v660 = vld [vmem:[#allocation2 + $0x1048] sm:$0xff]
    %v661 = vld [vmem:[#allocation2 + $0x1050] sm:$0xff]
    %v662 = vld [vmem:[#allocation2 + $0x1058] sm:$0xff]
    %v663 = vld [vmem:[#allocation2 + $0x1060] sm:$0xff]
    %v664 = vld [vmem:[#allocation2 + $0x1068] sm:$0xff]
    %v665 = vld [vmem:[#allocation2 + $0x1070] sm:$0xff]
    %v666 = vld [vmem:[#allocation2 + $0x1078] sm:$0xff]
    %v667 = vld [vmem:[#allocation2 + $0x1080] sm:$0xff]
    %v668 = vld [vmem:[#allocation2 + $0x1088] sm:$0xff]
    %v669 = vld [vmem:[#allocation2 + $0x1090] sm:$0xff]
    %v670 = vld [vmem:[#allocation2 + $0x1098] sm:$0xff]
    %v671 = vld [vmem:[#allocation2 + $0x10a0] sm:$0xff]
    %v672 = vld [vmem:[#allocation2 + $0x10a8] sm:$0xff]
    %v673 = vld [vmem:[#allocation2 + $0x10b0] sm:$0xff]
    %v674 = vld [vmem:[#allocation2 + $0x10b8] sm:$0xff]
    %v675 = vld [vmem:[#allocation2 + $0x10c0] sm:$0xff]
    %v676 = vld [vmem:[#allocation2 + $0x10c8] sm:$0xff]
    %v677 = vld [vmem:[#allocation2 + $0x10d0] sm:$0xff]
    %v678 = vld [vmem:[#allocation2 + $0x10d8] sm:$0xff]
    %v679 = vld [vmem:[#allocation2 + $0x10e0] sm:$0xff]
    %v680 = vld [vmem:[#allocation2 + $0x10e8] sm:$0xff]
    %v681 = vld [vmem:[#allocation2 + $0x10f0] sm:$0xff]
    %v682 = vld [vmem:[#allocation2 + $0x10f8] sm:$0xff]
    %v683 = vld [vmem:[#allocation2 + $0x1100] sm:$0xff]
    %v684 = vld [vmem:[#allocation2 + $0x1108] sm:$0xff]
    %v685 = vld [vmem:[#allocation2 + $0x1110] sm:$0xff]
    %v686 = vld [vmem:[#allocation2 + $0x1118] sm:$0xff]
    %v687 = vld [vmem:[#allocation2 + $0x1120] sm:$0xff]
    %v688 = vld [vmem:[#allocation2 + $0x1128] sm:$0xff]
    %v689 = vld [vmem:[#allocation2 + $0x1130] sm:$0xff]
    %v690 = vld [vmem:[#allocation2 + $0x1138] sm:$0xff]
    %v691 = vld [vmem:[#allocation2 + $0x1140] sm:$0xff]
    %v692 = vld [vmem:[#allocation2 + $0x1148] sm:$0xff]
    %v693 = vld [vmem:[#allocation2 + $0x1150] sm:$0xff]
    %v694 = vld [vmem:[#allocation2 + $0x1158] sm:$0xff]
    %v695 = vld [vmem:[#allocation2 + $0x1160] sm:$0xff]
    %v696 = vld [vmem:[#allocation2 + $0x1168] sm:$0xff]
    %v697 = vld [vmem:[#allocation2 + $0x1170] sm:$0xff]
    %v698 = vld [vmem:[#allocation2 + $0x1178] sm:$0xff]
    %v699 = vld [vmem:[#allocation2 + $0x1180] sm:$0xff]
    %v700 = vld [vmem:[#allocation2 + $0x1188] sm:$0xff]
    %v701 = vld [vmem:[#allocation2 + $0x1190] sm:$0xff]
    %v702 = vld [vmem:[#allocation2 + $0x1198] sm:$0xff]
    %v703 = vld [vmem:[#allocation2 + $0x11a0] sm:$0xff]
    %v704 = vld [vmem:[#allocation2 + $0x11a8] sm:$0xff]
    %v705 = vld [vmem:[#allocation2 + $0x11b0] sm:$0xff]
    %v706 = vld [vmem:[#allocation2 + $0x11b8] sm:$0xff]
    %v707 = vld [vmem:[#allocation2 + $0x11c0] sm:$0xff]
    %v708 = vld [vmem:[#allocation2 + $0x11c8] sm:$0xff]
    %v709 = vld [vmem:[#allocation2 + $0x11d0] sm:$0xff]
    %v710 = vld [vmem:[#allocation2 + $0x11d8] sm:$0xff]
    %v711 = vld [vmem:[#allocation2 + $0x11e0] sm:$0xff]
    %v712 = vld [vmem:[#allocation2 + $0x11e8] sm:$0xff]
    %v713 = vld [vmem:[#allocation2 + $0x11f0] sm:$0xff]
    %v714 = vld [vmem:[#allocation2 + $0x11f8] sm:$0xff]
    %v715 = vld [vmem:[#allocation2 + $0x1200] sm:$0xff]
    %v716 = vld [vmem:[#allocation2 + $0x1208] sm:$0xff]
    %v717 = vld [vmem:[#allocation2 + $0x1210] sm:$0xff]
    %v718 = vld [vmem:[#allocation2 + $0x1218] sm:$0xff]
    %v719 = vld [vmem:[#allocation2 + $0x1220] sm:$0xff]
    %v720 = vld [vmem:[#allocation2 + $0x1228] sm:$0xff]
    %v721 = vld [vmem:[#allocation2 + $0x1230] sm:$0xff]
    %v722 = vld [vmem:[#allocation2 + $0x1238] sm:$0xff]
    %v723 = vld [vmem:[#allocation2 + $0x1240] sm:$0xff]
    %v724 = vld [vmem:[#allocation2 + $0x1248] sm:$0xff]
    %v725 = vld [vmem:[#allocation2 + $0x1250] sm:$0xff]
    %v726 = vld [vmem:[#allocation2 + $0x1258] sm:$0xff]
    %v727 = vld [vmem:[#allocation2 + $0x1260] sm:$0xff]
    %v728 = vld [vmem:[#allocation2 + $0x1268] sm:$0xff]
    %v729 = vld [vmem:[#allocation2 + $0x1270] sm:$0xff]
    %v730 = vld [vmem:[#allocation2 + $0x1278] sm:$0xff]
    %v731 = vld [vmem:[#allocation2 + $0x1280] sm:$0xff]
    %v732 = vld [vmem:[#allocation2 + $0x1288] sm:$0xff]
    %v733 = vld [vmem:[#allocation2 + $0x1290] sm:$0xff]
    %v734 = vld [vmem:[#allocation2 + $0x1298] sm:$0xff]
    %v735 = vld [vmem:[#allocation2 + $0x12a0] sm:$0xff]
    %v736 = vld [vmem:[#allocation2 + $0x12a8] sm:$0xff]
    %v737 = vld [vmem:[#allocation2 + $0x12b0] sm:$0xff]
    %v738 = vld [vmem:[#allocation2 + $0x12b8] sm:$0xff]
    %v739 = vld [vmem:[#allocation2 + $0x12c0] sm:$0xff]
    %v740 = vld [vmem:[#allocation2 + $0x12c8] sm:$0xff]
    %v741 = vld [vmem:[#allocation2 + $0x12d0] sm:$0xff]
    %v742 = vld [vmem:[#allocation2 + $0x12d8] sm:$0xff]
    %v743 = vld [vmem:[#allocation2 + $0x12e0] sm:$0xff]
    %v744 = vld [vmem:[#allocation2 + $0x12e8] sm:$0xff]
    %v745 = vld [vmem:[#allocation2 + $0x12f0] sm:$0xff]
    %v746 = vld [vmem:[#allocation2 + $0x12f8] sm:$0xff]
    %v747 = vld [vmem:[#allocation2 + $0x1300] sm:$0xff]
    %v748 = vld [vmem:[#allocation2 + $0x1308] sm:$0xff]
    %v749 = vld [vmem:[#allocation2 + $0x1310] sm:$0xff]
    %v750 = vld [vmem:[#allocation2 + $0x1318] sm:$0xff]
    %v751 = vld [vmem:[#allocation2 + $0x1320] sm:$0xff]
    %v752 = vld [vmem:[#allocation2 + $0x1328] sm:$0xff]
    %v753 = vld [vmem:[#allocation2 + $0x1330] sm:$0xff]
    %v754 = vld [vmem:[#allocation2 + $0x1338] sm:$0xff]
    %v755 = vld [vmem:[#allocation2 + $0x1340] sm:$0xff]
    %v756 = vld [vmem:[#allocation2 + $0x1348] sm:$0xff]
    %v757 = vld [vmem:[#allocation2 + $0x1350] sm:$0xff]
    %v758 = vld [vmem:[#allocation2 + $0x1358] sm:$0xff]
    %v759 = vld [vmem:[#allocation2 + $0x1360] sm:$0xff]
    %v760 = vld [vmem:[#allocation2 + $0x1368] sm:$0xff]
    %v761 = vld [vmem:[#allocation2 + $0x1370] sm:$0xff]
    %v762 = vld [vmem:[#allocation2 + $0x1378] sm:$0xff]
    %v763 = vld [vmem:[#allocation2 + $0x1380] sm:$0xff]
    %v764 = vld [vmem:[#allocation2 + $0x1388] sm:$0xff]
    %v765 = vld [vmem:[#allocation2 + $0x1390] sm:$0xff]
    %v766 = vld [vmem:[#allocation2 + $0x1398] sm:$0xff]
    %v767 = vld [vmem:[#allocation2 + $0x13a0] sm:$0xff]
    %v768 = vld [vmem:[#allocation2 + $0x13a8] sm:$0xff]
    %v769 = vld [vmem:[#allocation2 + $0x13b0] sm:$0xff]
    %v770 = vld [vmem:[#allocation2 + $0x13b8] sm:$0xff]
    %v771 = vld [vmem:[#allocation2 + $0x13c0] sm:$0xff]
    %v772 = vld [vmem:[#allocation2 + $0x13c8] sm:$0xff]
    %v773 = vld [vmem:[#allocation2 + $0x13d0] sm:$0xff]
    %v774 = vld [vmem:[#allocation2 + $0x13d8] sm:$0xff]
    %v775 = vld [vmem:[#allocation2 + $0x13e0] sm:$0xff]
    %v776 = vld [vmem:[#allocation2 + $0x13e8] sm:$0xff]
    %v777 = vld [vmem:[#allocation2 + $0x13f0] sm:$0xff]
    %v778 = vld [vmem:[#allocation2 + $0x13f8] sm:$0xff]
    %v779 = vld [vmem:[#allocation2 + $0x1400] sm:$0xff]
    %v780 = vld [vmem:[#allocation2 + $0x1408] sm:$0xff]
    %v781 = vld [vmem:[#allocation2 + $0x1410] sm:$0xff]
    %v782 = vld [vmem:[#allocation2 + $0x1418] sm:$0xff]
    %v783 = vld [vmem:[#allocation2 + $0x1420] sm:$0xff]
    %v784 = vld [vmem:[#allocation2 + $0x1428] sm:$0xff]
    %v785 = vld [vmem:[#allocation2 + $0x1430] sm:$0xff]
    %v786 = vld [vmem:[#allocation2 + $0x1438] sm:$0xff]
    %v787 = vld [vmem:[#allocation2 + $0x1440] sm:$0xff]
    %v788 = vld [vmem:[#allocation2 + $0x1448] sm:$0xff]
    %v789 = vld [vmem:[#allocation2 + $0x1450] sm:$0xff]
    %v790 = vld [vmem:[#allocation2 + $0x1458] sm:$0xff]
    %v791 = vld [vmem:[#allocation2 + $0x1460] sm:$0xff]
    %v792 = vld [vmem:[#allocation2 + $0x1468] sm:$0xff]
    %v793 = vld [vmem:[#allocation2 + $0x1470] sm:$0xff]
    %v794 = vld [vmem:[#allocation2 + $0x1478] sm:$0xff]
    %v795 = vld [vmem:[#allocation2 + $0x1480] sm:$0xff]
    %v796 = vld [vmem:[#allocation2 + $0x1488] sm:$0xff]
    %v797 = vld [vmem:[#allocation2 + $0x1490] sm:$0xff]
    %v798 = vld [vmem:[#allocation2 + $0x1498] sm:$0xff]
    %v799 = vld [vmem:[#allocation2 + $0x14a0] sm:$0xff]
    %v800 = vld [vmem:[#allocation2 + $0x14a8] sm:$0xff]
    %v801 = vld [vmem:[#allocation2 + $0x14b0] sm:$0xff]
    %v802 = vld [vmem:[#allocation2 + $0x14b8] sm:$0xff]
    %v803 = vld [vmem:[#allocation2 + $0x14c0] sm:$0xff]
    %v804 = vld [vmem:[#allocation2 + $0x14c8] sm:$0xff]
    %v805 = vld [vmem:[#allocation2 + $0x14d0] sm:$0xff]
    %v806 = vld [vmem:[#allocation2 + $0x14d8] sm:$0xff]
    %v807 = vld [vmem:[#allocation2 + $0x14e0] sm:$0xff]
    %v808 = vld [vmem:[#allocation2 + $0x14e8] sm:$0xff]
    %v809 = vld [vmem:[#allocation2 + $0x14f0] sm:$0xff]
    %v810 = vld [vmem:[#allocation2 + $0x14f8] sm:$0xff]
    %v811 = vld [vmem:[#allocation2 + $0x1500] sm:$0xff]
    %v812 = vld [vmem:[#allocation2 + $0x1508] sm:$0xff]
    %v813 = vld [vmem:[#allocation2 + $0x1510] sm:$0xff]
    %v814 = vld [vmem:[#allocation2 + $0x1518] sm:$0xff]
    %v815 = vld [vmem:[#allocation2 + $0x1520] sm:$0xff]
    %v816 = vld [vmem:[#allocation2 + $0x1528] sm:$0xff]
    %v817 = vld [vmem:[#allocation2 + $0x1530] sm:$0xff]
    %v818 = vld [vmem:[#allocation2 + $0x1538] sm:$0xff]
    %v819 = vld [vmem:[#allocation2 + $0x1540] sm:$0xff]
    %v820 = vld [vmem:[#allocation2 + $0x1548] sm:$0xff]
    %v821 = vld [vmem:[#allocation2 + $0x1550] sm:$0xff]
    %v822 = vld [vmem:[#allocation2 + $0x1558] sm:$0xff]
    %v823 = vld [vmem:[#allocation2 + $0x1560] sm:$0xff]
    %v824 = vld [vmem:[#allocation2 + $0x1568] sm:$0xff]
    %v825 = vld [vmem:[#allocation2 + $0x1570] sm:$0xff]
    %v826 = vld [vmem:[#allocation2 + $0x1578] sm:$0xff]
    %v827 = vld [vmem:[#allocation2 + $0x1580] sm:$0xff]
    %v828 = vld [vmem:[#allocation2 + $0x1588] sm:$0xff]
    %v829 = vld [vmem:[#allocation2 + $0x1590] sm:$0xff]
    %v830 = vld [vmem:[#allocation2 + $0x1598] sm:$0xff]
    %v831 = vld [vmem:[#allocation2 + $0x15a0] sm:$0xff]
    %v832 = vld [vmem:[#allocation2 + $0x15a8] sm:$0xff]
    %v833 = vld [vmem:[#allocation2 + $0x15b0] sm:$0xff]
    %v834 = vld [vmem:[#allocation2 + $0x15b8] sm:$0xff]
    %v835 = vld [vmem:[#allocation2 + $0x15c0] sm:$0xff]
    %v836 = vld [vmem:[#allocation2 + $0x15c8] sm:$0xff]
    %v837 = vld [vmem:[#allocation2 + $0x15d0] sm:$0xff]
    %v838 = vld [vmem:[#allocation2 + $0x15d8] sm:$0xff]
    %v839 = vld [vmem:[#allocation2 + $0x15e0] sm:$0xff]
    %v840 = vld [vmem:[#allocation2 + $0x15e8] sm:$0xff]
    %v841 = vld [vmem:[#allocation2 + $0x15f0] sm:$0xff]
    %v842 = vld [vmem:[#allocation2 + $0x15f8] sm:$0xff]
    %v843 = vld [vmem:[#allocation2 + $0x1600] sm:$0xff]
    %v844 = vld [vmem:[#allocation2 + $0x1608] sm:$0xff]
    %v845 = vld [vmem:[#allocation2 + $0x1610] sm:$0xff]
    %v846 = vld [vmem:[#allocation2 + $0x1618] sm:$0xff]
    %v847 = vld [vmem:[#allocation2 + $0x1620] sm:$0xff]
    %v848 = vld [vmem:[#allocation2 + $0x1628] sm:$0xff]
    %v849 = vld [vmem:[#allocation2 + $0x1630] sm:$0xff]
    %v850 = vld [vmem:[#allocation2 + $0x1638] sm:$0xff]
    %v851 = vld [vmem:[#allocation2 + $0x1640] sm:$0xff]
    %v852 = vld [vmem:[#allocation2 + $0x1648] sm:$0xff]
    %v853 = vld [vmem:[#allocation2 + $0x1650] sm:$0xff]
    %v854 = vld [vmem:[#allocation2 + $0x1658] sm:$0xff]
    %v855 = vld [vmem:[#allocation2 + $0x1660] sm:$0xff]
    %v856 = vld [vmem:[#allocation2 + $0x1668] sm:$0xff]
    %v857 = vld [vmem:[#allocation2 + $0x1670] sm:$0xff]
    %v858 = vld [vmem:[#allocation2 + $0x1678] sm:$0xff]
    %v859 = vld [vmem:[#allocation2 + $0x1680] sm:$0xff]
    %v860 = vld [vmem:[#allocation2 + $0x1688] sm:$0xff]
    %v861 = vld [vmem:[#allocation2 + $0x1690] sm:$0xff]
    %v862 = vld [vmem:[#allocation2 + $0x1698] sm:$0xff]
    %v863 = vld [vmem:[#allocation2 + $0x16a0] sm:$0xff]
    %v864 = vld [vmem:[#allocation2 + $0x16a8] sm:$0xff]
    %v865 = vld [vmem:[#allocation2 + $0x16b0] sm:$0xff]
    %v866 = vld [vmem:[#allocation2 + $0x16b8] sm:$0xff]
    %v867 = vld [vmem:[#allocation2 + $0x16c0] sm:$0xff]
    %v868 = vld [vmem:[#allocation2 + $0x16c8] sm:$0xff]
    %v869 = vld [vmem:[#allocation2 + $0x16d0] sm:$0xff]
    %v870 = vld [vmem:[#allocation2 + $0x16d8] sm:$0xff]
    %v871 = vld [vmem:[#allocation2 + $0x16e0] sm:$0xff]
    %v872 = vld [vmem:[#allocation2 + $0x16e8] sm:$0xff]
    %v873 = vld [vmem:[#allocation2 + $0x16f0] sm:$0xff]
    %v874 = vld [vmem:[#allocation2 + $0x16f8] sm:$0xff]
    %v875 = vld [vmem:[#allocation2 + $0x1700] sm:$0xff]
    %v876 = vld [vmem:[#allocation2 + $0x1708] sm:$0xff]
    %v877 = vld [vmem:[#allocation2 + $0x1710] sm:$0xff]
    %v878 = vld [vmem:[#allocation2 + $0x1718] sm:$0xff]
    %v879 = vld [vmem:[#allocation2 + $0x1720] sm:$0xff]
    %v880 = vld [vmem:[#allocation2 + $0x1728] sm:$0xff]
    %v881 = vld [vmem:[#allocation2 + $0x1730] sm:$0xff]
    %v882 = vld [vmem:[#allocation2 + $0x1738] sm:$0xff]
    %v883 = vld [vmem:[#allocation2 + $0x1740] sm:$0xff]
    %v884 = vld [vmem:[#allocation2 + $0x1748] sm:$0xff]
    %v885 = vld [vmem:[#allocation2 + $0x1750] sm:$0xff]
    %v886 = vld [vmem:[#allocation2 + $0x1758] sm:$0xff]
    %v887 = vld [vmem:[#allocation2 + $0x1760] sm:$0xff]
    %v888 = vld [vmem:[#allocation2 + $0x1768] sm:$0xff]
    %v889 = vld [vmem:[#allocation2 + $0x1770] sm:$0xff]
    %v890 = vld [vmem:[#allocation2 + $0x1778] sm:$0xff]
    %v891 = vld [vmem:[#allocation2 + $0x1780] sm:$0xff]
    %v892 = vld [vmem:[#allocation2 + $0x1788] sm:$0xff]
    %v893 = vld [vmem:[#allocation2 + $0x1790] sm:$0xff]
    %v894 = vld [vmem:[#allocation2 + $0x1798] sm:$0xff]
    %v895 = vld [vmem:[#allocation2 + $0x17a0] sm:$0xff]
    %v896 = vld [vmem:[#allocation2 + $0x17a8] sm:$0xff]
    %v897 = vld [vmem:[#allocation2 + $0x17b0] sm:$0xff]
    %v898 = vld [vmem:[#allocation2 + $0x17b8] sm:$0xff]
    %v899 = vld [vmem:[#allocation2 + $0x17c0] sm:$0xff]
    %v900 = vld [vmem:[#allocation2 + $0x17c8] sm:$0xff]
    %v901 = vld [vmem:[#allocation2 + $0x17d0] sm:$0xff]
    %v902 = vld [vmem:[#allocation2 + $0x17d8] sm:$0xff]
    %v903 = vld [vmem:[#allocation2 + $0x17e0] sm:$0xff]
    %v904 = vld [vmem:[#allocation2 + $0x17e8] sm:$0xff]
    %v905 = vld [vmem:[#allocation2 + $0x17f0] sm:$0xff]
    %v906 = vld [vmem:[#allocation2 + $0x17f8] sm:$0xff]
    %v907 = vld [vmem:[#allocation2 + $0x1800] sm:$0xff]
    %v908 = vld [vmem:[#allocation2 + $0x1808] sm:$0xff]
    %v909 = vld [vmem:[#allocation2 + $0x1810] sm:$0xff]
    %v910 = vld [vmem:[#allocation2 + $0x1818] sm:$0xff]
    %v911 = vld [vmem:[#allocation2 + $0x1820] sm:$0xff]
    %v912 = vld [vmem:[#allocation2 + $0x1828] sm:$0xff]
    %v913 = vld [vmem:[#allocation2 + $0x1830] sm:$0xff]
    %v914 = vld [vmem:[#allocation2 + $0x1838] sm:$0xff]
    %v915 = vld [vmem:[#allocation2 + $0x1840] sm:$0xff]
    %v916 = vld [vmem:[#allocation2 + $0x1848] sm:$0xff]
    %v917 = vld [vmem:[#allocation2 + $0x1850] sm:$0xff]
    %v918 = vld [vmem:[#allocation2 + $0x1858] sm:$0xff]
    %v919 = vld [vmem:[#allocation2 + $0x1860] sm:$0xff]
    %v920 = vld [vmem:[#allocation2 + $0x1868] sm:$0xff]
    %v921 = vld [vmem:[#allocation2 + $0x1870] sm:$0xff]
    %v922 = vld [vmem:[#allocation2 + $0x1878] sm:$0xff]
    %v923 = vld [vmem:[#allocation2 + $0x1880] sm:$0xff]
    %v924 = vld [vmem:[#allocation2 + $0x1888] sm:$0xff]
    %v925 = vld [vmem:[#allocation2 + $0x1890] sm:$0xff]
    %v926 = vld [vmem:[#allocation2 + $0x1898] sm:$0xff]
    %v927 = vld [vmem:[#allocation2 + $0x18a0] sm:$0xff]
    %v928 = vld [vmem:[#allocation2 + $0x18a8] sm:$0xff]
    %v929 = vld [vmem:[#allocation2 + $0x18b0] sm:$0xff]
    %v930 = vld [vmem:[#allocation2 + $0x18b8] sm:$0xff]
    %v931 = vld [vmem:[#allocation2 + $0x18c0] sm:$0xff]
    %v932 = vld [vmem:[#allocation2 + $0x18c8] sm:$0xff]
    %v933 = vld [vmem:[#allocation2 + $0x18d0] sm:$0xff]
    %v934 = vld [vmem:[#allocation2 + $0x18d8] sm:$0xff]
    %v935 = vld [vmem:[#allocation2 + $0x18e0] sm:$0xff]
    %v936 = vld [vmem:[#allocation2 + $0x18e8] sm:$0xff]
    %v937 = vld [vmem:[#allocation2 + $0x18f0] sm:$0xff]
    %v938 = vld [vmem:[#allocation2 + $0x18f8] sm:$0xff]
    %v939 = vld [vmem:[#allocation2 + $0x1900] sm:$0xff]
    %v940 = vld [vmem:[#allocation2 + $0x1908] sm:$0xff]
    %v941 = vld [vmem:[#allocation2 + $0x1910] sm:$0xff]
    %v942 = vld [vmem:[#allocation2 + $0x1918] sm:$0xff]
    %v943 = vld [vmem:[#allocation2 + $0x1920] sm:$0xff]
    %v944 = vld [vmem:[#allocation2 + $0x1928] sm:$0xff]
    %v945 = vld [vmem:[#allocation2 + $0x1930] sm:$0xff]
    %v946 = vld [vmem:[#allocation2 + $0x1938] sm:$0xff]
    %v947 = vld [vmem:[#allocation2 + $0x1940] sm:$0xff]
    %v948 = vld [vmem:[#allocation2 + $0x1948] sm:$0xff]
    %v949 = vld [vmem:[#allocation2 + $0x1950] sm:$0xff]
    %v950 = vld [vmem:[#allocation2 + $0x1958] sm:$0xff]
    %v951 = vld [vmem:[#allocation2 + $0x1960] sm:$0xff]
    %v952 = vld [vmem:[#allocation2 + $0x1968] sm:$0xff]
    %v953 = vld [vmem:[#allocation2 + $0x1970] sm:$0xff]
    %v954 = vld [vmem:[#allocation2 + $0x1978] sm:$0xff]
    %v955 = vld [vmem:[#allocation2 + $0x1980] sm:$0xff]
    %v956 = vld [vmem:[#allocation2 + $0x1988] sm:$0xff]
    %v957 = vld [vmem:[#allocation2 + $0x1990] sm:$0xff]
    %v958 = vld [vmem:[#allocation2 + $0x1998] sm:$0xff]
    %v959 = vld [vmem:[#allocation2 + $0x19a0] sm:$0xff]
    %v960 = vld [vmem:[#allocation2 + $0x19a8] sm:$0xff]
    %v961 = vld [vmem:[#allocation2 + $0x19b0] sm:$0xff]
    %v962 = vld [vmem:[#allocation2 + $0x19b8] sm:$0xff]
    %v963 = vld [vmem:[#allocation2 + $0x19c0] sm:$0xff]
    %v964 = vld [vmem:[#allocation2 + $0x19c8] sm:$0xff]
    %v965 = vld [vmem:[#allocation2 + $0x19d0] sm:$0xff]
    %v966 = vld [vmem:[#allocation2 + $0x19d8] sm:$0xff]
    %v967 = vld [vmem:[#allocation2 + $0x19e0] sm:$0xff]
    %v968 = vld [vmem:[#allocation2 + $0x19e8] sm:$0xff]
    %v969 = vld [vmem:[#allocation2 + $0x19f0] sm:$0xff]
    %v970 = vld [vmem:[#allocation2 + $0x19f8] sm:$0xff]
    %v971 = vld [vmem:[#allocation2 + $0x1a00] sm:$0xff]
    %v972 = vld [vmem:[#allocation2 + $0x1a08] sm:$0xff]
    %v973 = vld [vmem:[#allocation2 + $0x1a10] sm:$0xff]
    %v974 = vld [vmem:[#allocation2 + $0x1a18] sm:$0xff]
    %v975 = vld [vmem:[#allocation2 + $0x1a20] sm:$0xff]
    %v976 = vld [vmem:[#allocation2 + $0x1a28] sm:$0xff]
    %v977 = vld [vmem:[#allocation2 + $0x1a30] sm:$0xff]
    %v978 = vld [vmem:[#allocation2 + $0x1a38] sm:$0xff]
    %v979 = vld [vmem:[#allocation2 + $0x1a40] sm:$0xff]
    %v980 = vld [vmem:[#allocation2 + $0x1a48] sm:$0xff]
    %v981 = vld [vmem:[#allocation2 + $0x1a50] sm:$0xff]
    %v982 = vld [vmem:[#allocation2 + $0x1a58] sm:$0xff]
    %v983 = vld [vmem:[#allocation2 + $0x1a60] sm:$0xff]
    %v984 = vld [vmem:[#allocation2 + $0x1a68] sm:$0xff]
    %v985 = vld [vmem:[#allocation2 + $0x1a70] sm:$0xff]
    %v986 = vld [vmem:[#allocation2 + $0x1a78] sm:$0xff]
    %v987 = vld [vmem:[#allocation2 + $0x1a80] sm:$0xff]
    %v988 = vld [vmem:[#allocation2 + $0x1a88] sm:$0xff]
    %v989 = vld [vmem:[#allocation2 + $0x1a90] sm:$0xff]
    %v990 = vld [vmem:[#allocation2 + $0x1a98] sm:$0xff]
    %v991 = vld [vmem:[#allocation2 + $0x1aa0] sm:$0xff]
    %v992 = vld [vmem:[#allocation2 + $0x1aa8] sm:$0xff]
    %v993 = vld [vmem:[#allocation2 + $0x1ab0] sm:$0xff]
    %v994 = vld [vmem:[#allocation2 + $0x1ab8] sm:$0xff]
    %v995 = vld [vmem:[#allocation2 + $0x1ac0] sm:$0xff]
    %v996 = vld [vmem:[#allocation2 + $0x1ac8] sm:$0xff]
    %v997 = vld [vmem:[#allocation2 + $0x1ad0] sm:$0xff]
    %v998 = vld [vmem:[#allocation2 + $0x1ad8] sm:$0xff]
    %v999 = vld [vmem:[#allocation2 + $0x1ae0] sm:$0xff]
    %v1000 = vld [vmem:[#allocation2 + $0x1ae8] sm:$0xff]
    %v1001 = vld [vmem:[#allocation2 + $0x1af0] sm:$0xff]
    %v1002 = vld [vmem:[#allocation2 + $0x1af8] sm:$0xff]
    %v1003 = vld [vmem:[#allocation2 + $0x1b00] sm:$0xff]
    %v1004 = vld [vmem:[#allocation2 + $0x1b08] sm:$0xff]
    %v1005 = vld [vmem:[#allocation2 + $0x1b10] sm:$0xff]
    %v1006 = vld [vmem:[#allocation2 + $0x1b18] sm:$0xff]
    %v1007 = vld [vmem:[#allocation2 + $0x1b20] sm:$0xff]
    %v1008 = vld [vmem:[#allocation2 + $0x1b28] sm:$0xff]
    %v1009 = vld [vmem:[#allocation2 + $0x1b30] sm:$0xff]
    %v1010 = vld [vmem:[#allocation2 + $0x1b38] sm:$0xff]
    %v1011 = vld [vmem:[#allocation2 + $0x1b40] sm:$0xff]
    %v1012 = vld [vmem:[#allocation2 + $0x1b48] sm:$0xff]
    %v1013 = vld [vmem:[#allocation2 + $0x1b50] sm:$0xff]
    %v1014 = vld [vmem:[#allocation2 + $0x1b58] sm:$0xff]
    %v1015 = vld [vmem:[#allocation2 + $0x1b60] sm:$0xff]
    %v1016 = vld [vmem:[#allocation2 + $0x1b68] sm:$0xff]
    %v1017 = vld [vmem:[#allocation2 + $0x1b70] sm:$0xff]
    %v1018 = vld [vmem:[#allocation2 + $0x1b78] sm:$0xff]
    %v1019 = vld [vmem:[#allocation2 + $0x1b80] sm:$0xff]
    %v1020 = vld [vmem:[#allocation2 + $0x1b88] sm:$0xff]
    %v1021 = vld [vmem:[#allocation2 + $0x1b90] sm:$0xff]
    %v1022 = vld [vmem:[#allocation2 + $0x1b98] sm:$0xff]
    %v1023 = vld [vmem:[#allocation2 + $0x1ba0] sm:$0xff]
    %v1024 = vld [vmem:[#allocation2 + $0x1ba8] sm:$0xff]
    %v1025 = vld [vmem:[#allocation2 + $0x1bb0] sm:$0xff]
    %v1026 = vld [vmem:[#allocation2 + $0x1bb8] sm:$0xff]
    %v1027 = vld [vmem:[#allocation2 + $0x1bc0] sm:$0xff]
    %v1028 = vld [vmem:[#allocation2 + $0x1bc8] sm:$0xff]
    %v1029 = vld [vmem:[#allocation2 + $0x1bd0] sm:$0xff]
    %v1030 = vld [vmem:[#allocation2 + $0x1bd8] sm:$0xff]
    %v1031 = vld [vmem:[#allocation2 + $0x1be0] sm:$0xff]
    %v1032 = vld [vmem:[#allocation2 + $0x1be8] sm:$0xff]
    %v1033 = vld [vmem:[#allocation2 + $0x1bf0] sm:$0xff]
    %v1034 = vld [vmem:[#allocation2 + $0x1bf8] sm:$0xff]
    %v1035 = vld [vmem:[#allocation2 + $0x1c00] sm:$0xff]
    %v1036 = vld [vmem:[#allocation2 + $0x1c08] sm:$0xff]
    %v1037 = vld [vmem:[#allocation2 + $0x1c10] sm:$0xff]
    %v1038 = vld [vmem:[#allocation2 + $0x1c18] sm:$0xff]
    %v1039 = vld [vmem:[#allocation2 + $0x1c20] sm:$0xff]
    %v1040 = vld [vmem:[#allocation2 + $0x1c28] sm:$0xff]
    %v1041 = vld [vmem:[#allocation2 + $0x1c30] sm:$0xff]
    %v1042 = vld [vmem:[#allocation2 + $0x1c38] sm:$0xff]
    %v1043 = vld [vmem:[#allocation2 + $0x1c40] sm:$0xff]
    %v1044 = vld [vmem:[#allocation2 + $0x1c48] sm:$0xff]
    %v1045 = vld [vmem:[#allocation2 + $0x1c50] sm:$0xff]
    %v1046 = vld [vmem:[#allocation2 + $0x1c58] sm:$0xff]
    %v1047 = vld [vmem:[#allocation2 + $0x1c60] sm:$0xff]
    %v1048 = vld [vmem:[#allocation2 + $0x1c68] sm:$0xff]
    %v1049 = vld [vmem:[#allocation2 + $0x1c70] sm:$0xff]
    %v1050 = vld [vmem:[#allocation2 + $0x1c78] sm:$0xff]
    %v1051 = vld [vmem:[#allocation2 + $0x1c80] sm:$0xff]
    %v1052 = vld [vmem:[#allocation2 + $0x1c88] sm:$0xff]
    %v1053 = vld [vmem:[#allocation2 + $0x1c90] sm:$0xff]
    %v1054 = vld [vmem:[#allocation2 + $0x1c98] sm:$0xff]
    %v1055 = vld [vmem:[#allocation2 + $0x1ca0] sm:$0xff]
    %v1056 = vld [vmem:[#allocation2 + $0x1ca8] sm:$0xff]
    %v1057 = vld [vmem:[#allocation2 + $0x1cb0] sm:$0xff]
    %v1058 = vld [vmem:[#allocation2 + $0x1cb8] sm:$0xff]
    %v1059 = vld [vmem:[#allocation2 + $0x1cc0] sm:$0xff]
    %v1060 = vld [vmem:[#allocation2 + $0x1cc8] sm:$0xff]
    %v1061 = vld [vmem:[#allocation2 + $0x1cd0] sm:$0xff]
    %v1062 = vld [vmem:[#allocation2 + $0x1cd8] sm:$0xff]
    %v1063 = vld [vmem:[#allocation2 + $0x1ce0] sm:$0xff]
    %v1064 = vld [vmem:[#allocation2 + $0x1ce8] sm:$0xff]
    %v1065 = vld [vmem:[#allocation2 + $0x1cf0] sm:$0xff]
    %v1066 = vld [vmem:[#allocation2 + $0x1cf8] sm:$0xff]
    %v1067 = vld [vmem:[#allocation2 + $0x1d00] sm:$0xff]
    %v1068 = vld [vmem:[#allocation2 + $0x1d08] sm:$0xff]
    %v1069 = vld [vmem:[#allocation2 + $0x1d10] sm:$0xff]
    %v1070 = vld [vmem:[#allocation2 + $0x1d18] sm:$0xff]
    %v1071 = vld [vmem:[#allocation2 + $0x1d20] sm:$0xff]
    %v1072 = vld [vmem:[#allocation2 + $0x1d28] sm:$0xff]
    %v1073 = vld [vmem:[#allocation2 + $0x1d30] sm:$0xff]
    %v1074 = vld [vmem:[#allocation2 + $0x1d38] sm:$0xff]
    %v1075 = vld [vmem:[#allocation2 + $0x1d40] sm:$0xff]
    %v1076 = vld [vmem:[#allocation2 + $0x1d48] sm:$0xff]
    %v1077 = vld [vmem:[#allocation2 + $0x1d50] sm:$0xff]
    %v1078 = vld [vmem:[#allocation2 + $0x1d58] sm:$0xff]
    %v1079 = vld [vmem:[#allocation2 + $0x1d60] sm:$0xff]
    %v1080 = vld [vmem:[#allocation2 + $0x1d68] sm:$0xff]
    %v1081 = vld [vmem:[#allocation2 + $0x1d70] sm:$0xff]
    %v1082 = vld [vmem:[#allocation2 + $0x1d78] sm:$0xff]
    %v1083 = vld [vmem:[#allocation2 + $0x1d80] sm:$0xff]
    %v1084 = vld [vmem:[#allocation2 + $0x1d88] sm:$0xff]
    %v1085 = vld [vmem:[#allocation2 + $0x1d90] sm:$0xff]
    %v1086 = vld [vmem:[#allocation2 + $0x1d98] sm:$0xff]
    %v1087 = vld [vmem:[#allocation2 + $0x1da0] sm:$0xff]
    %v1088 = vld [vmem:[#allocation2 + $0x1da8] sm:$0xff]
    %v1089 = vld [vmem:[#allocation2 + $0x1db0] sm:$0xff]
    %v1090 = vld [vmem:[#allocation2 + $0x1db8] sm:$0xff]
    %v1091 = vld [vmem:[#allocation2 + $0x1dc0] sm:$0xff]
    %v1092 = vld [vmem:[#allocation2 + $0x1dc8] sm:$0xff]
    %v1093 = vld [vmem:[#allocation2 + $0x1dd0] sm:$0xff]
    %v1094 = vld [vmem:[#allocation2 + $0x1dd8] sm:$0xff]
    %v1095 = vld [vmem:[#allocation2 + $0x1de0] sm:$0xff]
    %v1096 = vld [vmem:[#allocation2 + $0x1de8] sm:$0xff]
    %v1097 = vld [vmem:[#allocation2 + $0x1df0] sm:$0xff]
    %v1098 = vld [vmem:[#allocation2 + $0x1df8] sm:$0xff]
    %v1099 = vld [vmem:[#allocation2 + $0x1e00] sm:$0xff]
    %v1100 = vld [vmem:[#allocation2 + $0x1e08] sm:$0xff]
    %v1101 = vld [vmem:[#allocation2 + $0x1e10] sm:$0xff]
    %v1102 = vld [vmem:[#allocation2 + $0x1e18] sm:$0xff]
    %v1103 = vld [vmem:[#allocation2 + $0x1e20] sm:$0xff]
    %v1104 = vld [vmem:[#allocation2 + $0x1e28] sm:$0xff]
    %v1105 = vld [vmem:[#allocation2 + $0x1e30] sm:$0xff]
    %v1106 = vld [vmem:[#allocation2 + $0x1e38] sm:$0xff]
    %v1107 = vld [vmem:[#allocation2 + $0x1e40] sm:$0xff]
    %v1108 = vld [vmem:[#allocation2 + $0x1e48] sm:$0xff]
    %v1109 = vld [vmem:[#allocation2 + $0x1e50] sm:$0xff]
    %v1110 = vld [vmem:[#allocation2 + $0x1e58] sm:$0xff]
    %v1111 = vld [vmem:[#allocation2 + $0x1e60] sm:$0xff]
    %v1112 = vld [vmem:[#allocation2 + $0x1e68] sm:$0xff]
    %v1113 = vld [vmem:[#allocation2 + $0x1e70] sm:$0xff]
    %v1114 = vld [vmem:[#allocation2 + $0x1e78] sm:$0xff]
    %v1115 = vld [vmem:[#allocation2 + $0x1e80] sm:$0xff]
    %v1116 = vld [vmem:[#allocation2 + $0x1e88] sm:$0xff]
    %v1117 = vld [vmem:[#allocation2 + $0x1e90] sm:$0xff]
    %v1118 = vld [vmem:[#allocation2 + $0x1e98] sm:$0xff]
    %v1119 = vld [vmem:[#allocation2 + $0x1ea0] sm:$0xff]
    %v1120 = vld [vmem:[#allocation2 + $0x1ea8] sm:$0xff]
    %v1121 = vld [vmem:[#allocation2 + $0x1eb0] sm:$0xff]
    %v1122 = vld [vmem:[#allocation2 + $0x1eb8] sm:$0xff]
    %v1123 = vld [vmem:[#allocation2 + $0x1ec0] sm:$0xff]
    %v1124 = vld [vmem:[#allocation2 + $0x1ec8] sm:$0xff]
    %v1125 = vld [vmem:[#allocation2 + $0x1ed0] sm:$0xff]
    %v1126 = vld [vmem:[#allocation2 + $0x1ed8] sm:$0xff]
    %v1127 = vld [vmem:[#allocation2 + $0x1ee0] sm:$0xff]
    %v1128 = vld [vmem:[#allocation2 + $0x1ee8] sm:$0xff]
    %v1129 = vld [vmem:[#allocation2 + $0x1ef0] sm:$0xff]
    %v1130 = vld [vmem:[#allocation2 + $0x1ef8] sm:$0xff]
    %v1131 = vld [vmem:[#allocation2 + $0x1f00] sm:$0xff]
    %v1132 = vld [vmem:[#allocation2 + $0x1f08] sm:$0xff]
    %v1133 = vld [vmem:[#allocation2 + $0x1f10] sm:$0xff]
    %v1134 = vld [vmem:[#allocation2 + $0x1f18] sm:$0xff]
    %v1135 = vld [vmem:[#allocation2 + $0x1f20] sm:$0xff]
    %v1136 = vld [vmem:[#allocation2 + $0x1f28] sm:$0xff]
    %v1137 = vld [vmem:[#allocation2 + $0x1f30] sm:$0xff]
    %v1138 = vld [vmem:[#allocation2 + $0x1f38] sm:$0xff]
    %v1139 = vld [vmem:[#allocation2 + $0x1f40] sm:$0xff]
    %v1140 = vld [vmem:[#allocation2 + $0x1f48] sm:$0xff]
    %v1141 = vld [vmem:[#allocation2 + $0x1f50] sm:$0xff]
    %v1142 = vld [vmem:[#allocation2 + $0x1f58] sm:$0xff]
    %v1143 = vld [vmem:[#allocation2 + $0x1f60] sm:$0xff]
    %v1144 = vld [vmem:[#allocation2 + $0x1f68] sm:$0xff]
    %v1145 = vld [vmem:[#allocation2 + $0x1f70] sm:$0xff]
    %v1146 = vld [vmem:[#allocation2 + $0x1f78] sm:$0xff]
    %v1147 = vld [vmem:[#allocation2 + $0x1f80] sm:$0xff]
    %v1148 = vld [vmem:[#allocation2 + $0x1f88] sm:$0xff]
    %v1149 = vld [vmem:[#allocation2 + $0x1f90] sm:$0xff]
    %v1150 = vld [vmem:[#allocation2 + $0x1f98] sm:$0xff]
    %v1151 = vld [vmem:[#allocation2 + $0x1fa0] sm:$0xff]
    %v1152 = vld [vmem:[#allocation2 + $0x1fa8] sm:$0xff]
    %v1153 = vld [vmem:[#allocation2 + $0x1fb0] sm:$0xff]
    %v1154 = vld [vmem:[#allocation2 + $0x1fb8] sm:$0xff]
    %v1155 = vld [vmem:[#allocation2 + $0x1fc0] sm:$0xff]
    %v1156 = vld [vmem:[#allocation2 + $0x1fc8] sm:$0xff]
    %v1157 = vld [vmem:[#allocation2 + $0x1fd0] sm:$0xff]
    %v1158 = vld [vmem:[#allocation2 + $0x1fd8] sm:$0xff]
    %v1159 = vld [vmem:[#allocation2 + $0x1fe0] sm:$0xff]
    %v1160 = vld [vmem:[#allocation2 + $0x1fe8] sm:$0xff]
    %v1161 = vld [vmem:[#allocation2 + $0x1ff0] sm:$0xff]
    %v1162 = vld [vmem:[#allocation2 + $0x1ff8] sm:$0xff]
    %v1163 = vld [vmem:[#allocation2 + $0x2000] sm:$0xff]
    %v1164 = vld [vmem:[#allocation2 + $0x2008] sm:$0xff]
    %v1165 = vld [vmem:[#allocation2 + $0x2010] sm:$0xff]
    %v1166 = vld [vmem:[#allocation2 + $0x2018] sm:$0xff]
    %v1167 = vld [vmem:[#allocation2 + $0x2020] sm:$0xff]
    %v1168 = vld [vmem:[#allocation2 + $0x2028] sm:$0xff]
    %v1169 = vld [vmem:[#allocation2 + $0x2030] sm:$0xff]
    %v1170 = vld [vmem:[#allocation2 + $0x2038] sm:$0xff]
    %v1171 = vld [vmem:[#allocation2 + $0x2040] sm:$0xff]
    %v1172 = vld [vmem:[#allocation2 + $0x2048] sm:$0xff]
    %v1173 = vld [vmem:[#allocation2 + $0x2050] sm:$0xff]
    %v1174 = vld [vmem:[#allocation2 + $0x2058] sm:$0xff]
    %v1175 = vld [vmem:[#allocation2 + $0x2060] sm:$0xff]
    %v1176 = vld [vmem:[#allocation2 + $0x2068] sm:$0xff]
    %v1177 = vld [vmem:[#allocation2 + $0x2070] sm:$0xff]
    %v1178 = vld [vmem:[#allocation2 + $0x2078] sm:$0xff]
    %v1179 = vld [vmem:[#allocation2 + $0x2080] sm:$0xff]
    %v1180 = vld [vmem:[#allocation2 + $0x2088] sm:$0xff]
    %v1181 = vld [vmem:[#allocation2 + $0x2090] sm:$0xff]
    %v1182 = vld [vmem:[#allocation2 + $0x2098] sm:$0xff]
    %v1183 = vld [vmem:[#allocation2 + $0x20a0] sm:$0xff]
    %v1184 = vld [vmem:[#allocation2 + $0x20a8] sm:$0xff]
    %v1185 = vld [vmem:[#allocation2 + $0x20b0] sm:$0xff]
    %v1186 = vld [vmem:[#allocation2 + $0x20b8] sm:$0xff]
    %v1187 = vld [vmem:[#allocation2 + $0x20c0] sm:$0xff]
    %v1188 = vld [vmem:[#allocation2 + $0x20c8] sm:$0xff]
    %v1189 = vld [vmem:[#allocation2 + $0x20d0] sm:$0xff]
    %v1190 = vld [vmem:[#allocation2 + $0x20d8] sm:$0xff]
    %v1191 = vld [vmem:[#allocation2 + $0x20e0] sm:$0xff]
    %v1192 = vld [vmem:[#allocation2 + $0x20e8] sm:$0xff]
    %v1193 = vld [vmem:[#allocation2 + $0x20f0] sm:$0xff]
    %v1194 = vld [vmem:[#allocation2 + $0x20f8] sm:$0xff]
    %v1195 = vld [vmem:[#allocation2 + $0x2100] sm:$0xff]
    %v1196 = vld [vmem:[#allocation2 + $0x2108] sm:$0xff]
    %v1197 = vld [vmem:[#allocation2 + $0x2110] sm:$0xff]
    %v1198 = vld [vmem:[#allocation2 + $0x2118] sm:$0xff]
    %v1199 = vld [vmem:[#allocation2 + $0x2120] sm:$0xff]
    %v1200 = vld [vmem:[#allocation2 + $0x2128] sm:$0xff]
    %v1201 = vld [vmem:[#allocation2 + $0x2130] sm:$0xff]
    %v1202 = vld [vmem:[#allocation2 + $0x2138] sm:$0xff]
    %v1203 = vld [vmem:[#allocation2 + $0x2140] sm:$0xff]
    %v1204 = vld [vmem:[#allocation2 + $0x2148] sm:$0xff]
    %v1205 = vld [vmem:[#allocation2 + $0x2150] sm:$0xff]
    %v1206 = vld [vmem:[#allocation2 + $0x2158] sm:$0xff]
    %v1207 = vld [vmem:[#allocation2 + $0x2160] sm:$0xff]
    %v1208 = vld [vmem:[#allocation2 + $0x2168] sm:$0xff]
    %v1209 = vld [vmem:[#allocation2 + $0x2170] sm:$0xff]
    %v1210 = vld [vmem:[#allocation2 + $0x2178] sm:$0xff]
    %v1211 = vld [vmem:[#allocation2 + $0x2180] sm:$0xff]
    %v1212 = vld [vmem:[#allocation2 + $0x2188] sm:$0xff]
    %v1213 = vld [vmem:[#allocation2 + $0x2190] sm:$0xff]
    %v1214 = vld [vmem:[#allocation2 + $0x2198] sm:$0xff]
    %v1215 = vld [vmem:[#allocation2 + $0x21a0] sm:$0xff]
    %v1216 = vld [vmem:[#allocation2 + $0x21a8] sm:$0xff]
    %v1217 = vld [vmem:[#allocation2 + $0x21b0] sm:$0xff]
    %v1218 = vld [vmem:[#allocation2 + $0x21b8] sm:$0xff]
    %v1219 = vld [vmem:[#allocation2 + $0x21c0] sm:$0xff]
    %v1220 = vld [vmem:[#allocation2 + $0x21c8] sm:$0xff]
    %v1221 = vld [vmem:[#allocation2 + $0x21d0] sm:$0xff]
    %v1222 = vld [vmem:[#allocation2 + $0x21d8] sm:$0xff]
    %v1223 = vld [vmem:[#allocation2 + $0x21e0] sm:$0xff]
    %v1224 = vld [vmem:[#allocation2 + $0x21e8] sm:$0xff]
    %v1225 = vld [vmem:[#allocation2 + $0x21f0] sm:$0xff]
    %v1226 = vld [vmem:[#allocation2 + $0x21f8] sm:$0xff]
    %v1227 = vld [vmem:[#allocation2 + $0x2200] sm:$0xff]
    %v1228 = vld [vmem:[#allocation2 + $0x2208] sm:$0xff]
    %v1229 = vld [vmem:[#allocation2 + $0x2210] sm:$0xff]
    %v1230 = vld [vmem:[#allocation2 + $0x2218] sm:$0xff]
    %v1231 = vld [vmem:[#allocation2 + $0x2220] sm:$0xff]
    %v1232 = vld [vmem:[#allocation2 + $0x2228] sm:$0xff]
    %v1233 = vld [vmem:[#allocation2 + $0x2230] sm:$0xff]
    %v1234 = vld [vmem:[#allocation2 + $0x2238] sm:$0xff]
    %v1235 = vld [vmem:[#allocation2 + $0x2240] sm:$0xff]
    %v1236 = vld [vmem:[#allocation2 + $0x2248] sm:$0xff]
    %v1237 = vld [vmem:[#allocation2 + $0x2250] sm:$0xff]
    %v1238 = vld [vmem:[#allocation2 + $0x2258] sm:$0xff]
    %v1239 = vld [vmem:[#allocation2 + $0x2260] sm:$0xff]
    %v1240 = vld [vmem:[#allocation2 + $0x2268] sm:$0xff]
    %v1241 = vld [vmem:[#allocation2 + $0x2270] sm:$0xff]
    %v1242 = vld [vmem:[#allocation2 + $0x2278] sm:$0xff]
    %v1243 = vld [vmem:[#allocation2 + $0x2280] sm:$0xff]
    %v1244 = vld [vmem:[#allocation2 + $0x2288] sm:$0xff]
    %v1245 = vld [vmem:[#allocation2 + $0x2290] sm:$0xff]
    %v1246 = vld [vmem:[#allocation2 + $0x2298] sm:$0xff]
    %v1247 = vld [vmem:[#allocation2 + $0x22a0] sm:$0xff]
    %v1248 = vld [vmem:[#allocation2 + $0x22a8] sm:$0xff]
    %v1249 = vld [vmem:[#allocation2 + $0x22b0] sm:$0xff]
    %v1250 = vld [vmem:[#allocation2 + $0x22b8] sm:$0xff]
    %v1251 = vld [vmem:[#allocation2 + $0x22c0] sm:$0xff]
    %v1252 = vld [vmem:[#allocation2 + $0x22c8] sm:$0xff]
    %v1253 = vld [vmem:[#allocation2 + $0x22d0] sm:$0xff]
    %v1254 = vld [vmem:[#allocation2 + $0x22d8] sm:$0xff]
    %v1255 = vld [vmem:[#allocation2 + $0x22e0] sm:$0xff]
    %v1256 = vld [vmem:[#allocation2 + $0x22e8] sm:$0xff]
    %v1257 = vld [vmem:[#allocation2 + $0x22f0] sm:$0xff]
    %v1258 = vld [vmem:[#allocation2 + $0x22f8] sm:$0xff]
    %v1259 = vld [vmem:[#allocation2 + $0x2300] sm:$0xff]
    %v1260 = vld [vmem:[#allocation2 + $0x2308] sm:$0xff]
    %v1261 = vld [vmem:[#allocation2 + $0x2310] sm:$0xff]
    %v1262 = vld [vmem:[#allocation2 + $0x2318] sm:$0xff]
    %v1263 = vld [vmem:[#allocation2 + $0x2320] sm:$0xff]
    %v1264 = vld [vmem:[#allocation2 + $0x2328] sm:$0xff]
    %v1265 = vld [vmem:[#allocation2 + $0x2330] sm:$0xff]
    %v1266 = vld [vmem:[#allocation2 + $0x2338] sm:$0xff]
    %v1267 = vld [vmem:[#allocation2 + $0x2340] sm:$0xff]
    %v1268 = vld [vmem:[#allocation2 + $0x2348] sm:$0xff]
    %v1269 = vld [vmem:[#allocation2 + $0x2350] sm:$0xff]
    %v1270 = vld [vmem:[#allocation2 + $0x2358] sm:$0xff]
    %v1271 = vld [vmem:[#allocation2 + $0x2360] sm:$0xff]
    %v1272 = vld [vmem:[#allocation2 + $0x2368] sm:$0xff]
    %v1273 = vld [vmem:[#allocation2 + $0x2370] sm:$0xff]
    %v1274 = vld [vmem:[#allocation2 + $0x2378] sm:$0xff]
    %v1275 = vld [vmem:[#allocation2 + $0x2380] sm:$0xff]
    %v1276 = vld [vmem:[#allocation2 + $0x2388] sm:$0xff]
    %v1277 = vld [vmem:[#allocation2 + $0x2390] sm:$0xff]
    %v1278 = vld [vmem:[#allocation2 + $0x2398] sm:$0xff]
    %v1279 = vld [vmem:[#allocation2 + $0x23a0] sm:$0xff]
    %v1280 = vld [vmem:[#allocation2 + $0x23a8] sm:$0xff]
    %v1281 = vld [vmem:[#allocation2 + $0x23b0] sm:$0xff]
    %v1282 = vld [vmem:[#allocation2 + $0x23b8] sm:$0xff]
    %v1283 = vld [vmem:[#allocation2 + $0x23c0] sm:$0xff]
    %v1284 = vld [vmem:[#allocation2 + $0x23c8] sm:$0xff]
    %v1285 = vld [vmem:[#allocation2 + $0x23d0] sm:$0xff]
    %v1286 = vld [vmem:[#allocation2 + $0x23d8] sm:$0xff]
    %v1287 = vld [vmem:[#allocation2 + $0x23e0] sm:$0xff]
    %v1288 = vld [vmem:[#allocation2 + $0x23e8] sm:$0xff]
    %v1289 = vld [vmem:[#allocation2 + $0x23f0] sm:$0xff]
    %v1290 = vld [vmem:[#allocation2 + $0x23f8] sm:$0xff]
    %1291 = vmatprep.subr.mxu0 %v140
    %1292 = vmatpush1.msra.mxu0 %v139
    %1293 = vmatprep.subr.mxu0 %v152
    %1294 = vmatpush1.msra.mxu0 %v151
    %1295 = vmatprep.subr.mxu0 %v164
    %1296 = vmatpush1.msra.mxu0 %v163
    %1297 = vmatprep.subr.mxu0 %v176
    %1298 = vmatpush1.msra.mxu0 %v175
    %1299 = vmatprep.subr.mxu0 %v188
    %1300 = vmatpush1.msra.mxu0 %v187
    %1301 = vmatprep.subr.mxu0 %v200
    %1302 = vmatpush1.msra.mxu0 %v199
    %1303 = vmatprep.subr.mxu0 %v212
    %1304 = vmatpush1.msra.mxu0 %v211
    %1305 = vmatprep.subr.mxu0 %v224
    %1306 = vmatpush1.msra.mxu0 %v223
    %1307 = vmatprep.subr.mxu0 %v236
    %1308 = vmatpush1.msra.mxu0 %v235
    %1309 = vmatprep.subr.mxu0 %v248
    %1310 = vmatpush1.msra.mxu0 %v247
    %1311 = vmatprep.subr.mxu0 %v260
    %1312 = vmatpush1.msra.mxu0 %v259
    %1313 = vmatprep.subr.mxu0 %v272
    %1314 = vmatpush1.msra.mxu0 %v271
    %1315 = vmatprep.subr.mxu0 %v284
    %1316 = vmatpush1.msra.mxu0 %v283
    %1317 = vmatprep.subr.mxu0 %v296
    %1318 = vmatpush1.msra.mxu0 %v295
    %1319 = vmatprep.subr.mxu0 %v308
    %1320 = vmatpush1.msra.mxu0 %v307
    %1321 = vmatprep.subr.mxu0 %v320
    %1322 = vmatpush1.msra.mxu0 %v319
    %1323 = vmatprep.subr.mxu0 %v332
    %1324 = vmatpush1.msra.mxu0 %v331
    %1325 = vmatprep.subr.mxu0 %v344
    %1326 = vmatpush1.msra.mxu0 %v343
    %1327 = vmatprep.subr.mxu0 %v356
    %1328 = vmatpush1.msra.mxu0 %v355
    %1329 = vmatprep.subr.mxu0 %v368
    %1330 = vmatpush1.msra.mxu0 %v367
    %1331 = vmatprep.subr.mxu0 %v380
    %1332 = vmatpush1.msra.mxu0 %v379
    %1333 = vmatprep.subr.mxu0 %v392
    %1334 = vmatpush1.msra.mxu0 %v391
    %1335 = vmatprep.subr.mxu0 %v404
    %1336 = vmatpush1.msra.mxu0 %v403
    %1337 = vmatprep.subr.mxu0 %v416
    %1338 = vmatpush1.msra.mxu0 %v415
    %1339 = vmatprep.subr.mxu0 %v428
    %1340 = vmatpush1.msra.mxu0 %v427
    %1341 = vmatprep.subr.mxu0 %v440
    %1342 = vmatpush1.msra.mxu0 %v439
    %1343 = vmatprep.subr.mxu0 %v452
    %1344 = vmatpush1.msra.mxu0 %v451
    %1345 = vmatprep.subr.mxu0 %v464
    %1346 = vmatpush1.msra.mxu0 %v463
    %1347 = vmatprep.subr.mxu0 %v476
    %1348 = vmatpush1.msra.mxu0 %v475
    %1349 = vmatprep.subr.mxu0 %v488
    %1350 = vmatpush1.msra.mxu0 %v487
    %1351 = vmatprep.subr.mxu0 %v500
    %1352 = vmatpush1.msra.mxu0 %v499
    %1353 = vmatprep.subr.mxu0 %v512
    %1354 = vmatpush1.msra.mxu0 %v511
    %1355 = vmatprep.mubr.f32.mxu0 %v134
    %1356 = vmatmul.mubr.f32.gmra.mrb[0].mxu0 %v133
    %v1357 = vpop.f32.mrb[0].mxu0
    %v1358 = vadd.f32 0.0, %v1357
    %v1359 = vpop.f32.mrb[0].mxu0
    %v1360 = vadd.f32 0.0, %v1359
    %1361 = vdwg.mxu0
    %1362 = vmatprep.subr.mxu0 %v524
    %1363 = vmatpush1.msra.mxu0 %v523
    %1364 = vmatprep.subr.mxu0 %v536
    %1365 = vmatpush1.msra.mxu0 %v535
    %1366 = vmatprep.subr.mxu0 %v548
    %1367 = vmatpush1.msra.mxu0 %v547
    %1368 = vmatprep.subr.mxu0 %v560
    %1369 = vmatpush1.msra.mxu0 %v559
    %1370 = vmatprep.subr.mxu0 %v572
    %1371 = vmatpush1.msra.mxu0 %v571
    %1372 = vmatprep.subr.mxu0 %v584
    %1373 = vmatpush1.msra.mxu0 %v583
    %1374 = vmatprep.subr.mxu0 %v596
    %1375 = vmatpush1.msra.mxu0 %v595
    %1376 = vmatprep.subr.mxu0 %v608
    %1377 = vmatpush1.msra.mxu0 %v607
    %1378 = vmatprep.subr.mxu0 %v620
    %1379 = vmatpush1.msra.mxu0 %v619
    %1380 = vmatprep.subr.mxu0 %v632
    %1381 = vmatpush1.msra.mxu0 %v631
    %1382 = vmatprep.subr.mxu0 %v644
    %1383 = vmatpush1.msra.mxu0 %v643
    %1384 = vmatprep.subr.mxu0 %v656
    %1385 = vmatpush1.msra.mxu0 %v655
    %1386 = vmatprep.subr.mxu0 %v668
    %1387 = vmatpush1.msra.mxu0 %v667
    %1388 = vmatprep.subr.mxu0 %v680
    %1389 = vmatpush1.msra.mxu0 %v679
    %1390 = vmatprep.subr.mxu0 %v692
    %1391 = vmatpush1.msra.mxu0 %v691
    %1392 = vmatprep.subr.mxu0 %v704
    %1393 = vmatpush1.msra.mxu0 %v703
    %1394 = vmatprep.subr.mxu0 %v716
    %1395 = vmatpush1.msra.mxu0 %v715
    %1396 = vmatprep.subr.mxu0 %v728
    %1397 = vmatpush1.msra.mxu0 %v727
    %1398 = vmatprep.subr.mxu0 %v740
    %1399 = vmatpush1.msra.mxu0 %v739
    %1400 = vmatprep.subr.mxu0 %v752
    %1401 = vmatpush1.msra.mxu0 %v751
    %1402 = vmatprep.subr.mxu0 %v764
    %1403 = vmatpush1.msra.mxu0 %v763
    %1404 = vmatprep.subr.mxu0 %v776
    %1405 = vmatpush1.msra.mxu0 %v775
    %1406 = vmatprep.subr.mxu0 %v788
    %1407 = vmatpush1.msra.mxu0 %v787
    %1408 = vmatprep.subr.mxu0 %v800
    %1409 = vmatpush1.msra.mxu0 %v799
    %1410 = vmatprep.subr.mxu0 %v812
    %1411 = vmatpush1.msra.mxu0 %v811
    %1412 = vmatprep.subr.mxu0 %v824
    %1413 = vmatpush1.msra.mxu0 %v823
    %1414 = vmatprep.subr.mxu0 %v836
    %1415 = vmatpush1.msra.mxu0 %v835
    %1416 = vmatprep.subr.mxu0 %v848
    %1417 = vmatpush1.msra.mxu0 %v847
    %1418 = vmatprep.subr.mxu0 %v860
    %1419 = vmatpush1.msra.mxu0 %v859
    %1420 = vmatprep.subr.mxu0 %v872
    %1421 = vmatpush1.msra.mxu0 %v871
    %1422 = vmatprep.subr.mxu0 %v884
    %1423 = vmatpush1.msra.mxu0 %v883
    %1424 = vmatprep.subr.mxu0 %v896
    %1425 = vmatpush1.msra.mxu0 %v895
    %1426 = vmatprep.mubr.f32.mxu0 %v136
    %1427 = vmatmul.mubr.f32.gmra.mrb[0].mxu0 %v135
    %v1428 = vpop.f32.mrb[0].mxu0
    %v1429 = vadd.f32 %v1358, %v1428
    %v1430 = vpop.f32.mrb[0].mxu0
    %v1431 = vadd.f32 %v1360, %v1430
    %1432 = vdwg.mxu0
    %1433 = vmatprep.subr.mxu0 %v908
    %1434 = vmatpush1.msra.mxu0 %v907
    %1435 = vmatprep.subr.mxu0 %v920
    %1436 = vmatpush1.msra.mxu0 %v919
    %1437 = vmatprep.subr.mxu0 %v932
    %1438 = vmatpush1.msra.mxu0 %v931
    %1439 = vmatprep.subr.mxu0 %v944
    %1440 = vmatpush1.msra.mxu0 %v943
    %1441 = vmatprep.subr.mxu0 %v956
    %1442 = vmatpush1.msra.mxu0 %v955
    %1443 = vmatprep.subr.mxu0 %v968
    %1444 = vmatpush1.msra.mxu0 %v967
    %1445 = vmatprep.subr.mxu0 %v980
    %1446 = vmatpush1.msra.mxu0 %v979
    %1447 = vmatprep.subr.mxu0 %v992
    %1448 = vmatpush1.msra.mxu0 %v991
    %1449 = vmatprep.subr.mxu0 %v1004
    %1450 = vmatpush1.msra.mxu0 %v1003
    %1451 = vmatprep.subr.mxu0 %v1016
    %1452 = vmatpush1.msra.mxu0 %v1015
    %1453 = vmatprep.subr.mxu0 %v1028
    %1454 = vmatpush1.msra.mxu0 %v1027
    %1455 = vmatprep.subr.mxu0 %v1040
    %1456 = vmatpush1.msra.mxu0 %v1039
    %1457 = vmatprep.subr.mxu0 %v1052
    %1458 = vmatpush1.msra.mxu0 %v1051
    %1459 = vmatprep.subr.mxu0 %v1064
    %1460 = vmatpush1.msra.mxu0 %v1063
    %1461 = vmatprep.subr.mxu0 %v1076
    %1462 = vmatpush1.msra.mxu0 %v1075
    %1463 = vmatprep.subr.mxu0 %v1088
    %1464 = vmatpush1.msra.mxu0 %v1087
    %1465 = vmatprep.subr.mxu0 %v1100
    %1466 = vmatpush1.msra.mxu0 %v1099
    %1467 = vmatprep.subr.mxu0 %v1112
    %1468 = vmatpush1.msra.mxu0 %v1111
    %1469 = vmatprep.subr.mxu0 %v1124
    %1470 = vmatpush1.msra.mxu0 %v1123
    %1471 = vmatprep.subr.mxu0 %v1136
    %1472 = vmatpush1.msra.mxu0 %v1135
    %1473 = vmatprep.subr.mxu0 %v1148
    %1474 = vmatpush1.msra.mxu0 %v1147
    %1475 = vmatprep.subr.mxu0 %v1160
    %1476 = vmatpush1.msra.mxu0 %v1159
    %1477 = vmatprep.subr.mxu0 %v1172
    %1478 = vmatpush1.msra.mxu0 %v1171
    %1479 = vmatprep.subr.mxu0 %v1184
    %1480 = vmatpush1.msra.mxu0 %v1183
    %1481 = vmatprep.subr.mxu0 %v1196
    %1482 = vmatpush1.msra.mxu0 %v1195
    %1483 = vmatprep.subr.mxu0 %v1208
    %1484 = vmatpush1.msra.mxu0 %v1207
    %1485 = vmatprep.subr.mxu0 %v1220
    %1486 = vmatpush1.msra.mxu0 %v1219
    %1487 = vmatprep.subr.mxu0 %v1232
    %1488 = vmatpush1.msra.mxu0 %v1231
    %1489 = vmatprep.subr.mxu0 %v1244
    %1490 = vmatpush1.msra.mxu0 %v1243
    %1491 = vmatprep.subr.mxu0 %v1256
    %1492 = vmatpush1.msra.mxu0 %v1255
    %1493 = vmatprep.subr.mxu0 %v1268
    %1494 = vmatpush1.msra.mxu0 %v1267
    %1495 = vmatprep.subr.mxu0 %v1280
    %1496 = vmatpush1.msra.mxu0 %v1279
    %1497 = vmatprep.mubr.f32.mxu0 %v138
    %1498 = vmatmul.mubr.f32.gmra.mrb[0].mxu0 %v137
    %v1499 = vpop.f32.mrb[0].mxu0
    %v1500 = vadd.f32 %v1429, %v1499
    %v1501 = vpop.f32.mrb[0].mxu0
    %v1502 = vadd.f32 %v1431, %v1501
    %1503 = vdwg.mxu0
    %1504 = vmatprep.subr.mxu0 %v142
    %1505 = vmatpush1.msra.mxu0 %v141
    %1506 = vmatprep.subr.mxu0 %v154
    %1507 = vmatpush1.msra.mxu0 %v153
    %1508 = vmatprep.subr.mxu0 %v166
    %1509 = vmatpush1.msra.mxu0 %v165
    %1510 = vmatprep.subr.mxu0 %v178
    %1511 = vmatpush1.msra.mxu0 %v177
    %1512 = vmatprep.subr.mxu0 %v190
    %1513 = vmatpush1.msra.mxu0 %v189
    %1514 = vmatprep.subr.mxu0 %v202
    %1515 = vmatpush1.msra.mxu0 %v201
    %1516 = vmatprep.subr.mxu0 %v214
    %1517 = vmatpush1.msra.mxu0 %v213
    %1518 = vmatprep.subr.mxu0 %v226
    %1519 = vmatpush1.msra.mxu0 %v225
    %1520 = vmatprep.subr.mxu0 %v238
    %1521 = vmatpush1.msra.mxu0 %v237
    %1522 = vmatprep.subr.mxu0 %v250
    %1523 = vmatpush1.msra.mxu0 %v249
    %1524 = vmatprep.subr.mxu0 %v262
    %1525 = vmatpush1.msra.mxu0 %v261
    %1526 = vmatprep.subr.mxu0 %v274
    %1527 = vmatpush1.msra.mxu0 %v273
    %1528 = vmatprep.subr.mxu0 %v286
    %1529 = vmatpush1.msra.mxu0 %v285
    %1530 = vmatprep.subr.mxu0 %v298
    %1531 = vmatpush1.msra.mxu0 %v297
    %1532 = vmatprep.subr.mxu0 %v310
    %1533 = vmatpush1.msra.mxu0 %v309
    %1534 = vmatprep.subr.mxu0 %v322
    %1535 = vmatpush1.msra.mxu0 %v321
    %1536 = vmatprep.subr.mxu0 %v334
    %1537 = vmatpush1.msra.mxu0 %v333
    %1538 = vmatprep.subr.mxu0 %v346
    %1539 = vmatpush1.msra.mxu0 %v345
    %1540 = vmatprep.subr.mxu0 %v358
    %1541 = vmatpush1.msra.mxu0 %v357
    %1542 = vmatprep.subr.mxu0 %v370
    %1543 = vmatpush1.msra.mxu0 %v369
    %1544 = vmatprep.subr.mxu0 %v382
    %1545 = vmatpush1.msra.mxu0 %v381
    %1546 = vmatprep.subr.mxu0 %v394
    %1547 = vmatpush1.msra.mxu0 %v393
    %1548 = vmatprep.subr.mxu0 %v406
    %1549 = vmatpush1.msra.mxu0 %v405
    %1550 = vmatprep.subr.mxu0 %v418
    %1551 = vmatpush1.msra.mxu0 %v417
    %1552 = vmatprep.subr.mxu0 %v430
    %1553 = vmatpush1.msra.mxu0 %v429
    %1554 = vmatprep.subr.mxu0 %v442
    %1555 = vmatpush1.msra.mxu0 %v441
    %1556 = vmatprep.subr.mxu0 %v454
    %1557 = vmatpush1.msra.mxu0 %v453
    %1558 = vmatprep.subr.mxu0 %v466
    %1559 = vmatpush1.msra.mxu0 %v465
    %1560 = vmatprep.subr.mxu0 %v478
    %1561 = vmatpush1.msra.mxu0 %v477
    %1562 = vmatprep.subr.mxu0 %v490
    %1563 = vmatpush1.msra.mxu0 %v489
    %1564 = vmatprep.subr.mxu0 %v502
    %1565 = vmatpush1.msra.mxu0 %v501
    %1566 = vmatprep.subr.mxu0 %v514
    %1567 = vmatpush1.msra.mxu0 %v513
    %1568 = vmatprep.mubr.f32.mxu0 %v134
    %1569 = vmatmul.mubr.f32.gmra.mrb[0].mxu0 %v133
    %v1570 = vpop.f32.mrb[0].mxu0
    %v1571 = vadd.f32 0.0, %v1570
    %v1572 = vpop.f32.mrb[0].mxu0
    %v1573 = vadd.f32 0.0, %v1572
    %1574 = vdwg.mxu0
    %1575 = vmatprep.subr.mxu0 %v526
    %1576 = vmatpush1.msra.mxu0 %v525
    %1577 = vmatprep.subr.mxu0 %v538
    %1578 = vmatpush1.msra.mxu0 %v537
    %1579 = vmatprep.subr.mxu0 %v550
    %1580 = vmatpush1.msra.mxu0 %v549
    %1581 = vmatprep.subr.mxu0 %v562
    %1582 = vmatpush1.msra.mxu0 %v561
    %1583 = vmatprep.subr.mxu0 %v574
    %1584 = vmatpush1.msra.mxu0 %v573
    %1585 = vmatprep.subr.mxu0 %v586
    %1586 = vmatpush1.msra.mxu0 %v585
    %1587 = vmatprep.subr.mxu0 %v598
    %1588 = vmatpush1.msra.mxu0 %v597
    %1589 = vmatprep.subr.mxu0 %v610
    %1590 = vmatpush1.msra.mxu0 %v609
    %1591 = vmatprep.subr.mxu0 %v622
    %1592 = vmatpush1.msra.mxu0 %v621
    %1593 = vmatprep.subr.mxu0 %v634
    %1594 = vmatpush1.msra.mxu0 %v633
    %1595 = vmatprep.subr.mxu0 %v646
    %1596 = vmatpush1.msra.mxu0 %v645
    %1597 = vmatprep.subr.mxu0 %v658
    %1598 = vmatpush1.msra.mxu0 %v657
    %1599 = vmatprep.subr.mxu0 %v670
    %1600 = vmatpush1.msra.mxu0 %v669
    %1601 = vmatprep.subr.mxu0 %v682
    %1602 = vmatpush1.msra.mxu0 %v681
    %1603 = vmatprep.subr.mxu0 %v694
    %1604 = vmatpush1.msra.mxu0 %v693
    %1605 = vmatprep.subr.mxu0 %v706
    %1606 = vmatpush1.msra.mxu0 %v705
    %1607 = vmatprep.subr.mxu0 %v718
    %1608 = vmatpush1.msra.mxu0 %v717
    %1609 = vmatprep.subr.mxu0 %v730
    %1610 = vmatpush1.msra.mxu0 %v729
    %1611 = vmatprep.subr.mxu0 %v742
    %1612 = vmatpush1.msra.mxu0 %v741
    %1613 = vmatprep.subr.mxu0 %v754
    %1614 = vmatpush1.msra.mxu0 %v753
    %1615 = vmatprep.subr.mxu0 %v766
    %1616 = vmatpush1.msra.mxu0 %v765
    %1617 = vmatprep.subr.mxu0 %v778
    %1618 = vmatpush1.msra.mxu0 %v777
    %1619 = vmatprep.subr.mxu0 %v790
    %1620 = vmatpush1.msra.mxu0 %v789
    %1621 = vmatprep.subr.mxu0 %v802
    %1622 = vmatpush1.msra.mxu0 %v801
    %1623 = vmatprep.subr.mxu0 %v814
    %1624 = vmatpush1.msra.mxu0 %v813
    %1625 = vmatprep.subr.mxu0 %v826
    %1626 = vmatpush1.msra.mxu0 %v825
    %1627 = vmatprep.subr.mxu0 %v838
    %1628 = vmatpush1.msra.mxu0 %v837
    %1629 = vmatprep.subr.mxu0 %v850
    %1630 = vmatpush1.msra.mxu0 %v849
    %1631 = vmatprep.subr.mxu0 %v862
    %1632 = vmatpush1.msra.mxu0 %v861
    %1633 = vmatprep.subr.mxu0 %v874
    %1634 = vmatpush1.msra.mxu0 %v873
    %1635 = vmatprep.subr.mxu0 %v886
    %1636 = vmatpush1.msra.mxu0 %v885
    %1637 = vmatprep.subr.mxu0 %v898
    %1638 = vmatpush1.msra.mxu0 %v897
    %1639 = vmatprep.mubr.f32.mxu0 %v136
    %1640 = vmatmul.mubr.f32.gmra.mrb[0].mxu0 %v135
    %v1641 = vpop.f32.mrb[0].mxu0
    %v1642 = vadd.f32 %v1571, %v1641
    %v1643 = vpop.f32.mrb[0].mxu0
    %v1644 = vadd.f32 %v1573, %v1643
    %1645 = vdwg.mxu0
    %1646 = vmatprep.subr.mxu0 %v910
    %1647 = vmatpush1.msra.mxu0 %v909
    %1648 = vmatprep.subr.mxu0 %v922
    %1649 = vmatpush1.msra.mxu0 %v921
    %1650 = vmatprep.subr.mxu0 %v934
    %1651 = vmatpush1.msra.mxu0 %v933
    %1652 = vmatprep.subr.mxu0 %v946
    %1653 = vmatpush1.msra.mxu0 %v945
    %1654 = vmatprep.subr.mxu0 %v958
    %1655 = vmatpush1.msra.mxu0 %v957
    %1656 = vmatprep.subr.mxu0 %v970
    %1657 = vmatpush1.msra.mxu0 %v969
    %1658 = vmatprep.subr.mxu0 %v982
    %1659 = vmatpush1.msra.mxu0 %v981
    %1660 = vmatprep.subr.mxu0 %v994
    %1661 = vmatpush1.msra.mxu0 %v993
    %1662 = vmatprep.subr.mxu0 %v1006
    %1663 = vmatpush1.msra.mxu0 %v1005
    %1664 = vmatprep.subr.mxu0 %v1018
    %1665 = vmatpush1.msra.mxu0 %v1017
    %1666 = vmatprep.subr.mxu0 %v1030
    %1667 = vmatpush1.msra.mxu0 %v1029
    %1668 = vmatprep.subr.mxu0 %v1042
    %1669 = vmatpush1.msra.mxu0 %v1041
    %1670 = vmatprep.subr.mxu0 %v1054
    %1671 = vmatpush1.msra.mxu0 %v1053
    %1672 = vmatprep.subr.mxu0 %v1066
    %1673 = vmatpush1.msra.mxu0 %v1065
    %1674 = vmatprep.subr.mxu0 %v1078
    %1675 = vmatpush1.msra.mxu0 %v1077
    %1676 = vmatprep.subr.mxu0 %v1090
    %1677 = vmatpush1.msra.mxu0 %v1089
    %1678 = vmatprep.subr.mxu0 %v1102
    %1679 = vmatpush1.msra.mxu0 %v1101
    %1680 = vmatprep.subr.mxu0 %v1114
    %1681 = vmatpush1.msra.mxu0 %v1113
    %1682 = vmatprep.subr.mxu0 %v1126
    %1683 = vmatpush1.msra.mxu0 %v1125
    %1684 = vmatprep.subr.mxu0 %v1138
    %1685 = vmatpush1.msra.mxu0 %v1137
    %1686 = vmatprep.subr.mxu0 %v1150
    %1687 = vmatpush1.msra.mxu0 %v1149
    %1688 = vmatprep.subr.mxu0 %v1162
    %1689 = vmatpush1.msra.mxu0 %v1161
    %1690 = vmatprep.subr.mxu0 %v1174
    %1691 = vmatpush1.msra.mxu0 %v1173
    %1692 = vmatprep.subr.mxu0 %v1186
    %1693 = vmatpush1.msra.mxu0 %v1185
    %1694 = vmatprep.subr.mxu0 %v1198
    %1695 = vmatpush1.msra.mxu0 %v1197
    %1696 = vmatprep.subr.mxu0 %v1210
    %1697 = vmatpush1.msra.mxu0 %v1209
    %1698 = vmatprep.subr.mxu0 %v1222
    %1699 = vmatpush1.msra.mxu0 %v1221
    %1700 = vmatprep.subr.mxu0 %v1234
    %1701 = vmatpush1.msra.mxu0 %v1233
    %1702 = vmatprep.subr.mxu0 %v1246
    %1703 = vmatpush1.msra.mxu0 %v1245
    %1704 = vmatprep.subr.mxu0 %v1258
    %1705 = vmatpush1.msra.mxu0 %v1257
    %1706 = vmatprep.subr.mxu0 %v1270
    %1707 = vmatpush1.msra.mxu0 %v1269
    %1708 = vmatprep.subr.mxu0 %v1282
    %1709 = vmatpush1.msra.mxu0 %v1281
    %1710 = vmatprep.mubr.f32.mxu0 %v138
    %1711 = vmatmul.mubr.f32.gmra.mrb[0].mxu0 %v137
    %v1712 = vpop.f32.mrb[0].mxu0
    %v1713 = vadd.f32 %v1642, %v1712
    %v1714 = vpop.f32.mrb[0].mxu0
    %v1715 = vadd.f32 %v1644, %v1714
    %1716 = vdwg.mxu0
    %1717 = vmatprep.subr.mxu0 %v144
    %1718 = vmatpush1.msra.mxu0 %v143
    %1719 = vmatprep.subr.mxu0 %v156
    %1720 = vmatpush1.msra.mxu0 %v155
    %1721 = vmatprep.subr.mxu0 %v168
    %1722 = vmatpush1.msra.mxu0 %v167
    %1723 = vmatprep.subr.mxu0 %v180
    %1724 = vmatpush1.msra.mxu0 %v179
    %1725 = vmatprep.subr.mxu0 %v192
    %1726 = vmatpush1.msra.mxu0 %v191
    %1727 = vmatprep.subr.mxu0 %v204
    %1728 = vmatpush1.msra.mxu0 %v203
    %1729 = vmatprep.subr.mxu0 %v216
    %1730 = vmatpush1.msra.mxu0 %v215
    %1731 = vmatprep.subr.mxu0 %v228
    %1732 = vmatpush1.msra.mxu0 %v227
    %1733 = vmatprep.subr.mxu0 %v240
    %1734 = vmatpush1.msra.mxu0 %v239
    %1735 = vmatprep.subr.mxu0 %v252
    %1736 = vmatpush1.msra.mxu0 %v251
    %1737 = vmatprep.subr.mxu0 %v264
    %1738 = vmatpush1.msra.mxu0 %v263
    %1739 = vmatprep.subr.mxu0 %v276
    %1740 = vmatpush1.msra.mxu0 %v275
    %1741 = vmatprep.subr.mxu0 %v288
    %1742 = vmatpush1.msra.mxu0 %v287
    %1743 = vmatprep.subr.mxu0 %v300
    %1744 = vmatpush1.msra.mxu0 %v299
    %1745 = vmatprep.subr.mxu0 %v312
    %1746 = vmatpush1.msra.mxu0 %v311
    %1747 = vmatprep.subr.mxu0 %v324
    %1748 = vmatpush1.msra.mxu0 %v323
    %1749 = vmatprep.subr.mxu0 %v336
    %1750 = vmatpush1.msra.mxu0 %v335
    %1751 = vmatprep.subr.mxu0 %v348
    %1752 = vmatpush1.msra.mxu0 %v347
    %1753 = vmatprep.subr.mxu0 %v360
    %1754 = vmatpush1.msra.mxu0 %v359
    %1755 = vmatprep.subr.mxu0 %v372
    %1756 = vmatpush1.msra.mxu0 %v371
    %1757 = vmatprep.subr.mxu0 %v384
    %1758 = vmatpush1.msra.mxu0 %v383
    %1759 = vmatprep.subr.mxu0 %v396
    %1760 = vmatpush1.msra.mxu0 %v395
    %1761 = vmatprep.subr.mxu0 %v408
    %1762 = vmatpush1.msra.mxu0 %v407
    %1763 = vmatprep.subr.mxu0 %v420
    %1764 = vmatpush1.msra.mxu0 %v419
    %1765 = vmatprep.subr.mxu0 %v432
    %1766 = vmatpush1.msra.mxu0 %v431
    %1767 = vmatprep.subr.mxu0 %v444
    %1768 = vmatpush1.msra.mxu0 %v443
    %1769 = vmatprep.subr.mxu0 %v456
    %1770 = vmatpush1.msra.mxu0 %v455
    %1771 = vmatprep.subr.mxu0 %v468
    %1772 = vmatpush1.msra.mxu0 %v467
    %1773 = vmatprep.subr.mxu0 %v480
    %1774 = vmatpush1.msra.mxu0 %v479
    %1775 = vmatprep.subr.mxu0 %v492
    %1776 = vmatpush1.msra.mxu0 %v491
    %1777 = vmatprep.subr.mxu0 %v504
    %1778 = vmatpush1.msra.mxu0 %v503
    %1779 = vmatprep.subr.mxu0 %v516
    %1780 = vmatpush1.msra.mxu0 %v515
    %1781 = vmatprep.mubr.f32.mxu0 %v134
    %1782 = vmatmul.mubr.f32.gmra.mrb[0].mxu0 %v133
    %v1783 = vpop.f32.mrb[0].mxu0
    %v1784 = vadd.f32 0.0, %v1783
    %v1785 = vpop.f32.mrb[0].mxu0
    %v1786 = vadd.f32 0.0, %v1785
    %1787 = vdwg.mxu0
    %1788 = vmatprep.subr.mxu0 %v528
    %1789 = vmatpush1.msra.mxu0 %v527
    %1790 = vmatprep.subr.mxu0 %v540
    %1791 = vmatpush1.msra.mxu0 %v539
    %1792 = vmatprep.subr.mxu0 %v552
    %1793 = vmatpush1.msra.mxu0 %v551
    %1794 = vmatprep.subr.mxu0 %v564
    %1795 = vmatpush1.msra.mxu0 %v563
    %1796 = vmatprep.subr.mxu0 %v576
    %1797 = vmatpush1.msra.mxu0 %v575
    %1798 = vmatprep.subr.mxu0 %v588
    %1799 = vmatpush1.msra.mxu0 %v587
    %1800 = vmatprep.subr.mxu0 %v600
    %1801 = vmatpush1.msra.mxu0 %v599
    %1802 = vmatprep.subr.mxu0 %v612
    %1803 = vmatpush1.msra.mxu0 %v611
    %1804 = vmatprep.subr.mxu0 %v624
    %1805 = vmatpush1.msra.mxu0 %v623
    %1806 = vmatprep.subr.mxu0 %v636
    %1807 = vmatpush1.msra.mxu0 %v635
    %1808 = vmatprep.subr.mxu0 %v648
    %1809 = vmatpush1.msra.mxu0 %v647
    %1810 = vmatprep.subr.mxu0 %v660
    %1811 = vmatpush1.msra.mxu0 %v659
    %1812 = vmatprep.subr.mxu0 %v672
    %1813 = vmatpush1.msra.mxu0 %v671
    %1814 = vmatprep.subr.mxu0 %v684
    %1815 = vmatpush1.msra.mxu0 %v683
    %1816 = vmatprep.subr.mxu0 %v696
    %1817 = vmatpush1.msra.mxu0 %v695
    %1818 = vmatprep.subr.mxu0 %v708
    %1819 = vmatpush1.msra.mxu0 %v707
    %1820 = vmatprep.subr.mxu0 %v720
    %1821 = vmatpush1.msra.mxu0 %v719
    %1822 = vmatprep.subr.mxu0 %v732
    %1823 = vmatpush1.msra.mxu0 %v731
    %1824 = vmatprep.subr.mxu0 %v744
    %1825 = vmatpush1.msra.mxu0 %v743
    %1826 = vmatprep.subr.mxu0 %v756
    %1827 = vmatpush1.msra.mxu0 %v755
    %1828 = vmatprep.subr.mxu0 %v768
    %1829 = vmatpush1.msra.mxu0 %v767
    %1830 = vmatprep.subr.mxu0 %v780
    %1831 = vmatpush1.msra.mxu0 %v779
    %1832 = vmatprep.subr.mxu0 %v792
    %1833 = vmatpush1.msra.mxu0 %v791
    %1834 = vmatprep.subr.mxu0 %v804
    %1835 = vmatpush1.msra.mxu0 %v803
    %1836 = vmatprep.subr.mxu0 %v816
    %1837 = vmatpush1.msra.mxu0 %v815
    %1838 = vmatprep.subr.mxu0 %v828
    %1839 = vmatpush1.msra.mxu0 %v827
    %1840 = vmatprep.subr.mxu0 %v840
    %1841 = vmatpush1.msra.mxu0 %v839
    %1842 = vmatprep.subr.mxu0 %v852
    %1843 = vmatpush1.msra.mxu0 %v851
    %1844 = vmatprep.subr.mxu0 %v864
    %1845 = vmatpush1.msra.mxu0 %v863
    %1846 = vmatprep.subr.mxu0 %v876
    %1847 = vmatpush1.msra.mxu0 %v875
    %1848 = vmatprep.subr.mxu0 %v888
    %1849 = vmatpush1.msra.mxu0 %v887
    %1850 = vmatprep.subr.mxu0 %v900
    %1851 = vmatpush1.msra.mxu0 %v899
    %1852 = vmatprep.mubr.f32.mxu0 %v136
    %1853 = vmatmul.mubr.f32.gmra.mrb[0].mxu0 %v135
    %v1854 = vpop.f32.mrb[0].mxu0
    %v1855 = vadd.f32 %v1784, %v1854
    %v1856 = vpop.f32.mrb[0].mxu0
    %v1857 = vadd.f32 %v1786, %v1856
    %1858 = vdwg.mxu0
    %1859 = vmatprep.subr.mxu0 %v912
    %1860 = vmatpush1.msra.mxu0 %v911
    %1861 = vmatprep.subr.mxu0 %v924
    %1862 = vmatpush1.msra.mxu0 %v923
    %1863 = vmatprep.subr.mxu0 %v936
    %1864 = vmatpush1.msra.mxu0 %v935
    %1865 = vmatprep.subr.mxu0 %v948
    %1866 = vmatpush1.msra.mxu0 %v947
    %1867 = vmatprep.subr.mxu0 %v960
    %1868 = vmatpush1.msra.mxu0 %v959
    %1869 = vmatprep.subr.mxu0 %v972
    %1870 = vmatpush1.msra.mxu0 %v971
    %1871 = vmatprep.subr.mxu0 %v984
    %1872 = vmatpush1.msra.mxu0 %v983
    %1873 = vmatprep.subr.mxu0 %v996
    %1874 = vmatpush1.msra.mxu0 %v995
    %1875 = vmatprep.subr.mxu0 %v1008
    %1876 = vmatpush1.msra.mxu0 %v1007
    %1877 = vmatprep.subr.mxu0 %v1020
    %1878 = vmatpush1.msra.mxu0 %v1019
    %1879 = vmatprep.subr.mxu0 %v1032
    %1880 = vmatpush1.msra.mxu0 %v1031
    %1881 = vmatprep.subr.mxu0 %v1044
    %1882 = vmatpush1.msra.mxu0 %v1043
    %1883 = vmatprep.subr.mxu0 %v1056
    %1884 = vmatpush1.msra.mxu0 %v1055
    %1885 = vmatprep.subr.mxu0 %v1068
    %1886 = vmatpush1.msra.mxu0 %v1067
    %1887 = vmatprep.subr.mxu0 %v1080
    %1888 = vmatpush1.msra.mxu0 %v1079
    %1889 = vmatprep.subr.mxu0 %v1092
    %1890 = vmatpush1.msra.mxu0 %v1091
    %1891 = vmatprep.subr.mxu0 %v1104
    %1892 = vmatpush1.msra.mxu0 %v1103
    %1893 = vmatprep.subr.mxu0 %v1116
    %1894 = vmatpush1.msra.mxu0 %v1115
    %1895 = vmatprep.subr.mxu0 %v1128
    %1896 = vmatpush1.msra.mxu0 %v1127
    %1897 = vmatprep.subr.mxu0 %v1140
    %1898 = vmatpush1.msra.mxu0 %v1139
    %1899 = vmatprep.subr.mxu0 %v1152
    %1900 = vmatpush1.msra.mxu0 %v1151
    %1901 = vmatprep.subr.mxu0 %v1164
    %1902 = vmatpush1.msra.mxu0 %v1163
    %1903 = vmatprep.subr.mxu0 %v1176
    %1904 = vmatpush1.msra.mxu0 %v1175
    %1905 = vmatprep.subr.mxu0 %v1188
    %1906 = vmatpush1.msra.mxu0 %v1187
    %1907 = vmatprep.subr.mxu0 %v1200
    %1908 = vmatpush1.msra.mxu0 %v1199
    %1909 = vmatprep.subr.mxu0 %v1212
    %1910 = vmatpush1.msra.mxu0 %v1211
    %1911 = vmatprep.subr.mxu0 %v1224
    %1912 = vmatpush1.msra.mxu0 %v1223
    %1913 = vmatprep.subr.mxu0 %v1236
    %1914 = vmatpush1.msra.mxu0 %v1235
    %1915 = vmatprep.subr.mxu0 %v1248
    %1916 = vmatpush1.msra.mxu0 %v1247
    %1917 = vmatprep.subr.mxu0 %v1260
    %1918 = vmatpush1.msra.mxu0 %v1259
    %1919 = vmatprep.subr.mxu0 %v1272
    %1920 = vmatpush1.msra.mxu0 %v1271
    %1921 = vmatprep.subr.mxu0 %v1284
    %1922 = vmatpush1.msra.mxu0 %v1283
    %1923 = vmatprep.mubr.f32.mxu0 %v138
    %1924 = vmatmul.mubr.f32.gmra.mrb[0].mxu0 %v137
    %v1925 = vpop.f32.mrb[0].mxu0
    %v1926 = vadd.f32 %v1855, %v1925
    %v1927 = vpop.f32.mrb[0].mxu0
    %v1928 = vadd.f32 %v1857, %v1927
    %1929 = vdwg.mxu0
    %1930 = vmatprep.subr.mxu0 %v146
    %1931 = vmatpush1.msra.mxu0 %v145
    %1932 = vmatprep.subr.mxu0 %v158
    %1933 = vmatpush1.msra.mxu0 %v157
    %1934 = vmatprep.subr.mxu0 %v170
    %1935 = vmatpush1.msra.mxu0 %v169
    %1936 = vmatprep.subr.mxu0 %v182
    %1937 = vmatpush1.msra.mxu0 %v181
    %1938 = vmatprep.subr.mxu0 %v194
    %1939 = vmatpush1.msra.mxu0 %v193
    %1940 = vmatprep.subr.mxu0 %v206
    %1941 = vmatpush1.msra.mxu0 %v205
    %1942 = vmatprep.subr.mxu0 %v218
    %1943 = vmatpush1.msra.mxu0 %v217
    %1944 = vmatprep.subr.mxu0 %v230
    %1945 = vmatpush1.msra.mxu0 %v229
    %1946 = vmatprep.subr.mxu0 %v242
    %1947 = vmatpush1.msra.mxu0 %v241
    %1948 = vmatprep.subr.mxu0 %v254
    %1949 = vmatpush1.msra.mxu0 %v253
    %1950 = vmatprep.subr.mxu0 %v266
    %1951 = vmatpush1.msra.mxu0 %v265
    %1952 = vmatprep.subr.mxu0 %v278
    %1953 = vmatpush1.msra.mxu0 %v277
    %1954 = vmatprep.subr.mxu0 %v290
    %1955 = vmatpush1.msra.mxu0 %v289
    %1956 = vmatprep.subr.mxu0 %v302
    %1957 = vmatpush1.msra.mxu0 %v301
    %1958 = vmatprep.subr.mxu0 %v314
    %1959 = vmatpush1.msra.mxu0 %v313
    %1960 = vmatprep.subr.mxu0 %v326
    %1961 = vmatpush1.msra.mxu0 %v325
    %1962 = vmatprep.subr.mxu0 %v338
    %1963 = vmatpush1.msra.mxu0 %v337
    %1964 = vmatprep.subr.mxu0 %v350
    %1965 = vmatpush1.msra.mxu0 %v349
    %1966 = vmatprep.subr.mxu0 %v362
    %1967 = vmatpush1.msra.mxu0 %v361
    %1968 = vmatprep.subr.mxu0 %v374
    %1969 = vmatpush1.msra.mxu0 %v373
    %1970 = vmatprep.subr.mxu0 %v386
    %1971 = vmatpush1.msra.mxu0 %v385
    %1972 = vmatprep.subr.mxu0 %v398
    %1973 = vmatpush1.msra.mxu0 %v397
    %1974 = vmatprep.subr.mxu0 %v410
    %1975 = vmatpush1.msra.mxu0 %v409
    %1976 = vmatprep.subr.mxu0 %v422
    %1977 = vmatpush1.msra.mxu0 %v421
    %1978 = vmatprep.subr.mxu0 %v434
    %1979 = vmatpush1.msra.mxu0 %v433
    %1980 = vmatprep.subr.mxu0 %v446
    %1981 = vmatpush1.msra.mxu0 %v445
    %1982 = vmatprep.subr.mxu0 %v458
    %1983 = vmatpush1.msra.mxu0 %v457
    %1984 = vmatprep.subr.mxu0 %v470
    %1985 = vmatpush1.msra.mxu0 %v469
    %1986 = vmatprep.subr.mxu0 %v482
    %1987 = vmatpush1.msra.mxu0 %v481
    %1988 = vmatprep.subr.mxu0 %v494
    %1989 = vmatpush1.msra.mxu0 %v493
    %1990 = vmatprep.subr.mxu0 %v506
    %1991 = vmatpush1.msra.mxu0 %v505
    %1992 = vmatprep.subr.mxu0 %v518
    %1993 = vmatpush1.msra.mxu0 %v517
    %1994 = vmatprep.mubr.f32.mxu0 %v134
    %1995 = vmatmul.mubr.f32.gmra.mrb[0].mxu0 %v133
    %v1996 = vpop.f32.mrb[0].mxu0
    %v1997 = vadd.f32 0.0, %v1996
    %v1998 = vpop.f32.mrb[0].mxu0
    %v1999 = vadd.f32 0.0, %v1998
    %2000 = vdwg.mxu0
    %2001 = vmatprep.subr.mxu0 %v530
    %2002 = vmatpush1.msra.mxu0 %v529
    %2003 = vmatprep.subr.mxu0 %v542
    %2004 = vmatpush1.msra.mxu0 %v541
    %2005 = vmatprep.subr.mxu0 %v554
    %2006 = vmatpush1.msra.mxu0 %v553
    %2007 = vmatprep.subr.mxu0 %v566
    %2008 = vmatpush1.msra.mxu0 %v565
    %2009 = vmatprep.subr.mxu0 %v578
    %2010 = vmatpush1.msra.mxu0 %v577
    %2011 = vmatprep.subr.mxu0 %v590
    %2012 = vmatpush1.msra.mxu0 %v589
    %2013 = vmatprep.subr.mxu0 %v602
    %2014 = vmatpush1.msra.mxu0 %v601
    %2015 = vmatprep.subr.mxu0 %v614
    %2016 = vmatpush1.msra.mxu0 %v613
    %2017 = vmatprep.subr.mxu0 %v626
    %2018 = vmatpush1.msra.mxu0 %v625
    %2019 = vmatprep.subr.mxu0 %v638
    %2020 = vmatpush1.msra.mxu0 %v637
    %2021 = vmatprep.subr.mxu0 %v650
    %2022 = vmatpush1.msra.mxu0 %v649
    %2023 = vmatprep.subr.mxu0 %v662
    %2024 = vmatpush1.msra.mxu0 %v661
    %2025 = vmatprep.subr.mxu0 %v674
    %2026 = vmatpush1.msra.mxu0 %v673
    %2027 = vmatprep.subr.mxu0 %v686
    %2028 = vmatpush1.msra.mxu0 %v685
    %2029 = vmatprep.subr.mxu0 %v698
    %2030 = vmatpush1.msra.mxu0 %v697
    %2031 = vmatprep.subr.mxu0 %v710
    %2032 = vmatpush1.msra.mxu0 %v709
    %2033 = vmatprep.subr.mxu0 %v722
    %2034 = vmatpush1.msra.mxu0 %v721
    %2035 = vmatprep.subr.mxu0 %v734
    %2036 = vmatpush1.msra.mxu0 %v733
    %2037 = vmatprep.subr.mxu0 %v746
    %2038 = vmatpush1.msra.mxu0 %v745
    %2039 = vmatprep.subr.mxu0 %v758
    %2040 = vmatpush1.msra.mxu0 %v757
    %2041 = vmatprep.subr.mxu0 %v770
    %2042 = vmatpush1.msra.mxu0 %v769
    %2043 = vmatprep.subr.mxu0 %v782
    %2044 = vmatpush1.msra.mxu0 %v781
    %2045 = vmatprep.subr.mxu0 %v794
    %2046 = vmatpush1.msra.mxu0 %v793
    %2047 = vmatprep.subr.mxu0 %v806
    %2048 = vmatpush1.msra.mxu0 %v805
    %2049 = vmatprep.subr.mxu0 %v818
    %2050 = vmatpush1.msra.mxu0 %v817
    %2051 = vmatprep.subr.mxu0 %v830
    %2052 = vmatpush1.msra.mxu0 %v829
    %2053 = vmatprep.subr.mxu0 %v842
    %2054 = vmatpush1.msra.mxu0 %v841
    %2055 = vmatprep.subr.mxu0 %v854
    %2056 = vmatpush1.msra.mxu0 %v853
    %2057 = vmatprep.subr.mxu0 %v866
    %2058 = vmatpush1.msra.mxu0 %v865
    %2059 = vmatprep.subr.mxu0 %v878
    %2060 = vmatpush1.msra.mxu0 %v877
    %2061 = vmatprep.subr.mxu0 %v890
    %2062 = vmatpush1.msra.mxu0 %v889
    %2063 = vmatprep.subr.mxu0 %v902
    %2064 = vmatpush1.msra.mxu0 %v901
    %2065 = vmatprep.mubr.f32.mxu0 %v136
    %2066 = vmatmul.mubr.f32.gmra.mrb[0].mxu0 %v135
    %v2067 = vpop.f32.mrb[0].mxu0
    %v2068 = vadd.f32 %v1997, %v2067
    %v2069 = vpop.f32.mrb[0].mxu0
    %v2070 = vadd.f32 %v1999, %v2069
    %2071 = vdwg.mxu0
    %2072 = vmatprep.subr.mxu0 %v914
    %2073 = vmatpush1.msra.mxu0 %v913
    %2074 = vmatprep.subr.mxu0 %v926
    %2075 = vmatpush1.msra.mxu0 %v925
    %2076 = vmatprep.subr.mxu0 %v938
    %2077 = vmatpush1.msra.mxu0 %v937
    %2078 = vmatprep.subr.mxu0 %v950
    %2079 = vmatpush1.msra.mxu0 %v949
    %2080 = vmatprep.subr.mxu0 %v962
    %2081 = vmatpush1.msra.mxu0 %v961
    %2082 = vmatprep.subr.mxu0 %v974
    %2083 = vmatpush1.msra.mxu0 %v973
    %2084 = vmatprep.subr.mxu0 %v986
    %2085 = vmatpush1.msra.mxu0 %v985
    %2086 = vmatprep.subr.mxu0 %v998
    %2087 = vmatpush1.msra.mxu0 %v997
    %2088 = vmatprep.subr.mxu0 %v1010
    %2089 = vmatpush1.msra.mxu0 %v1009
    %2090 = vmatprep.subr.mxu0 %v1022
    %2091 = vmatpush1.msra.mxu0 %v1021
    %2092 = vmatprep.subr.mxu0 %v1034
    %2093 = vmatpush1.msra.mxu0 %v1033
    %2094 = vmatprep.subr.mxu0 %v1046
    %2095 = vmatpush1.msra.mxu0 %v1045
    %2096 = vmatprep.subr.mxu0 %v1058
    %2097 = vmatpush1.msra.mxu0 %v1057
    %2098 = vmatprep.subr.mxu0 %v1070
    %2099 = vmatpush1.msra.mxu0 %v1069
    %2100 = vmatprep.subr.mxu0 %v1082
    %2101 = vmatpush1.msra.mxu0 %v1081
    %2102 = vmatprep.subr.mxu0 %v1094
    %2103 = vmatpush1.msra.mxu0 %v1093
    %2104 = vmatprep.subr.mxu0 %v1106
    %2105 = vmatpush1.msra.mxu0 %v1105
    %2106 = vmatprep.subr.mxu0 %v1118
    %2107 = vmatpush1.msra.mxu0 %v1117
    %2108 = vmatprep.subr.mxu0 %v1130
    %2109 = vmatpush1.msra.mxu0 %v1129
    %2110 = vmatprep.subr.mxu0 %v1142
    %2111 = vmatpush1.msra.mxu0 %v1141
    %2112 = vmatprep.subr.mxu0 %v1154
    %2113 = vmatpush1.msra.mxu0 %v1153
    %2114 = vmatprep.subr.mxu0 %v1166
    %2115 = vmatpush1.msra.mxu0 %v1165
    %2116 = vmatprep.subr.mxu0 %v1178
    %2117 = vmatpush1.msra.mxu0 %v1177
    %2118 = vmatprep.subr.mxu0 %v1190
    %2119 = vmatpush1.msra.mxu0 %v1189
    %2120 = vmatprep.subr.mxu0 %v1202
    %2121 = vmatpush1.msra.mxu0 %v1201
    %2122 = vmatprep.subr.mxu0 %v1214
    %2123 = vmatpush1.msra.mxu0 %v1213
    %2124 = vmatprep.subr.mxu0 %v1226
    %2125 = vmatpush1.msra.mxu0 %v1225
    %2126 = vmatprep.subr.mxu0 %v1238
    %2127 = vmatpush1.msra.mxu0 %v1237
    %2128 = vmatprep.subr.mxu0 %v1250
    %2129 = vmatpush1.msra.mxu0 %v1249
    %2130 = vmatprep.subr.mxu0 %v1262
    %2131 = vmatpush1.msra.mxu0 %v1261
    %2132 = vmatprep.subr.mxu0 %v1274
    %2133 = vmatpush1.msra.mxu0 %v1273
    %2134 = vmatprep.subr.mxu0 %v1286
    %2135 = vmatpush1.msra.mxu0 %v1285
    %2136 = vmatprep.mubr.f32.mxu0 %v138
    %2137 = vmatmul.mubr.f32.gmra.mrb[0].mxu0 %v137
    %v2138 = vpop.f32.mrb[0].mxu0
    %v2139 = vadd.f32 %v2068, %v2138
    %v2140 = vpop.f32.mrb[0].mxu0
    %v2141 = vadd.f32 %v2070, %v2140
    %2142 = vdwg.mxu0
    %2143 = vmatprep.subr.mxu0 %v148
    %2144 = vmatpush1.msra.mxu0 %v147
    %2145 = vmatprep.subr.mxu0 %v160
    %2146 = vmatpush1.msra.mxu0 %v159
    %2147 = vmatprep.subr.mxu0 %v172
    %2148 = vmatpush1.msra.mxu0 %v171
    %2149 = vmatprep.subr.mxu0 %v184
    %2150 = vmatpush1.msra.mxu0 %v183
    %2151 = vmatprep.subr.mxu0 %v196
    %2152 = vmatpush1.msra.mxu0 %v195
    %2153 = vmatprep.subr.mxu0 %v208
    %2154 = vmatpush1.msra.mxu0 %v207
    %2155 = vmatprep.subr.mxu0 %v220
    %2156 = vmatpush1.msra.mxu0 %v219
    %2157 = vmatprep.subr.mxu0 %v232
    %2158 = vmatpush1.msra.mxu0 %v231
    %2159 = vmatprep.subr.mxu0 %v244
    %2160 = vmatpush1.msra.mxu0 %v243
    %2161 = vmatprep.subr.mxu0 %v256
    %2162 = vmatpush1.msra.mxu0 %v255
    %2163 = vmatprep.subr.mxu0 %v268
    %2164 = vmatpush1.msra.mxu0 %v267
    %2165 = vmatprep.subr.mxu0 %v280
    %2166 = vmatpush1.msra.mxu0 %v279
    %2167 = vmatprep.subr.mxu0 %v292
    %2168 = vmatpush1.msra.mxu0 %v291
    %2169 = vmatprep.subr.mxu0 %v304
    %2170 = vmatpush1.msra.mxu0 %v303
    %2171 = vmatprep.subr.mxu0 %v316
    %2172 = vmatpush1.msra.mxu0 %v315
    %2173 = vmatprep.subr.mxu0 %v328
    %2174 = vmatpush1.msra.mxu0 %v327
    %2175 = vmatprep.subr.mxu0 %v340
    %2176 = vmatpush1.msra.mxu0 %v339
    %2177 = vmatprep.subr.mxu0 %v352
    %2178 = vmatpush1.msra.mxu0 %v351
    %2179 = vmatprep.subr.mxu0 %v364
    %2180 = vmatpush1.msra.mxu0 %v363
    %2181 = vmatprep.subr.mxu0 %v376
    %2182 = vmatpush1.msra.mxu0 %v375
    %2183 = vmatprep.subr.mxu0 %v388
    %2184 = vmatpush1.msra.mxu0 %v387
    %2185 = vmatprep.subr.mxu0 %v400
    %2186 = vmatpush1.msra.mxu0 %v399
    %2187 = vmatprep.subr.mxu0 %v412
    %2188 = vmatpush1.msra.mxu0 %v411
    %2189 = vmatprep.subr.mxu0 %v424
    %2190 = vmatpush1.msra.mxu0 %v423
    %2191 = vmatprep.subr.mxu0 %v436
    %2192 = vmatpush1.msra.mxu0 %v435
    %2193 = vmatprep.subr.mxu0 %v448
    %2194 = vmatpush1.msra.mxu0 %v447
    %2195 = vmatprep.subr.mxu0 %v460
    %2196 = vmatpush1.msra.mxu0 %v459
    %2197 = vmatprep.subr.mxu0 %v472
    %2198 = vmatpush1.msra.mxu0 %v471
    %2199 = vmatprep.subr.mxu0 %v484
    %2200 = vmatpush1.msra.mxu0 %v483
    %2201 = vmatprep.subr.mxu0 %v496
    %2202 = vmatpush1.msra.mxu0 %v495
    %2203 = vmatprep.subr.mxu0 %v508
    %2204 = vmatpush1.msra.mxu0 %v507
    %2205 = vmatprep.subr.mxu0 %v520
    %2206 = vmatpush1.msra.mxu0 %v519
    %2207 = vmatprep.mubr.f32.mxu0 %v134
    %2208 = vmatmul.mubr.f32.gmra.mrb[0].mxu0 %v133
    %v2209 = vpop.f32.mrb[0].mxu0
    %v2210 = vadd.f32 0.0, %v2209
    %v2211 = vpop.f32.mrb[0].mxu0
    %v2212 = vadd.f32 0.0, %v2211
    %2213 = vdwg.mxu0
    %2214 = vmatprep.subr.mxu0 %v532
    %2215 = vmatpush1.msra.mxu0 %v531
    %2216 = vmatprep.subr.mxu0 %v544
    %2217 = vmatpush1.msra.mxu0 %v543
    %2218 = vmatprep.subr.mxu0 %v556
    %2219 = vmatpush1.msra.mxu0 %v555
    %2220 = vmatprep.subr.mxu0 %v568
    %2221 = vmatpush1.msra.mxu0 %v567
    %2222 = vmatprep.subr.mxu0 %v580
    %2223 = vmatpush1.msra.mxu0 %v579
    %2224 = vmatprep.subr.mxu0 %v592
    %2225 = vmatpush1.msra.mxu0 %v591
    %2226 = vmatprep.subr.mxu0 %v604
    %2227 = vmatpush1.msra.mxu0 %v603
    %2228 = vmatprep.subr.mxu0 %v616
    %2229 = vmatpush1.msra.mxu0 %v615
    %2230 = vmatprep.subr.mxu0 %v628
    %2231 = vmatpush1.msra.mxu0 %v627
    %2232 = vmatprep.subr.mxu0 %v640
    %2233 = vmatpush1.msra.mxu0 %v639
    %2234 = vmatprep.subr.mxu0 %v652
    %2235 = vmatpush1.msra.mxu0 %v651
    %2236 = vmatprep.subr.mxu0 %v664
    %2237 = vmatpush1.msra.mxu0 %v663
    %2238 = vmatprep.subr.mxu0 %v676
    %2239 = vmatpush1.msra.mxu0 %v675
    %2240 = vmatprep.subr.mxu0 %v688
    %2241 = vmatpush1.msra.mxu0 %v687
    %2242 = vmatprep.subr.mxu0 %v700
    %2243 = vmatpush1.msra.mxu0 %v699
    %2244 = vmatprep.subr.mxu0 %v712
    %2245 = vmatpush1.msra.mxu0 %v711
    %2246 = vmatprep.subr.mxu0 %v724
    %2247 = vmatpush1.msra.mxu0 %v723
    %2248 = vmatprep.subr.mxu0 %v736
    %2249 = vmatpush1.msra.mxu0 %v735
    %2250 = vmatprep.subr.mxu0 %v748
    %2251 = vmatpush1.msra.mxu0 %v747
    %2252 = vmatprep.subr.mxu0 %v760
    %2253 = vmatpush1.msra.mxu0 %v759
    %2254 = vmatprep.subr.mxu0 %v772
    %2255 = vmatpush1.msra.mxu0 %v771
    %2256 = vmatprep.subr.mxu0 %v784
    %2257 = vmatpush1.msra.mxu0 %v783
    %2258 = vmatprep.subr.mxu0 %v796
    %2259 = vmatpush1.msra.mxu0 %v795
    %2260 = vmatprep.subr.mxu0 %v808
    %2261 = vmatpush1.msra.mxu0 %v807
    %2262 = vmatprep.subr.mxu0 %v820
    %2263 = vmatpush1.msra.mxu0 %v819
    %2264 = vmatprep.subr.mxu0 %v832
    %2265 = vmatpush1.msra.mxu0 %v831
    %2266 = vmatprep.subr.mxu0 %v844
    %2267 = vmatpush1.msra.mxu0 %v843
    %2268 = vmatprep.subr.mxu0 %v856
    %2269 = vmatpush1.msra.mxu0 %v855
    %2270 = vmatprep.subr.mxu0 %v868
    %2271 = vmatpush1.msra.mxu0 %v867
    %2272 = vmatprep.subr.mxu0 %v880
    %2273 = vmatpush1.msra.mxu0 %v879
    %2274 = vmatprep.subr.mxu0 %v892
    %2275 = vmatpush1.msra.mxu0 %v891
    %2276 = vmatprep.subr.mxu0 %v904
    %2277 = vmatpush1.msra.mxu0 %v903
    %2278 = vmatprep.mubr.f32.mxu0 %v136
    %2279 = vmatmul.mubr.f32.gmra.mrb[0].mxu0 %v135
    %v2280 = vpop.f32.mrb[0].mxu0
    %v2281 = vadd.f32 %v2210, %v2280
    %v2282 = vpop.f32.mrb[0].mxu0
    %v2283 = vadd.f32 %v2212, %v2282
    %2284 = vdwg.mxu0
    %2285 = vmatprep.subr.mxu0 %v916
    %2286 = vmatpush1.msra.mxu0 %v915
    %2287 = vmatprep.subr.mxu0 %v928
    %2288 = vmatpush1.msra.mxu0 %v927
    %2289 = vmatprep.subr.mxu0 %v940
    %2290 = vmatpush1.msra.mxu0 %v939
    %2291 = vmatprep.subr.mxu0 %v952
    %2292 = vmatpush1.msra.mxu0 %v951
    %2293 = vmatprep.subr.mxu0 %v964
    %2294 = vmatpush1.msra.mxu0 %v963
    %2295 = vmatprep.subr.mxu0 %v976
    %2296 = vmatpush1.msra.mxu0 %v975
    %2297 = vmatprep.subr.mxu0 %v988
    %2298 = vmatpush1.msra.mxu0 %v987
    %2299 = vmatprep.subr.mxu0 %v1000
    %2300 = vmatpush1.msra.mxu0 %v999
    %2301 = vmatprep.subr.mxu0 %v1012
    %2302 = vmatpush1.msra.mxu0 %v1011
    %2303 = vmatprep.subr.mxu0 %v1024
    %2304 = vmatpush1.msra.mxu0 %v1023
    %2305 = vmatprep.subr.mxu0 %v1036
    %2306 = vmatpush1.msra.mxu0 %v1035
    %2307 = vmatprep.subr.mxu0 %v1048
    %2308 = vmatpush1.msra.mxu0 %v1047
    %2309 = vmatprep.subr.mxu0 %v1060
    %2310 = vmatpush1.msra.mxu0 %v1059
    %2311 = vmatprep.subr.mxu0 %v1072
    %2312 = vmatpush1.msra.mxu0 %v1071
    %2313 = vmatprep.subr.mxu0 %v1084
    %2314 = vmatpush1.msra.mxu0 %v1083
    %2315 = vmatprep.subr.mxu0 %v1096
    %2316 = vmatpush1.msra.mxu0 %v1095
    %2317 = vmatprep.subr.mxu0 %v1108
    %2318 = vmatpush1.msra.mxu0 %v1107
    %2319 = vmatprep.subr.mxu0 %v1120
    %2320 = vmatpush1.msra.mxu0 %v1119
    %2321 = vmatprep.subr.mxu0 %v1132
    %2322 = vmatpush1.msra.mxu0 %v1131
    %2323 = vmatprep.subr.mxu0 %v1144
    %2324 = vmatpush1.msra.mxu0 %v1143
    %2325 = vmatprep.subr.mxu0 %v1156
    %2326 = vmatpush1.msra.mxu0 %v1155
    %2327 = vmatprep.subr.mxu0 %v1168
    %2328 = vmatpush1.msra.mxu0 %v1167
    %2329 = vmatprep.subr.mxu0 %v1180
    %2330 = vmatpush1.msra.mxu0 %v1179
    %2331 = vmatprep.subr.mxu0 %v1192
    %2332 = vmatpush1.msra.mxu0 %v1191
    %2333 = vmatprep.subr.mxu0 %v1204
    %2334 = vmatpush1.msra.mxu0 %v1203
    %2335 = vmatprep.subr.mxu0 %v1216
    %2336 = vmatpush1.msra.mxu0 %v1215
    %2337 = vmatprep.subr.mxu0 %v1228
    %2338 = vmatpush1.msra.mxu0 %v1227
    %2339 = vmatprep.subr.mxu0 %v1240
    %2340 = vmatpush1.msra.mxu0 %v1239
    %2341 = vmatprep.subr.mxu0 %v1252
    %2342 = vmatpush1.msra.mxu0 %v1251
    %2343 = vmatprep.subr.mxu0 %v1264
    %2344 = vmatpush1.msra.mxu0 %v1263
    %2345 = vmatprep.subr.mxu0 %v1276
    %2346 = vmatpush1.msra.mxu0 %v1275
    %2347 = vmatprep.subr.mxu0 %v1288
    %2348 = vmatpush1.msra.mxu0 %v1287
    %2349 = vmatprep.mubr.f32.mxu0 %v138
    %2350 = vmatmul.mubr.f32.gmra.mrb[0].mxu0 %v137
    %v2351 = vpop.f32.mrb[0].mxu0
    %v2352 = vadd.f32 %v2281, %v2351
    %v2353 = vpop.f32.mrb[0].mxu0
    %v2354 = vadd.f32 %v2283, %v2353
    %2355 = vdwg.mxu0
    %2356 = vmatprep.subr.mxu0 %v150
    %2357 = vmatpush1.msra.mxu0 %v149
    %2358 = vmatprep.subr.mxu0 %v162
    %2359 = vmatpush1.msra.mxu0 %v161
    %2360 = vmatprep.subr.mxu0 %v174
    %2361 = vmatpush1.msra.mxu0 %v173
    %2362 = vmatprep.subr.mxu0 %v186
    %2363 = vmatpush1.msra.mxu0 %v185
    %2364 = vmatprep.subr.mxu0 %v198
    %2365 = vmatpush1.msra.mxu0 %v197
    %2366 = vmatprep.subr.mxu0 %v210
    %2367 = vmatpush1.msra.mxu0 %v209
    %2368 = vmatprep.subr.mxu0 %v222
    %2369 = vmatpush1.msra.mxu0 %v221
    %2370 = vmatprep.subr.mxu0 %v234
    %2371 = vmatpush1.msra.mxu0 %v233
    %2372 = vmatprep.subr.mxu0 %v246
    %2373 = vmatpush1.msra.mxu0 %v245
    %2374 = vmatprep.subr.mxu0 %v258
    %2375 = vmatpush1.msra.mxu0 %v257
    %2376 = vmatprep.subr.mxu0 %v270
    %2377 = vmatpush1.msra.mxu0 %v269
    %2378 = vmatprep.subr.mxu0 %v282
    %2379 = vmatpush1.msra.mxu0 %v281
    %2380 = vmatprep.subr.mxu0 %v294
    %2381 = vmatpush1.msra.mxu0 %v293
    %2382 = vmatprep.subr.mxu0 %v306
    %2383 = vmatpush1.msra.mxu0 %v305
    %2384 = vmatprep.subr.mxu0 %v318
    %2385 = vmatpush1.msra.mxu0 %v317
    %2386 = vmatprep.subr.mxu0 %v330
    %2387 = vmatpush1.msra.mxu0 %v329
    %2388 = vmatprep.subr.mxu0 %v342
    %2389 = vmatpush1.msra.mxu0 %v341
    %2390 = vmatprep.subr.mxu0 %v354
    %2391 = vmatpush1.msra.mxu0 %v353
    %2392 = vmatprep.subr.mxu0 %v366
    %2393 = vmatpush1.msra.mxu0 %v365
    %2394 = vmatprep.subr.mxu0 %v378
    %2395 = vmatpush1.msra.mxu0 %v377
    %2396 = vmatprep.subr.mxu0 %v390
    %2397 = vmatpush1.msra.mxu0 %v389
    %2398 = vmatprep.subr.mxu0 %v402
    %2399 = vmatpush1.msra.mxu0 %v401
    %2400 = vmatprep.subr.mxu0 %v414
    %2401 = vmatpush1.msra.mxu0 %v413
    %2402 = vmatprep.subr.mxu0 %v426
    %2403 = vmatpush1.msra.mxu0 %v425
    %2404 = vmatprep.subr.mxu0 %v438
    %2405 = vmatpush1.msra.mxu0 %v437
    %2406 = vmatprep.subr.mxu0 %v450
    %2407 = vmatpush1.msra.mxu0 %v449
    %2408 = vmatprep.subr.mxu0 %v462
    %2409 = vmatpush1.msra.mxu0 %v461
    %2410 = vmatprep.subr.mxu0 %v474
    %2411 = vmatpush1.msra.mxu0 %v473
    %2412 = vmatprep.subr.mxu0 %v486
    %2413 = vmatpush1.msra.mxu0 %v485
    %2414 = vmatprep.subr.mxu0 %v498
    %2415 = vmatpush1.msra.mxu0 %v497
    %2416 = vmatprep.subr.mxu0 %v510
    %2417 = vmatpush1.msra.mxu0 %v509
    %2418 = vmatprep.subr.mxu0 %v522
    %2419 = vmatpush1.msra.mxu0 %v521
    %2420 = vmatprep.mubr.f32.mxu0 %v134
    %2421 = vmatmul.mubr.f32.gmra.mrb[0].mxu0 %v133
    %v2422 = vpop.f32.mrb[0].mxu0
    %v2423 = vadd.f32 0.0, %v2422
    %v2424 = vpop.f32.mrb[0].mxu0
    %v2425 = vadd.f32 0.0, %v2424
    %2426 = vdwg.mxu0
    %2427 = vmatprep.subr.mxu0 %v534
    %2428 = vmatpush1.msra.mxu0 %v533
    %2429 = vmatprep.subr.mxu0 %v546
    %2430 = vmatpush1.msra.mxu0 %v545
    %2431 = vmatprep.subr.mxu0 %v558
    %2432 = vmatpush1.msra.mxu0 %v557
    %2433 = vmatprep.subr.mxu0 %v570
    %2434 = vmatpush1.msra.mxu0 %v569
    %2435 = vmatprep.subr.mxu0 %v582
    %2436 = vmatpush1.msra.mxu0 %v581
    %2437 = vmatprep.subr.mxu0 %v594
    %2438 = vmatpush1.msra.mxu0 %v593
    %2439 = vmatprep.subr.mxu0 %v606
    %2440 = vmatpush1.msra.mxu0 %v605
    %2441 = vmatprep.subr.mxu0 %v618
    %2442 = vmatpush1.msra.mxu0 %v617
    %2443 = vmatprep.subr.mxu0 %v630
    %2444 = vmatpush1.msra.mxu0 %v629
    %2445 = vmatprep.subr.mxu0 %v642
    %2446 = vmatpush1.msra.mxu0 %v641
    %2447 = vmatprep.subr.mxu0 %v654
    %2448 = vmatpush1.msra.mxu0 %v653
    %2449 = vmatprep.subr.mxu0 %v666
    %2450 = vmatpush1.msra.mxu0 %v665
    %2451 = vmatprep.subr.mxu0 %v678
    %2452 = vmatpush1.msra.mxu0 %v677
    %2453 = vmatprep.subr.mxu0 %v690
    %2454 = vmatpush1.msra.mxu0 %v689
    %2455 = vmatprep.subr.mxu0 %v702
    %2456 = vmatpush1.msra.mxu0 %v701
    %2457 = vmatprep.subr.mxu0 %v714
    %2458 = vmatpush1.msra.mxu0 %v713
    %2459 = vmatprep.subr.mxu0 %v726
    %2460 = vmatpush1.msra.mxu0 %v725
    %2461 = vmatprep.subr.mxu0 %v738
    %2462 = vmatpush1.msra.mxu0 %v737
    %2463 = vmatprep.subr.mxu0 %v750
    %2464 = vmatpush1.msra.mxu0 %v749
    %2465 = vmatprep.subr.mxu0 %v762
    %2466 = vmatpush1.msra.mxu0 %v761
    %2467 = vmatprep.subr.mxu0 %v774
    %2468 = vmatpush1.msra.mxu0 %v773
    %2469 = vmatprep.subr.mxu0 %v786
    %2470 = vmatpush1.msra.mxu0 %v785
    %2471 = vmatprep.subr.mxu0 %v798
    %2472 = vmatpush1.msra.mxu0 %v797
    %2473 = vmatprep.subr.mxu0 %v810
    %2474 = vmatpush1.msra.mxu0 %v809
    %2475 = vmatprep.subr.mxu0 %v822
    %2476 = vmatpush1.msra.mxu0 %v821
    %2477 = vmatprep.subr.mxu0 %v834
    %2478 = vmatpush1.msra.mxu0 %v833
    %2479 = vmatprep.subr.mxu0 %v846
    %2480 = vmatpush1.msra.mxu0 %v845
    %2481 = vmatprep.subr.mxu0 %v858
    %2482 = vmatpush1.msra.mxu0 %v857
    %2483 = vmatprep.subr.mxu0 %v870
    %2484 = vmatpush1.msra.mxu0 %v869
    %2485 = vmatprep.subr.mxu0 %v882
    %2486 = vmatpush1.msra.mxu0 %v881
    %2487 = vmatprep.subr.mxu0 %v894
    %2488 = vmatpush1.msra.mxu0 %v893
    %2489 = vmatprep.subr.mxu0 %v906
    %2490 = vmatpush1.msra.mxu0 %v905
    %2491 = vmatprep.mubr.f32.mxu0 %v136
    %2492 = vmatmul.mubr.f32.gmra.mrb[0].mxu0 %v135
    %v2493 = vpop.f32.mrb[0].mxu0
    %v2494 = vadd.f32 %v2423, %v2493
    %v2495 = vpop.f32.mrb[0].mxu0
    %v2496 = vadd.f32 %v2425, %v2495
    %2497 = vdwg.mxu0
    %2498 = vmatprep.subr.mxu0 %v918
    %2499 = vmatpush1.msra.mxu0 %v917
    %2500 = vmatprep.subr.mxu0 %v930
    %2501 = vmatpush1.msra.mxu0 %v929
    %2502 = vmatprep.subr.mxu0 %v942
    %2503 = vmatpush1.msra.mxu0 %v941
    %2504 = vmatprep.subr.mxu0 %v954
    %2505 = vmatpush1.msra.mxu0 %v953
    %2506 = vmatprep.subr.mxu0 %v966
    %2507 = vmatpush1.msra.mxu0 %v965
    %2508 = vmatprep.subr.mxu0 %v978
    %2509 = vmatpush1.msra.mxu0 %v977
    %2510 = vmatprep.subr.mxu0 %v990
    %2511 = vmatpush1.msra.mxu0 %v989
    %2512 = vmatprep.subr.mxu0 %v1002
    %2513 = vmatpush1.msra.mxu0 %v1001
    %2514 = vmatprep.subr.mxu0 %v1014
    %2515 = vmatpush1.msra.mxu0 %v1013
    %2516 = vmatprep.subr.mxu0 %v1026
    %2517 = vmatpush1.msra.mxu0 %v1025
    %2518 = vmatprep.subr.mxu0 %v1038
    %2519 = vmatpush1.msra.mxu0 %v1037
    %2520 = vmatprep.subr.mxu0 %v1050
    %2521 = vmatpush1.msra.mxu0 %v1049
    %2522 = vmatprep.subr.mxu0 %v1062
    %2523 = vmatpush1.msra.mxu0 %v1061
    %2524 = vmatprep.subr.mxu0 %v1074
    %2525 = vmatpush1.msra.mxu0 %v1073
    %2526 = vmatprep.subr.mxu0 %v1086
    %2527 = vmatpush1.msra.mxu0 %v1085
    %2528 = vmatprep.subr.mxu0 %v1098
    %2529 = vmatpush1.msra.mxu0 %v1097
    %2530 = vmatprep.subr.mxu0 %v1110
    %2531 = vmatpush1.msra.mxu0 %v1109
    %2532 = vmatprep.subr.mxu0 %v1122
    %2533 = vmatpush1.msra.mxu0 %v1121
    %2534 = vmatprep.subr.mxu0 %v1134
    %2535 = vmatpush1.msra.mxu0 %v1133
    %2536 = vmatprep.subr.mxu0 %v1146
    %2537 = vmatpush1.msra.mxu0 %v1145
    %2538 = vmatprep.subr.mxu0 %v1158
    %2539 = vmatpush1.msra.mxu0 %v1157
    %2540 = vmatprep.subr.mxu0 %v1170
    %2541 = vmatpush1.msra.mxu0 %v1169
    %2542 = vmatprep.subr.mxu0 %v1182
    %2543 = vmatpush1.msra.mxu0 %v1181
    %2544 = vmatprep.subr.mxu0 %v1194
    %2545 = vmatpush1.msra.mxu0 %v1193
    %2546 = vmatprep.subr.mxu0 %v1206
    %2547 = vmatpush1.msra.mxu0 %v1205
    %2548 = vmatprep.subr.mxu0 %v1218
    %2549 = vmatpush1.msra.mxu0 %v1217
    %2550 = vmatprep.subr.mxu0 %v1230
    %2551 = vmatpush1.msra.mxu0 %v1229
    %2552 = vmatprep.subr.mxu0 %v1242
    %2553 = vmatpush1.msra.mxu0 %v1241
    %2554 = vmatprep.subr.mxu0 %v1254
    %2555 = vmatpush1.msra.mxu0 %v1253
    %2556 = vmatprep.subr.mxu0 %v1266
    %2557 = vmatpush1.msra.mxu0 %v1265
    %2558 = vmatprep.subr.mxu0 %v1278
    %2559 = vmatpush1.msra.mxu0 %v1277
    %2560 = vmatprep.subr.mxu0 %v1290
    %2561 = vmatpush1.msra.mxu0 %v1289
    %2562 = vmatprep.mubr.f32.mxu0 %v138
    %2563 = vmatmul.mubr.f32.gmra.mrb[0].mxu0 %v137
    %v2564 = vpop.f32.mrb[0].mxu0
    %v2565 = vadd.f32 %v2494, %v2564
    %v2566 = vpop.f32.mrb[0].mxu0
    %v2567 = vadd.f32 %v2496, %v2566
    %2568 = vdwg.mxu0
    %v2569 = vmax.f32 %v1500, %v1715
    %v2570 = vmax.f32 %v1502, %v1926
    %v2571 = vmax.f32 %v1713, %v1928
    %v2572 = vmax.f32 %v2139, %v2354
    %v2573 = vmax.f32 %v2141, %v2565
    %v2574 = vmax.f32 %v2352, %v2567
    %v2575 = vmax.f32 %v2569, %v2572
    %v2576 = vmax.f32 %v2570, %v2573
    %v2577 = vmax.f32 %v2571, %v2574
    %v2578 = vld [vmem:[#allocation4] sm:$0x7]
    %v2580 = vlaneseq
    %v2581 = vshrl.u32 %v2580, 7
    %v2582 = vsub.s32 0, %v2581
    %v2583 = vrot.slane %v2578, %v2582
    %v2584 = vlaneseq
    %v2585 = vshrl.u32 %v2584, 7
    %v2586 = vsub.s32 1, %v2585
    %v2587 = vrot.slane %v2578, %v2586
    %v2588 = vlaneseq
    %v2589 = vshrl.u32 %v2588, 7
    %v2590 = vsub.s32 2, %v2589
    %v2591 = vrot.slane %v2578, %v2590
    %v2595 = vadd.f32 %v2575, %v2583
    %v2596 = vadd.f32 %v2576, %v2587
    %v2597 = vadd.f32 %v2577, %v2591
    %v2598 = vmax.f32 %v2595, 0.0
    %v2599 = vmax.f32 %v2596, 0.0
    %v2600 = vmax.f32 %v2597, 0.0
    %v2601 = vld [vmem:[#allocation6] sm:$0xff]
    %v2602 = vld [vmem:[#allocation6 + $0x8] sm:$0xff]
    %v2603 = vld [vmem:[#allocation6 + $0x10] sm:$0xff]
    %v2604 = vld [vmem:[#allocation6 + $0x18] sm:$0xff]
    %v2605 = vld [vmem:[#allocation6 + $0x20] sm:$0xff]
    %v2606 = vld [vmem:[#allocation6 + $0x28] sm:$0xff]
    %v2607 = vld [vmem:[#allocation6 + $0x30] sm:$0xff]
    %v2608 = vld [vmem:[#allocation6 + $0x38] sm:$0xff]
    %v2609 = vld [vmem:[#allocation6 + $0x40] sm:$0xff]
    %v2610 = vld [vmem:[#allocation6 + $0x48] sm:$0xff]
    %v2611 = vld [vmem:[#allocation6 + $0x50] sm:$0xff]
    %v2612 = vld [vmem:[#allocation6 + $0x58] sm:$0xff]
    %v2613 = vld [vmem:[#allocation6 + $0x60] sm:$0xff]
    %v2614 = vld [vmem:[#allocation6 + $0x68] sm:$0xff]
    %v2615 = vld [vmem:[#allocation6 + $0x70] sm:$0xff]
    %v2616 = vld [vmem:[#allocation6 + $0x78] sm:$0xff]
    %v2617 = vld [vmem:[#allocation6 + $0x80] sm:$0xff]
    %v2618 = vld [vmem:[#allocation6 + $0x88] sm:$0xff]
    %v2619 = vld [vmem:[#allocation6 + $0x90] sm:$0xff]
    %v2620 = vld [vmem:[#allocation6 + $0x98] sm:$0xff]
    %v2621 = vld [vmem:[#allocation6 + $0xa0] sm:$0xff]
    %v2622 = vld [vmem:[#allocation6 + $0xa8] sm:$0xff]
    %v2623 = vld [vmem:[#allocation6 + $0xb0] sm:$0xff]
    %v2624 = vld [vmem:[#allocation6 + $0xb8] sm:$0xff]
    %v2625 = vld [vmem:[#allocation6 + $0xc0] sm:$0xff]
    %v2626 = vld [vmem:[#allocation6 + $0xc8] sm:$0xff]
    %v2627 = vld [vmem:[#allocation6 + $0xd0] sm:$0xff]
    %v2628 = vld [vmem:[#allocation6 + $0xd8] sm:$0xff]
    %v2629 = vld [vmem:[#allocation6 + $0xe0] sm:$0xff]
    %v2630 = vld [vmem:[#allocation6 + $0xe8] sm:$0xff]
    %v2631 = vld [vmem:[#allocation6 + $0xf0] sm:$0xff]
    %v2632 = vld [vmem:[#allocation6 + $0xf8] sm:$0xff]
    %v2633 = vld [vmem:[#allocation6 + $0x100] sm:$0xff]
    %v2634 = vld [vmem:[#allocation6 + $0x108] sm:$0xff]
    %v2635 = vld [vmem:[#allocation6 + $0x110] sm:$0xff]
    %v2636 = vld [vmem:[#allocation6 + $0x118] sm:$0xff]
    %v2637 = vld [vmem:[#allocation6 + $0x120] sm:$0xff]
    %v2638 = vld [vmem:[#allocation6 + $0x128] sm:$0xff]
    %v2639 = vld [vmem:[#allocation6 + $0x130] sm:$0xff]
    %v2640 = vld [vmem:[#allocation6 + $0x138] sm:$0xff]
    %v2641 = vld [vmem:[#allocation6 + $0x140] sm:$0xff]
    %v2642 = vld [vmem:[#allocation6 + $0x148] sm:$0xff]
    %v2643 = vld [vmem:[#allocation6 + $0x150] sm:$0xff]
    %v2644 = vld [vmem:[#allocation6 + $0x158] sm:$0xff]
    %v2645 = vld [vmem:[#allocation6 + $0x160] sm:$0xff]
    %v2646 = vld [vmem:[#allocation6 + $0x168] sm:$0xff]
    %v2647 = vld [vmem:[#allocation6 + $0x170] sm:$0xff]
    %v2648 = vld [vmem:[#allocation6 + $0x178] sm:$0xff]
    %v2649 = vld [vmem:[#allocation6 + $0x180] sm:$0xff]
    %v2650 = vld [vmem:[#allocation6 + $0x188] sm:$0xff]
    %v2651 = vld [vmem:[#allocation6 + $0x190] sm:$0xff]
    %v2652 = vld [vmem:[#allocation6 + $0x198] sm:$0xff]
    %v2653 = vld [vmem:[#allocation6 + $0x1a0] sm:$0xff]
    %v2654 = vld [vmem:[#allocation6 + $0x1a8] sm:$0xff]
    %v2655 = vld [vmem:[#allocation6 + $0x1b0] sm:$0xff]
    %v2656 = vld [vmem:[#allocation6 + $0x1b8] sm:$0xff]
    %v2657 = vld [vmem:[#allocation6 + $0x1c0] sm:$0xff]
    %v2658 = vld [vmem:[#allocation6 + $0x1c8] sm:$0xff]
    %v2659 = vld [vmem:[#allocation6 + $0x1d0] sm:$0xff]
    %v2660 = vld [vmem:[#allocation6 + $0x1d8] sm:$0xff]
    %v2661 = vld [vmem:[#allocation6 + $0x1e0] sm:$0xff]
    %v2662 = vld [vmem:[#allocation6 + $0x1e8] sm:$0xff]
    %v2663 = vld [vmem:[#allocation6 + $0x1f0] sm:$0xff]
    %v2664 = vld [vmem:[#allocation6 + $0x1f8] sm:$0xff]
    %v2665 = vld [vmem:[#allocation6 + $0x200] sm:$0xff]
    %v2666 = vld [vmem:[#allocation6 + $0x208] sm:$0xff]
    %v2667 = vld [vmem:[#allocation6 + $0x210] sm:$0xff]
    %v2668 = vld [vmem:[#allocation6 + $0x218] sm:$0xff]
    %v2669 = vld [vmem:[#allocation6 + $0x220] sm:$0xff]
    %v2670 = vld [vmem:[#allocation6 + $0x228] sm:$0xff]
    %v2671 = vld [vmem:[#allocation6 + $0x230] sm:$0xff]
    %v2672 = vld [vmem:[#allocation6 + $0x238] sm:$0xff]
    %v2673 = vld [vmem:[#allocation6 + $0x240] sm:$0xff]
    %v2674 = vld [vmem:[#allocation6 + $0x248] sm:$0xff]
    %v2675 = vld [vmem:[#allocation6 + $0x250] sm:$0xff]
    %v2676 = vld [vmem:[#allocation6 + $0x258] sm:$0xff]
    %v2677 = vld [vmem:[#allocation6 + $0x260] sm:$0xff]
    %v2678 = vld [vmem:[#allocation6 + $0x268] sm:$0xff]
    %v2679 = vld [vmem:[#allocation6 + $0x270] sm:$0xff]
    %v2680 = vld [vmem:[#allocation6 + $0x278] sm:$0xff]
    %v2681 = vld [vmem:[#allocation6 + $0x280] sm:$0xff]
    %v2682 = vld [vmem:[#allocation6 + $0x288] sm:$0xff]
    %v2683 = vld [vmem:[#allocation6 + $0x290] sm:$0xff]
    %v2684 = vld [vmem:[#allocation6 + $0x298] sm:$0xff]
    %v2685 = vld [vmem:[#allocation6 + $0x2a0] sm:$0xff]
    %v2686 = vld [vmem:[#allocation6 + $0x2a8] sm:$0xff]
    %v2687 = vld [vmem:[#allocation6 + $0x2b0] sm:$0xff]
    %v2688 = vld [vmem:[#allocation6 + $0x2b8] sm:$0xff]
    %v2689 = vld [vmem:[#allocation6 + $0x2c0] sm:$0xff]
    %v2690 = vld [vmem:[#allocation6 + $0x2c8] sm:$0xff]
    %v2691 = vld [vmem:[#allocation6 + $0x2d0] sm:$0xff]
    %v2692 = vld [vmem:[#allocation6 + $0x2d8] sm:$0xff]
    %v2693 = vld [vmem:[#allocation6 + $0x2e0] sm:$0xff]
    %v2694 = vld [vmem:[#allocation6 + $0x2e8] sm:$0xff]
    %v2695 = vld [vmem:[#allocation6 + $0x2f0] sm:$0xff]
    %v2696 = vld [vmem:[#allocation6 + $0x2f8] sm:$0xff]
    %v2697 = vld [vmem:[#allocation6 + $0x300] sm:$0xff]
    %v2698 = vld [vmem:[#allocation6 + $0x308] sm:$0xff]
    %v2699 = vld [vmem:[#allocation6 + $0x310] sm:$0xff]
    %v2700 = vld [vmem:[#allocation6 + $0x318] sm:$0xff]
    %v2701 = vld [vmem:[#allocation6 + $0x320] sm:$0xff]
    %v2702 = vld [vmem:[#allocation6 + $0x328] sm:$0xff]
    %v2703 = vld [vmem:[#allocation6 + $0x330] sm:$0xff]
    %v2704 = vld [vmem:[#allocation6 + $0x338] sm:$0xff]
    %v2705 = vld [vmem:[#allocation6 + $0x340] sm:$0xff]
    %v2706 = vld [vmem:[#allocation6 + $0x348] sm:$0xff]
    %v2707 = vld [vmem:[#allocation6 + $0x350] sm:$0xff]
    %v2708 = vld [vmem:[#allocation6 + $0x358] sm:$0xff]
    %v2709 = vld [vmem:[#allocation6 + $0x360] sm:$0xff]
    %v2710 = vld [vmem:[#allocation6 + $0x368] sm:$0xff]
    %v2711 = vld [vmem:[#allocation6 + $0x370] sm:$0xff]
    %v2712 = vld [vmem:[#allocation6 + $0x378] sm:$0xff]
    %v2713 = vld [vmem:[#allocation6 + $0x380] sm:$0xff]
    %v2714 = vld [vmem:[#allocation6 + $0x388] sm:$0xff]
    %v2715 = vld [vmem:[#allocation6 + $0x390] sm:$0xff]
    %v2716 = vld [vmem:[#allocation6 + $0x398] sm:$0xff]
    %v2717 = vld [vmem:[#allocation6 + $0x3a0] sm:$0xff]
    %v2718 = vld [vmem:[#allocation6 + $0x3a8] sm:$0xff]
    %v2719 = vld [vmem:[#allocation6 + $0x3b0] sm:$0xff]
    %v2720 = vld [vmem:[#allocation6 + $0x3b8] sm:$0xff]
    %v2721 = vld [vmem:[#allocation6 + $0x3c0] sm:$0xff]
    %v2722 = vld [vmem:[#allocation6 + $0x3c8] sm:$0xff]
    %v2723 = vld [vmem:[#allocation6 + $0x3d0] sm:$0xff]
    %v2724 = vld [vmem:[#allocation6 + $0x3d8] sm:$0xff]
    %v2725 = vld [vmem:[#allocation6 + $0x3e0] sm:$0xff]
    %v2726 = vld [vmem:[#allocation6 + $0x3e8] sm:$0xff]
    %v2727 = vld [vmem:[#allocation6 + $0x3f0] sm:$0xff]
    %v2728 = vld [vmem:[#allocation6 + $0x3f8] sm:$0xff]
    %v2729 = vld [vmem:[#allocation6 + $0x400] sm:$0xff]
    %v2730 = vld [vmem:[#allocation6 + $0x408] sm:$0xff]
    %v2731 = vld [vmem:[#allocation6 + $0x410] sm:$0xff]
    %v2732 = vld [vmem:[#allocation6 + $0x418] sm:$0xff]
    %v2733 = vld [vmem:[#allocation6 + $0x420] sm:$0xff]
    %v2734 = vld [vmem:[#allocation6 + $0x428] sm:$0xff]
    %v2735 = vld [vmem:[#allocation6 + $0x430] sm:$0xff]
    %v2736 = vld [vmem:[#allocation6 + $0x438] sm:$0xff]
    %v2737 = vld [vmem:[#allocation6 + $0x440] sm:$0xff]
    %v2738 = vld [vmem:[#allocation6 + $0x448] sm:$0xff]
    %v2739 = vld [vmem:[#allocation6 + $0x450] sm:$0xff]
    %v2740 = vld [vmem:[#allocation6 + $0x458] sm:$0xff]
    %v2741 = vld [vmem:[#allocation6 + $0x460] sm:$0xff]
    %v2742 = vld [vmem:[#allocation6 + $0x468] sm:$0xff]
    %v2743 = vld [vmem:[#allocation6 + $0x470] sm:$0xff]
    %v2744 = vld [vmem:[#allocation6 + $0x478] sm:$0xff]
    %v2745 = vld [vmem:[#allocation6 + $0x480] sm:$0xff]
    %v2746 = vld [vmem:[#allocation6 + $0x488] sm:$0xff]
    %v2747 = vld [vmem:[#allocation6 + $0x490] sm:$0xff]
    %v2748 = vld [vmem:[#allocation6 + $0x498] sm:$0xff]
    %v2749 = vld [vmem:[#allocation6 + $0x4a0] sm:$0xff]
    %v2750 = vld [vmem:[#allocation6 + $0x4a8] sm:$0xff]
    %v2751 = vld [vmem:[#allocation6 + $0x4b0] sm:$0xff]
    %v2752 = vld [vmem:[#allocation6 + $0x4b8] sm:$0xff]
    %v2753 = vld [vmem:[#allocation6 + $0x4c0] sm:$0xff]
    %v2754 = vld [vmem:[#allocation6 + $0x4c8] sm:$0xff]
    %v2755 = vld [vmem:[#allocation6 + $0x4d0] sm:$0xff]
    %v2756 = vld [vmem:[#allocation6 + $0x4d8] sm:$0xff]
    %v2757 = vld [vmem:[#allocation6 + $0x4e0] sm:$0xff]
    %v2758 = vld [vmem:[#allocation6 + $0x4e8] sm:$0xff]
    %v2759 = vld [vmem:[#allocation6 + $0x4f0] sm:$0xff]
    %v2760 = vld [vmem:[#allocation6 + $0x4f8] sm:$0xff]
    %v2761 = vld [vmem:[#allocation6 + $0x500] sm:$0xff]
    %v2762 = vld [vmem:[#allocation6 + $0x508] sm:$0xff]
    %v2763 = vld [vmem:[#allocation6 + $0x510] sm:$0xff]
    %v2764 = vld [vmem:[#allocation6 + $0x518] sm:$0xff]
    %v2765 = vld [vmem:[#allocation6 + $0x520] sm:$0xff]
    %v2766 = vld [vmem:[#allocation6 + $0x528] sm:$0xff]
    %v2767 = vld [vmem:[#allocation6 + $0x530] sm:$0xff]
    %v2768 = vld [vmem:[#allocation6 + $0x538] sm:$0xff]
    %v2769 = vld [vmem:[#allocation6 + $0x540] sm:$0xff]
    %v2770 = vld [vmem:[#allocation6 + $0x548] sm:$0xff]
    %v2771 = vld [vmem:[#allocation6 + $0x550] sm:$0xff]
    %v2772 = vld [vmem:[#allocation6 + $0x558] sm:$0xff]
    %v2773 = vld [vmem:[#allocation6 + $0x560] sm:$0xff]
    %v2774 = vld [vmem:[#allocation6 + $0x568] sm:$0xff]
    %v2775 = vld [vmem:[#allocation6 + $0x570] sm:$0xff]
    %v2776 = vld [vmem:[#allocation6 + $0x578] sm:$0xff]
    %v2777 = vld [vmem:[#allocation6 + $0x580] sm:$0xff]
    %v2778 = vld [vmem:[#allocation6 + $0x588] sm:$0xff]
    %v2779 = vld [vmem:[#allocation6 + $0x590] sm:$0xff]
    %v2780 = vld [vmem:[#allocation6 + $0x598] sm:$0xff]
    %v2781 = vld [vmem:[#allocation6 + $0x5a0] sm:$0xff]
    %v2782 = vld [vmem:[#allocation6 + $0x5a8] sm:$0xff]
    %v2783 = vld [vmem:[#allocation6 + $0x5b0] sm:$0xff]
    %v2784 = vld [vmem:[#allocation6 + $0x5b8] sm:$0xff]
    %v2785 = vld [vmem:[#allocation6 + $0x5c0] sm:$0xff]
    %v2786 = vld [vmem:[#allocation6 + $0x5c8] sm:$0xff]
    %v2787 = vld [vmem:[#allocation6 + $0x5d0] sm:$0xff]
    %v2788 = vld [vmem:[#allocation6 + $0x5d8] sm:$0xff]
    %v2789 = vld [vmem:[#allocation6 + $0x5e0] sm:$0xff]
    %v2790 = vld [vmem:[#allocation6 + $0x5e8] sm:$0xff]
    %v2791 = vld [vmem:[#allocation6 + $0x5f0] sm:$0xff]
    %v2792 = vld [vmem:[#allocation6 + $0x5f8] sm:$0xff]
    %v2793 = vld [vmem:[#allocation6 + $0x600] sm:$0xff]
    %v2794 = vld [vmem:[#allocation6 + $0x608] sm:$0xff]
    %v2795 = vld [vmem:[#allocation6 + $0x610] sm:$0xff]
    %v2796 = vld [vmem:[#allocation6 + $0x618] sm:$0xff]
    %v2797 = vld [vmem:[#allocation6 + $0x620] sm:$0xff]
    %v2798 = vld [vmem:[#allocation6 + $0x628] sm:$0xff]
    %v2799 = vld [vmem:[#allocation6 + $0x630] sm:$0xff]
    %v2800 = vld [vmem:[#allocation6 + $0x638] sm:$0xff]
    %v2801 = vld [vmem:[#allocation6 + $0x640] sm:$0xff]
    %v2802 = vld [vmem:[#allocation6 + $0x648] sm:$0xff]
    %v2803 = vld [vmem:[#allocation6 + $0x650] sm:$0xff]
    %v2804 = vld [vmem:[#allocation6 + $0x658] sm:$0xff]
    %v2805 = vld [vmem:[#allocation6 + $0x660] sm:$0xff]
    %v2806 = vld [vmem:[#allocation6 + $0x668] sm:$0xff]
    %v2807 = vld [vmem:[#allocation6 + $0x670] sm:$0xff]
    %v2808 = vld [vmem:[#allocation6 + $0x678] sm:$0xff]
    %v2809 = vld [vmem:[#allocation6 + $0x680] sm:$0xff]
    %v2810 = vld [vmem:[#allocation6 + $0x688] sm:$0xff]
    %v2811 = vld [vmem:[#allocation6 + $0x690] sm:$0xff]
    %v2812 = vld [vmem:[#allocation6 + $0x698] sm:$0xff]
    %v2813 = vld [vmem:[#allocation6 + $0x6a0] sm:$0xff]
    %v2814 = vld [vmem:[#allocation6 + $0x6a8] sm:$0xff]
    %v2815 = vld [vmem:[#allocation6 + $0x6b0] sm:$0xff]
    %v2816 = vld [vmem:[#allocation6 + $0x6b8] sm:$0xff]
    %v2817 = vld [vmem:[#allocation6 + $0x6c0] sm:$0xff]
    %v2818 = vld [vmem:[#allocation6 + $0x6c8] sm:$0xff]
    %v2819 = vld [vmem:[#allocation6 + $0x6d0] sm:$0xff]
    %v2820 = vld [vmem:[#allocation6 + $0x6d8] sm:$0xff]
    %v2821 = vld [vmem:[#allocation6 + $0x6e0] sm:$0xff]
    %v2822 = vld [vmem:[#allocation6 + $0x6e8] sm:$0xff]
    %v2823 = vld [vmem:[#allocation6 + $0x6f0] sm:$0xff]
    %v2824 = vld [vmem:[#allocation6 + $0x6f8] sm:$0xff]
    %v2825 = vld [vmem:[#allocation6 + $0x700] sm:$0xff]
    %v2826 = vld [vmem:[#allocation6 + $0x708] sm:$0xff]
    %v2827 = vld [vmem:[#allocation6 + $0x710] sm:$0xff]
    %v2828 = vld [vmem:[#allocation6 + $0x718] sm:$0xff]
    %v2829 = vld [vmem:[#allocation6 + $0x720] sm:$0xff]
    %v2830 = vld [vmem:[#allocation6 + $0x728] sm:$0xff]
    %v2831 = vld [vmem:[#allocation6 + $0x730] sm:$0xff]
    %v2832 = vld [vmem:[#allocation6 + $0x738] sm:$0xff]
    %v2833 = vld [vmem:[#allocation6 + $0x740] sm:$0xff]
    %v2834 = vld [vmem:[#allocation6 + $0x748] sm:$0xff]
    %v2835 = vld [vmem:[#allocation6 + $0x750] sm:$0xff]
    %v2836 = vld [vmem:[#allocation6 + $0x758] sm:$0xff]
    %v2837 = vld [vmem:[#allocation6 + $0x760] sm:$0xff]
    %v2838 = vld [vmem:[#allocation6 + $0x768] sm:$0xff]
    %v2839 = vld [vmem:[#allocation6 + $0x770] sm:$0xff]
    %v2840 = vld [vmem:[#allocation6 + $0x778] sm:$0xff]
    %v2841 = vld [vmem:[#allocation6 + $0x780] sm:$0xff]
    %v2842 = vld [vmem:[#allocation6 + $0x788] sm:$0xff]
    %v2843 = vld [vmem:[#allocation6 + $0x790] sm:$0xff]
    %v2844 = vld [vmem:[#allocation6 + $0x798] sm:$0xff]
    %v2845 = vld [vmem:[#allocation6 + $0x7a0] sm:$0xff]
    %v2846 = vld [vmem:[#allocation6 + $0x7a8] sm:$0xff]
    %v2847 = vld [vmem:[#allocation6 + $0x7b0] sm:$0xff]
    %v2848 = vld [vmem:[#allocation6 + $0x7b8] sm:$0xff]
    %v2849 = vld [vmem:[#allocation6 + $0x7c0] sm:$0xff]
    %v2850 = vld [vmem:[#allocation6 + $0x7c8] sm:$0xff]
    %v2851 = vld [vmem:[#allocation6 + $0x7d0] sm:$0xff]
    %v2852 = vld [vmem:[#allocation6 + $0x7d8] sm:$0xff]
    %v2853 = vld [vmem:[#allocation6 + $0x7e0] sm:$0xff]
    %v2854 = vld [vmem:[#allocation6 + $0x7e8] sm:$0xff]
    %v2855 = vld [vmem:[#allocation6 + $0x7f0] sm:$0xff]
    %v2856 = vld [vmem:[#allocation6 + $0x7f8] sm:$0xff]
    %v2857 = vld [vmem:[#allocation6 + $0x800] sm:$0xff]
    %v2858 = vld [vmem:[#allocation6 + $0x808] sm:$0xff]
    %v2859 = vld [vmem:[#allocation6 + $0x810] sm:$0xff]
    %v2860 = vld [vmem:[#allocation6 + $0x818] sm:$0xff]
    %v2861 = vld [vmem:[#allocation6 + $0x820] sm:$0xff]
    %v2862 = vld [vmem:[#allocation6 + $0x828] sm:$0xff]
    %v2863 = vld [vmem:[#allocation6 + $0x830] sm:$0xff]
    %v2864 = vld [vmem:[#allocation6 + $0x838] sm:$0xff]
    %v2865 = vld [vmem:[#allocation6 + $0x840] sm:$0xff]
    %v2866 = vld [vmem:[#allocation6 + $0x848] sm:$0xff]
    %v2867 = vld [vmem:[#allocation6 + $0x850] sm:$0xff]
    %v2868 = vld [vmem:[#allocation6 + $0x858] sm:$0xff]
    %v2869 = vld [vmem:[#allocation6 + $0x860] sm:$0xff]
    %v2870 = vld [vmem:[#allocation6 + $0x868] sm:$0xff]
    %v2871 = vld [vmem:[#allocation6 + $0x870] sm:$0xff]
    %v2872 = vld [vmem:[#allocation6 + $0x878] sm:$0xff]
    %v2873 = vld [vmem:[#allocation6 + $0x880] sm:$0xff]
    %v2874 = vld [vmem:[#allocation6 + $0x888] sm:$0xff]
    %v2875 = vld [vmem:[#allocation6 + $0x890] sm:$0xff]
    %v2876 = vld [vmem:[#allocation6 + $0x898] sm:$0xff]
    %v2877 = vld [vmem:[#allocation6 + $0x8a0] sm:$0xff]
    %v2878 = vld [vmem:[#allocation6 + $0x8a8] sm:$0xff]
    %v2879 = vld [vmem:[#allocation6 + $0x8b0] sm:$0xff]
    %v2880 = vld [vmem:[#allocation6 + $0x8b8] sm:$0xff]
    %v2881 = vld [vmem:[#allocation6 + $0x8c0] sm:$0xff]
    %v2882 = vld [vmem:[#allocation6 + $0x8c8] sm:$0xff]
    %v2883 = vld [vmem:[#allocation6 + $0x8d0] sm:$0xff]
    %v2884 = vld [vmem:[#allocation6 + $0x8d8] sm:$0xff]
    %v2885 = vld [vmem:[#allocation6 + $0x8e0] sm:$0xff]
    %v2886 = vld [vmem:[#allocation6 + $0x8e8] sm:$0xff]
    %v2887 = vld [vmem:[#allocation6 + $0x8f0] sm:$0xff]
    %v2888 = vld [vmem:[#allocation6 + $0x8f8] sm:$0xff]
    %v2889 = vld [vmem:[#allocation7] sm:$0x3f]
    %v2891 = vlaneseq
    %v2892 = vshrl.u32 %v2891, 7
    %v2893 = vsub.s32 0, %v2892
    %v2894 = vrot.slane %v2889, %v2893
    %v2895 = vlaneseq
    %v2896 = vshrl.u32 %v2895, 7
    %v2897 = vsub.s32 1, %v2896
    %v2898 = vrot.slane %v2889, %v2897
    %v2899 = vlaneseq
    %v2900 = vshrl.u32 %v2899, 7
    %v2901 = vsub.s32 2, %v2900
    %v2902 = vrot.slane %v2889, %v2901
    %v2903 = vlaneseq
    %v2904 = vshrl.u32 %v2903, 7
    %v2905 = vsub.s32 3, %v2904
    %v2906 = vrot.slane %v2889, %v2905
    %v2907 = vlaneseq
    %v2908 = vshrl.u32 %v2907, 7
    %v2909 = vsub.s32 4, %v2908
    %v2910 = vrot.slane %v2889, %v2909
    %v2911 = vlaneseq
    %v2912 = vshrl.u32 %v2911, 7
    %v2913 = vsub.s32 5, %v2912
    %v2914 = vrot.slane %v2889, %v2913
    %2921 = vmatprep.subr.mxu0 %v2602
    %2922 = vmatpush1.msra.mxu0 %v2601
    %2923 = vmatprep.subr.mxu0 %v2608
    %2924 = vmatpush1.msra.mxu0 %v2607
    %2925 = vmatprep.subr.mxu0 %v2614
    %2926 = vmatpush1.msra.mxu0 %v2613
    %2927 = vmatprep.subr.mxu0 %v2620
    %2928 = vmatpush1.msra.mxu0 %v2619
    %2929 = vmatprep.subr.mxu0 %v2626
    %2930 = vmatpush1.msra.mxu0 %v2625
    %2931 = vmatprep.subr.mxu0 %v2632
    %2932 = vmatpush1.msra.mxu0 %v2631
    %2933 = vmatprep.subr.mxu0 %v2638
    %2934 = vmatpush1.msra.mxu0 %v2637
    %2935 = vmatprep.subr.mxu0 %v2644
    %2936 = vmatpush1.msra.mxu0 %v2643
    %2937 = vmatprep.subr.mxu0 %v2650
    %2938 = vmatpush1.msra.mxu0 %v2649
    %2939 = vmatprep.subr.mxu0 %v2656
    %2940 = vmatpush1.msra.mxu0 %v2655
    %2941 = vmatprep.subr.mxu0 %v2662
    %2942 = vmatpush1.msra.mxu0 %v2661
    %2943 = vmatprep.subr.mxu0 %v2668
    %2944 = vmatpush1.msra.mxu0 %v2667
    %2945 = vmatprep.subr.mxu0 %v2674
    %2946 = vmatpush1.msra.mxu0 %v2673
    %2947 = vmatprep.subr.mxu0 %v2680
    %2948 = vmatpush1.msra.mxu0 %v2679
    %2949 = vmatprep.subr.mxu0 %v2686
    %2950 = vmatpush1.msra.mxu0 %v2685
    %2951 = vmatprep.subr.mxu0 %v2692
    %2952 = vmatpush1.msra.mxu0 %v2691
    %2953 = vmatprep.subr.mxu0 %v2698
    %2954 = vmatpush1.msra.mxu0 %v2697
    %2955 = vmatprep.subr.mxu0 %v2704
    %2956 = vmatpush1.msra.mxu0 %v2703
    %2957 = vmatprep.subr.mxu0 %v2710
    %2958 = vmatpush1.msra.mxu0 %v2709
    %2959 = vmatprep.subr.mxu0 %v2716
    %2960 = vmatpush1.msra.mxu0 %v2715
    %2961 = vmatprep.subr.mxu0 %v2722
    %2962 = vmatpush1.msra.mxu0 %v2721
    %2963 = vmatprep.subr.mxu0 %v2728
    %2964 = vmatpush1.msra.mxu0 %v2727
    %2965 = vmatprep.subr.mxu0 %v2734
    %2966 = vmatpush1.msra.mxu0 %v2733
    %2967 = vmatprep.subr.mxu0 %v2740
    %2968 = vmatpush1.msra.mxu0 %v2739
    %2969 = vmatprep.subr.mxu0 %v2746
    %2970 = vmatpush1.msra.mxu0 %v2745
    %2971 = vmatprep.subr.mxu0 %v2752
    %2972 = vmatpush1.msra.mxu0 %v2751
    %2973 = vmatprep.subr.mxu0 %v2758
    %2974 = vmatpush1.msra.mxu0 %v2757
    %2975 = vmatprep.subr.mxu0 %v2764
    %2976 = vmatpush1.msra.mxu0 %v2763
    %2977 = vmatprep.subr.mxu0 %v2770
    %2978 = vmatpush1.msra.mxu0 %v2769
    %2979 = vmatprep.subr.mxu0 %v2776
    %2980 = vmatpush1.msra.mxu0 %v2775
    %2981 = vmatprep.subr.mxu0 %v2782
    %2982 = vmatpush1.msra.mxu0 %v2781
    %2983 = vmatprep.subr.mxu0 %v2788
    %2984 = vmatpush1.msra.mxu0 %v2787
    %2985 = vmatprep.mubr.f32.mxu0 %v2599
    %2986 = vmatmul.mubr.f32.gmra.mrb[0].mxu0 %v2598
    %v2987 = vpop.f32.mrb[0].mxu0
    %v2988 = vadd.f32 %v2894, %v2987
    %v2989 = vpop.f32.mrb[0].mxu0
    %v2990 = vadd.f32 %v2898, %v2989
    %2991 = vdwg.mxu0
    %2992 = vmatprep.subr.mxu0 %v2794
    %2993 = vmatpush1.msra.mxu0 %v2793
    %2994 = vmatprep.subr.mxu0 %v2800
    %2995 = vmatpush1.msra.mxu0 %v2799
    %2996 = vmatprep.subr.mxu0 %v2806
    %2997 = vmatpush1.msra.mxu0 %v2805
    %2998 = vmatprep.subr.mxu0 %v2812
    %2999 = vmatpush1.msra.mxu0 %v2811
    %3000 = vmatprep.subr.mxu0 %v2818
    %3001 = vmatpush1.msra.mxu0 %v2817
    %3002 = vmatprep.subr.mxu0 %v2824
    %3003 = vmatpush1.msra.mxu0 %v2823
    %3004 = vmatprep.subr.mxu0 %v2830
    %3005 = vmatpush1.msra.mxu0 %v2829
    %3006 = vmatprep.subr.mxu0 %v2836
    %3007 = vmatpush1.msra.mxu0 %v2835
    %3008 = vmatprep.subr.mxu0 %v2842
    %3009 = vmatpush1.msra.mxu0 %v2841
    %3010 = vmatprep.subr.mxu0 %v2848
    %3011 = vmatpush1.msra.mxu0 %v2847
    %3012 = vmatprep.subr.mxu0 %v2854
    %3013 = vmatpush1.msra.mxu0 %v2853
    %3014 = vmatprep.subr.mxu0 %v2860
    %3015 = vmatpush1.msra.mxu0 %v2859
    %3016 = vmatprep.subr.mxu0 %v2866
    %3017 = vmatpush1.msra.mxu0 %v2865
    %3018 = vmatprep.subr.mxu0 %v2872
    %3019 = vmatpush1.msra.mxu0 %v2871
    %3020 = vmatprep.subr.mxu0 %v2878
    %3021 = vmatpush1.msra.mxu0 %v2877
    %3022 = vmatprep.subr.mxu0 %v2884
    %3023 = vmatpush1.msra.mxu0 %v2883
    %3024 = vmatprep.subr.mxu0 0.0
    %3025 = vmatpush1.msra.mxu0 0.0
    %3026 = vmatprep.subr.mxu0 0.0
    %3027 = vmatpush1.msra.mxu0 0.0
    %3028 = vmatprep.subr.mxu0 0.0
    %3029 = vmatpush1.msra.mxu0 0.0
    %3030 = vmatprep.subr.mxu0 0.0
    %3031 = vmatpush1.msra.mxu0 0.0
    %3032 = vmatprep.subr.mxu0 0.0
    %3033 = vmatpush1.msra.mxu0 0.0
    %3034 = vmatprep.subr.mxu0 0.0
    %3035 = vmatpush1.msra.mxu0 0.0
    %3036 = vmatprep.subr.mxu0 0.0
    %3037 = vmatpush1.msra.mxu0 0.0
    %3038 = vmatprep.subr.mxu0 0.0
    %3039 = vmatpush1.msra.mxu0 0.0
    %3040 = vmatprep.subr.mxu0 0.0
    %3041 = vmatpush1.msra.mxu0 0.0
    %3042 = vmatprep.subr.mxu0 0.0
    %3043 = vmatpush1.msra.mxu0 0.0
    %3044 = vmatprep.subr.mxu0 0.0
    %3045 = vmatpush1.msra.mxu0 0.0
    %3046 = vmatprep.subr.mxu0 0.0
    %3047 = vmatpush1.msra.mxu0 0.0
    %3048 = vmatprep.subr.mxu0 0.0
    %3049 = vmatpush1.msra.mxu0 0.0
    %3050 = vmatprep.subr.mxu0 0.0
    %3051 = vmatpush1.msra.mxu0 0.0
    %3052 = vmatprep.subr.mxu0 0.0
    %3053 = vmatpush1.msra.mxu0 0.0
    %3054 = vmatprep.subr.mxu0 0.0
    %3055 = vmatpush1.msra.mxu0 0.0
    %3056 = vmatprep.mubr.f32.mxu0 0.0
    %3057 = vmatmul.mubr.f32.gmra.mrb[0].mxu0 %v2600
    %v3058 = vpop.f32.mrb[0].mxu0
    %v3059 = vadd.f32 %v2988, %v3058
    %v3060 = vpop.f32.mrb[0].mxu0
    %v3061 = vadd.f32 %v2990, %v3060
    %3062 = vdwg.mxu0
    %3063 = vmatprep.subr.mxu0 %v2604
    %3064 = vmatpush1.msra.mxu0 %v2603
    %3065 = vmatprep.subr.mxu0 %v2610
    %3066 = vmatpush1.msra.mxu0 %v2609
    %3067 = vmatprep.subr.mxu0 %v2616
    %3068 = vmatpush1.msra.mxu0 %v2615
    %3069 = vmatprep.subr.mxu0 %v2622
    %3070 = vmatpush1.msra.mxu0 %v2621
    %3071 = vmatprep.subr.mxu0 %v2628
    %3072 = vmatpush1.msra.mxu0 %v2627
    %3073 = vmatprep.subr.mxu0 %v2634
    %3074 = vmatpush1.msra.mxu0 %v2633
    %3075 = vmatprep.subr.mxu0 %v2640
    %3076 = vmatpush1.msra.mxu0 %v2639
    %3077 = vmatprep.subr.mxu0 %v2646
    %3078 = vmatpush1.msra.mxu0 %v2645
    %3079 = vmatprep.subr.mxu0 %v2652
    %3080 = vmatpush1.msra.mxu0 %v2651
    %3081 = vmatprep.subr.mxu0 %v2658
    %3082 = vmatpush1.msra.mxu0 %v2657
    %3083 = vmatprep.subr.mxu0 %v2664
    %3084 = vmatpush1.msra.mxu0 %v2663
    %3085 = vmatprep.subr.mxu0 %v2670
    %3086 = vmatpush1.msra.mxu0 %v2669
    %3087 = vmatprep.subr.mxu0 %v2676
    %3088 = vmatpush1.msra.mxu0 %v2675
    %3089 = vmatprep.subr.mxu0 %v2682
    %3090 = vmatpush1.msra.mxu0 %v2681
    %3091 = vmatprep.subr.mxu0 %v2688
    %3092 = vmatpush1.msra.mxu0 %v2687
    %3093 = vmatprep.subr.mxu0 %v2694
    %3094 = vmatpush1.msra.mxu0 %v2693
    %3095 = vmatprep.subr.mxu0 %v2700
    %3096 = vmatpush1.msra.mxu0 %v2699
    %3097 = vmatprep.subr.mxu0 %v2706
    %3098 = vmatpush1.msra.mxu0 %v2705
    %3099 = vmatprep.subr.mxu0 %v2712
    %3100 = vmatpush1.msra.mxu0 %v2711
    %3101 = vmatprep.subr.mxu0 %v2718
    %3102 = vmatpush1.msra.mxu0 %v2717
    %3103 = vmatprep.subr.mxu0 %v2724
    %3104 = vmatpush1.msra.mxu0 %v2723
    %3105 = vmatprep.subr.mxu0 %v2730
    %3106 = vmatpush1.msra.mxu0 %v2729
    %3107 = vmatprep.subr.mxu0 %v2736
    %3108 = vmatpush1.msra.mxu0 %v2735
    %3109 = vmatprep.subr.mxu0 %v2742
    %3110 = vmatpush1.msra.mxu0 %v2741
    %3111 = vmatprep.subr.mxu0 %v2748
    %3112 = vmatpush1.msra.mxu0 %v2747
    %3113 = vmatprep.subr.mxu0 %v2754
    %3114 = vmatpush1.msra.mxu0 %v2753
    %3115 = vmatprep.subr.mxu0 %v2760
    %3116 = vmatpush1.msra.mxu0 %v2759
    %3117 = vmatprep.subr.mxu0 %v2766
    %3118 = vmatpush1.msra.mxu0 %v2765
    %3119 = vmatprep.subr.mxu0 %v2772
    %3120 = vmatpush1.msra.mxu0 %v2771
    %3121 = vmatprep.subr.mxu0 %v2778
    %3122 = vmatpush1.msra.mxu0 %v2777
    %3123 = vmatprep.subr.mxu0 %v2784
    %3124 = vmatpush1.msra.mxu0 %v2783
    %3125 = vmatprep.subr.mxu0 %v2790
    %3126 = vmatpush1.msra.mxu0 %v2789
    %3127 = vmatprep.mubr.f32.mxu0 %v2599
    %3128 = vmatmul.mubr.f32.gmra.mrb[0].mxu0 %v2598
    %v3129 = vpop.f32.mrb[0].mxu0
    %v3130 = vadd.f32 %v2902, %v3129
    %v3131 = vpop.f32.mrb[0].mxu0
    %v3132 = vadd.f32 %v2906, %v3131
    %3133 = vdwg.mxu0
    %3134 = vmatprep.subr.mxu0 %v2796
    %3135 = vmatpush1.msra.mxu0 %v2795
    %3136 = vmatprep.subr.mxu0 %v2802
    %3137 = vmatpush1.msra.mxu0 %v2801
    %3138 = vmatprep.subr.mxu0 %v2808
    %3139 = vmatpush1.msra.mxu0 %v2807
    %3140 = vmatprep.subr.mxu0 %v2814
    %3141 = vmatpush1.msra.mxu0 %v2813
    %3142 = vmatprep.subr.mxu0 %v2820
    %3143 = vmatpush1.msra.mxu0 %v2819
    %3144 = vmatprep.subr.mxu0 %v2826
    %3145 = vmatpush1.msra.mxu0 %v2825
    %3146 = vmatprep.subr.mxu0 %v2832
    %3147 = vmatpush1.msra.mxu0 %v2831
    %3148 = vmatprep.subr.mxu0 %v2838
    %3149 = vmatpush1.msra.mxu0 %v2837
    %3150 = vmatprep.subr.mxu0 %v2844
    %3151 = vmatpush1.msra.mxu0 %v2843
    %3152 = vmatprep.subr.mxu0 %v2850
    %3153 = vmatpush1.msra.mxu0 %v2849
    %3154 = vmatprep.subr.mxu0 %v2856
    %3155 = vmatpush1.msra.mxu0 %v2855
    %3156 = vmatprep.subr.mxu0 %v2862
    %3157 = vmatpush1.msra.mxu0 %v2861
    %3158 = vmatprep.subr.mxu0 %v2868
    %3159 = vmatpush1.msra.mxu0 %v2867
    %3160 = vmatprep.subr.mxu0 %v2874
    %3161 = vmatpush1.msra.mxu0 %v2873
    %3162 = vmatprep.subr.mxu0 %v2880
    %3163 = vmatpush1.msra.mxu0 %v2879
    %3164 = vmatprep.subr.mxu0 %v2886
    %3165 = vmatpush1.msra.mxu0 %v2885
    %3166 = vmatprep.subr.mxu0 0.0
    %3167 = vmatpush1.msra.mxu0 0.0
    %3168 = vmatprep.subr.mxu0 0.0
    %3169 = vmatpush1.msra.mxu0 0.0
    %3170 = vmatprep.subr.mxu0 0.0
    %3171 = vmatpush1.msra.mxu0 0.0
    %3172 = vmatprep.subr.mxu0 0.0
    %3173 = vmatpush1.msra.mxu0 0.0
    %3174 = vmatprep.subr.mxu0 0.0
    %3175 = vmatpush1.msra.mxu0 0.0
    %3176 = vmatprep.subr.mxu0 0.0
    %3177 = vmatpush1.msra.mxu0 0.0
    %3178 = vmatprep.subr.mxu0 0.0
    %3179 = vmatpush1.msra.mxu0 0.0
    %3180 = vmatprep.subr.mxu0 0.0
    %3181 = vmatpush1.msra.mxu0 0.0
    %3182 = vmatprep.subr.mxu0 0.0
    %3183 = vmatpush1.msra.mxu0 0.0
    %3184 = vmatprep.subr.mxu0 0.0
    %3185 = vmatpush1.msra.mxu0 0.0
    %3186 = vmatprep.subr.mxu0 0.0
    %3187 = vmatpush1.msra.mxu0 0.0
    %3188 = vmatprep.subr.mxu0 0.0
    %3189 = vmatpush1.msra.mxu0 0.0
    %3190 = vmatprep.subr.mxu0 0.0
    %3191 = vmatpush1.msra.mxu0 0.0
    %3192 = vmatprep.subr.mxu0 0.0
    %3193 = vmatpush1.msra.mxu0 0.0
    %3194 = vmatprep.subr.mxu0 0.0
    %3195 = vmatpush1.msra.mxu0 0.0
    %3196 = vmatprep.subr.mxu0 0.0
    %3197 = vmatpush1.msra.mxu0 0.0
    %3198 = vmatprep.mubr.f32.mxu0 0.0
    %3199 = vmatmul.mubr.f32.gmra.mrb[0].mxu0 %v2600
    %v3200 = vpop.f32.mrb[0].mxu0
    %v3201 = vadd.f32 %v3130, %v3200
    %v3202 = vpop.f32.mrb[0].mxu0
    %v3203 = vadd.f32 %v3132, %v3202
    %3204 = vdwg.mxu0
    %3205 = vmatprep.subr.mxu0 %v2606
    %3206 = vmatpush1.msra.mxu0 %v2605
    %3207 = vmatprep.subr.mxu0 %v2612
    %3208 = vmatpush1.msra.mxu0 %v2611
    %3209 = vmatprep.subr.mxu0 %v2618
    %3210 = vmatpush1.msra.mxu0 %v2617
    %3211 = vmatprep.subr.mxu0 %v2624
    %3212 = vmatpush1.msra.mxu0 %v2623
    %3213 = vmatprep.subr.mxu0 %v2630
    %3214 = vmatpush1.msra.mxu0 %v2629
    %3215 = vmatprep.subr.mxu0 %v2636
    %3216 = vmatpush1.msra.mxu0 %v2635
    %3217 = vmatprep.subr.mxu0 %v2642
    %3218 = vmatpush1.msra.mxu0 %v2641
    %3219 = vmatprep.subr.mxu0 %v2648
    %3220 = vmatpush1.msra.mxu0 %v2647
    %3221 = vmatprep.subr.mxu0 %v2654
    %3222 = vmatpush1.msra.mxu0 %v2653
    %3223 = vmatprep.subr.mxu0 %v2660
    %3224 = vmatpush1.msra.mxu0 %v2659
    %3225 = vmatprep.subr.mxu0 %v2666
    %3226 = vmatpush1.msra.mxu0 %v2665
    %3227 = vmatprep.subr.mxu0 %v2672
    %3228 = vmatpush1.msra.mxu0 %v2671
    %3229 = vmatprep.subr.mxu0 %v2678
    %3230 = vmatpush1.msra.mxu0 %v2677
    %3231 = vmatprep.subr.mxu0 %v2684
    %3232 = vmatpush1.msra.mxu0 %v2683
    %3233 = vmatprep.subr.mxu0 %v2690
    %3234 = vmatpush1.msra.mxu0 %v2689
    %3235 = vmatprep.subr.mxu0 %v2696
    %3236 = vmatpush1.msra.mxu0 %v2695
    %3237 = vmatprep.subr.mxu0 %v2702
    %3238 = vmatpush1.msra.mxu0 %v2701
    %3239 = vmatprep.subr.mxu0 %v2708
    %3240 = vmatpush1.msra.mxu0 %v2707
    %3241 = vmatprep.subr.mxu0 %v2714
    %3242 = vmatpush1.msra.mxu0 %v2713
    %3243 = vmatprep.subr.mxu0 %v2720
    %3244 = vmatpush1.msra.mxu0 %v2719
    %3245 = vmatprep.subr.mxu0 %v2726
    %3246 = vmatpush1.msra.mxu0 %v2725
    %3247 = vmatprep.subr.mxu0 %v2732
    %3248 = vmatpush1.msra.mxu0 %v2731
    %3249 = vmatprep.subr.mxu0 %v2738
    %3250 = vmatpush1.msra.mxu0 %v2737
    %3251 = vmatprep.subr.mxu0 %v2744
    %3252 = vmatpush1.msra.mxu0 %v2743
    %3253 = vmatprep.subr.mxu0 %v2750
    %3254 = vmatpush1.msra.mxu0 %v2749
    %3255 = vmatprep.subr.mxu0 %v2756
    %3256 = vmatpush1.msra.mxu0 %v2755
    %3257 = vmatprep.subr.mxu0 %v2762
    %3258 = vmatpush1.msra.mxu0 %v2761
    %3259 = vmatprep.subr.mxu0 %v2768
    %3260 = vmatpush1.msra.mxu0 %v2767
    %3261 = vmatprep.subr.mxu0 %v2774
    %3262 = vmatpush1.msra.mxu0 %v2773
    %3263 = vmatprep.subr.mxu0 %v2780
    %3264 = vmatpush1.msra.mxu0 %v2779
    %3265 = vmatprep.subr.mxu0 %v2786
    %3266 = vmatpush1.msra.mxu0 %v2785
    %3267 = vmatprep.subr.mxu0 %v2792
    %3268 = vmatpush1.msra.mxu0 %v2791
    %3269 = vmatprep.mubr.f32.mxu0 %v2599
    %3270 = vmatmul.mubr.f32.gmra.mrb[0].mxu0 %v2598
    %v3271 = vpop.f32.mrb[0].mxu0
    %v3272 = vadd.f32 %v2910, %v3271
    %v3273 = vpop.f32.mrb[0].mxu0
    %v3274 = vadd.f32 %v2914, %v3273
    %3275 = vdwg.mxu0
    %3276 = vmatprep.subr.mxu0 %v2798
    %3277 = vmatpush1.msra.mxu0 %v2797
    %3278 = vmatprep.subr.mxu0 %v2804
    %3279 = vmatpush1.msra.mxu0 %v2803
    %3280 = vmatprep.subr.mxu0 %v2810
    %3281 = vmatpush1.msra.mxu0 %v2809
    %3282 = vmatprep.subr.mxu0 %v2816
    %3283 = vmatpush1.msra.mxu0 %v2815
    %3284 = vmatprep.subr.mxu0 %v2822
    %3285 = vmatpush1.msra.mxu0 %v2821
    %3286 = vmatprep.subr.mxu0 %v2828
    %3287 = vmatpush1.msra.mxu0 %v2827
    %3288 = vmatprep.subr.mxu0 %v2834
    %3289 = vmatpush1.msra.mxu0 %v2833
    %3290 = vmatprep.subr.mxu0 %v2840
    %3291 = vmatpush1.msra.mxu0 %v2839
    %3292 = vmatprep.subr.mxu0 %v2846
    %3293 = vmatpush1.msra.mxu0 %v2845
    %3294 = vmatprep.subr.mxu0 %v2852
    %3295 = vmatpush1.msra.mxu0 %v2851
    %3296 = vmatprep.subr.mxu0 %v2858
    %3297 = vmatpush1.msra.mxu0 %v2857
    %3298 = vmatprep.subr.mxu0 %v2864
    %3299 = vmatpush1.msra.mxu0 %v2863
    %3300 = vmatprep.subr.mxu0 %v2870
    %3301 = vmatpush1.msra.mxu0 %v2869
    %3302 = vmatprep.subr.mxu0 %v2876
    %3303 = vmatpush1.msra.mxu0 %v2875
    %3304 = vmatprep.subr.mxu0 %v2882
    %3305 = vmatpush1.msra.mxu0 %v2881
    %3306 = vmatprep.subr.mxu0 %v2888
    %3307 = vmatpush1.msra.mxu0 %v2887
    %3308 = vmatprep.subr.mxu0 0.0
    %3309 = vmatpush1.msra.mxu0 0.0
    %3310 = vmatprep.subr.mxu0 0.0
    %3311 = vmatpush1.msra.mxu0 0.0
    %3312 = vmatprep.subr.mxu0 0.0
    %3313 = vmatpush1.msra.mxu0 0.0
    %3314 = vmatprep.subr.mxu0 0.0
    %3315 = vmatpush1.msra.mxu0 0.0
    %3316 = vmatprep.subr.mxu0 0.0
    %3317 = vmatpush1.msra.mxu0 0.0
    %3318 = vmatprep.subr.mxu0 0.0
    %3319 = vmatpush1.msra.mxu0 0.0
    %3320 = vmatprep.subr.mxu0 0.0
    %3321 = vmatpush1.msra.mxu0 0.0
    %3322 = vmatprep.subr.mxu0 0.0
    %3323 = vmatpush1.msra.mxu0 0.0
    %3324 = vmatprep.subr.mxu0 0.0
    %3325 = vmatpush1.msra.mxu0 0.0
    %3326 = vmatprep.subr.mxu0 0.0
    %3327 = vmatpush1.msra.mxu0 0.0
    %3328 = vmatprep.subr.mxu0 0.0
    %3329 = vmatpush1.msra.mxu0 0.0
    %3330 = vmatprep.subr.mxu0 0.0
    %3331 = vmatpush1.msra.mxu0 0.0
    %3332 = vmatprep.subr.mxu0 0.0
    %3333 = vmatpush1.msra.mxu0 0.0
    %3334 = vmatprep.subr.mxu0 0.0
    %3335 = vmatpush1.msra.mxu0 0.0
    %3336 = vmatprep.subr.mxu0 0.0
    %3337 = vmatpush1.msra.mxu0 0.0
    %3338 = vmatprep.subr.mxu0 0.0
    %3339 = vmatpush1.msra.mxu0 0.0
    %3340 = vmatprep.mubr.f32.mxu0 0.0
    %3341 = vmatmul.mubr.f32.gmra.mrb[0].mxu0 %v2600
    %v3342 = vpop.f32.mrb[0].mxu0
    %v3343 = vadd.f32 %v3272, %v3342
    %v3344 = vpop.f32.mrb[0].mxu0
    %v3345 = vadd.f32 %v3274, %v3344
    %3346 = vdwg.mxu0
    %v3347 = vmax.f32 %v3059, 0.0
    %v3348 = vmax.f32 %v3061, 0.0
    %v3349 = vmax.f32 %v3201, 0.0
    %v3350 = vmax.f32 %v3203, 0.0
    %v3351 = vmax.f32 %v3343, 0.0
    %v3352 = vmax.f32 %v3345, 0.0
    %v3353 = vld [vmem:[#allocation9] sm:$0xff]
    %v3354 = vld [vmem:[#allocation9 + $0x8] sm:$0xff]
    %v3355 = vld [vmem:[#allocation9 + $0x10] sm:$0xff]
    %v3356 = vld [vmem:[#allocation9 + $0x18] sm:$0xff]
    %v3357 = vld [vmem:[#allocation9 + $0x20] sm:$0xff]
    %v3358 = vld [vmem:[#allocation9 + $0x28] sm:$0xff]
    %v3359 = vld [vmem:[#allocation9 + $0x30] sm:$0xff]
    %v3360 = vld [vmem:[#allocation9 + $0x38] sm:$0xff]
    %v3361 = vld [vmem:[#allocation9 + $0x40] sm:$0xff]
    %v3362 = vld [vmem:[#allocation9 + $0x48] sm:$0xff]
    %v3363 = vld [vmem:[#allocation9 + $0x50] sm:$0xff]
    %v3364 = vld [vmem:[#allocation9 + $0x58] sm:$0xff]
    %v3365 = vld [vmem:[#allocation9 + $0x60] sm:$0xff]
    %v3366 = vld [vmem:[#allocation9 + $0x68] sm:$0xff]
    %v3367 = vld [vmem:[#allocation9 + $0x70] sm:$0xff]
    %v3368 = vld [vmem:[#allocation9 + $0x78] sm:$0xff]
    %v3369 = vld [vmem:[#allocation9 + $0x80] sm:$0xff]
    %v3370 = vld [vmem:[#allocation9 + $0x88] sm:$0xff]
    %v3371 = vld [vmem:[#allocation9 + $0x90] sm:$0xff]
    %v3372 = vld [vmem:[#allocation9 + $0x98] sm:$0xff]
    %v3373 = vld [vmem:[#allocation9 + $0xa0] sm:$0xff]
    %v3374 = vld [vmem:[#allocation9 + $0xa8] sm:$0xff]
    %v3375 = vld [vmem:[#allocation9 + $0xb0] sm:$0xff]
    %v3376 = vld [vmem:[#allocation9 + $0xb8] sm:$0xff]
    %v3377 = vld [vmem:[#allocation9 + $0xc0] sm:$0xff]
    %v3378 = vld [vmem:[#allocation9 + $0xc8] sm:$0xff]
    %v3379 = vld [vmem:[#allocation9 + $0xd0] sm:$0xff]
    %v3380 = vld [vmem:[#allocation9 + $0xd8] sm:$0xff]
    %v3381 = vld [vmem:[#allocation9 + $0xe0] sm:$0xff]
    %v3382 = vld [vmem:[#allocation9 + $0xe8] sm:$0xff]
    %v3383 = vld [vmem:[#allocation9 + $0xf0] sm:$0xff]
    %v3384 = vld [vmem:[#allocation9 + $0xf8] sm:$0xff]
    %v3385 = vld [vmem:[#allocation9 + $0x100] sm:$0xff]
    %v3386 = vld [vmem:[#allocation9 + $0x108] sm:$0xff]
    %v3387 = vld [vmem:[#allocation9 + $0x110] sm:$0xff]
    %v3388 = vld [vmem:[#allocation9 + $0x118] sm:$0xff]
    %v3389 = vld [vmem:[#allocation9 + $0x120] sm:$0xff]
    %v3390 = vld [vmem:[#allocation9 + $0x128] sm:$0xff]
    %v3391 = vld [vmem:[#allocation9 + $0x130] sm:$0xff]
    %v3392 = vld [vmem:[#allocation9 + $0x138] sm:$0xff]
    %v3393 = vld [vmem:[#allocation9 + $0x140] sm:$0xff]
    %v3394 = vld [vmem:[#allocation9 + $0x148] sm:$0xff]
    %v3395 = vld [vmem:[#allocation9 + $0x150] sm:$0xff]
    %v3396 = vld [vmem:[#allocation9 + $0x158] sm:$0xff]
    %v3397 = vld [vmem:[#allocation9 + $0x160] sm:$0xff]
    %v3398 = vld [vmem:[#allocation9 + $0x168] sm:$0xff]
    %v3399 = vld [vmem:[#allocation9 + $0x170] sm:$0xff]
    %v3400 = vld [vmem:[#allocation9 + $0x178] sm:$0xff]
    %v3401 = vld [vmem:[#allocation9 + $0x180] sm:$0xff]
    %v3402 = vld [vmem:[#allocation9 + $0x188] sm:$0xff]
    %v3403 = vld [vmem:[#allocation9 + $0x190] sm:$0xff]
    %v3404 = vld [vmem:[#allocation9 + $0x198] sm:$0xff]
    %v3405 = vld [vmem:[#allocation9 + $0x1a0] sm:$0xff]
    %v3406 = vld [vmem:[#allocation9 + $0x1a8] sm:$0xff]
    %v3407 = vld [vmem:[#allocation9 + $0x1b0] sm:$0xff]
    %v3408 = vld [vmem:[#allocation9 + $0x1b8] sm:$0xff]
    %v3409 = vld [vmem:[#allocation9 + $0x1c0] sm:$0xff]
    %v3410 = vld [vmem:[#allocation9 + $0x1c8] sm:$0xff]
    %v3411 = vld [vmem:[#allocation9 + $0x1d0] sm:$0xff]
    %v3412 = vld [vmem:[#allocation9 + $0x1d8] sm:$0xff]
    %v3413 = vld [vmem:[#allocation9 + $0x1e0] sm:$0xff]
    %v3414 = vld [vmem:[#allocation9 + $0x1e8] sm:$0xff]
    %v3415 = vld [vmem:[#allocation9 + $0x1f0] sm:$0xff]
    %v3416 = vld [vmem:[#allocation9 + $0x1f8] sm:$0xff]
    %v3417 = vld [vmem:[#allocation9 + $0x200] sm:$0xff]
    %v3418 = vld [vmem:[#allocation9 + $0x208] sm:$0xff]
    %v3419 = vld [vmem:[#allocation9 + $0x210] sm:$0xff]
    %v3420 = vld [vmem:[#allocation9 + $0x218] sm:$0xff]
    %v3421 = vld [vmem:[#allocation9 + $0x220] sm:$0xff]
    %v3422 = vld [vmem:[#allocation9 + $0x228] sm:$0xff]
    %v3423 = vld [vmem:[#allocation9 + $0x230] sm:$0xff]
    %v3424 = vld [vmem:[#allocation9 + $0x238] sm:$0xff]
    %v3425 = vld [vmem:[#allocation9 + $0x240] sm:$0xff]
    %v3426 = vld [vmem:[#allocation9 + $0x248] sm:$0xff]
    %v3427 = vld [vmem:[#allocation9 + $0x250] sm:$0xff]
    %v3428 = vld [vmem:[#allocation9 + $0x258] sm:$0xff]
    %v3429 = vld [vmem:[#allocation9 + $0x260] sm:$0xff]
    %v3430 = vld [vmem:[#allocation9 + $0x268] sm:$0xff]
    %v3431 = vld [vmem:[#allocation9 + $0x270] sm:$0xff]
    %v3432 = vld [vmem:[#allocation9 + $0x278] sm:$0xff]
    %v3433 = vld [vmem:[#allocation9 + $0x280] sm:$0xff]
    %v3434 = vld [vmem:[#allocation9 + $0x288] sm:$0xff]
    %v3435 = vld [vmem:[#allocation9 + $0x290] sm:$0xff]
    %v3436 = vld [vmem:[#allocation9 + $0x298] sm:$0xff]
    %v3437 = vld [vmem:[#allocation9 + $0x2a0] sm:$0xff]
    %v3438 = vld [vmem:[#allocation9 + $0x2a8] sm:$0xff]
    %v3439 = vld [vmem:[#allocation9 + $0x2b0] sm:$0xff]
    %v3440 = vld [vmem:[#allocation9 + $0x2b8] sm:$0xff]
    %v3441 = vld [vmem:[#allocation9 + $0x2c0] sm:$0xff]
    %v3442 = vld [vmem:[#allocation9 + $0x2c8] sm:$0xff]
    %v3443 = vld [vmem:[#allocation9 + $0x2d0] sm:$0xff]
    %v3444 = vld [vmem:[#allocation9 + $0x2d8] sm:$0xff]
    %v3445 = vld [vmem:[#allocation9 + $0x2e0] sm:$0xff]
    %v3446 = vld [vmem:[#allocation9 + $0x2e8] sm:$0xff]
    %v3447 = vld [vmem:[#allocation9 + $0x2f0] sm:$0xff]
    %v3448 = vld [vmem:[#allocation9 + $0x2f8] sm:$0xff]
    %v3449 = vld [vmem:[#allocation9 + $0x300] sm:$0xff]
    %v3450 = vld [vmem:[#allocation9 + $0x308] sm:$0xff]
    %v3451 = vld [vmem:[#allocation9 + $0x310] sm:$0xff]
    %v3452 = vld [vmem:[#allocation9 + $0x318] sm:$0xff]
    %v3453 = vld [vmem:[#allocation9 + $0x320] sm:$0xff]
    %v3454 = vld [vmem:[#allocation9 + $0x328] sm:$0xff]
    %v3455 = vld [vmem:[#allocation9 + $0x330] sm:$0xff]
    %v3456 = vld [vmem:[#allocation9 + $0x338] sm:$0xff]
    %v3457 = vld [vmem:[#allocation9 + $0x340] sm:$0xff]
    %v3458 = vld [vmem:[#allocation9 + $0x348] sm:$0xff]
    %v3459 = vld [vmem:[#allocation9 + $0x350] sm:$0xff]
    %v3460 = vld [vmem:[#allocation9 + $0x358] sm:$0xff]
    %v3461 = vld [vmem:[#allocation9 + $0x360] sm:$0xff]
    %v3462 = vld [vmem:[#allocation9 + $0x368] sm:$0xff]
    %v3463 = vld [vmem:[#allocation9 + $0x370] sm:$0xff]
    %v3464 = vld [vmem:[#allocation9 + $0x378] sm:$0xff]
    %v3465 = vld [vmem:[#allocation9 + $0x380] sm:$0xff]
    %v3466 = vld [vmem:[#allocation9 + $0x388] sm:$0xff]
    %v3467 = vld [vmem:[#allocation9 + $0x390] sm:$0xff]
    %v3468 = vld [vmem:[#allocation9 + $0x398] sm:$0xff]
    %v3469 = vld [vmem:[#allocation9 + $0x3a0] sm:$0xff]
    %v3470 = vld [vmem:[#allocation9 + $0x3a8] sm:$0xff]
    %v3471 = vld [vmem:[#allocation9 + $0x3b0] sm:$0xff]
    %v3472 = vld [vmem:[#allocation9 + $0x3b8] sm:$0xff]
    %v3473 = vld [vmem:[#allocation9 + $0x3c0] sm:$0xff]
    %v3474 = vld [vmem:[#allocation9 + $0x3c8] sm:$0xff]
    %v3475 = vld [vmem:[#allocation9 + $0x3d0] sm:$0xff]
    %v3476 = vld [vmem:[#allocation9 + $0x3d8] sm:$0xff]
    %v3477 = vld [vmem:[#allocation9 + $0x3e0] sm:$0xff]
    %v3478 = vld [vmem:[#allocation9 + $0x3e8] sm:$0xff]
    %v3479 = vld [vmem:[#allocation9 + $0x3f0] sm:$0xff]
    %v3480 = vld [vmem:[#allocation9 + $0x3f8] sm:$0xff]
    %v3481 = vld [vmem:[#allocation9 + $0x400] sm:$0xff]
    %v3482 = vld [vmem:[#allocation9 + $0x408] sm:$0xff]
    %v3483 = vld [vmem:[#allocation9 + $0x410] sm:$0xff]
    %v3484 = vld [vmem:[#allocation9 + $0x418] sm:$0xff]
    %v3485 = vld [vmem:[#allocation9 + $0x420] sm:$0xff]
    %v3486 = vld [vmem:[#allocation9 + $0x428] sm:$0xff]
    %v3487 = vld [vmem:[#allocation9 + $0x430] sm:$0xff]
    %v3488 = vld [vmem:[#allocation9 + $0x438] sm:$0xff]
    %v3489 = vld [vmem:[#allocation9 + $0x440] sm:$0xff]
    %v3490 = vld [vmem:[#allocation9 + $0x448] sm:$0xff]
    %v3491 = vld [vmem:[#allocation9 + $0x450] sm:$0xff]
    %v3492 = vld [vmem:[#allocation9 + $0x458] sm:$0xff]
    %v3493 = vld [vmem:[#allocation9 + $0x460] sm:$0xff]
    %v3494 = vld [vmem:[#allocation9 + $0x468] sm:$0xff]
    %v3495 = vld [vmem:[#allocation9 + $0x470] sm:$0xff]
    %v3496 = vld [vmem:[#allocation9 + $0x478] sm:$0xff]
    %v3497 = vld [vmem:[#allocation9 + $0x480] sm:$0xff]
    %v3498 = vld [vmem:[#allocation9 + $0x488] sm:$0xff]
    %v3499 = vld [vmem:[#allocation9 + $0x490] sm:$0xff]
    %v3500 = vld [vmem:[#allocation9 + $0x498] sm:$0xff]
    %v3501 = vld [vmem:[#allocation9 + $0x4a0] sm:$0xff]
    %v3502 = vld [vmem:[#allocation9 + $0x4a8] sm:$0xff]
    %v3503 = vld [vmem:[#allocation9 + $0x4b0] sm:$0xff]
    %v3504 = vld [vmem:[#allocation9 + $0x4b8] sm:$0xff]
    %v3505 = vld [vmem:[#allocation9 + $0x4c0] sm:$0xff]
    %v3506 = vld [vmem:[#allocation9 + $0x4c8] sm:$0xff]
    %v3507 = vld [vmem:[#allocation9 + $0x4d0] sm:$0xff]
    %v3508 = vld [vmem:[#allocation9 + $0x4d8] sm:$0xff]
    %v3509 = vld [vmem:[#allocation9 + $0x4e0] sm:$0xff]
    %v3510 = vld [vmem:[#allocation9 + $0x4e8] sm:$0xff]
    %v3511 = vld [vmem:[#allocation9 + $0x4f0] sm:$0xff]
    %v3512 = vld [vmem:[#allocation9 + $0x4f8] sm:$0xff]
    %v3513 = vld [vmem:[#allocation9 + $0x500] sm:$0xff]
    %v3514 = vld [vmem:[#allocation9 + $0x508] sm:$0xff]
    %v3515 = vld [vmem:[#allocation9 + $0x510] sm:$0xff]
    %v3516 = vld [vmem:[#allocation9 + $0x518] sm:$0xff]
    %v3517 = vld [vmem:[#allocation9 + $0x520] sm:$0xff]
    %v3518 = vld [vmem:[#allocation9 + $0x528] sm:$0xff]
    %v3519 = vld [vmem:[#allocation9 + $0x530] sm:$0xff]
    %v3520 = vld [vmem:[#allocation9 + $0x538] sm:$0xff]
    %v3521 = vld [vmem:[#allocation9 + $0x540] sm:$0xff]
    %v3522 = vld [vmem:[#allocation9 + $0x548] sm:$0xff]
    %v3523 = vld [vmem:[#allocation9 + $0x550] sm:$0xff]
    %v3524 = vld [vmem:[#allocation9 + $0x558] sm:$0xff]
    %v3525 = vld [vmem:[#allocation9 + $0x560] sm:$0xff]
    %v3526 = vld [vmem:[#allocation9 + $0x568] sm:$0xff]
    %v3527 = vld [vmem:[#allocation9 + $0x570] sm:$0xff]
    %v3528 = vld [vmem:[#allocation9 + $0x578] sm:$0xff]
    %v3529 = vld [vmem:[#allocation9 + $0x580] sm:$0xff]
    %v3530 = vld [vmem:[#allocation9 + $0x588] sm:$0xff]
    %v3531 = vld [vmem:[#allocation9 + $0x590] sm:$0xff]
    %v3532 = vld [vmem:[#allocation9 + $0x598] sm:$0xff]
    %v3533 = vld [vmem:[#allocation9 + $0x5a0] sm:$0xff]
    %v3534 = vld [vmem:[#allocation9 + $0x5a8] sm:$0xff]
    %v3535 = vld [vmem:[#allocation9 + $0x5b0] sm:$0xff]
    %v3536 = vld [vmem:[#allocation9 + $0x5b8] sm:$0xff]
    %v3537 = vld [vmem:[#allocation9 + $0x5c0] sm:$0xff]
    %v3538 = vld [vmem:[#allocation9 + $0x5c8] sm:$0xff]
    %v3539 = vld [vmem:[#allocation9 + $0x5d0] sm:$0xff]
    %v3540 = vld [vmem:[#allocation9 + $0x5d8] sm:$0xff]
    %v3541 = vld [vmem:[#allocation9 + $0x5e0] sm:$0xff]
    %v3542 = vld [vmem:[#allocation9 + $0x5e8] sm:$0xff]
    %v3543 = vld [vmem:[#allocation9 + $0x5f0] sm:$0xff]
    %v3544 = vld [vmem:[#allocation9 + $0x5f8] sm:$0xff]
    %v3545 = vld [vmem:[#allocation9 + $0x600] sm:$0xff]
    %v3546 = vld [vmem:[#allocation9 + $0x608] sm:$0xff]
    %v3547 = vld [vmem:[#allocation9 + $0x610] sm:$0xff]
    %v3548 = vld [vmem:[#allocation9 + $0x618] sm:$0xff]
    %v3549 = vld [vmem:[#allocation9 + $0x620] sm:$0xff]
    %v3550 = vld [vmem:[#allocation9 + $0x628] sm:$0xff]
    %v3551 = vld [vmem:[#allocation9 + $0x630] sm:$0xff]
    %v3552 = vld [vmem:[#allocation9 + $0x638] sm:$0xff]
    %v3553 = vld [vmem:[#allocation9 + $0x640] sm:$0xff]
    %v3554 = vld [vmem:[#allocation9 + $0x648] sm:$0xff]
    %v3555 = vld [vmem:[#allocation9 + $0x650] sm:$0xff]
    %v3556 = vld [vmem:[#allocation9 + $0x658] sm:$0xff]
    %v3557 = vld [vmem:[#allocation9 + $0x660] sm:$0xff]
    %v3558 = vld [vmem:[#allocation9 + $0x668] sm:$0xff]
    %v3559 = vld [vmem:[#allocation9 + $0x670] sm:$0xff]
    %v3560 = vld [vmem:[#allocation9 + $0x678] sm:$0xff]
    %v3561 = vld [vmem:[#allocation9 + $0x680] sm:$0xff]
    %v3562 = vld [vmem:[#allocation9 + $0x688] sm:$0xff]
    %v3563 = vld [vmem:[#allocation9 + $0x690] sm:$0xff]
    %v3564 = vld [vmem:[#allocation9 + $0x698] sm:$0xff]
    %v3565 = vld [vmem:[#allocation9 + $0x6a0] sm:$0xff]
    %v3566 = vld [vmem:[#allocation9 + $0x6a8] sm:$0xff]
    %v3567 = vld [vmem:[#allocation9 + $0x6b0] sm:$0xff]
    %v3568 = vld [vmem:[#allocation9 + $0x6b8] sm:$0xff]
    %v3569 = vld [vmem:[#allocation9 + $0x6c0] sm:$0xff]
    %v3570 = vld [vmem:[#allocation9 + $0x6c8] sm:$0xff]
    %v3571 = vld [vmem:[#allocation9 + $0x6d0] sm:$0xff]
    %v3572 = vld [vmem:[#allocation9 + $0x6d8] sm:$0xff]
    %v3573 = vld [vmem:[#allocation9 + $0x6e0] sm:$0xff]
    %v3574 = vld [vmem:[#allocation9 + $0x6e8] sm:$0xff]
    %v3575 = vld [vmem:[#allocation9 + $0x6f0] sm:$0xff]
    %v3576 = vld [vmem:[#allocation9 + $0x6f8] sm:$0xff]
    %v3577 = vld [vmem:[#allocation9 + $0x700] sm:$0xff]
    %v3578 = vld [vmem:[#allocation9 + $0x708] sm:$0xff]
    %v3579 = vld [vmem:[#allocation9 + $0x710] sm:$0xff]
    %v3580 = vld [vmem:[#allocation9 + $0x718] sm:$0xff]
    %v3581 = vld [vmem:[#allocation9 + $0x720] sm:$0xff]
    %v3582 = vld [vmem:[#allocation9 + $0x728] sm:$0xff]
    %v3583 = vld [vmem:[#allocation9 + $0x730] sm:$0xff]
    %v3584 = vld [vmem:[#allocation9 + $0x738] sm:$0xff]
    %v3585 = vld [vmem:[#allocation9 + $0x740] sm:$0xff]
    %v3586 = vld [vmem:[#allocation9 + $0x748] sm:$0xff]
    %v3587 = vld [vmem:[#allocation9 + $0x750] sm:$0xff]
    %v3588 = vld [vmem:[#allocation9 + $0x758] sm:$0xff]
    %v3589 = vld [vmem:[#allocation9 + $0x760] sm:$0xff]
    %v3590 = vld [vmem:[#allocation9 + $0x768] sm:$0xff]
    %v3591 = vld [vmem:[#allocation9 + $0x770] sm:$0xff]
    %v3592 = vld [vmem:[#allocation9 + $0x778] sm:$0xff]
    %v3593 = vld [vmem:[#allocation9 + $0x780] sm:$0xff]
    %v3594 = vld [vmem:[#allocation9 + $0x788] sm:$0xff]
    %v3595 = vld [vmem:[#allocation9 + $0x790] sm:$0xff]
    %v3596 = vld [vmem:[#allocation9 + $0x798] sm:$0xff]
    %v3597 = vld [vmem:[#allocation9 + $0x7a0] sm:$0xff]
    %v3598 = vld [vmem:[#allocation9 + $0x7a8] sm:$0xff]
    %v3599 = vld [vmem:[#allocation9 + $0x7b0] sm:$0xff]
    %v3600 = vld [vmem:[#allocation9 + $0x7b8] sm:$0xff]
    %v3601 = vld [vmem:[#allocation9 + $0x7c0] sm:$0xff]
    %v3602 = vld [vmem:[#allocation9 + $0x7c8] sm:$0xff]
    %v3603 = vld [vmem:[#allocation9 + $0x7d0] sm:$0xff]
    %v3604 = vld [vmem:[#allocation9 + $0x7d8] sm:$0xff]
    %v3605 = vld [vmem:[#allocation9 + $0x7e0] sm:$0xff]
    %v3606 = vld [vmem:[#allocation9 + $0x7e8] sm:$0xff]
    %v3607 = vld [vmem:[#allocation9 + $0x7f0] sm:$0xff]
    %v3608 = vld [vmem:[#allocation9 + $0x7f8] sm:$0xff]
    %v3609 = vld [vmem:[#allocation9 + $0x800] sm:$0xff]
    %v3610 = vld [vmem:[#allocation9 + $0x808] sm:$0xff]
    %v3611 = vld [vmem:[#allocation9 + $0x810] sm:$0xff]
    %v3612 = vld [vmem:[#allocation9 + $0x818] sm:$0xff]
    %v3613 = vld [vmem:[#allocation9 + $0x820] sm:$0xff]
    %v3614 = vld [vmem:[#allocation9 + $0x828] sm:$0xff]
    %v3615 = vld [vmem:[#allocation9 + $0x830] sm:$0xff]
    %v3616 = vld [vmem:[#allocation9 + $0x838] sm:$0xff]
    %v3617 = vld [vmem:[#allocation9 + $0x840] sm:$0xff]
    %v3618 = vld [vmem:[#allocation9 + $0x848] sm:$0xff]
    %v3619 = vld [vmem:[#allocation9 + $0x850] sm:$0xff]
    %v3620 = vld [vmem:[#allocation9 + $0x858] sm:$0xff]
    %v3621 = vld [vmem:[#allocation9 + $0x860] sm:$0xff]
    %v3622 = vld [vmem:[#allocation9 + $0x868] sm:$0xff]
    %v3623 = vld [vmem:[#allocation9 + $0x870] sm:$0xff]
    %v3624 = vld [vmem:[#allocation9 + $0x878] sm:$0xff]
    %v3625 = vld [vmem:[#allocation9 + $0x880] sm:$0xff]
    %v3626 = vld [vmem:[#allocation9 + $0x888] sm:$0xff]
    %v3627 = vld [vmem:[#allocation9 + $0x890] sm:$0xff]
    %v3628 = vld [vmem:[#allocation9 + $0x898] sm:$0xff]
    %v3629 = vld [vmem:[#allocation9 + $0x8a0] sm:$0xff]
    %v3630 = vld [vmem:[#allocation9 + $0x8a8] sm:$0xff]
    %v3631 = vld [vmem:[#allocation9 + $0x8b0] sm:$0xff]
    %v3632 = vld [vmem:[#allocation9 + $0x8b8] sm:$0xff]
    %v3633 = vld [vmem:[#allocation9 + $0x8c0] sm:$0xff]
    %v3634 = vld [vmem:[#allocation9 + $0x8c8] sm:$0xff]
    %v3635 = vld [vmem:[#allocation9 + $0x8d0] sm:$0xff]
    %v3636 = vld [vmem:[#allocation9 + $0x8d8] sm:$0xff]
    %v3637 = vld [vmem:[#allocation9 + $0x8e0] sm:$0xff]
    %v3638 = vld [vmem:[#allocation9 + $0x8e8] sm:$0xff]
    %v3639 = vld [vmem:[#allocation9 + $0x8f0] sm:$0xff]
    %v3640 = vld [vmem:[#allocation9 + $0x8f8] sm:$0xff]
    %v3641 = vld [vmem:[#allocation9 + $0x900] sm:$0xff]
    %v3642 = vld [vmem:[#allocation9 + $0x908] sm:$0xff]
    %v3643 = vld [vmem:[#allocation9 + $0x910] sm:$0xff]
    %v3644 = vld [vmem:[#allocation9 + $0x918] sm:$0xff]
    %v3645 = vld [vmem:[#allocation9 + $0x920] sm:$0xff]
    %v3646 = vld [vmem:[#allocation9 + $0x928] sm:$0xff]
    %v3647 = vld [vmem:[#allocation9 + $0x930] sm:$0xff]
    %v3648 = vld [vmem:[#allocation9 + $0x938] sm:$0xff]
    %v3649 = vld [vmem:[#allocation9 + $0x940] sm:$0xff]
    %v3650 = vld [vmem:[#allocation9 + $0x948] sm:$0xff]
    %v3651 = vld [vmem:[#allocation9 + $0x950] sm:$0xff]
    %v3652 = vld [vmem:[#allocation9 + $0x958] sm:$0xff]
    %v3653 = vld [vmem:[#allocation9 + $0x960] sm:$0xff]
    %v3654 = vld [vmem:[#allocation9 + $0x968] sm:$0xff]
    %v3655 = vld [vmem:[#allocation9 + $0x970] sm:$0xff]
    %v3656 = vld [vmem:[#allocation9 + $0x978] sm:$0xff]
    %v3657 = vld [vmem:[#allocation9 + $0x980] sm:$0xff]
    %v3658 = vld [vmem:[#allocation9 + $0x988] sm:$0xff]
    %v3659 = vld [vmem:[#allocation9 + $0x990] sm:$0xff]
    %v3660 = vld [vmem:[#allocation9 + $0x998] sm:$0xff]
    %v3661 = vld [vmem:[#allocation9 + $0x9a0] sm:$0xff]
    %v3662 = vld [vmem:[#allocation9 + $0x9a8] sm:$0xff]
    %v3663 = vld [vmem:[#allocation9 + $0x9b0] sm:$0xff]
    %v3664 = vld [vmem:[#allocation9 + $0x9b8] sm:$0xff]
    %v3665 = vld [vmem:[#allocation9 + $0x9c0] sm:$0xff]
    %v3666 = vld [vmem:[#allocation9 + $0x9c8] sm:$0xff]
    %v3667 = vld [vmem:[#allocation9 + $0x9d0] sm:$0xff]
    %v3668 = vld [vmem:[#allocation9 + $0x9d8] sm:$0xff]
    %v3669 = vld [vmem:[#allocation9 + $0x9e0] sm:$0xff]
    %v3670 = vld [vmem:[#allocation9 + $0x9e8] sm:$0xff]
    %v3671 = vld [vmem:[#allocation9 + $0x9f0] sm:$0xff]
    %v3672 = vld [vmem:[#allocation9 + $0x9f8] sm:$0xff]
    %v3673 = vld [vmem:[#allocation9 + $0xa00] sm:$0xff]
    %v3674 = vld [vmem:[#allocation9 + $0xa08] sm:$0xff]
    %v3675 = vld [vmem:[#allocation9 + $0xa10] sm:$0xff]
    %v3676 = vld [vmem:[#allocation9 + $0xa18] sm:$0xff]
    %v3677 = vld [vmem:[#allocation9 + $0xa20] sm:$0xff]
    %v3678 = vld [vmem:[#allocation9 + $0xa28] sm:$0xff]
    %v3679 = vld [vmem:[#allocation9 + $0xa30] sm:$0xff]
    %v3680 = vld [vmem:[#allocation9 + $0xa38] sm:$0xff]
    %v3681 = vld [vmem:[#allocation9 + $0xa40] sm:$0xff]
    %v3682 = vld [vmem:[#allocation9 + $0xa48] sm:$0xff]
    %v3683 = vld [vmem:[#allocation9 + $0xa50] sm:$0xff]
    %v3684 = vld [vmem:[#allocation9 + $0xa58] sm:$0xff]
    %v3685 = vld [vmem:[#allocation9 + $0xa60] sm:$0xff]
    %v3686 = vld [vmem:[#allocation9 + $0xa68] sm:$0xff]
    %v3687 = vld [vmem:[#allocation9 + $0xa70] sm:$0xff]
    %v3688 = vld [vmem:[#allocation9 + $0xa78] sm:$0xff]
    %v3689 = vld [vmem:[#allocation9 + $0xa80] sm:$0xff]
    %v3690 = vld [vmem:[#allocation9 + $0xa88] sm:$0xff]
    %v3691 = vld [vmem:[#allocation9 + $0xa90] sm:$0xff]
    %v3692 = vld [vmem:[#allocation9 + $0xa98] sm:$0xff]
    %v3693 = vld [vmem:[#allocation9 + $0xaa0] sm:$0xff]
    %v3694 = vld [vmem:[#allocation9 + $0xaa8] sm:$0xff]
    %v3695 = vld [vmem:[#allocation9 + $0xab0] sm:$0xff]
    %v3696 = vld [vmem:[#allocation9 + $0xab8] sm:$0xff]
    %v3697 = vld [vmem:[#allocation9 + $0xac0] sm:$0xff]
    %v3698 = vld [vmem:[#allocation9 + $0xac8] sm:$0xff]
    %v3699 = vld [vmem:[#allocation9 + $0xad0] sm:$0xff]
    %v3700 = vld [vmem:[#allocation9 + $0xad8] sm:$0xff]
    %v3701 = vld [vmem:[#allocation9 + $0xae0] sm:$0xff]
    %v3702 = vld [vmem:[#allocation9 + $0xae8] sm:$0xff]
    %v3703 = vld [vmem:[#allocation9 + $0xaf0] sm:$0xff]
    %v3704 = vld [vmem:[#allocation9 + $0xaf8] sm:$0xff]
    %v3705 = vld [vmem:[#allocation9 + $0xb00] sm:$0xff]
    %v3706 = vld [vmem:[#allocation9 + $0xb08] sm:$0xff]
    %v3707 = vld [vmem:[#allocation9 + $0xb10] sm:$0xff]
    %v3708 = vld [vmem:[#allocation9 + $0xb18] sm:$0xff]
    %v3709 = vld [vmem:[#allocation9 + $0xb20] sm:$0xff]
    %v3710 = vld [vmem:[#allocation9 + $0xb28] sm:$0xff]
    %v3711 = vld [vmem:[#allocation9 + $0xb30] sm:$0xff]
    %v3712 = vld [vmem:[#allocation9 + $0xb38] sm:$0xff]
    %v3713 = vld [vmem:[#allocation9 + $0xb40] sm:$0xff]
    %v3714 = vld [vmem:[#allocation9 + $0xb48] sm:$0xff]
    %v3715 = vld [vmem:[#allocation9 + $0xb50] sm:$0xff]
    %v3716 = vld [vmem:[#allocation9 + $0xb58] sm:$0xff]
    %v3717 = vld [vmem:[#allocation9 + $0xb60] sm:$0xff]
    %v3718 = vld [vmem:[#allocation9 + $0xb68] sm:$0xff]
    %v3719 = vld [vmem:[#allocation9 + $0xb70] sm:$0xff]
    %v3720 = vld [vmem:[#allocation9 + $0xb78] sm:$0xff]
    %v3721 = vld [vmem:[#allocation9 + $0xb80] sm:$0xff]
    %v3722 = vld [vmem:[#allocation9 + $0xb88] sm:$0xff]
    %v3723 = vld [vmem:[#allocation9 + $0xb90] sm:$0xff]
    %v3724 = vld [vmem:[#allocation9 + $0xb98] sm:$0xff]
    %v3725 = vld [vmem:[#allocation9 + $0xba0] sm:$0xff]
    %v3726 = vld [vmem:[#allocation9 + $0xba8] sm:$0xff]
    %v3727 = vld [vmem:[#allocation9 + $0xbb0] sm:$0xff]
    %v3728 = vld [vmem:[#allocation9 + $0xbb8] sm:$0xff]
    %v3729 = vld [vmem:[#allocation9 + $0xbc0] sm:$0xff]
    %v3730 = vld [vmem:[#allocation9 + $0xbc8] sm:$0xff]
    %v3731 = vld [vmem:[#allocation9 + $0xbd0] sm:$0xff]
    %v3732 = vld [vmem:[#allocation9 + $0xbd8] sm:$0xff]
    %v3733 = vld [vmem:[#allocation9 + $0xbe0] sm:$0xff]
    %v3734 = vld [vmem:[#allocation9 + $0xbe8] sm:$0xff]
    %v3735 = vld [vmem:[#allocation9 + $0xbf0] sm:$0xff]
    %v3736 = vld [vmem:[#allocation9 + $0xbf8] sm:$0xff]
    %v3737 = vld [vmem:[#allocation9 + $0xc00] sm:$0xff]
    %v3738 = vld [vmem:[#allocation9 + $0xc08] sm:$0xff]
    %v3739 = vld [vmem:[#allocation9 + $0xc10] sm:$0xff]
    %v3740 = vld [vmem:[#allocation9 + $0xc18] sm:$0xff]
    %v3741 = vld [vmem:[#allocation9 + $0xc20] sm:$0xff]
    %v3742 = vld [vmem:[#allocation9 + $0xc28] sm:$0xff]
    %v3743 = vld [vmem:[#allocation9 + $0xc30] sm:$0xff]
    %v3744 = vld [vmem:[#allocation9 + $0xc38] sm:$0xff]
    %v3745 = vld [vmem:[#allocation9 + $0xc40] sm:$0xff]
    %v3746 = vld [vmem:[#allocation9 + $0xc48] sm:$0xff]
    %v3747 = vld [vmem:[#allocation9 + $0xc50] sm:$0xff]
    %v3748 = vld [vmem:[#allocation9 + $0xc58] sm:$0xff]
    %v3749 = vld [vmem:[#allocation9 + $0xc60] sm:$0xff]
    %v3750 = vld [vmem:[#allocation9 + $0xc68] sm:$0xff]
    %v3751 = vld [vmem:[#allocation9 + $0xc70] sm:$0xff]
    %v3752 = vld [vmem:[#allocation9 + $0xc78] sm:$0xff]
    %v3753 = vld [vmem:[#allocation9 + $0xc80] sm:$0xff]
    %v3754 = vld [vmem:[#allocation9 + $0xc88] sm:$0xff]
    %v3755 = vld [vmem:[#allocation9 + $0xc90] sm:$0xff]
    %v3756 = vld [vmem:[#allocation9 + $0xc98] sm:$0xff]
    %v3757 = vld [vmem:[#allocation9 + $0xca0] sm:$0xff]
    %v3758 = vld [vmem:[#allocation9 + $0xca8] sm:$0xff]
    %v3759 = vld [vmem:[#allocation9 + $0xcb0] sm:$0xff]
    %v3760 = vld [vmem:[#allocation9 + $0xcb8] sm:$0xff]
    %v3761 = vld [vmem:[#allocation9 + $0xcc0] sm:$0xff]
    %v3762 = vld [vmem:[#allocation9 + $0xcc8] sm:$0xff]
    %v3763 = vld [vmem:[#allocation9 + $0xcd0] sm:$0xff]
    %v3764 = vld [vmem:[#allocation9 + $0xcd8] sm:$0xff]
    %v3765 = vld [vmem:[#allocation9 + $0xce0] sm:$0xff]
    %v3766 = vld [vmem:[#allocation9 + $0xce8] sm:$0xff]
    %v3767 = vld [vmem:[#allocation9 + $0xcf0] sm:$0xff]
    %v3768 = vld [vmem:[#allocation9 + $0xcf8] sm:$0xff]
    %v3769 = vld [vmem:[#allocation9 + $0xd00] sm:$0xff]
    %v3770 = vld [vmem:[#allocation9 + $0xd08] sm:$0xff]
    %v3771 = vld [vmem:[#allocation9 + $0xd10] sm:$0xff]
    %v3772 = vld [vmem:[#allocation9 + $0xd18] sm:$0xff]
    %v3773 = vld [vmem:[#allocation9 + $0xd20] sm:$0xff]
    %v3774 = vld [vmem:[#allocation9 + $0xd28] sm:$0xff]
    %v3775 = vld [vmem:[#allocation9 + $0xd30] sm:$0xff]
    %v3776 = vld [vmem:[#allocation9 + $0xd38] sm:$0xff]
    %v3777 = vld [vmem:[#allocation9 + $0xd40] sm:$0xff]
    %v3778 = vld [vmem:[#allocation9 + $0xd48] sm:$0xff]
    %v3779 = vld [vmem:[#allocation9 + $0xd50] sm:$0xff]
    %v3780 = vld [vmem:[#allocation9 + $0xd58] sm:$0xff]
    %v3781 = vld [vmem:[#allocation9 + $0xd60] sm:$0xff]
    %v3782 = vld [vmem:[#allocation9 + $0xd68] sm:$0xff]
    %v3783 = vld [vmem:[#allocation9 + $0xd70] sm:$0xff]
    %v3784 = vld [vmem:[#allocation9 + $0xd78] sm:$0xff]
    %v3785 = vld [vmem:[#allocation9 + $0xd80] sm:$0xff]
    %v3786 = vld [vmem:[#allocation9 + $0xd88] sm:$0xff]
    %v3787 = vld [vmem:[#allocation9 + $0xd90] sm:$0xff]
    %v3788 = vld [vmem:[#allocation9 + $0xd98] sm:$0xff]
    %v3789 = vld [vmem:[#allocation9 + $0xda0] sm:$0xff]
    %v3790 = vld [vmem:[#allocation9 + $0xda8] sm:$0xff]
    %v3791 = vld [vmem:[#allocation9 + $0xdb0] sm:$0xff]
    %v3792 = vld [vmem:[#allocation9 + $0xdb8] sm:$0xff]
    %v3793 = vld [vmem:[#allocation9 + $0xdc0] sm:$0xff]
    %v3794 = vld [vmem:[#allocation9 + $0xdc8] sm:$0xff]
    %v3795 = vld [vmem:[#allocation9 + $0xdd0] sm:$0xff]
    %v3796 = vld [vmem:[#allocation9 + $0xdd8] sm:$0xff]
    %v3797 = vld [vmem:[#allocation9 + $0xde0] sm:$0xff]
    %v3798 = vld [vmem:[#allocation9 + $0xde8] sm:$0xff]
    %v3799 = vld [vmem:[#allocation9 + $0xdf0] sm:$0xff]
    %v3800 = vld [vmem:[#allocation9 + $0xdf8] sm:$0xff]
    %v3801 = vld [vmem:[#allocation9 + $0xe00] sm:$0xff]
    %v3802 = vld [vmem:[#allocation9 + $0xe08] sm:$0xff]
    %v3803 = vld [vmem:[#allocation9 + $0xe10] sm:$0xff]
    %v3804 = vld [vmem:[#allocation9 + $0xe18] sm:$0xff]
    %v3805 = vld [vmem:[#allocation9 + $0xe20] sm:$0xff]
    %v3806 = vld [vmem:[#allocation9 + $0xe28] sm:$0xff]
    %v3807 = vld [vmem:[#allocation9 + $0xe30] sm:$0xff]
    %v3808 = vld [vmem:[#allocation9 + $0xe38] sm:$0xff]
    %v3809 = vld [vmem:[#allocation9 + $0xe40] sm:$0xff]
    %v3810 = vld [vmem:[#allocation9 + $0xe48] sm:$0xff]
    %v3811 = vld [vmem:[#allocation9 + $0xe50] sm:$0xff]
    %v3812 = vld [vmem:[#allocation9 + $0xe58] sm:$0xff]
    %v3813 = vld [vmem:[#allocation9 + $0xe60] sm:$0xff]
    %v3814 = vld [vmem:[#allocation9 + $0xe68] sm:$0xff]
    %v3815 = vld [vmem:[#allocation9 + $0xe70] sm:$0xff]
    %v3816 = vld [vmem:[#allocation9 + $0xe78] sm:$0xff]
    %v3817 = vld [vmem:[#allocation9 + $0xe80] sm:$0xff]
    %v3818 = vld [vmem:[#allocation9 + $0xe88] sm:$0xff]
    %v3819 = vld [vmem:[#allocation9 + $0xe90] sm:$0xff]
    %v3820 = vld [vmem:[#allocation9 + $0xe98] sm:$0xff]
    %v3821 = vld [vmem:[#allocation9 + $0xea0] sm:$0xff]
    %v3822 = vld [vmem:[#allocation9 + $0xea8] sm:$0xff]
    %v3823 = vld [vmem:[#allocation9 + $0xeb0] sm:$0xff]
    %v3824 = vld [vmem:[#allocation9 + $0xeb8] sm:$0xff]
    %v3825 = vld [vmem:[#allocation9 + $0xec0] sm:$0xff]
    %v3826 = vld [vmem:[#allocation9 + $0xec8] sm:$0xff]
    %v3827 = vld [vmem:[#allocation9 + $0xed0] sm:$0xff]
    %v3828 = vld [vmem:[#allocation9 + $0xed8] sm:$0xff]
    %v3829 = vld [vmem:[#allocation9 + $0xee0] sm:$0xff]
    %v3830 = vld [vmem:[#allocation9 + $0xee8] sm:$0xff]
    %v3831 = vld [vmem:[#allocation9 + $0xef0] sm:$0xff]
    %v3832 = vld [vmem:[#allocation9 + $0xef8] sm:$0xff]
    %v3833 = vld [vmem:[#allocation9 + $0xf00] sm:$0xff]
    %v3834 = vld [vmem:[#allocation9 + $0xf08] sm:$0xff]
    %v3835 = vld [vmem:[#allocation9 + $0xf10] sm:$0xff]
    %v3836 = vld [vmem:[#allocation9 + $0xf18] sm:$0xff]
    %v3837 = vld [vmem:[#allocation9 + $0xf20] sm:$0xff]
    %v3838 = vld [vmem:[#allocation9 + $0xf28] sm:$0xff]
    %v3839 = vld [vmem:[#allocation9 + $0xf30] sm:$0xff]
    %v3840 = vld [vmem:[#allocation9 + $0xf38] sm:$0xff]
    %v3841 = vld [vmem:[#allocation9 + $0xf40] sm:$0xff]
    %v3842 = vld [vmem:[#allocation9 + $0xf48] sm:$0xff]
    %v3843 = vld [vmem:[#allocation9 + $0xf50] sm:$0xff]
    %v3844 = vld [vmem:[#allocation9 + $0xf58] sm:$0xff]
    %v3845 = vld [vmem:[#allocation9 + $0xf60] sm:$0xff]
    %v3846 = vld [vmem:[#allocation9 + $0xf68] sm:$0xff]
    %v3847 = vld [vmem:[#allocation9 + $0xf70] sm:$0xff]
    %v3848 = vld [vmem:[#allocation9 + $0xf78] sm:$0xff]
    %v3849 = vld [vmem:[#allocation9 + $0xf80] sm:$0xff]
    %v3850 = vld [vmem:[#allocation9 + $0xf88] sm:$0xff]
    %v3851 = vld [vmem:[#allocation9 + $0xf90] sm:$0xff]
    %v3852 = vld [vmem:[#allocation9 + $0xf98] sm:$0xff]
    %v3853 = vld [vmem:[#allocation9 + $0xfa0] sm:$0xff]
    %v3854 = vld [vmem:[#allocation9 + $0xfa8] sm:$0xff]
    %v3855 = vld [vmem:[#allocation9 + $0xfb0] sm:$0xff]
    %v3856 = vld [vmem:[#allocation9 + $0xfb8] sm:$0xff]
    %v3857 = vld [vmem:[#allocation9 + $0xfc0] sm:$0xff]
    %v3858 = vld [vmem:[#allocation9 + $0xfc8] sm:$0xff]
    %v3859 = vld [vmem:[#allocation9 + $0xfd0] sm:$0xff]
    %v3860 = vld [vmem:[#allocation9 + $0xfd8] sm:$0xff]
    %v3861 = vld [vmem:[#allocation9 + $0xfe0] sm:$0xff]
    %v3862 = vld [vmem:[#allocation9 + $0xfe8] sm:$0xff]
    %v3863 = vld [vmem:[#allocation9 + $0xff0] sm:$0xff]
    %v3864 = vld [vmem:[#allocation9 + $0xff8] sm:$0xff]
    %v3865 = vld [vmem:[#allocation9 + $0x1000] sm:$0xff]
    %v3866 = vld [vmem:[#allocation9 + $0x1008] sm:$0xff]
    %v3867 = vld [vmem:[#allocation9 + $0x1010] sm:$0xff]
    %v3868 = vld [vmem:[#allocation9 + $0x1018] sm:$0xff]
    %v3869 = vld [vmem:[#allocation9 + $0x1020] sm:$0xff]
    %v3870 = vld [vmem:[#allocation9 + $0x1028] sm:$0xff]
    %v3871 = vld [vmem:[#allocation9 + $0x1030] sm:$0xff]
    %v3872 = vld [vmem:[#allocation9 + $0x1038] sm:$0xff]
    %v3873 = vld [vmem:[#allocation9 + $0x1040] sm:$0xff]
    %v3874 = vld [vmem:[#allocation9 + $0x1048] sm:$0xff]
    %v3875 = vld [vmem:[#allocation9 + $0x1050] sm:$0xff]
    %v3876 = vld [vmem:[#allocation9 + $0x1058] sm:$0xff]
    %v3877 = vld [vmem:[#allocation9 + $0x1060] sm:$0xff]
    %v3878 = vld [vmem:[#allocation9 + $0x1068] sm:$0xff]
    %v3879 = vld [vmem:[#allocation9 + $0x1070] sm:$0xff]
    %v3880 = vld [vmem:[#allocation9 + $0x1078] sm:$0xff]
    %v3881 = vld [vmem:[#allocation9 + $0x1080] sm:$0xff]
    %v3882 = vld [vmem:[#allocation9 + $0x1088] sm:$0xff]
    %v3883 = vld [vmem:[#allocation9 + $0x1090] sm:$0xff]
    %v3884 = vld [vmem:[#allocation9 + $0x1098] sm:$0xff]
    %v3885 = vld [vmem:[#allocation9 + $0x10a0] sm:$0xff]
    %v3886 = vld [vmem:[#allocation9 + $0x10a8] sm:$0xff]
    %v3887 = vld [vmem:[#allocation9 + $0x10b0] sm:$0xff]
    %v3888 = vld [vmem:[#allocation9 + $0x10b8] sm:$0xff]
    %v3889 = vld [vmem:[#allocation9 + $0x10c0] sm:$0xff]
    %v3890 = vld [vmem:[#allocation9 + $0x10c8] sm:$0xff]
    %v3891 = vld [vmem:[#allocation9 + $0x10d0] sm:$0xff]
    %v3892 = vld [vmem:[#allocation9 + $0x10d8] sm:$0xff]
    %v3893 = vld [vmem:[#allocation9 + $0x10e0] sm:$0xff]
    %v3894 = vld [vmem:[#allocation9 + $0x10e8] sm:$0xff]
    %v3895 = vld [vmem:[#allocation9 + $0x10f0] sm:$0xff]
    %v3896 = vld [vmem:[#allocation9 + $0x10f8] sm:$0xff]
    %v3897 = vld [vmem:[#allocation9 + $0x1100] sm:$0xff]
    %v3898 = vld [vmem:[#allocation9 + $0x1108] sm:$0xff]
    %v3899 = vld [vmem:[#allocation9 + $0x1110] sm:$0xff]
    %v3900 = vld [vmem:[#allocation9 + $0x1118] sm:$0xff]
    %v3901 = vld [vmem:[#allocation9 + $0x1120] sm:$0xff]
    %v3902 = vld [vmem:[#allocation9 + $0x1128] sm:$0xff]
    %v3903 = vld [vmem:[#allocation9 + $0x1130] sm:$0xff]
    %v3904 = vld [vmem:[#allocation9 + $0x1138] sm:$0xff]
    %v3905 = vld [vmem:[#allocation9 + $0x1140] sm:$0xff]
    %v3906 = vld [vmem:[#allocation9 + $0x1148] sm:$0xff]
    %v3907 = vld [vmem:[#allocation9 + $0x1150] sm:$0xff]
    %v3908 = vld [vmem:[#allocation9 + $0x1158] sm:$0xff]
    %v3909 = vld [vmem:[#allocation9 + $0x1160] sm:$0xff]
    %v3910 = vld [vmem:[#allocation9 + $0x1168] sm:$0xff]
    %v3911 = vld [vmem:[#allocation9 + $0x1170] sm:$0xff]
    %v3912 = vld [vmem:[#allocation9 + $0x1178] sm:$0xff]
    %v3913 = vld [vmem:[#allocation9 + $0x1180] sm:$0xff]
    %v3914 = vld [vmem:[#allocation9 + $0x1188] sm:$0xff]
    %v3915 = vld [vmem:[#allocation9 + $0x1190] sm:$0xff]
    %v3916 = vld [vmem:[#allocation9 + $0x1198] sm:$0xff]
    %v3917 = vld [vmem:[#allocation9 + $0x11a0] sm:$0xff]
    %v3918 = vld [vmem:[#allocation9 + $0x11a8] sm:$0xff]
    %v3919 = vld [vmem:[#allocation9 + $0x11b0] sm:$0xff]
    %v3920 = vld [vmem:[#allocation9 + $0x11b8] sm:$0xff]
    %v3921 = vld [vmem:[#allocation9 + $0x11c0] sm:$0xff]
    %v3922 = vld [vmem:[#allocation9 + $0x11c8] sm:$0xff]
    %v3923 = vld [vmem:[#allocation9 + $0x11d0] sm:$0xff]
    %v3924 = vld [vmem:[#allocation9 + $0x11d8] sm:$0xff]
    %v3925 = vld [vmem:[#allocation9 + $0x11e0] sm:$0xff]
    %v3926 = vld [vmem:[#allocation9 + $0x11e8] sm:$0xff]
    %v3927 = vld [vmem:[#allocation9 + $0x11f0] sm:$0xff]
    %v3928 = vld [vmem:[#allocation9 + $0x11f8] sm:$0xff]
    %v3929 = vld [vmem:[#allocation9 + $0x1200] sm:$0xff]
    %v3930 = vld [vmem:[#allocation9 + $0x1208] sm:$0xff]
    %v3931 = vld [vmem:[#allocation9 + $0x1210] sm:$0xff]
    %v3932 = vld [vmem:[#allocation9 + $0x1218] sm:$0xff]
    %v3933 = vld [vmem:[#allocation9 + $0x1220] sm:$0xff]
    %v3934 = vld [vmem:[#allocation9 + $0x1228] sm:$0xff]
    %v3935 = vld [vmem:[#allocation9 + $0x1230] sm:$0xff]
    %v3936 = vld [vmem:[#allocation9 + $0x1238] sm:$0xff]
    %v3937 = vld [vmem:[#allocation9 + $0x1240] sm:$0xff]
    %v3938 = vld [vmem:[#allocation9 + $0x1248] sm:$0xff]
    %v3939 = vld [vmem:[#allocation9 + $0x1250] sm:$0xff]
    %v3940 = vld [vmem:[#allocation9 + $0x1258] sm:$0xff]
    %v3941 = vld [vmem:[#allocation9 + $0x1260] sm:$0xff]
    %v3942 = vld [vmem:[#allocation9 + $0x1268] sm:$0xff]
    %v3943 = vld [vmem:[#allocation9 + $0x1270] sm:$0xff]
    %v3944 = vld [vmem:[#allocation9 + $0x1278] sm:$0xff]
    %v3945 = vld [vmem:[#allocation9 + $0x1280] sm:$0xff]
    %v3946 = vld [vmem:[#allocation9 + $0x1288] sm:$0xff]
    %v3947 = vld [vmem:[#allocation9 + $0x1290] sm:$0xff]
    %v3948 = vld [vmem:[#allocation9 + $0x1298] sm:$0xff]
    %v3949 = vld [vmem:[#allocation9 + $0x12a0] sm:$0xff]
    %v3950 = vld [vmem:[#allocation9 + $0x12a8] sm:$0xff]
    %v3951 = vld [vmem:[#allocation9 + $0x12b0] sm:$0xff]
    %v3952 = vld [vmem:[#allocation9 + $0x12b8] sm:$0xff]
    %v3953 = vld [vmem:[#allocation9 + $0x12c0] sm:$0xff]
    %v3954 = vld [vmem:[#allocation9 + $0x12c8] sm:$0xff]
    %v3955 = vld [vmem:[#allocation9 + $0x12d0] sm:$0xff]
    %v3956 = vld [vmem:[#allocation9 + $0x12d8] sm:$0xff]
    %v3957 = vld [vmem:[#allocation9 + $0x12e0] sm:$0xff]
    %v3958 = vld [vmem:[#allocation9 + $0x12e8] sm:$0xff]
    %v3959 = vld [vmem:[#allocation9 + $0x12f0] sm:$0xff]
    %v3960 = vld [vmem:[#allocation9 + $0x12f8] sm:$0xff]
    %v3961 = vld [vmem:[#allocation9 + $0x1300] sm:$0xff]
    %v3962 = vld [vmem:[#allocation9 + $0x1308] sm:$0xff]
    %v3963 = vld [vmem:[#allocation9 + $0x1310] sm:$0xff]
    %v3964 = vld [vmem:[#allocation9 + $0x1318] sm:$0xff]
    %v3965 = vld [vmem:[#allocation9 + $0x1320] sm:$0xff]
    %v3966 = vld [vmem:[#allocation9 + $0x1328] sm:$0xff]
    %v3967 = vld [vmem:[#allocation9 + $0x1330] sm:$0xff]
    %v3968 = vld [vmem:[#allocation9 + $0x1338] sm:$0xff]
    %v3969 = vld [vmem:[#allocation9 + $0x1340] sm:$0xff]
    %v3970 = vld [vmem:[#allocation9 + $0x1348] sm:$0xff]
    %v3971 = vld [vmem:[#allocation9 + $0x1350] sm:$0xff]
    %v3972 = vld [vmem:[#allocation9 + $0x1358] sm:$0xff]
    %v3973 = vld [vmem:[#allocation9 + $0x1360] sm:$0xff]
    %v3974 = vld [vmem:[#allocation9 + $0x1368] sm:$0xff]
    %v3975 = vld [vmem:[#allocation9 + $0x1370] sm:$0xff]
    %v3976 = vld [vmem:[#allocation9 + $0x1378] sm:$0xff]
    %v3977 = vld [vmem:[#allocation9 + $0x1380] sm:$0xff]
    %v3978 = vld [vmem:[#allocation9 + $0x1388] sm:$0xff]
    %v3979 = vld [vmem:[#allocation9 + $0x1390] sm:$0xff]
    %v3980 = vld [vmem:[#allocation9 + $0x1398] sm:$0xff]
    %v3981 = vld [vmem:[#allocation9 + $0x13a0] sm:$0xff]
    %v3982 = vld [vmem:[#allocation9 + $0x13a8] sm:$0xff]
    %v3983 = vld [vmem:[#allocation9 + $0x13b0] sm:$0xff]
    %v3984 = vld [vmem:[#allocation9 + $0x13b8] sm:$0xff]
    %v3985 = vld [vmem:[#allocation9 + $0x13c0] sm:$0xff]
    %v3986 = vld [vmem:[#allocation9 + $0x13c8] sm:$0xff]
    %v3987 = vld [vmem:[#allocation9 + $0x13d0] sm:$0xff]
    %v3988 = vld [vmem:[#allocation9 + $0x13d8] sm:$0xff]
    %v3989 = vld [vmem:[#allocation9 + $0x13e0] sm:$0xff]
    %v3990 = vld [vmem:[#allocation9 + $0x13e8] sm:$0xff]
    %v3991 = vld [vmem:[#allocation9 + $0x13f0] sm:$0xff]
    %v3992 = vld [vmem:[#allocation9 + $0x13f8] sm:$0xff]
    %v3993 = vld [vmem:[#allocation9 + $0x1400] sm:$0xff]
    %v3994 = vld [vmem:[#allocation9 + $0x1408] sm:$0xff]
    %v3995 = vld [vmem:[#allocation9 + $0x1410] sm:$0xff]
    %v3996 = vld [vmem:[#allocation9 + $0x1418] sm:$0xff]
    %v3997 = vld [vmem:[#allocation9 + $0x1420] sm:$0xff]
    %v3998 = vld [vmem:[#allocation9 + $0x1428] sm:$0xff]
    %v3999 = vld [vmem:[#allocation9 + $0x1430] sm:$0xff]
    %v4000 = vld [vmem:[#allocation9 + $0x1438] sm:$0xff]
    %v4001 = vld [vmem:[#allocation9 + $0x1440] sm:$0xff]
    %v4002 = vld [vmem:[#allocation9 + $0x1448] sm:$0xff]
    %v4003 = vld [vmem:[#allocation9 + $0x1450] sm:$0xff]
    %v4004 = vld [vmem:[#allocation9 + $0x1458] sm:$0xff]
    %v4005 = vld [vmem:[#allocation9 + $0x1460] sm:$0xff]
    %v4006 = vld [vmem:[#allocation9 + $0x1468] sm:$0xff]
    %v4007 = vld [vmem:[#allocation9 + $0x1470] sm:$0xff]
    %v4008 = vld [vmem:[#allocation9 + $0x1478] sm:$0xff]
    %v4009 = vld [vmem:[#allocation9 + $0x1480] sm:$0xff]
    %v4010 = vld [vmem:[#allocation9 + $0x1488] sm:$0xff]
    %v4011 = vld [vmem:[#allocation9 + $0x1490] sm:$0xff]
    %v4012 = vld [vmem:[#allocation9 + $0x1498] sm:$0xff]
    %v4013 = vld [vmem:[#allocation9 + $0x14a0] sm:$0xff]
    %v4014 = vld [vmem:[#allocation9 + $0x14a8] sm:$0xff]
    %v4015 = vld [vmem:[#allocation9 + $0x14b0] sm:$0xff]
    %v4016 = vld [vmem:[#allocation9 + $0x14b8] sm:$0xff]
    %v4017 = vld [vmem:[#allocation9 + $0x14c0] sm:$0xff]
    %v4018 = vld [vmem:[#allocation9 + $0x14c8] sm:$0xff]
    %v4019 = vld [vmem:[#allocation9 + $0x14d0] sm:$0xff]
    %v4020 = vld [vmem:[#allocation9 + $0x14d8] sm:$0xff]
    %v4021 = vld [vmem:[#allocation9 + $0x14e0] sm:$0xff]
    %v4022 = vld [vmem:[#allocation9 + $0x14e8] sm:$0xff]
    %v4023 = vld [vmem:[#allocation9 + $0x14f0] sm:$0xff]
    %v4024 = vld [vmem:[#allocation9 + $0x14f8] sm:$0xff]
    %v4025 = vld [vmem:[#allocation9 + $0x1500] sm:$0xff]
    %v4026 = vld [vmem:[#allocation9 + $0x1508] sm:$0xff]
    %v4027 = vld [vmem:[#allocation9 + $0x1510] sm:$0xff]
    %v4028 = vld [vmem:[#allocation9 + $0x1518] sm:$0xff]
    %v4029 = vld [vmem:[#allocation9 + $0x1520] sm:$0xff]
    %v4030 = vld [vmem:[#allocation9 + $0x1528] sm:$0xff]
    %v4031 = vld [vmem:[#allocation9 + $0x1530] sm:$0xff]
    %v4032 = vld [vmem:[#allocation9 + $0x1538] sm:$0xff]
    %v4033 = vld [vmem:[#allocation9 + $0x1540] sm:$0xff]
    %v4034 = vld [vmem:[#allocation9 + $0x1548] sm:$0xff]
    %v4035 = vld [vmem:[#allocation9 + $0x1550] sm:$0xff]
    %v4036 = vld [vmem:[#allocation9 + $0x1558] sm:$0xff]
    %v4037 = vld [vmem:[#allocation9 + $0x1560] sm:$0xff]
    %v4038 = vld [vmem:[#allocation9 + $0x1568] sm:$0xff]
    %v4039 = vld [vmem:[#allocation9 + $0x1570] sm:$0xff]
    %v4040 = vld [vmem:[#allocation9 + $0x1578] sm:$0xff]
    %v4041 = vld [vmem:[#allocation9 + $0x1580] sm:$0xff]
    %v4042 = vld [vmem:[#allocation9 + $0x1588] sm:$0xff]
    %v4043 = vld [vmem:[#allocation9 + $0x1590] sm:$0xff]
    %v4044 = vld [vmem:[#allocation9 + $0x1598] sm:$0xff]
    %v4045 = vld [vmem:[#allocation9 + $0x15a0] sm:$0xff]
    %v4046 = vld [vmem:[#allocation9 + $0x15a8] sm:$0xff]
    %v4047 = vld [vmem:[#allocation9 + $0x15b0] sm:$0xff]
    %v4048 = vld [vmem:[#allocation9 + $0x15b8] sm:$0xff]
    %v4049 = vld [vmem:[#allocation9 + $0x15c0] sm:$0xff]
    %v4050 = vld [vmem:[#allocation9 + $0x15c8] sm:$0xff]
    %v4051 = vld [vmem:[#allocation9 + $0x15d0] sm:$0xff]
    %v4052 = vld [vmem:[#allocation9 + $0x15d8] sm:$0xff]
    %v4053 = vld [vmem:[#allocation9 + $0x15e0] sm:$0xff]
    %v4054 = vld [vmem:[#allocation9 + $0x15e8] sm:$0xff]
    %v4055 = vld [vmem:[#allocation9 + $0x15f0] sm:$0xff]
    %v4056 = vld [vmem:[#allocation9 + $0x15f8] sm:$0xff]
    %v4057 = vld [vmem:[#allocation9 + $0x1600] sm:$0xff]
    %v4058 = vld [vmem:[#allocation9 + $0x1608] sm:$0xff]
    %v4059 = vld [vmem:[#allocation9 + $0x1610] sm:$0xff]
    %v4060 = vld [vmem:[#allocation9 + $0x1618] sm:$0xff]
    %v4061 = vld [vmem:[#allocation9 + $0x1620] sm:$0xff]
    %v4062 = vld [vmem:[#allocation9 + $0x1628] sm:$0xff]
    %v4063 = vld [vmem:[#allocation9 + $0x1630] sm:$0xff]
    %v4064 = vld [vmem:[#allocation9 + $0x1638] sm:$0xff]
    %v4065 = vld [vmem:[#allocation9 + $0x1640] sm:$0xff]
    %v4066 = vld [vmem:[#allocation9 + $0x1648] sm:$0xff]
    %v4067 = vld [vmem:[#allocation9 + $0x1650] sm:$0xff]
    %v4068 = vld [vmem:[#allocation9 + $0x1658] sm:$0xff]
    %v4069 = vld [vmem:[#allocation9 + $0x1660] sm:$0xff]
    %v4070 = vld [vmem:[#allocation9 + $0x1668] sm:$0xff]
    %v4071 = vld [vmem:[#allocation9 + $0x1670] sm:$0xff]
    %v4072 = vld [vmem:[#allocation9 + $0x1678] sm:$0xff]
    %v4073 = vld [vmem:[#allocation9 + $0x1680] sm:$0xff]
    %v4074 = vld [vmem:[#allocation9 + $0x1688] sm:$0xff]
    %v4075 = vld [vmem:[#allocation9 + $0x1690] sm:$0xff]
    %v4076 = vld [vmem:[#allocation9 + $0x1698] sm:$0xff]
    %v4077 = vld [vmem:[#allocation9 + $0x16a0] sm:$0xff]
    %v4078 = vld [vmem:[#allocation9 + $0x16a8] sm:$0xff]
    %v4079 = vld [vmem:[#allocation9 + $0x16b0] sm:$0xff]
    %v4080 = vld [vmem:[#allocation9 + $0x16b8] sm:$0xff]
    %v4081 = vld [vmem:[#allocation9 + $0x16c0] sm:$0xff]
    %v4082 = vld [vmem:[#allocation9 + $0x16c8] sm:$0xff]
    %v4083 = vld [vmem:[#allocation9 + $0x16d0] sm:$0xff]
    %v4084 = vld [vmem:[#allocation9 + $0x16d8] sm:$0xff]
    %v4085 = vld [vmem:[#allocation9 + $0x16e0] sm:$0xff]
    %v4086 = vld [vmem:[#allocation9 + $0x16e8] sm:$0xff]
    %v4087 = vld [vmem:[#allocation9 + $0x16f0] sm:$0xff]
    %v4088 = vld [vmem:[#allocation9 + $0x16f8] sm:$0xff]
    %v4089 = vld [vmem:[#allocation9 + $0x1700] sm:$0xff]
    %v4090 = vld [vmem:[#allocation9 + $0x1708] sm:$0xff]
    %v4091 = vld [vmem:[#allocation9 + $0x1710] sm:$0xff]
    %v4092 = vld [vmem:[#allocation9 + $0x1718] sm:$0xff]
    %v4093 = vld [vmem:[#allocation9 + $0x1720] sm:$0xff]
    %v4094 = vld [vmem:[#allocation9 + $0x1728] sm:$0xff]
    %v4095 = vld [vmem:[#allocation9 + $0x1730] sm:$0xff]
    %v4096 = vld [vmem:[#allocation9 + $0x1738] sm:$0xff]
    %v4097 = vld [vmem:[#allocation9 + $0x1740] sm:$0xff]
    %v4098 = vld [vmem:[#allocation9 + $0x1748] sm:$0xff]
    %v4099 = vld [vmem:[#allocation9 + $0x1750] sm:$0xff]
    %v4100 = vld [vmem:[#allocation9 + $0x1758] sm:$0xff]
    %v4101 = vld [vmem:[#allocation9 + $0x1760] sm:$0xff]
    %v4102 = vld [vmem:[#allocation9 + $0x1768] sm:$0xff]
    %v4103 = vld [vmem:[#allocation9 + $0x1770] sm:$0xff]
    %v4104 = vld [vmem:[#allocation9 + $0x1778] sm:$0xff]
    %v4105 = vld [vmem:[#allocation9 + $0x1780] sm:$0xff]
    %v4106 = vld [vmem:[#allocation9 + $0x1788] sm:$0xff]
    %v4107 = vld [vmem:[#allocation9 + $0x1790] sm:$0xff]
    %v4108 = vld [vmem:[#allocation9 + $0x1798] sm:$0xff]
    %v4109 = vld [vmem:[#allocation9 + $0x17a0] sm:$0xff]
    %v4110 = vld [vmem:[#allocation9 + $0x17a8] sm:$0xff]
    %v4111 = vld [vmem:[#allocation9 + $0x17b0] sm:$0xff]
    %v4112 = vld [vmem:[#allocation9 + $0x17b8] sm:$0xff]
    %v4113 = vld [vmem:[#allocation9 + $0x17c0] sm:$0xff]
    %v4114 = vld [vmem:[#allocation9 + $0x17c8] sm:$0xff]
    %v4115 = vld [vmem:[#allocation9 + $0x17d0] sm:$0xff]
    %v4116 = vld [vmem:[#allocation9 + $0x17d8] sm:$0xff]
    %v4117 = vld [vmem:[#allocation9 + $0x17e0] sm:$0xff]
    %v4118 = vld [vmem:[#allocation9 + $0x17e8] sm:$0xff]
    %v4119 = vld [vmem:[#allocation9 + $0x17f0] sm:$0xff]
    %v4120 = vld [vmem:[#allocation9 + $0x17f8] sm:$0xff]
    %v4121 = vld [vmem:[#allocation9 + $0x1800] sm:$0xff]
    %v4122 = vld [vmem:[#allocation9 + $0x1808] sm:$0xff]
    %v4123 = vld [vmem:[#allocation9 + $0x1810] sm:$0xff]
    %v4124 = vld [vmem:[#allocation9 + $0x1818] sm:$0xff]
    %v4125 = vld [vmem:[#allocation9 + $0x1820] sm:$0xff]
    %v4126 = vld [vmem:[#allocation9 + $0x1828] sm:$0xff]
    %v4127 = vld [vmem:[#allocation9 + $0x1830] sm:$0xff]
    %v4128 = vld [vmem:[#allocation9 + $0x1838] sm:$0xff]
    %v4129 = vld [vmem:[#allocation9 + $0x1840] sm:$0xff]
    %v4130 = vld [vmem:[#allocation9 + $0x1848] sm:$0xff]
    %v4131 = vld [vmem:[#allocation9 + $0x1850] sm:$0xff]
    %v4132 = vld [vmem:[#allocation9 + $0x1858] sm:$0xff]
    %v4133 = vld [vmem:[#allocation9 + $0x1860] sm:$0xff]
    %v4134 = vld [vmem:[#allocation9 + $0x1868] sm:$0xff]
    %v4135 = vld [vmem:[#allocation9 + $0x1870] sm:$0xff]
    %v4136 = vld [vmem:[#allocation9 + $0x1878] sm:$0xff]
    %v4137 = vld [vmem:[#allocation9 + $0x1880] sm:$0xff]
    %v4138 = vld [vmem:[#allocation9 + $0x1888] sm:$0xff]
    %v4139 = vld [vmem:[#allocation9 + $0x1890] sm:$0xff]
    %v4140 = vld [vmem:[#allocation9 + $0x1898] sm:$0xff]
    %v4141 = vld [vmem:[#allocation9 + $0x18a0] sm:$0xff]
    %v4142 = vld [vmem:[#allocation9 + $0x18a8] sm:$0xff]
    %v4143 = vld [vmem:[#allocation9 + $0x18b0] sm:$0xff]
    %v4144 = vld [vmem:[#allocation9 + $0x18b8] sm:$0xff]
    %v4145 = vld [vmem:[#allocation9 + $0x18c0] sm:$0xff]
    %v4146 = vld [vmem:[#allocation9 + $0x18c8] sm:$0xff]
    %v4147 = vld [vmem:[#allocation9 + $0x18d0] sm:$0xff]
    %v4148 = vld [vmem:[#allocation9 + $0x18d8] sm:$0xff]
    %v4149 = vld [vmem:[#allocation9 + $0x18e0] sm:$0xff]
    %v4150 = vld [vmem:[#allocation9 + $0x18e8] sm:$0xff]
    %v4151 = vld [vmem:[#allocation9 + $0x18f0] sm:$0xff]
    %v4152 = vld [vmem:[#allocation9 + $0x18f8] sm:$0xff]
    %v4153 = vld [vmem:[#allocation9 + $0x1900] sm:$0xff]
    %v4154 = vld [vmem:[#allocation9 + $0x1908] sm:$0xff]
    %v4155 = vld [vmem:[#allocation9 + $0x1910] sm:$0xff]
    %v4156 = vld [vmem:[#allocation9 + $0x1918] sm:$0xff]
    %v4157 = vld [vmem:[#allocation9 + $0x1920] sm:$0xff]
    %v4158 = vld [vmem:[#allocation9 + $0x1928] sm:$0xff]
    %v4159 = vld [vmem:[#allocation9 + $0x1930] sm:$0xff]
    %v4160 = vld [vmem:[#allocation9 + $0x1938] sm:$0xff]
    %v4161 = vld [vmem:[#allocation9 + $0x1940] sm:$0xff]
    %v4162 = vld [vmem:[#allocation9 + $0x1948] sm:$0xff]
    %v4163 = vld [vmem:[#allocation9 + $0x1950] sm:$0xff]
    %v4164 = vld [vmem:[#allocation9 + $0x1958] sm:$0xff]
    %v4165 = vld [vmem:[#allocation9 + $0x1960] sm:$0xff]
    %v4166 = vld [vmem:[#allocation9 + $0x1968] sm:$0xff]
    %v4167 = vld [vmem:[#allocation9 + $0x1970] sm:$0xff]
    %v4168 = vld [vmem:[#allocation9 + $0x1978] sm:$0xff]
    %v4169 = vld [vmem:[#allocation9 + $0x1980] sm:$0xff]
    %v4170 = vld [vmem:[#allocation9 + $0x1988] sm:$0xff]
    %v4171 = vld [vmem:[#allocation9 + $0x1990] sm:$0xff]
    %v4172 = vld [vmem:[#allocation9 + $0x1998] sm:$0xff]
    %v4173 = vld [vmem:[#allocation9 + $0x19a0] sm:$0xff]
    %v4174 = vld [vmem:[#allocation9 + $0x19a8] sm:$0xff]
    %v4175 = vld [vmem:[#allocation9 + $0x19b0] sm:$0xff]
    %v4176 = vld [vmem:[#allocation9 + $0x19b8] sm:$0xff]
    %v4177 = vld [vmem:[#allocation9 + $0x19c0] sm:$0xff]
    %v4178 = vld [vmem:[#allocation9 + $0x19c8] sm:$0xff]
    %v4179 = vld [vmem:[#allocation9 + $0x19d0] sm:$0xff]
    %v4180 = vld [vmem:[#allocation9 + $0x19d8] sm:$0xff]
    %v4181 = vld [vmem:[#allocation9 + $0x19e0] sm:$0xff]
    %v4182 = vld [vmem:[#allocation9 + $0x19e8] sm:$0xff]
    %v4183 = vld [vmem:[#allocation9 + $0x19f0] sm:$0xff]
    %v4184 = vld [vmem:[#allocation9 + $0x19f8] sm:$0xff]
    %v4185 = vld [vmem:[#allocation9 + $0x1a00] sm:$0xff]
    %v4186 = vld [vmem:[#allocation9 + $0x1a08] sm:$0xff]
    %v4187 = vld [vmem:[#allocation9 + $0x1a10] sm:$0xff]
    %v4188 = vld [vmem:[#allocation9 + $0x1a18] sm:$0xff]
    %v4189 = vld [vmem:[#allocation9 + $0x1a20] sm:$0xff]
    %v4190 = vld [vmem:[#allocation9 + $0x1a28] sm:$0xff]
    %v4191 = vld [vmem:[#allocation9 + $0x1a30] sm:$0xff]
    %v4192 = vld [vmem:[#allocation9 + $0x1a38] sm:$0xff]
    %v4193 = vld [vmem:[#allocation9 + $0x1a40] sm:$0xff]
    %v4194 = vld [vmem:[#allocation9 + $0x1a48] sm:$0xff]
    %v4195 = vld [vmem:[#allocation9 + $0x1a50] sm:$0xff]
    %v4196 = vld [vmem:[#allocation9 + $0x1a58] sm:$0xff]
    %v4197 = vld [vmem:[#allocation9 + $0x1a60] sm:$0xff]
    %v4198 = vld [vmem:[#allocation9 + $0x1a68] sm:$0xff]
    %v4199 = vld [vmem:[#allocation9 + $0x1a70] sm:$0xff]
    %v4200 = vld [vmem:[#allocation9 + $0x1a78] sm:$0xff]
    %v4201 = vld [vmem:[#allocation9 + $0x1a80] sm:$0xff]
    %v4202 = vld [vmem:[#allocation9 + $0x1a88] sm:$0xff]
    %v4203 = vld [vmem:[#allocation9 + $0x1a90] sm:$0xff]
    %v4204 = vld [vmem:[#allocation9 + $0x1a98] sm:$0xff]
    %v4205 = vld [vmem:[#allocation9 + $0x1aa0] sm:$0xff]
    %v4206 = vld [vmem:[#allocation9 + $0x1aa8] sm:$0xff]
    %v4207 = vld [vmem:[#allocation9 + $0x1ab0] sm:$0xff]
    %v4208 = vld [vmem:[#allocation9 + $0x1ab8] sm:$0xff]
    %v4209 = vld [vmem:[#allocation9 + $0x1ac0] sm:$0xff]
    %v4210 = vld [vmem:[#allocation9 + $0x1ac8] sm:$0xff]
    %v4211 = vld [vmem:[#allocation9 + $0x1ad0] sm:$0xff]
    %v4212 = vld [vmem:[#allocation9 + $0x1ad8] sm:$0xff]
    %v4213 = vld [vmem:[#allocation9 + $0x1ae0] sm:$0xff]
    %v4214 = vld [vmem:[#allocation9 + $0x1ae8] sm:$0xff]
    %v4215 = vld [vmem:[#allocation9 + $0x1af0] sm:$0xff]
    %v4216 = vld [vmem:[#allocation9 + $0x1af8] sm:$0xff]
    %v4217 = vld [vmem:[#allocation9 + $0x1b00] sm:$0xff]
    %v4218 = vld [vmem:[#allocation9 + $0x1b08] sm:$0xff]
    %v4219 = vld [vmem:[#allocation9 + $0x1b10] sm:$0xff]
    %v4220 = vld [vmem:[#allocation9 + $0x1b18] sm:$0xff]
    %v4221 = vld [vmem:[#allocation9 + $0x1b20] sm:$0xff]
    %v4222 = vld [vmem:[#allocation9 + $0x1b28] sm:$0xff]
    %v4223 = vld [vmem:[#allocation9 + $0x1b30] sm:$0xff]
    %v4224 = vld [vmem:[#allocation9 + $0x1b38] sm:$0xff]
    %v4225 = vld [vmem:[#allocation9 + $0x1b40] sm:$0xff]
    %v4226 = vld [vmem:[#allocation9 + $0x1b48] sm:$0xff]
    %v4227 = vld [vmem:[#allocation9 + $0x1b50] sm:$0xff]
    %v4228 = vld [vmem:[#allocation9 + $0x1b58] sm:$0xff]
    %v4229 = vld [vmem:[#allocation9 + $0x1b60] sm:$0xff]
    %v4230 = vld [vmem:[#allocation9 + $0x1b68] sm:$0xff]
    %v4231 = vld [vmem:[#allocation9 + $0x1b70] sm:$0xff]
    %v4232 = vld [vmem:[#allocation9 + $0x1b78] sm:$0xff]
    %v4233 = vld [vmem:[#allocation9 + $0x1b80] sm:$0xff]
    %v4234 = vld [vmem:[#allocation9 + $0x1b88] sm:$0xff]
    %v4235 = vld [vmem:[#allocation9 + $0x1b90] sm:$0xff]
    %v4236 = vld [vmem:[#allocation9 + $0x1b98] sm:$0xff]
    %v4237 = vld [vmem:[#allocation9 + $0x1ba0] sm:$0xff]
    %v4238 = vld [vmem:[#allocation9 + $0x1ba8] sm:$0xff]
    %v4239 = vld [vmem:[#allocation9 + $0x1bb0] sm:$0xff]
    %v4240 = vld [vmem:[#allocation9 + $0x1bb8] sm:$0xff]
    %v4241 = vld [vmem:[#allocation9 + $0x1bc0] sm:$0xff]
    %v4242 = vld [vmem:[#allocation9 + $0x1bc8] sm:$0xff]
    %v4243 = vld [vmem:[#allocation9 + $0x1bd0] sm:$0xff]
    %v4244 = vld [vmem:[#allocation9 + $0x1bd8] sm:$0xff]
    %v4245 = vld [vmem:[#allocation9 + $0x1be0] sm:$0xff]
    %v4246 = vld [vmem:[#allocation9 + $0x1be8] sm:$0xff]
    %v4247 = vld [vmem:[#allocation9 + $0x1bf0] sm:$0xff]
    %v4248 = vld [vmem:[#allocation9 + $0x1bf8] sm:$0xff]
    %v4249 = vld [vmem:[#allocation9 + $0x1c00] sm:$0xff]
    %v4250 = vld [vmem:[#allocation9 + $0x1c08] sm:$0xff]
    %v4251 = vld [vmem:[#allocation9 + $0x1c10] sm:$0xff]
    %v4252 = vld [vmem:[#allocation9 + $0x1c18] sm:$0xff]
    %v4253 = vld [vmem:[#allocation9 + $0x1c20] sm:$0xff]
    %v4254 = vld [vmem:[#allocation9 + $0x1c28] sm:$0xff]
    %v4255 = vld [vmem:[#allocation9 + $0x1c30] sm:$0xff]
    %v4256 = vld [vmem:[#allocation9 + $0x1c38] sm:$0xff]
    %v4257 = vld [vmem:[#allocation9 + $0x1c40] sm:$0xff]
    %v4258 = vld [vmem:[#allocation9 + $0x1c48] sm:$0xff]
    %v4259 = vld [vmem:[#allocation9 + $0x1c50] sm:$0xff]
    %v4260 = vld [vmem:[#allocation9 + $0x1c58] sm:$0xff]
    %v4261 = vld [vmem:[#allocation9 + $0x1c60] sm:$0xff]
    %v4262 = vld [vmem:[#allocation9 + $0x1c68] sm:$0xff]
    %v4263 = vld [vmem:[#allocation9 + $0x1c70] sm:$0xff]
    %v4264 = vld [vmem:[#allocation9 + $0x1c78] sm:$0xff]
    %v4265 = vld [vmem:[#allocation9 + $0x1c80] sm:$0xff]
    %v4266 = vld [vmem:[#allocation9 + $0x1c88] sm:$0xff]
    %v4267 = vld [vmem:[#allocation9 + $0x1c90] sm:$0xff]
    %v4268 = vld [vmem:[#allocation9 + $0x1c98] sm:$0xff]
    %v4269 = vld [vmem:[#allocation9 + $0x1ca0] sm:$0xff]
    %v4270 = vld [vmem:[#allocation9 + $0x1ca8] sm:$0xff]
    %v4271 = vld [vmem:[#allocation9 + $0x1cb0] sm:$0xff]
    %v4272 = vld [vmem:[#allocation9 + $0x1cb8] sm:$0xff]
    %v4273 = vld [vmem:[#allocation9 + $0x1cc0] sm:$0xff]
    %v4274 = vld [vmem:[#allocation9 + $0x1cc8] sm:$0xff]
    %v4275 = vld [vmem:[#allocation9 + $0x1cd0] sm:$0xff]
    %v4276 = vld [vmem:[#allocation9 + $0x1cd8] sm:$0xff]
    %v4277 = vld [vmem:[#allocation9 + $0x1ce0] sm:$0xff]
    %v4278 = vld [vmem:[#allocation9 + $0x1ce8] sm:$0xff]
    %v4279 = vld [vmem:[#allocation9 + $0x1cf0] sm:$0xff]
    %v4280 = vld [vmem:[#allocation9 + $0x1cf8] sm:$0xff]
    %v4281 = vld [vmem:[#allocation9 + $0x1d00] sm:$0xff]
    %v4282 = vld [vmem:[#allocation9 + $0x1d08] sm:$0xff]
    %v4283 = vld [vmem:[#allocation9 + $0x1d10] sm:$0xff]
    %v4284 = vld [vmem:[#allocation9 + $0x1d18] sm:$0xff]
    %v4285 = vld [vmem:[#allocation9 + $0x1d20] sm:$0xff]
    %v4286 = vld [vmem:[#allocation9 + $0x1d28] sm:$0xff]
    %v4287 = vld [vmem:[#allocation9 + $0x1d30] sm:$0xff]
    %v4288 = vld [vmem:[#allocation9 + $0x1d38] sm:$0xff]
    %v4289 = vld [vmem:[#allocation9 + $0x1d40] sm:$0xff]
    %v4290 = vld [vmem:[#allocation9 + $0x1d48] sm:$0xff]
    %v4291 = vld [vmem:[#allocation9 + $0x1d50] sm:$0xff]
    %v4292 = vld [vmem:[#allocation9 + $0x1d58] sm:$0xff]
    %v4293 = vld [vmem:[#allocation9 + $0x1d60] sm:$0xff]
    %v4294 = vld [vmem:[#allocation9 + $0x1d68] sm:$0xff]
    %v4295 = vld [vmem:[#allocation9 + $0x1d70] sm:$0xff]
    %v4296 = vld [vmem:[#allocation9 + $0x1d78] sm:$0xff]
    %v4297 = vld [vmem:[#allocation9 + $0x1d80] sm:$0xff]
    %v4298 = vld [vmem:[#allocation9 + $0x1d88] sm:$0xff]
    %v4299 = vld [vmem:[#allocation9 + $0x1d90] sm:$0xff]
    %v4300 = vld [vmem:[#allocation9 + $0x1d98] sm:$0xff]
    %v4301 = vld [vmem:[#allocation9 + $0x1da0] sm:$0xff]
    %v4302 = vld [vmem:[#allocation9 + $0x1da8] sm:$0xff]
    %v4303 = vld [vmem:[#allocation9 + $0x1db0] sm:$0xff]
    %v4304 = vld [vmem:[#allocation9 + $0x1db8] sm:$0xff]
    %v4305 = vld [vmem:[#allocation9 + $0x1dc0] sm:$0xff]
    %v4306 = vld [vmem:[#allocation9 + $0x1dc8] sm:$0xff]
    %v4307 = vld [vmem:[#allocation9 + $0x1dd0] sm:$0xff]
    %v4308 = vld [vmem:[#allocation9 + $0x1dd8] sm:$0xff]
    %v4309 = vld [vmem:[#allocation9 + $0x1de0] sm:$0xff]
    %v4310 = vld [vmem:[#allocation9 + $0x1de8] sm:$0xff]
    %v4311 = vld [vmem:[#allocation9 + $0x1df0] sm:$0xff]
    %v4312 = vld [vmem:[#allocation9 + $0x1df8] sm:$0xff]
    %v4313 = vld [vmem:[#allocation9 + $0x1e00] sm:$0xff]
    %v4314 = vld [vmem:[#allocation9 + $0x1e08] sm:$0xff]
    %v4315 = vld [vmem:[#allocation9 + $0x1e10] sm:$0xff]
    %v4316 = vld [vmem:[#allocation9 + $0x1e18] sm:$0xff]
    %v4317 = vld [vmem:[#allocation9 + $0x1e20] sm:$0xff]
    %v4318 = vld [vmem:[#allocation9 + $0x1e28] sm:$0xff]
    %v4319 = vld [vmem:[#allocation9 + $0x1e30] sm:$0xff]
    %v4320 = vld [vmem:[#allocation9 + $0x1e38] sm:$0xff]
    %v4321 = vld [vmem:[#allocation9 + $0x1e40] sm:$0xff]
    %v4322 = vld [vmem:[#allocation9 + $0x1e48] sm:$0xff]
    %v4323 = vld [vmem:[#allocation9 + $0x1e50] sm:$0xff]
    %v4324 = vld [vmem:[#allocation9 + $0x1e58] sm:$0xff]
    %v4325 = vld [vmem:[#allocation9 + $0x1e60] sm:$0xff]
    %v4326 = vld [vmem:[#allocation9 + $0x1e68] sm:$0xff]
    %v4327 = vld [vmem:[#allocation9 + $0x1e70] sm:$0xff]
    %v4328 = vld [vmem:[#allocation9 + $0x1e78] sm:$0xff]
    %v4329 = vld [vmem:[#allocation9 + $0x1e80] sm:$0xff]
    %v4330 = vld [vmem:[#allocation9 + $0x1e88] sm:$0xff]
    %v4331 = vld [vmem:[#allocation9 + $0x1e90] sm:$0xff]
    %v4332 = vld [vmem:[#allocation9 + $0x1e98] sm:$0xff]
    %v4333 = vld [vmem:[#allocation9 + $0x1ea0] sm:$0xff]
    %v4334 = vld [vmem:[#allocation9 + $0x1ea8] sm:$0xff]
    %v4335 = vld [vmem:[#allocation9 + $0x1eb0] sm:$0xff]
    %v4336 = vld [vmem:[#allocation9 + $0x1eb8] sm:$0xff]
    %v4337 = vld [vmem:[#allocation9 + $0x1ec0] sm:$0xff]
    %v4338 = vld [vmem:[#allocation9 + $0x1ec8] sm:$0xff]
    %v4339 = vld [vmem:[#allocation9 + $0x1ed0] sm:$0xff]
    %v4340 = vld [vmem:[#allocation9 + $0x1ed8] sm:$0xff]
    %v4341 = vld [vmem:[#allocation9 + $0x1ee0] sm:$0xff]
    %v4342 = vld [vmem:[#allocation9 + $0x1ee8] sm:$0xff]
    %v4343 = vld [vmem:[#allocation9 + $0x1ef0] sm:$0xff]
    %v4344 = vld [vmem:[#allocation9 + $0x1ef8] sm:$0xff]
    %v4345 = vld [vmem:[#allocation9 + $0x1f00] sm:$0xff]
    %v4346 = vld [vmem:[#allocation9 + $0x1f08] sm:$0xff]
    %v4347 = vld [vmem:[#allocation9 + $0x1f10] sm:$0xff]
    %v4348 = vld [vmem:[#allocation9 + $0x1f18] sm:$0xff]
    %v4349 = vld [vmem:[#allocation9 + $0x1f20] sm:$0xff]
    %v4350 = vld [vmem:[#allocation9 + $0x1f28] sm:$0xff]
    %v4351 = vld [vmem:[#allocation9 + $0x1f30] sm:$0xff]
    %v4352 = vld [vmem:[#allocation9 + $0x1f38] sm:$0xff]
    %v4353 = vld [vmem:[#allocation9 + $0x1f40] sm:$0xff]
    %v4354 = vld [vmem:[#allocation9 + $0x1f48] sm:$0xff]
    %v4355 = vld [vmem:[#allocation9 + $0x1f50] sm:$0xff]
    %v4356 = vld [vmem:[#allocation9 + $0x1f58] sm:$0xff]
    %v4357 = vld [vmem:[#allocation9 + $0x1f60] sm:$0xff]
    %v4358 = vld [vmem:[#allocation9 + $0x1f68] sm:$0xff]
    %v4359 = vld [vmem:[#allocation9 + $0x1f70] sm:$0xff]
    %v4360 = vld [vmem:[#allocation9 + $0x1f78] sm:$0xff]
    %v4361 = vld [vmem:[#allocation9 + $0x1f80] sm:$0xff]
    %v4362 = vld [vmem:[#allocation9 + $0x1f88] sm:$0xff]
    %v4363 = vld [vmem:[#allocation9 + $0x1f90] sm:$0xff]
    %v4364 = vld [vmem:[#allocation9 + $0x1f98] sm:$0xff]
    %v4365 = vld [vmem:[#allocation9 + $0x1fa0] sm:$0xff]
    %v4366 = vld [vmem:[#allocation9 + $0x1fa8] sm:$0xff]
    %v4367 = vld [vmem:[#allocation9 + $0x1fb0] sm:$0xff]
    %v4368 = vld [vmem:[#allocation9 + $0x1fb8] sm:$0xff]
    %v4369 = vld [vmem:[#allocation9 + $0x1fc0] sm:$0xff]
    %v4370 = vld [vmem:[#allocation9 + $0x1fc8] sm:$0xff]
    %v4371 = vld [vmem:[#allocation9 + $0x1fd0] sm:$0xff]
    %v4372 = vld [vmem:[#allocation9 + $0x1fd8] sm:$0xff]
    %v4373 = vld [vmem:[#allocation9 + $0x1fe0] sm:$0xff]
    %v4374 = vld [vmem:[#allocation9 + $0x1fe8] sm:$0xff]
    %v4375 = vld [vmem:[#allocation9 + $0x1ff0] sm:$0xff]
    %v4376 = vld [vmem:[#allocation9 + $0x1ff8] sm:$0xff]
    %v4377 = vld [vmem:[#allocation9 + $0x2000] sm:$0xff]
    %v4378 = vld [vmem:[#allocation9 + $0x2008] sm:$0xff]
    %v4379 = vld [vmem:[#allocation9 + $0x2010] sm:$0xff]
    %v4380 = vld [vmem:[#allocation9 + $0x2018] sm:$0xff]
    %v4381 = vld [vmem:[#allocation9 + $0x2020] sm:$0xff]
    %v4382 = vld [vmem:[#allocation9 + $0x2028] sm:$0xff]
    %v4383 = vld [vmem:[#allocation9 + $0x2030] sm:$0xff]
    %v4384 = vld [vmem:[#allocation9 + $0x2038] sm:$0xff]
    %v4385 = vld [vmem:[#allocation9 + $0x2040] sm:$0xff]
    %v4386 = vld [vmem:[#allocation9 + $0x2048] sm:$0xff]
    %v4387 = vld [vmem:[#allocation9 + $0x2050] sm:$0xff]
    %v4388 = vld [vmem:[#allocation9 + $0x2058] sm:$0xff]
    %v4389 = vld [vmem:[#allocation9 + $0x2060] sm:$0xff]
    %v4390 = vld [vmem:[#allocation9 + $0x2068] sm:$0xff]
    %v4391 = vld [vmem:[#allocation9 + $0x2070] sm:$0xff]
    %v4392 = vld [vmem:[#allocation9 + $0x2078] sm:$0xff]
    %v4393 = vld [vmem:[#allocation9 + $0x2080] sm:$0xff]
    %v4394 = vld [vmem:[#allocation9 + $0x2088] sm:$0xff]
    %v4395 = vld [vmem:[#allocation9 + $0x2090] sm:$0xff]
    %v4396 = vld [vmem:[#allocation9 + $0x2098] sm:$0xff]
    %v4397 = vld [vmem:[#allocation9 + $0x20a0] sm:$0xff]
    %v4398 = vld [vmem:[#allocation9 + $0x20a8] sm:$0xff]
    %v4399 = vld [vmem:[#allocation9 + $0x20b0] sm:$0xff]
    %v4400 = vld [vmem:[#allocation9 + $0x20b8] sm:$0xff]
    %v4401 = vld [vmem:[#allocation9 + $0x20c0] sm:$0xff]
    %v4402 = vld [vmem:[#allocation9 + $0x20c8] sm:$0xff]
    %v4403 = vld [vmem:[#allocation9 + $0x20d0] sm:$0xff]
    %v4404 = vld [vmem:[#allocation9 + $0x20d8] sm:$0xff]
    %v4405 = vld [vmem:[#allocation9 + $0x20e0] sm:$0xff]
    %v4406 = vld [vmem:[#allocation9 + $0x20e8] sm:$0xff]
    %v4407 = vld [vmem:[#allocation9 + $0x20f0] sm:$0xff]
    %v4408 = vld [vmem:[#allocation9 + $0x20f8] sm:$0xff]
    %v4409 = vld [vmem:[#allocation9 + $0x2100] sm:$0xff]
    %v4410 = vld [vmem:[#allocation9 + $0x2108] sm:$0xff]
    %v4411 = vld [vmem:[#allocation9 + $0x2110] sm:$0xff]
    %v4412 = vld [vmem:[#allocation9 + $0x2118] sm:$0xff]
    %v4413 = vld [vmem:[#allocation9 + $0x2120] sm:$0xff]
    %v4414 = vld [vmem:[#allocation9 + $0x2128] sm:$0xff]
    %v4415 = vld [vmem:[#allocation9 + $0x2130] sm:$0xff]
    %v4416 = vld [vmem:[#allocation9 + $0x2138] sm:$0xff]
    %v4417 = vld [vmem:[#allocation9 + $0x2140] sm:$0xff]
    %v4418 = vld [vmem:[#allocation9 + $0x2148] sm:$0xff]
    %v4419 = vld [vmem:[#allocation9 + $0x2150] sm:$0xff]
    %v4420 = vld [vmem:[#allocation9 + $0x2158] sm:$0xff]
    %v4421 = vld [vmem:[#allocation9 + $0x2160] sm:$0xff]
    %v4422 = vld [vmem:[#allocation9 + $0x2168] sm:$0xff]
    %v4423 = vld [vmem:[#allocation9 + $0x2170] sm:$0xff]
    %v4424 = vld [vmem:[#allocation9 + $0x2178] sm:$0xff]
    %v4425 = vld [vmem:[#allocation9 + $0x2180] sm:$0xff]
    %v4426 = vld [vmem:[#allocation9 + $0x2188] sm:$0xff]
    %v4427 = vld [vmem:[#allocation9 + $0x2190] sm:$0xff]
    %v4428 = vld [vmem:[#allocation9 + $0x2198] sm:$0xff]
    %v4429 = vld [vmem:[#allocation9 + $0x21a0] sm:$0xff]
    %v4430 = vld [vmem:[#allocation9 + $0x21a8] sm:$0xff]
    %v4431 = vld [vmem:[#allocation9 + $0x21b0] sm:$0xff]
    %v4432 = vld [vmem:[#allocation9 + $0x21b8] sm:$0xff]
    %v4433 = vld [vmem:[#allocation9 + $0x21c0] sm:$0xff]
    %v4434 = vld [vmem:[#allocation9 + $0x21c8] sm:$0xff]
    %v4435 = vld [vmem:[#allocation9 + $0x21d0] sm:$0xff]
    %v4436 = vld [vmem:[#allocation9 + $0x21d8] sm:$0xff]
    %v4437 = vld [vmem:[#allocation9 + $0x21e0] sm:$0xff]
    %v4438 = vld [vmem:[#allocation9 + $0x21e8] sm:$0xff]
    %v4439 = vld [vmem:[#allocation9 + $0x21f0] sm:$0xff]
    %v4440 = vld [vmem:[#allocation9 + $0x21f8] sm:$0xff]
    %v4441 = vld [vmem:[#allocation9 + $0x2200] sm:$0xff]
    %v4442 = vld [vmem:[#allocation9 + $0x2208] sm:$0xff]
    %v4443 = vld [vmem:[#allocation9 + $0x2210] sm:$0xff]
    %v4444 = vld [vmem:[#allocation9 + $0x2218] sm:$0xff]
    %v4445 = vld [vmem:[#allocation9 + $0x2220] sm:$0xff]
    %v4446 = vld [vmem:[#allocation9 + $0x2228] sm:$0xff]
    %v4447 = vld [vmem:[#allocation9 + $0x2230] sm:$0xff]
    %v4448 = vld [vmem:[#allocation9 + $0x2238] sm:$0xff]
    %v4449 = vld [vmem:[#allocation9 + $0x2240] sm:$0xff]
    %v4450 = vld [vmem:[#allocation9 + $0x2248] sm:$0xff]
    %v4451 = vld [vmem:[#allocation9 + $0x2250] sm:$0xff]
    %v4452 = vld [vmem:[#allocation9 + $0x2258] sm:$0xff]
    %v4453 = vld [vmem:[#allocation9 + $0x2260] sm:$0xff]
    %v4454 = vld [vmem:[#allocation9 + $0x2268] sm:$0xff]
    %v4455 = vld [vmem:[#allocation9 + $0x2270] sm:$0xff]
    %v4456 = vld [vmem:[#allocation9 + $0x2278] sm:$0xff]
    %v4457 = vld [vmem:[#allocation9 + $0x2280] sm:$0xff]
    %v4458 = vld [vmem:[#allocation9 + $0x2288] sm:$0xff]
    %v4459 = vld [vmem:[#allocation9 + $0x2290] sm:$0xff]
    %v4460 = vld [vmem:[#allocation9 + $0x2298] sm:$0xff]
    %v4461 = vld [vmem:[#allocation9 + $0x22a0] sm:$0xff]
    %v4462 = vld [vmem:[#allocation9 + $0x22a8] sm:$0xff]
    %v4463 = vld [vmem:[#allocation9 + $0x22b0] sm:$0xff]
    %v4464 = vld [vmem:[#allocation9 + $0x22b8] sm:$0xff]
    %v4465 = vld [vmem:[#allocation9 + $0x22c0] sm:$0xff]
    %v4466 = vld [vmem:[#allocation9 + $0x22c8] sm:$0xff]
    %v4467 = vld [vmem:[#allocation9 + $0x22d0] sm:$0xff]
    %v4468 = vld [vmem:[#allocation9 + $0x22d8] sm:$0xff]
    %v4469 = vld [vmem:[#allocation9 + $0x22e0] sm:$0xff]
    %v4470 = vld [vmem:[#allocation9 + $0x22e8] sm:$0xff]
    %v4471 = vld [vmem:[#allocation9 + $0x22f0] sm:$0xff]
    %v4472 = vld [vmem:[#allocation9 + $0x22f8] sm:$0xff]
    %v4473 = vld [vmem:[#allocation9 + $0x2300] sm:$0xff]
    %v4474 = vld [vmem:[#allocation9 + $0x2308] sm:$0xff]
    %v4475 = vld [vmem:[#allocation9 + $0x2310] sm:$0xff]
    %v4476 = vld [vmem:[#allocation9 + $0x2318] sm:$0xff]
    %v4477 = vld [vmem:[#allocation9 + $0x2320] sm:$0xff]
    %v4478 = vld [vmem:[#allocation9 + $0x2328] sm:$0xff]
    %v4479 = vld [vmem:[#allocation9 + $0x2330] sm:$0xff]
    %v4480 = vld [vmem:[#allocation9 + $0x2338] sm:$0xff]
    %v4481 = vld [vmem:[#allocation9 + $0x2340] sm:$0xff]
    %v4482 = vld [vmem:[#allocation9 + $0x2348] sm:$0xff]
    %v4483 = vld [vmem:[#allocation9 + $0x2350] sm:$0xff]
    %v4484 = vld [vmem:[#allocation9 + $0x2358] sm:$0xff]
    %v4485 = vld [vmem:[#allocation9 + $0x2360] sm:$0xff]
    %v4486 = vld [vmem:[#allocation9 + $0x2368] sm:$0xff]
    %v4487 = vld [vmem:[#allocation9 + $0x2370] sm:$0xff]
    %v4488 = vld [vmem:[#allocation9 + $0x2378] sm:$0xff]
    %v4489 = vld [vmem:[#allocation9 + $0x2380] sm:$0xff]
    %v4490 = vld [vmem:[#allocation9 + $0x2388] sm:$0xff]
    %v4491 = vld [vmem:[#allocation9 + $0x2390] sm:$0xff]
    %v4492 = vld [vmem:[#allocation9 + $0x2398] sm:$0xff]
    %v4493 = vld [vmem:[#allocation9 + $0x23a0] sm:$0xff]
    %v4494 = vld [vmem:[#allocation9 + $0x23a8] sm:$0xff]
    %v4495 = vld [vmem:[#allocation9 + $0x23b0] sm:$0xff]
    %v4496 = vld [vmem:[#allocation9 + $0x23b8] sm:$0xff]
    %v4497 = vld [vmem:[#allocation9 + $0x23c0] sm:$0xff]
    %v4498 = vld [vmem:[#allocation9 + $0x23c8] sm:$0xff]
    %v4499 = vld [vmem:[#allocation9 + $0x23d0] sm:$0xff]
    %v4500 = vld [vmem:[#allocation9 + $0x23d8] sm:$0xff]
    %v4501 = vld [vmem:[#allocation9 + $0x23e0] sm:$0xff]
    %v4502 = vld [vmem:[#allocation9 + $0x23e8] sm:$0xff]
    %v4503 = vld [vmem:[#allocation9 + $0x23f0] sm:$0xff]
    %v4504 = vld [vmem:[#allocation9 + $0x23f8] sm:$0xff]
    %v4505 = vld [vmem:[#allocation10] sm:$0xff]
    %v4506 = vld [vmem:[#allocation10 + $0x8] sm:$0xf]
    %v4509 = vlaneseq
    %v4510 = vshrl.u32 %v4509, 7
    %v4511 = vsub.s32 0, %v4510
    %v4512 = vrot.slane %v4505, %v4511
    %v4513 = vlaneseq
    %v4514 = vshrl.u32 %v4513, 7
    %v4515 = vsub.s32 1, %v4514
    %v4516 = vrot.slane %v4505, %v4515
    %v4517 = vlaneseq
    %v4518 = vshrl.u32 %v4517, 7
    %v4519 = vsub.s32 2, %v4518
    %v4520 = vrot.slane %v4505, %v4519
    %v4521 = vlaneseq
    %v4522 = vshrl.u32 %v4521, 7
    %v4523 = vsub.s32 3, %v4522
    %v4524 = vrot.slane %v4505, %v4523
    %v4525 = vlaneseq
    %v4526 = vshrl.u32 %v4525, 7
    %v4527 = vsub.s32 4, %v4526
    %v4528 = vrot.slane %v4505, %v4527
    %v4529 = vlaneseq
    %v4530 = vshrl.u32 %v4529, 7
    %v4531 = vsub.s32 5, %v4530
    %v4532 = vrot.slane %v4505, %v4531
    %v4533 = vlaneseq
    %v4534 = vshrl.u32 %v4533, 7
    %v4535 = vsub.s32 6, %v4534
    %v4536 = vrot.slane %v4505, %v4535
    %v4537 = vlaneseq
    %v4538 = vshrl.u32 %v4537, 7
    %v4539 = vsub.s32 7, %v4538
    %v4540 = vrot.slane %v4505, %v4539
    %v4541 = vlaneseq
    %v4542 = vshrl.u32 %v4541, 7
    %v4543 = vsub.s32 0, %v4542
    %v4544 = vrot.slane %v4506, %v4543
    %v4545 = vlaneseq
    %v4546 = vshrl.u32 %v4545, 7
    %v4547 = vsub.s32 1, %v4546
    %v4548 = vrot.slane %v4506, %v4547
    %v4549 = vlaneseq
    %v4550 = vshrl.u32 %v4549, 7
    %v4551 = vsub.s32 2, %v4550
    %v4552 = vrot.slane %v4506, %v4551
    %v4553 = vlaneseq
    %v4554 = vshrl.u32 %v4553, 7
    %v4555 = vsub.s32 3, %v4554
    %v4556 = vrot.slane %v4506, %v4555
    %4569 = vmatprep.subr.mxu0 %v3354
    %4570 = vmatpush1.msra.mxu0 %v3353
    %4571 = vmatprep.subr.mxu0 %v3366
    %4572 = vmatpush1.msra.mxu0 %v3365
    %4573 = vmatprep.subr.mxu0 %v3378
    %4574 = vmatpush1.msra.mxu0 %v3377
    %4575 = vmatprep.subr.mxu0 %v3390
    %4576 = vmatpush1.msra.mxu0 %v3389
    %4577 = vmatprep.subr.mxu0 %v3402
    %4578 = vmatpush1.msra.mxu0 %v3401
    %4579 = vmatprep.subr.mxu0 %v3414
    %4580 = vmatpush1.msra.mxu0 %v3413
    %4581 = vmatprep.subr.mxu0 %v3426
    %4582 = vmatpush1.msra.mxu0 %v3425
    %4583 = vmatprep.subr.mxu0 %v3438
    %4584 = vmatpush1.msra.mxu0 %v3437
    %4585 = vmatprep.subr.mxu0 %v3450
    %4586 = vmatpush1.msra.mxu0 %v3449
    %4587 = vmatprep.subr.mxu0 %v3462
    %4588 = vmatpush1.msra.mxu0 %v3461
    %4589 = vmatprep.subr.mxu0 %v3474
    %4590 = vmatpush1.msra.mxu0 %v3473
    %4591 = vmatprep.subr.mxu0 %v3486
    %4592 = vmatpush1.msra.mxu0 %v3485
    %4593 = vmatprep.subr.mxu0 %v3498
    %4594 = vmatpush1.msra.mxu0 %v3497
    %4595 = vmatprep.subr.mxu0 %v3510
    %4596 = vmatpush1.msra.mxu0 %v3509
    %4597 = vmatprep.subr.mxu0 %v3522
    %4598 = vmatpush1.msra.mxu0 %v3521
    %4599 = vmatprep.subr.mxu0 %v3534
    %4600 = vmatpush1.msra.mxu0 %v3533
    %4601 = vmatprep.subr.mxu0 %v3546
    %4602 = vmatpush1.msra.mxu0 %v3545
    %4603 = vmatprep.subr.mxu0 %v3558
    %4604 = vmatpush1.msra.mxu0 %v3557
    %4605 = vmatprep.subr.mxu0 %v3570
    %4606 = vmatpush1.msra.mxu0 %v3569
    %4607 = vmatprep.subr.mxu0 %v3582
    %4608 = vmatpush1.msra.mxu0 %v3581
    %4609 = vmatprep.subr.mxu0 %v3594
    %4610 = vmatpush1.msra.mxu0 %v3593
    %4611 = vmatprep.subr.mxu0 %v3606
    %4612 = vmatpush1.msra.mxu0 %v3605
    %4613 = vmatprep.subr.mxu0 %v3618
    %4614 = vmatpush1.msra.mxu0 %v3617
    %4615 = vmatprep.subr.mxu0 %v3630
    %4616 = vmatpush1.msra.mxu0 %v3629
    %4617 = vmatprep.subr.mxu0 %v3642
    %4618 = vmatpush1.msra.mxu0 %v3641
    %4619 = vmatprep.subr.mxu0 %v3654
    %4620 = vmatpush1.msra.mxu0 %v3653
    %4621 = vmatprep.subr.mxu0 %v3666
    %4622 = vmatpush1.msra.mxu0 %v3665
    %4623 = vmatprep.subr.mxu0 %v3678
    %4624 = vmatpush1.msra.mxu0 %v3677
    %4625 = vmatprep.subr.mxu0 %v3690
    %4626 = vmatpush1.msra.mxu0 %v3689
    %4627 = vmatprep.subr.mxu0 %v3702
    %4628 = vmatpush1.msra.mxu0 %v3701
    %4629 = vmatprep.subr.mxu0 %v3714
    %4630 = vmatpush1.msra.mxu0 %v3713
    %4631 = vmatprep.subr.mxu0 %v3726
    %4632 = vmatpush1.msra.mxu0 %v3725
    %4633 = vmatprep.mubr.f32.mxu0 %v3348
    %4634 = vmatmul.mubr.f32.gmra.mrb[0].mxu0 %v3347
    %v4635 = vpop.f32.mrb[0].mxu0
    %v4636 = vadd.f32 %v4512, %v4635
    %v4637 = vpop.f32.mrb[0].mxu0
    %v4638 = vadd.f32 %v4516, %v4637
    %4639 = vdwg.mxu0
    %4640 = vmatprep.subr.mxu0 %v3738
    %4641 = vmatpush1.msra.mxu0 %v3737
    %4642 = vmatprep.subr.mxu0 %v3750
    %4643 = vmatpush1.msra.mxu0 %v3749
    %4644 = vmatprep.subr.mxu0 %v3762
    %4645 = vmatpush1.msra.mxu0 %v3761
    %4646 = vmatprep.subr.mxu0 %v3774
    %4647 = vmatpush1.msra.mxu0 %v3773
    %4648 = vmatprep.subr.mxu0 %v3786
    %4649 = vmatpush1.msra.mxu0 %v3785
    %4650 = vmatprep.subr.mxu0 %v3798
    %4651 = vmatpush1.msra.mxu0 %v3797
    %4652 = vmatprep.subr.mxu0 %v3810
    %4653 = vmatpush1.msra.mxu0 %v3809
    %4654 = vmatprep.subr.mxu0 %v3822
    %4655 = vmatpush1.msra.mxu0 %v3821
    %4656 = vmatprep.subr.mxu0 %v3834
    %4657 = vmatpush1.msra.mxu0 %v3833
    %4658 = vmatprep.subr.mxu0 %v3846
    %4659 = vmatpush1.msra.mxu0 %v3845
    %4660 = vmatprep.subr.mxu0 %v3858
    %4661 = vmatpush1.msra.mxu0 %v3857
    %4662 = vmatprep.subr.mxu0 %v3870
    %4663 = vmatpush1.msra.mxu0 %v3869
    %4664 = vmatprep.subr.mxu0 %v3882
    %4665 = vmatpush1.msra.mxu0 %v3881
    %4666 = vmatprep.subr.mxu0 %v3894
    %4667 = vmatpush1.msra.mxu0 %v3893
    %4668 = vmatprep.subr.mxu0 %v3906
    %4669 = vmatpush1.msra.mxu0 %v3905
    %4670 = vmatprep.subr.mxu0 %v3918
    %4671 = vmatpush1.msra.mxu0 %v3917
    %4672 = vmatprep.subr.mxu0 %v3930
    %4673 = vmatpush1.msra.mxu0 %v3929
    %4674 = vmatprep.subr.mxu0 %v3942
    %4675 = vmatpush1.msra.mxu0 %v3941
    %4676 = vmatprep.subr.mxu0 %v3954
    %4677 = vmatpush1.msra.mxu0 %v3953
    %4678 = vmatprep.subr.mxu0 %v3966
    %4679 = vmatpush1.msra.mxu0 %v3965
    %4680 = vmatprep.subr.mxu0 %v3978
    %4681 = vmatpush1.msra.mxu0 %v3977
    %4682 = vmatprep.subr.mxu0 %v3990
    %4683 = vmatpush1.msra.mxu0 %v3989
    %4684 = vmatprep.subr.mxu0 %v4002
    %4685 = vmatpush1.msra.mxu0 %v4001
    %4686 = vmatprep.subr.mxu0 %v4014
    %4687 = vmatpush1.msra.mxu0 %v4013
    %4688 = vmatprep.subr.mxu0 %v4026
    %4689 = vmatpush1.msra.mxu0 %v4025
    %4690 = vmatprep.subr.mxu0 %v4038
    %4691 = vmatpush1.msra.mxu0 %v4037
    %4692 = vmatprep.subr.mxu0 %v4050
    %4693 = vmatpush1.msra.mxu0 %v4049
    %4694 = vmatprep.subr.mxu0 %v4062
    %4695 = vmatpush1.msra.mxu0 %v4061
    %4696 = vmatprep.subr.mxu0 %v4074
    %4697 = vmatpush1.msra.mxu0 %v4073
    %4698 = vmatprep.subr.mxu0 %v4086
    %4699 = vmatpush1.msra.mxu0 %v4085
    %4700 = vmatprep.subr.mxu0 %v4098
    %4701 = vmatpush1.msra.mxu0 %v4097
    %4702 = vmatprep.subr.mxu0 %v4110
    %4703 = vmatpush1.msra.mxu0 %v4109
    %4704 = vmatprep.mubr.f32.mxu0 %v3350
    %4705 = vmatmul.mubr.f32.gmra.mrb[0].mxu0 %v3349
    %v4706 = vpop.f32.mrb[0].mxu0
    %v4707 = vadd.f32 %v4636, %v4706
    %v4708 = vpop.f32.mrb[0].mxu0
    %v4709 = vadd.f32 %v4638, %v4708
    %4710 = vdwg.mxu0
    %4711 = vmatprep.subr.mxu0 %v4122
    %4712 = vmatpush1.msra.mxu0 %v4121
    %4713 = vmatprep.subr.mxu0 %v4134
    %4714 = vmatpush1.msra.mxu0 %v4133
    %4715 = vmatprep.subr.mxu0 %v4146
    %4716 = vmatpush1.msra.mxu0 %v4145
    %4717 = vmatprep.subr.mxu0 %v4158
    %4718 = vmatpush1.msra.mxu0 %v4157
    %4719 = vmatprep.subr.mxu0 %v4170
    %4720 = vmatpush1.msra.mxu0 %v4169
    %4721 = vmatprep.subr.mxu0 %v4182
    %4722 = vmatpush1.msra.mxu0 %v4181
    %4723 = vmatprep.subr.mxu0 %v4194
    %4724 = vmatpush1.msra.mxu0 %v4193
    %4725 = vmatprep.subr.mxu0 %v4206
    %4726 = vmatpush1.msra.mxu0 %v4205
    %4727 = vmatprep.subr.mxu0 %v4218
    %4728 = vmatpush1.msra.mxu0 %v4217
    %4729 = vmatprep.subr.mxu0 %v4230
    %4730 = vmatpush1.msra.mxu0 %v4229
    %4731 = vmatprep.subr.mxu0 %v4242
    %4732 = vmatpush1.msra.mxu0 %v4241
    %4733 = vmatprep.subr.mxu0 %v4254
    %4734 = vmatpush1.msra.mxu0 %v4253
    %4735 = vmatprep.subr.mxu0 %v4266
    %4736 = vmatpush1.msra.mxu0 %v4265
    %4737 = vmatprep.subr.mxu0 %v4278
    %4738 = vmatpush1.msra.mxu0 %v4277
    %4739 = vmatprep.subr.mxu0 %v4290
    %4740 = vmatpush1.msra.mxu0 %v4289
    %4741 = vmatprep.subr.mxu0 %v4302
    %4742 = vmatpush1.msra.mxu0 %v4301
    %4743 = vmatprep.subr.mxu0 %v4314
    %4744 = vmatpush1.msra.mxu0 %v4313
    %4745 = vmatprep.subr.mxu0 %v4326
    %4746 = vmatpush1.msra.mxu0 %v4325
    %4747 = vmatprep.subr.mxu0 %v4338
    %4748 = vmatpush1.msra.mxu0 %v4337
    %4749 = vmatprep.subr.mxu0 %v4350
    %4750 = vmatpush1.msra.mxu0 %v4349
    %4751 = vmatprep.subr.mxu0 %v4362
    %4752 = vmatpush1.msra.mxu0 %v4361
    %4753 = vmatprep.subr.mxu0 %v4374
    %4754 = vmatpush1.msra.mxu0 %v4373
    %4755 = vmatprep.subr.mxu0 %v4386
    %4756 = vmatpush1.msra.mxu0 %v4385
    %4757 = vmatprep.subr.mxu0 %v4398
    %4758 = vmatpush1.msra.mxu0 %v4397
    %4759 = vmatprep.subr.mxu0 %v4410
    %4760 = vmatpush1.msra.mxu0 %v4409
    %4761 = vmatprep.subr.mxu0 %v4422
    %4762 = vmatpush1.msra.mxu0 %v4421
    %4763 = vmatprep.subr.mxu0 %v4434
    %4764 = vmatpush1.msra.mxu0 %v4433
    %4765 = vmatprep.subr.mxu0 %v4446
    %4766 = vmatpush1.msra.mxu0 %v4445
    %4767 = vmatprep.subr.mxu0 %v4458
    %4768 = vmatpush1.msra.mxu0 %v4457
    %4769 = vmatprep.subr.mxu0 %v4470
    %4770 = vmatpush1.msra.mxu0 %v4469
    %4771 = vmatprep.subr.mxu0 %v4482
    %4772 = vmatpush1.msra.mxu0 %v4481
    %4773 = vmatprep.subr.mxu0 %v4494
    %4774 = vmatpush1.msra.mxu0 %v4493
    %4775 = vmatprep.mubr.f32.mxu0 %v3352
    %4776 = vmatmul.mubr.f32.gmra.mrb[0].mxu0 %v3351
    %v4777 = vpop.f32.mrb[0].mxu0
    %v4778 = vadd.f32 %v4707, %v4777
    %v4779 = vpop.f32.mrb[0].mxu0
    %v4780 = vadd.f32 %v4709, %v4779
    %4781 = vdwg.mxu0
    %4782 = vmatprep.subr.mxu0 %v3356
    %4783 = vmatpush1.msra.mxu0 %v3355
    %4784 = vmatprep.subr.mxu0 %v3368
    %4785 = vmatpush1.msra.mxu0 %v3367
    %4786 = vmatprep.subr.mxu0 %v3380
    %4787 = vmatpush1.msra.mxu0 %v3379
    %4788 = vmatprep.subr.mxu0 %v3392
    %4789 = vmatpush1.msra.mxu0 %v3391
    %4790 = vmatprep.subr.mxu0 %v3404
    %4791 = vmatpush1.msra.mxu0 %v3403
    %4792 = vmatprep.subr.mxu0 %v3416
    %4793 = vmatpush1.msra.mxu0 %v3415
    %4794 = vmatprep.subr.mxu0 %v3428
    %4795 = vmatpush1.msra.mxu0 %v3427
    %4796 = vmatprep.subr.mxu0 %v3440
    %4797 = vmatpush1.msra.mxu0 %v3439
    %4798 = vmatprep.subr.mxu0 %v3452
    %4799 = vmatpush1.msra.mxu0 %v3451
    %4800 = vmatprep.subr.mxu0 %v3464
    %4801 = vmatpush1.msra.mxu0 %v3463
    %4802 = vmatprep.subr.mxu0 %v3476
    %4803 = vmatpush1.msra.mxu0 %v3475
    %4804 = vmatprep.subr.mxu0 %v3488
    %4805 = vmatpush1.msra.mxu0 %v3487
    %4806 = vmatprep.subr.mxu0 %v3500
    %4807 = vmatpush1.msra.mxu0 %v3499
    %4808 = vmatprep.subr.mxu0 %v3512
    %4809 = vmatpush1.msra.mxu0 %v3511
    %4810 = vmatprep.subr.mxu0 %v3524
    %4811 = vmatpush1.msra.mxu0 %v3523
    %4812 = vmatprep.subr.mxu0 %v3536
    %4813 = vmatpush1.msra.mxu0 %v3535
    %4814 = vmatprep.subr.mxu0 %v3548
    %4815 = vmatpush1.msra.mxu0 %v3547
    %4816 = vmatprep.subr.mxu0 %v3560
    %4817 = vmatpush1.msra.mxu0 %v3559
    %4818 = vmatprep.subr.mxu0 %v3572
    %4819 = vmatpush1.msra.mxu0 %v3571
    %4820 = vmatprep.subr.mxu0 %v3584
    %4821 = vmatpush1.msra.mxu0 %v3583
    %4822 = vmatprep.subr.mxu0 %v3596
    %4823 = vmatpush1.msra.mxu0 %v3595
    %4824 = vmatprep.subr.mxu0 %v3608
    %4825 = vmatpush1.msra.mxu0 %v3607
    %4826 = vmatprep.subr.mxu0 %v3620
    %4827 = vmatpush1.msra.mxu0 %v3619
    %4828 = vmatprep.subr.mxu0 %v3632
    %4829 = vmatpush1.msra.mxu0 %v3631
    %4830 = vmatprep.subr.mxu0 %v3644
    %4831 = vmatpush1.msra.mxu0 %v3643
    %4832 = vmatprep.subr.mxu0 %v3656
    %4833 = vmatpush1.msra.mxu0 %v3655
    %4834 = vmatprep.subr.mxu0 %v3668
    %4835 = vmatpush1.msra.mxu0 %v3667
    %4836 = vmatprep.subr.mxu0 %v3680
    %4837 = vmatpush1.msra.mxu0 %v3679
    %4838 = vmatprep.subr.mxu0 %v3692
    %4839 = vmatpush1.msra.mxu0 %v3691
    %4840 = vmatprep.subr.mxu0 %v3704
    %4841 = vmatpush1.msra.mxu0 %v3703
    %4842 = vmatprep.subr.mxu0 %v3716
    %4843 = vmatpush1.msra.mxu0 %v3715
    %4844 = vmatprep.subr.mxu0 %v3728
    %4845 = vmatpush1.msra.mxu0 %v3727
    %4846 = vmatprep.mubr.f32.mxu0 %v3348
    %4847 = vmatmul.mubr.f32.gmra.mrb[0].mxu0 %v3347
    %v4848 = vpop.f32.mrb[0].mxu0
    %v4849 = vadd.f32 %v4520, %v4848
    %v4850 = vpop.f32.mrb[0].mxu0
    %v4851 = vadd.f32 %v4524, %v4850
    %4852 = vdwg.mxu0
    %4853 = vmatprep.subr.mxu0 %v3740
    %4854 = vmatpush1.msra.mxu0 %v3739
    %4855 = vmatprep.subr.mxu0 %v3752
    %4856 = vmatpush1.msra.mxu0 %v3751
    %4857 = vmatprep.subr.mxu0 %v3764
    %4858 = vmatpush1.msra.mxu0 %v3763
    %4859 = vmatprep.subr.mxu0 %v3776
    %4860 = vmatpush1.msra.mxu0 %v3775
    %4861 = vmatprep.subr.mxu0 %v3788
    %4862 = vmatpush1.msra.mxu0 %v3787
    %4863 = vmatprep.subr.mxu0 %v3800
    %4864 = vmatpush1.msra.mxu0 %v3799
    %4865 = vmatprep.subr.mxu0 %v3812
    %4866 = vmatpush1.msra.mxu0 %v3811
    %4867 = vmatprep.subr.mxu0 %v3824
    %4868 = vmatpush1.msra.mxu0 %v3823
    %4869 = vmatprep.subr.mxu0 %v3836
    %4870 = vmatpush1.msra.mxu0 %v3835
    %4871 = vmatprep.subr.mxu0 %v3848
    %4872 = vmatpush1.msra.mxu0 %v3847
    %4873 = vmatprep.subr.mxu0 %v3860
    %4874 = vmatpush1.msra.mxu0 %v3859
    %4875 = vmatprep.subr.mxu0 %v3872
    %4876 = vmatpush1.msra.mxu0 %v3871
    %4877 = vmatprep.subr.mxu0 %v3884
    %4878 = vmatpush1.msra.mxu0 %v3883
    %4879 = vmatprep.subr.mxu0 %v3896
    %4880 = vmatpush1.msra.mxu0 %v3895
    %4881 = vmatprep.subr.mxu0 %v3908
    %4882 = vmatpush1.msra.mxu0 %v3907
    %4883 = vmatprep.subr.mxu0 %v3920
    %4884 = vmatpush1.msra.mxu0 %v3919
    %4885 = vmatprep.subr.mxu0 %v3932
    %4886 = vmatpush1.msra.mxu0 %v3931
    %4887 = vmatprep.subr.mxu0 %v3944
    %4888 = vmatpush1.msra.mxu0 %v3943
    %4889 = vmatprep.subr.mxu0 %v3956
    %4890 = vmatpush1.msra.mxu0 %v3955
    %4891 = vmatprep.subr.mxu0 %v3968
    %4892 = vmatpush1.msra.mxu0 %v3967
    %4893 = vmatprep.subr.mxu0 %v3980
    %4894 = vmatpush1.msra.mxu0 %v3979
    %4895 = vmatprep.subr.mxu0 %v3992
    %4896 = vmatpush1.msra.mxu0 %v3991
    %4897 = vmatprep.subr.mxu0 %v4004
    %4898 = vmatpush1.msra.mxu0 %v4003
    %4899 = vmatprep.subr.mxu0 %v4016
    %4900 = vmatpush1.msra.mxu0 %v4015
    %4901 = vmatprep.subr.mxu0 %v4028
    %4902 = vmatpush1.msra.mxu0 %v4027
    %4903 = vmatprep.subr.mxu0 %v4040
    %4904 = vmatpush1.msra.mxu0 %v4039
    %4905 = vmatprep.subr.mxu0 %v4052
    %4906 = vmatpush1.msra.mxu0 %v4051
    %4907 = vmatprep.subr.mxu0 %v4064
    %4908 = vmatpush1.msra.mxu0 %v4063
    %4909 = vmatprep.subr.mxu0 %v4076
    %4910 = vmatpush1.msra.mxu0 %v4075
    %4911 = vmatprep.subr.mxu0 %v4088
    %4912 = vmatpush1.msra.mxu0 %v4087
    %4913 = vmatprep.subr.mxu0 %v4100
    %4914 = vmatpush1.msra.mxu0 %v4099
    %4915 = vmatprep.subr.mxu0 %v4112
    %4916 = vmatpush1.msra.mxu0 %v4111
    %4917 = vmatprep.mubr.f32.mxu0 %v3350
    %4918 = vmatmul.mubr.f32.gmra.mrb[0].mxu0 %v3349
    %v4919 = vpop.f32.mrb[0].mxu0
    %v4920 = vadd.f32 %v4849, %v4919
    %v4921 = vpop.f32.mrb[0].mxu0
    %v4922 = vadd.f32 %v4851, %v4921
    %4923 = vdwg.mxu0
    %4924 = vmatprep.subr.mxu0 %v4124
    %4925 = vmatpush1.msra.mxu0 %v4123
    %4926 = vmatprep.subr.mxu0 %v4136
    %4927 = vmatpush1.msra.mxu0 %v4135
    %4928 = vmatprep.subr.mxu0 %v4148
    %4929 = vmatpush1.msra.mxu0 %v4147
    %4930 = vmatprep.subr.mxu0 %v4160
    %4931 = vmatpush1.msra.mxu0 %v4159
    %4932 = vmatprep.subr.mxu0 %v4172
    %4933 = vmatpush1.msra.mxu0 %v4171
    %4934 = vmatprep.subr.mxu0 %v4184
    %4935 = vmatpush1.msra.mxu0 %v4183
    %4936 = vmatprep.subr.mxu0 %v4196
    %4937 = vmatpush1.msra.mxu0 %v4195
    %4938 = vmatprep.subr.mxu0 %v4208
    %4939 = vmatpush1.msra.mxu0 %v4207
    %4940 = vmatprep.subr.mxu0 %v4220
    %4941 = vmatpush1.msra.mxu0 %v4219
    %4942 = vmatprep.subr.mxu0 %v4232
    %4943 = vmatpush1.msra.mxu0 %v4231
    %4944 = vmatprep.subr.mxu0 %v4244
    %4945 = vmatpush1.msra.mxu0 %v4243
    %4946 = vmatprep.subr.mxu0 %v4256
    %4947 = vmatpush1.msra.mxu0 %v4255
    %4948 = vmatprep.subr.mxu0 %v4268
    %4949 = vmatpush1.msra.mxu0 %v4267
    %4950 = vmatprep.subr.mxu0 %v4280
    %4951 = vmatpush1.msra.mxu0 %v4279
    %4952 = vmatprep.subr.mxu0 %v4292
    %4953 = vmatpush1.msra.mxu0 %v4291
    %4954 = vmatprep.subr.mxu0 %v4304
    %4955 = vmatpush1.msra.mxu0 %v4303
    %4956 = vmatprep.subr.mxu0 %v4316
    %4957 = vmatpush1.msra.mxu0 %v4315
    %4958 = vmatprep.subr.mxu0 %v4328
    %4959 = vmatpush1.msra.mxu0 %v4327
    %4960 = vmatprep.subr.mxu0 %v4340
    %4961 = vmatpush1.msra.mxu0 %v4339
    %4962 = vmatprep.subr.mxu0 %v4352
    %4963 = vmatpush1.msra.mxu0 %v4351
    %4964 = vmatprep.subr.mxu0 %v4364
    %4965 = vmatpush1.msra.mxu0 %v4363
    %4966 = vmatprep.subr.mxu0 %v4376
    %4967 = vmatpush1.msra.mxu0 %v4375
    %4968 = vmatprep.subr.mxu0 %v4388
    %4969 = vmatpush1.msra.mxu0 %v4387
    %4970 = vmatprep.subr.mxu0 %v4400
    %4971 = vmatpush1.msra.mxu0 %v4399
    %4972 = vmatprep.subr.mxu0 %v4412
    %4973 = vmatpush1.msra.mxu0 %v4411
    %4974 = vmatprep.subr.mxu0 %v4424
    %4975 = vmatpush1.msra.mxu0 %v4423
    %4976 = vmatprep.subr.mxu0 %v4436
    %4977 = vmatpush1.msra.mxu0 %v4435
    %4978 = vmatprep.subr.mxu0 %v4448
    %4979 = vmatpush1.msra.mxu0 %v4447
    %4980 = vmatprep.subr.mxu0 %v4460
    %4981 = vmatpush1.msra.mxu0 %v4459
    %4982 = vmatprep.subr.mxu0 %v4472
    %4983 = vmatpush1.msra.mxu0 %v4471
    %4984 = vmatprep.subr.mxu0 %v4484
    %4985 = vmatpush1.msra.mxu0 %v4483
    %4986 = vmatprep.subr.mxu0 %v4496
    %4987 = vmatpush1.msra.mxu0 %v4495
    %4988 = vmatprep.mubr.f32.mxu0 %v3352
    %4989 = vmatmul.mubr.f32.gmra.mrb[0].mxu0 %v3351
    %v4990 = vpop.f32.mrb[0].mxu0
    %v4991 = vadd.f32 %v4920, %v4990
    %v4992 = vpop.f32.mrb[0].mxu0
    %v4993 = vadd.f32 %v4922, %v4992
    %4994 = vdwg.mxu0
    %4995 = vmatprep.subr.mxu0 %v3358
    %4996 = vmatpush1.msra.mxu0 %v3357
    %4997 = vmatprep.subr.mxu0 %v3370
    %4998 = vmatpush1.msra.mxu0 %v3369
    %4999 = vmatprep.subr.mxu0 %v3382
    %5000 = vmatpush1.msra.mxu0 %v3381
    %5001 = vmatprep.subr.mxu0 %v3394
    %5002 = vmatpush1.msra.mxu0 %v3393
    %5003 = vmatprep.subr.mxu0 %v3406
    %5004 = vmatpush1.msra.mxu0 %v3405
    %5005 = vmatprep.subr.mxu0 %v3418
    %5006 = vmatpush1.msra.mxu0 %v3417
    %5007 = vmatprep.subr.mxu0 %v3430
    %5008 = vmatpush1.msra.mxu0 %v3429
    %5009 = vmatprep.subr.mxu0 %v3442
    %5010 = vmatpush1.msra.mxu0 %v3441
    %5011 = vmatprep.subr.mxu0 %v3454
    %5012 = vmatpush1.msra.mxu0 %v3453
    %5013 = vmatprep.subr.mxu0 %v3466
    %5014 = vmatpush1.msra.mxu0 %v3465
    %5015 = vmatprep.subr.mxu0 %v3478
    %5016 = vmatpush1.msra.mxu0 %v3477
    %5017 = vmatprep.subr.mxu0 %v3490
    %5018 = vmatpush1.msra.mxu0 %v3489
    %5019 = vmatprep.subr.mxu0 %v3502
    %5020 = vmatpush1.msra.mxu0 %v3501
    %5021 = vmatprep.subr.mxu0 %v3514
    %5022 = vmatpush1.msra.mxu0 %v3513
    %5023 = vmatprep.subr.mxu0 %v3526
    %5024 = vmatpush1.msra.mxu0 %v3525
    %5025 = vmatprep.subr.mxu0 %v3538
    %5026 = vmatpush1.msra.mxu0 %v3537
    %5027 = vmatprep.subr.mxu0 %v3550
    %5028 = vmatpush1.msra.mxu0 %v3549
    %5029 = vmatprep.subr.mxu0 %v3562
    %5030 = vmatpush1.msra.mxu0 %v3561
    %5031 = vmatprep.subr.mxu0 %v3574
    %5032 = vmatpush1.msra.mxu0 %v3573
    %5033 = vmatprep.subr.mxu0 %v3586
    %5034 = vmatpush1.msra.mxu0 %v3585
    %5035 = vmatprep.subr.mxu0 %v3598
    %5036 = vmatpush1.msra.mxu0 %v3597
    %5037 = vmatprep.subr.mxu0 %v3610
    %5038 = vmatpush1.msra.mxu0 %v3609
    %5039 = vmatprep.subr.mxu0 %v3622
    %5040 = vmatpush1.msra.mxu0 %v3621
    %5041 = vmatprep.subr.mxu0 %v3634
    %5042 = vmatpush1.msra.mxu0 %v3633
    %5043 = vmatprep.subr.mxu0 %v3646
    %5044 = vmatpush1.msra.mxu0 %v3645
    %5045 = vmatprep.subr.mxu0 %v3658
    %5046 = vmatpush1.msra.mxu0 %v3657
    %5047 = vmatprep.subr.mxu0 %v3670
    %5048 = vmatpush1.msra.mxu0 %v3669
    %5049 = vmatprep.subr.mxu0 %v3682
    %5050 = vmatpush1.msra.mxu0 %v3681
    %5051 = vmatprep.subr.mxu0 %v3694
    %5052 = vmatpush1.msra.mxu0 %v3693
    %5053 = vmatprep.subr.mxu0 %v3706
    %5054 = vmatpush1.msra.mxu0 %v3705
    %5055 = vmatprep.subr.mxu0 %v3718
    %5056 = vmatpush1.msra.mxu0 %v3717
    %5057 = vmatprep.subr.mxu0 %v3730
    %5058 = vmatpush1.msra.mxu0 %v3729
    %5059 = vmatprep.mubr.f32.mxu0 %v3348
    %5060 = vmatmul.mubr.f32.gmra.mrb[0].mxu0 %v3347
    %v5061 = vpop.f32.mrb[0].mxu0
    %v5062 = vadd.f32 %v4528, %v5061
    %v5063 = vpop.f32.mrb[0].mxu0
    %v5064 = vadd.f32 %v4532, %v5063
    %5065 = vdwg.mxu0
    %5066 = vmatprep.subr.mxu0 %v3742
    %5067 = vmatpush1.msra.mxu0 %v3741
    %5068 = vmatprep.subr.mxu0 %v3754
    %5069 = vmatpush1.msra.mxu0 %v3753
    %5070 = vmatprep.subr.mxu0 %v3766
    %5071 = vmatpush1.msra.mxu0 %v3765
    %5072 = vmatprep.subr.mxu0 %v3778
    %5073 = vmatpush1.msra.mxu0 %v3777
    %5074 = vmatprep.subr.mxu0 %v3790
    %5075 = vmatpush1.msra.mxu0 %v3789
    %5076 = vmatprep.subr.mxu0 %v3802
    %5077 = vmatpush1.msra.mxu0 %v3801
    %5078 = vmatprep.subr.mxu0 %v3814
    %5079 = vmatpush1.msra.mxu0 %v3813
    %5080 = vmatprep.subr.mxu0 %v3826
    %5081 = vmatpush1.msra.mxu0 %v3825
    %5082 = vmatprep.subr.mxu0 %v3838
    %5083 = vmatpush1.msra.mxu0 %v3837
    %5084 = vmatprep.subr.mxu0 %v3850
    %5085 = vmatpush1.msra.mxu0 %v3849
    %5086 = vmatprep.subr.mxu0 %v3862
    %5087 = vmatpush1.msra.mxu0 %v3861
    %5088 = vmatprep.subr.mxu0 %v3874
    %5089 = vmatpush1.msra.mxu0 %v3873
    %5090 = vmatprep.subr.mxu0 %v3886
    %5091 = vmatpush1.msra.mxu0 %v3885
    %5092 = vmatprep.subr.mxu0 %v3898
    %5093 = vmatpush1.msra.mxu0 %v3897
    %5094 = vmatprep.subr.mxu0 %v3910
    %5095 = vmatpush1.msra.mxu0 %v3909
    %5096 = vmatprep.subr.mxu0 %v3922
    %5097 = vmatpush1.msra.mxu0 %v3921
    %5098 = vmatprep.subr.mxu0 %v3934
    %5099 = vmatpush1.msra.mxu0 %v3933
    %5100 = vmatprep.subr.mxu0 %v3946
    %5101 = vmatpush1.msra.mxu0 %v3945
    %5102 = vmatprep.subr.mxu0 %v3958
    %5103 = vmatpush1.msra.mxu0 %v3957
    %5104 = vmatprep.subr.mxu0 %v3970
    %5105 = vmatpush1.msra.mxu0 %v3969
    %5106 = vmatprep.subr.mxu0 %v3982
    %5107 = vmatpush1.msra.mxu0 %v3981
    %5108 = vmatprep.subr.mxu0 %v3994
    %5109 = vmatpush1.msra.mxu0 %v3993
    %5110 = vmatprep.subr.mxu0 %v4006
    %5111 = vmatpush1.msra.mxu0 %v4005
    %5112 = vmatprep.subr.mxu0 %v4018
    %5113 = vmatpush1.msra.mxu0 %v4017
    %5114 = vmatprep.subr.mxu0 %v4030
    %5115 = vmatpush1.msra.mxu0 %v4029
    %5116 = vmatprep.subr.mxu0 %v4042
    %5117 = vmatpush1.msra.mxu0 %v4041
    %5118 = vmatprep.subr.mxu0 %v4054
    %5119 = vmatpush1.msra.mxu0 %v4053
    %5120 = vmatprep.subr.mxu0 %v4066
    %5121 = vmatpush1.msra.mxu0 %v4065
    %5122 = vmatprep.subr.mxu0 %v4078
    %5123 = vmatpush1.msra.mxu0 %v4077
    %5124 = vmatprep.subr.mxu0 %v4090
    %5125 = vmatpush1.msra.mxu0 %v4089
    %5126 = vmatprep.subr.mxu0 %v4102
    %5127 = vmatpush1.msra.mxu0 %v4101
    %5128 = vmatprep.subr.mxu0 %v4114
    %5129 = vmatpush1.msra.mxu0 %v4113
    %5130 = vmatprep.mubr.f32.mxu0 %v3350
    %5131 = vmatmul.mubr.f32.gmra.mrb[0].mxu0 %v3349
    %v5132 = vpop.f32.mrb[0].mxu0
    %v5133 = vadd.f32 %v5062, %v5132
    %v5134 = vpop.f32.mrb[0].mxu0
    %v5135 = vadd.f32 %v5064, %v5134
    %5136 = vdwg.mxu0
    %5137 = vmatprep.subr.mxu0 %v4126
    %5138 = vmatpush1.msra.mxu0 %v4125
    %5139 = vmatprep.subr.mxu0 %v4138
    %5140 = vmatpush1.msra.mxu0 %v4137
    %5141 = vmatprep.subr.mxu0 %v4150
    %5142 = vmatpush1.msra.mxu0 %v4149
    %5143 = vmatprep.subr.mxu0 %v4162
    %5144 = vmatpush1.msra.mxu0 %v4161
    %5145 = vmatprep.subr.mxu0 %v4174
    %5146 = vmatpush1.msra.mxu0 %v4173
    %5147 = vmatprep.subr.mxu0 %v4186
    %5148 = vmatpush1.msra.mxu0 %v4185
    %5149 = vmatprep.subr.mxu0 %v4198
    %5150 = vmatpush1.msra.mxu0 %v4197
    %5151 = vmatprep.subr.mxu0 %v4210
    %5152 = vmatpush1.msra.mxu0 %v4209
    %5153 = vmatprep.subr.mxu0 %v4222
    %5154 = vmatpush1.msra.mxu0 %v4221
    %5155 = vmatprep.subr.mxu0 %v4234
    %5156 = vmatpush1.msra.mxu0 %v4233
    %5157 = vmatprep.subr.mxu0 %v4246
    %5158 = vmatpush1.msra.mxu0 %v4245
    %5159 = vmatprep.subr.mxu0 %v4258
    %5160 = vmatpush1.msra.mxu0 %v4257
    %5161 = vmatprep.subr.mxu0 %v4270
    %5162 = vmatpush1.msra.mxu0 %v4269
    %5163 = vmatprep.subr.mxu0 %v4282
    %5164 = vmatpush1.msra.mxu0 %v4281
    %5165 = vmatprep.subr.mxu0 %v4294
    %5166 = vmatpush1.msra.mxu0 %v4293
    %5167 = vmatprep.subr.mxu0 %v4306
    %5168 = vmatpush1.msra.mxu0 %v4305
    %5169 = vmatprep.subr.mxu0 %v4318
    %5170 = vmatpush1.msra.mxu0 %v4317
    %5171 = vmatprep.subr.mxu0 %v4330
    %5172 = vmatpush1.msra.mxu0 %v4329
    %5173 = vmatprep.subr.mxu0 %v4342
    %5174 = vmatpush1.msra.mxu0 %v4341
    %5175 = vmatprep.subr.mxu0 %v4354
    %5176 = vmatpush1.msra.mxu0 %v4353
    %5177 = vmatprep.subr.mxu0 %v4366
    %5178 = vmatpush1.msra.mxu0 %v4365
    %5179 = vmatprep.subr.mxu0 %v4378
    %5180 = vmatpush1.msra.mxu0 %v4377
    %5181 = vmatprep.subr.mxu0 %v4390
    %5182 = vmatpush1.msra.mxu0 %v4389
    %5183 = vmatprep.subr.mxu0 %v4402
    %5184 = vmatpush1.msra.mxu0 %v4401
    %5185 = vmatprep.subr.mxu0 %v4414
    %5186 = vmatpush1.msra.mxu0 %v4413
    %5187 = vmatprep.subr.mxu0 %v4426
    %5188 = vmatpush1.msra.mxu0 %v4425
    %5189 = vmatprep.subr.mxu0 %v4438
    %5190 = vmatpush1.msra.mxu0 %v4437
    %5191 = vmatprep.subr.mxu0 %v4450
    %5192 = vmatpush1.msra.mxu0 %v4449
    %5193 = vmatprep.subr.mxu0 %v4462
    %5194 = vmatpush1.msra.mxu0 %v4461
    %5195 = vmatprep.subr.mxu0 %v4474
    %5196 = vmatpush1.msra.mxu0 %v4473
    %5197 = vmatprep.subr.mxu0 %v4486
    %5198 = vmatpush1.msra.mxu0 %v4485
    %5199 = vmatprep.subr.mxu0 %v4498
    %5200 = vmatpush1.msra.mxu0 %v4497
    %5201 = vmatprep.mubr.f32.mxu0 %v3352
    %5202 = vmatmul.mubr.f32.gmra.mrb[0].mxu0 %v3351
    %v5203 = vpop.f32.mrb[0].mxu0
    %v5204 = vadd.f32 %v5133, %v5203
    %v5205 = vpop.f32.mrb[0].mxu0
    %v5206 = vadd.f32 %v5135, %v5205
    %5207 = vdwg.mxu0
    %5208 = vmatprep.subr.mxu0 %v3360
    %5209 = vmatpush1.msra.mxu0 %v3359
    %5210 = vmatprep.subr.mxu0 %v3372
    %5211 = vmatpush1.msra.mxu0 %v3371
    %5212 = vmatprep.subr.mxu0 %v3384
    %5213 = vmatpush1.msra.mxu0 %v3383
    %5214 = vmatprep.subr.mxu0 %v3396
    %5215 = vmatpush1.msra.mxu0 %v3395
    %5216 = vmatprep.subr.mxu0 %v3408
    %5217 = vmatpush1.msra.mxu0 %v3407
    %5218 = vmatprep.subr.mxu0 %v3420
    %5219 = vmatpush1.msra.mxu0 %v3419
    %5220 = vmatprep.subr.mxu0 %v3432
    %5221 = vmatpush1.msra.mxu0 %v3431
    %5222 = vmatprep.subr.mxu0 %v3444
    %5223 = vmatpush1.msra.mxu0 %v3443
    %5224 = vmatprep.subr.mxu0 %v3456
    %5225 = vmatpush1.msra.mxu0 %v3455
    %5226 = vmatprep.subr.mxu0 %v3468
    %5227 = vmatpush1.msra.mxu0 %v3467
    %5228 = vmatprep.subr.mxu0 %v3480
    %5229 = vmatpush1.msra.mxu0 %v3479
    %5230 = vmatprep.subr.mxu0 %v3492
    %5231 = vmatpush1.msra.mxu0 %v3491
    %5232 = vmatprep.subr.mxu0 %v3504
    %5233 = vmatpush1.msra.mxu0 %v3503
    %5234 = vmatprep.subr.mxu0 %v3516
    %5235 = vmatpush1.msra.mxu0 %v3515
    %5236 = vmatprep.subr.mxu0 %v3528
    %5237 = vmatpush1.msra.mxu0 %v3527
    %5238 = vmatprep.subr.mxu0 %v3540
    %5239 = vmatpush1.msra.mxu0 %v3539
    %5240 = vmatprep.subr.mxu0 %v3552
    %5241 = vmatpush1.msra.mxu0 %v3551
    %5242 = vmatprep.subr.mxu0 %v3564
    %5243 = vmatpush1.msra.mxu0 %v3563
    %5244 = vmatprep.subr.mxu0 %v3576
    %5245 = vmatpush1.msra.mxu0 %v3575
    %5246 = vmatprep.subr.mxu0 %v3588
    %5247 = vmatpush1.msra.mxu0 %v3587
    %5248 = vmatprep.subr.mxu0 %v3600
    %5249 = vmatpush1.msra.mxu0 %v3599
    %5250 = vmatprep.subr.mxu0 %v3612
    %5251 = vmatpush1.msra.mxu0 %v3611
    %5252 = vmatprep.subr.mxu0 %v3624
    %5253 = vmatpush1.msra.mxu0 %v3623
    %5254 = vmatprep.subr.mxu0 %v3636
    %5255 = vmatpush1.msra.mxu0 %v3635
    %5256 = vmatprep.subr.mxu0 %v3648
    %5257 = vmatpush1.msra.mxu0 %v3647
    %5258 = vmatprep.subr.mxu0 %v3660
    %5259 = vmatpush1.msra.mxu0 %v3659
    %5260 = vmatprep.subr.mxu0 %v3672
    %5261 = vmatpush1.msra.mxu0 %v3671
    %5262 = vmatprep.subr.mxu0 %v3684
    %5263 = vmatpush1.msra.mxu0 %v3683
    %5264 = vmatprep.subr.mxu0 %v3696
    %5265 = vmatpush1.msra.mxu0 %v3695
    %5266 = vmatprep.subr.mxu0 %v3708
    %5267 = vmatpush1.msra.mxu0 %v3707
    %5268 = vmatprep.subr.mxu0 %v3720
    %5269 = vmatpush1.msra.mxu0 %v3719
    %5270 = vmatprep.subr.mxu0 %v3732
    %5271 = vmatpush1.msra.mxu0 %v3731
    %5272 = vmatprep.mubr.f32.mxu0 %v3348
    %5273 = vmatmul.mubr.f32.gmra.mrb[0].mxu0 %v3347
    %v5274 = vpop.f32.mrb[0].mxu0
    %v5275 = vadd.f32 %v4536, %v5274
    %v5276 = vpop.f32.mrb[0].mxu0
    %v5277 = vadd.f32 %v4540, %v5276
    %5278 = vdwg.mxu0
    %5279 = vmatprep.subr.mxu0 %v3744
    %5280 = vmatpush1.msra.mxu0 %v3743
    %5281 = vmatprep.subr.mxu0 %v3756
    %5282 = vmatpush1.msra.mxu0 %v3755
    %5283 = vmatprep.subr.mxu0 %v3768
    %5284 = vmatpush1.msra.mxu0 %v3767
    %5285 = vmatprep.subr.mxu0 %v3780
    %5286 = vmatpush1.msra.mxu0 %v3779
    %5287 = vmatprep.subr.mxu0 %v3792
    %5288 = vmatpush1.msra.mxu0 %v3791
    %5289 = vmatprep.subr.mxu0 %v3804
    %5290 = vmatpush1.msra.mxu0 %v3803
    %5291 = vmatprep.subr.mxu0 %v3816
    %5292 = vmatpush1.msra.mxu0 %v3815
    %5293 = vmatprep.subr.mxu0 %v3828
    %5294 = vmatpush1.msra.mxu0 %v3827
    %5295 = vmatprep.subr.mxu0 %v3840
    %5296 = vmatpush1.msra.mxu0 %v3839
    %5297 = vmatprep.subr.mxu0 %v3852
    %5298 = vmatpush1.msra.mxu0 %v3851
    %5299 = vmatprep.subr.mxu0 %v3864
    %5300 = vmatpush1.msra.mxu0 %v3863
    %5301 = vmatprep.subr.mxu0 %v3876
    %5302 = vmatpush1.msra.mxu0 %v3875
    %5303 = vmatprep.subr.mxu0 %v3888
    %5304 = vmatpush1.msra.mxu0 %v3887
    %5305 = vmatprep.subr.mxu0 %v3900
    %5306 = vmatpush1.msra.mxu0 %v3899
    %5307 = vmatprep.subr.mxu0 %v3912
    %5308 = vmatpush1.msra.mxu0 %v3911
    %5309 = vmatprep.subr.mxu0 %v3924
    %5310 = vmatpush1.msra.mxu0 %v3923
    %5311 = vmatprep.subr.mxu0 %v3936
    %5312 = vmatpush1.msra.mxu0 %v3935
    %5313 = vmatprep.subr.mxu0 %v3948
    %5314 = vmatpush1.msra.mxu0 %v3947
    %5315 = vmatprep.subr.mxu0 %v3960
    %5316 = vmatpush1.msra.mxu0 %v3959
    %5317 = vmatprep.subr.mxu0 %v3972
    %5318 = vmatpush1.msra.mxu0 %v3971
    %5319 = vmatprep.subr.mxu0 %v3984
    %5320 = vmatpush1.msra.mxu0 %v3983
    %5321 = vmatprep.subr.mxu0 %v3996
    %5322 = vmatpush1.msra.mxu0 %v3995
    %5323 = vmatprep.subr.mxu0 %v4008
    %5324 = vmatpush1.msra.mxu0 %v4007
    %5325 = vmatprep.subr.mxu0 %v4020
    %5326 = vmatpush1.msra.mxu0 %v4019
    %5327 = vmatprep.subr.mxu0 %v4032
    %5328 = vmatpush1.msra.mxu0 %v4031
    %5329 = vmatprep.subr.mxu0 %v4044
    %5330 = vmatpush1.msra.mxu0 %v4043
    %5331 = vmatprep.subr.mxu0 %v4056
    %5332 = vmatpush1.msra.mxu0 %v4055
    %5333 = vmatprep.subr.mxu0 %v4068
    %5334 = vmatpush1.msra.mxu0 %v4067
    %5335 = vmatprep.subr.mxu0 %v4080
    %5336 = vmatpush1.msra.mxu0 %v4079
    %5337 = vmatprep.subr.mxu0 %v4092
    %5338 = vmatpush1.msra.mxu0 %v4091
    %5339 = vmatprep.subr.mxu0 %v4104
    %5340 = vmatpush1.msra.mxu0 %v4103
    %5341 = vmatprep.subr.mxu0 %v4116
    %5342 = vmatpush1.msra.mxu0 %v4115
    %5343 = vmatprep.mubr.f32.mxu0 %v3350
    %5344 = vmatmul.mubr.f32.gmra.mrb[0].mxu0 %v3349
    %v5345 = vpop.f32.mrb[0].mxu0
    %v5346 = vadd.f32 %v5275, %v5345
    %v5347 = vpop.f32.mrb[0].mxu0
    %v5348 = vadd.f32 %v5277, %v5347
    %5349 = vdwg.mxu0
    %5350 = vmatprep.subr.mxu0 %v4128
    %5351 = vmatpush1.msra.mxu0 %v4127
    %5352 = vmatprep.subr.mxu0 %v4140
    %5353 = vmatpush1.msra.mxu0 %v4139
    %5354 = vmatprep.subr.mxu0 %v4152
    %5355 = vmatpush1.msra.mxu0 %v4151
    %5356 = vmatprep.subr.mxu0 %v4164
    %5357 = vmatpush1.msra.mxu0 %v4163
    %5358 = vmatprep.subr.mxu0 %v4176
    %5359 = vmatpush1.msra.mxu0 %v4175
    %5360 = vmatprep.subr.mxu0 %v4188
    %5361 = vmatpush1.msra.mxu0 %v4187
    %5362 = vmatprep.subr.mxu0 %v4200
    %5363 = vmatpush1.msra.mxu0 %v4199
    %5364 = vmatprep.subr.mxu0 %v4212
    %5365 = vmatpush1.msra.mxu0 %v4211
    %5366 = vmatprep.subr.mxu0 %v4224
    %5367 = vmatpush1.msra.mxu0 %v4223
    %5368 = vmatprep.subr.mxu0 %v4236
    %5369 = vmatpush1.msra.mxu0 %v4235
    %5370 = vmatprep.subr.mxu0 %v4248
    %5371 = vmatpush1.msra.mxu0 %v4247
    %5372 = vmatprep.subr.mxu0 %v4260
    %5373 = vmatpush1.msra.mxu0 %v4259
    %5374 = vmatprep.subr.mxu0 %v4272
    %5375 = vmatpush1.msra.mxu0 %v4271
    %5376 = vmatprep.subr.mxu0 %v4284
    %5377 = vmatpush1.msra.mxu0 %v4283
    %5378 = vmatprep.subr.mxu0 %v4296
    %5379 = vmatpush1.msra.mxu0 %v4295
    %5380 = vmatprep.subr.mxu0 %v4308
    %5381 = vmatpush1.msra.mxu0 %v4307
    %5382 = vmatprep.subr.mxu0 %v4320
    %5383 = vmatpush1.msra.mxu0 %v4319
    %5384 = vmatprep.subr.mxu0 %v4332
    %5385 = vmatpush1.msra.mxu0 %v4331
    %5386 = vmatprep.subr.mxu0 %v4344
    %5387 = vmatpush1.msra.mxu0 %v4343
    %5388 = vmatprep.subr.mxu0 %v4356
    %5389 = vmatpush1.msra.mxu0 %v4355
    %5390 = vmatprep.subr.mxu0 %v4368
    %5391 = vmatpush1.msra.mxu0 %v4367
    %5392 = vmatprep.subr.mxu0 %v4380
    %5393 = vmatpush1.msra.mxu0 %v4379
    %5394 = vmatprep.subr.mxu0 %v4392
    %5395 = vmatpush1.msra.mxu0 %v4391
    %5396 = vmatprep.subr.mxu0 %v4404
    %5397 = vmatpush1.msra.mxu0 %v4403
    %5398 = vmatprep.subr.mxu0 %v4416
    %5399 = vmatpush1.msra.mxu0 %v4415
    %5400 = vmatprep.subr.mxu0 %v4428
    %5401 = vmatpush1.msra.mxu0 %v4427
    %5402 = vmatprep.subr.mxu0 %v4440
    %5403 = vmatpush1.msra.mxu0 %v4439
    %5404 = vmatprep.subr.mxu0 %v4452
    %5405 = vmatpush1.msra.mxu0 %v4451
    %5406 = vmatprep.subr.mxu0 %v4464
    %5407 = vmatpush1.msra.mxu0 %v4463
    %5408 = vmatprep.subr.mxu0 %v4476
    %5409 = vmatpush1.msra.mxu0 %v4475
    %5410 = vmatprep.subr.mxu0 %v4488
    %5411 = vmatpush1.msra.mxu0 %v4487
    %5412 = vmatprep.subr.mxu0 %v4500
    %5413 = vmatpush1.msra.mxu0 %v4499
    %5414 = vmatprep.mubr.f32.mxu0 %v3352
    %5415 = vmatmul.mubr.f32.gmra.mrb[0].mxu0 %v3351
    %v5416 = vpop.f32.mrb[0].mxu0
    %v5417 = vadd.f32 %v5346, %v5416
    %v5418 = vpop.f32.mrb[0].mxu0
    %v5419 = vadd.f32 %v5348, %v5418
    %5420 = vdwg.mxu0
    %5421 = vmatprep.subr.mxu0 %v3362
    %5422 = vmatpush1.msra.mxu0 %v3361
    %5423 = vmatprep.subr.mxu0 %v3374
    %5424 = vmatpush1.msra.mxu0 %v3373
    %5425 = vmatprep.subr.mxu0 %v3386
    %5426 = vmatpush1.msra.mxu0 %v3385
    %5427 = vmatprep.subr.mxu0 %v3398
    %5428 = vmatpush1.msra.mxu0 %v3397
    %5429 = vmatprep.subr.mxu0 %v3410
    %5430 = vmatpush1.msra.mxu0 %v3409
    %5431 = vmatprep.subr.mxu0 %v3422
    %5432 = vmatpush1.msra.mxu0 %v3421
    %5433 = vmatprep.subr.mxu0 %v3434
    %5434 = vmatpush1.msra.mxu0 %v3433
    %5435 = vmatprep.subr.mxu0 %v3446
    %5436 = vmatpush1.msra.mxu0 %v3445
    %5437 = vmatprep.subr.mxu0 %v3458
    %5438 = vmatpush1.msra.mxu0 %v3457
    %5439 = vmatprep.subr.mxu0 %v3470
    %5440 = vmatpush1.msra.mxu0 %v3469
    %5441 = vmatprep.subr.mxu0 %v3482
    %5442 = vmatpush1.msra.mxu0 %v3481
    %5443 = vmatprep.subr.mxu0 %v3494
    %5444 = vmatpush1.msra.mxu0 %v3493
    %5445 = vmatprep.subr.mxu0 %v3506
    %5446 = vmatpush1.msra.mxu0 %v3505
    %5447 = vmatprep.subr.mxu0 %v3518
    %5448 = vmatpush1.msra.mxu0 %v3517
    %5449 = vmatprep.subr.mxu0 %v3530
    %5450 = vmatpush1.msra.mxu0 %v3529
    %5451 = vmatprep.subr.mxu0 %v3542
    %5452 = vmatpush1.msra.mxu0 %v3541
    %5453 = vmatprep.subr.mxu0 %v3554
    %5454 = vmatpush1.msra.mxu0 %v3553
    %5455 = vmatprep.subr.mxu0 %v3566
    %5456 = vmatpush1.msra.mxu0 %v3565
    %5457 = vmatprep.subr.mxu0 %v3578
    %5458 = vmatpush1.msra.mxu0 %v3577
    %5459 = vmatprep.subr.mxu0 %v3590
    %5460 = vmatpush1.msra.mxu0 %v3589
    %5461 = vmatprep.subr.mxu0 %v3602
    %5462 = vmatpush1.msra.mxu0 %v3601
    %5463 = vmatprep.subr.mxu0 %v3614
    %5464 = vmatpush1.msra.mxu0 %v3613
    %5465 = vmatprep.subr.mxu0 %v3626
    %5466 = vmatpush1.msra.mxu0 %v3625
    %5467 = vmatprep.subr.mxu0 %v3638
    %5468 = vmatpush1.msra.mxu0 %v3637
    %5469 = vmatprep.subr.mxu0 %v3650
    %5470 = vmatpush1.msra.mxu0 %v3649
    %5471 = vmatprep.subr.mxu0 %v3662
    %5472 = vmatpush1.msra.mxu0 %v3661
    %5473 = vmatprep.subr.mxu0 %v3674
    %5474 = vmatpush1.msra.mxu0 %v3673
    %5475 = vmatprep.subr.mxu0 %v3686
    %5476 = vmatpush1.msra.mxu0 %v3685
    %5477 = vmatprep.subr.mxu0 %v3698
    %5478 = vmatpush1.msra.mxu0 %v3697
    %5479 = vmatprep.subr.mxu0 %v3710
    %5480 = vmatpush1.msra.mxu0 %v3709
    %5481 = vmatprep.subr.mxu0 %v3722
    %5482 = vmatpush1.msra.mxu0 %v3721
    %5483 = vmatprep.subr.mxu0 %v3734
    %5484 = vmatpush1.msra.mxu0 %v3733
    %5485 = vmatprep.mubr.f32.mxu0 %v3348
    %5486 = vmatmul.mubr.f32.gmra.mrb[0].mxu0 %v3347
    %v5487 = vpop.f32.mrb[0].mxu0
    %v5488 = vadd.f32 %v4544, %v5487
    %v5489 = vpop.f32.mrb[0].mxu0
    %v5490 = vadd.f32 %v4548, %v5489
    %5491 = vdwg.mxu0
    %5492 = vmatprep.subr.mxu0 %v3746
    %5493 = vmatpush1.msra.mxu0 %v3745
    %5494 = vmatprep.subr.mxu0 %v3758
    %5495 = vmatpush1.msra.mxu0 %v3757
    %5496 = vmatprep.subr.mxu0 %v3770
    %5497 = vmatpush1.msra.mxu0 %v3769
    %5498 = vmatprep.subr.mxu0 %v3782
    %5499 = vmatpush1.msra.mxu0 %v3781
    %5500 = vmatprep.subr.mxu0 %v3794
    %5501 = vmatpush1.msra.mxu0 %v3793
    %5502 = vmatprep.subr.mxu0 %v3806
    %5503 = vmatpush1.msra.mxu0 %v3805
    %5504 = vmatprep.subr.mxu0 %v3818
    %5505 = vmatpush1.msra.mxu0 %v3817
    %5506 = vmatprep.subr.mxu0 %v3830
    %5507 = vmatpush1.msra.mxu0 %v3829
    %5508 = vmatprep.subr.mxu0 %v3842
    %5509 = vmatpush1.msra.mxu0 %v3841
    %5510 = vmatprep.subr.mxu0 %v3854
    %5511 = vmatpush1.msra.mxu0 %v3853
    %5512 = vmatprep.subr.mxu0 %v3866
    %5513 = vmatpush1.msra.mxu0 %v3865
    %5514 = vmatprep.subr.mxu0 %v3878
    %5515 = vmatpush1.msra.mxu0 %v3877
    %5516 = vmatprep.subr.mxu0 %v3890
    %5517 = vmatpush1.msra.mxu0 %v3889
    %5518 = vmatprep.subr.mxu0 %v3902
    %5519 = vmatpush1.msra.mxu0 %v3901
    %5520 = vmatprep.subr.mxu0 %v3914
    %5521 = vmatpush1.msra.mxu0 %v3913
    %5522 = vmatprep.subr.mxu0 %v3926
    %5523 = vmatpush1.msra.mxu0 %v3925
    %5524 = vmatprep.subr.mxu0 %v3938
    %5525 = vmatpush1.msra.mxu0 %v3937
    %5526 = vmatprep.subr.mxu0 %v3950
    %5527 = vmatpush1.msra.mxu0 %v3949
    %5528 = vmatprep.subr.mxu0 %v3962
    %5529 = vmatpush1.msra.mxu0 %v3961
    %5530 = vmatprep.subr.mxu0 %v3974
    %5531 = vmatpush1.msra.mxu0 %v3973
    %5532 = vmatprep.subr.mxu0 %v3986
    %5533 = vmatpush1.msra.mxu0 %v3985
    %5534 = vmatprep.subr.mxu0 %v3998
    %5535 = vmatpush1.msra.mxu0 %v3997
    %5536 = vmatprep.subr.mxu0 %v4010
    %5537 = vmatpush1.msra.mxu0 %v4009
    %5538 = vmatprep.subr.mxu0 %v4022
    %5539 = vmatpush1.msra.mxu0 %v4021
    %5540 = vmatprep.subr.mxu0 %v4034
    %5541 = vmatpush1.msra.mxu0 %v4033
    %5542 = vmatprep.subr.mxu0 %v4046
    %5543 = vmatpush1.msra.mxu0 %v4045
    %5544 = vmatprep.subr.mxu0 %v4058
    %5545 = vmatpush1.msra.mxu0 %v4057
    %5546 = vmatprep.subr.mxu0 %v4070
    %5547 = vmatpush1.msra.mxu0 %v4069
    %5548 = vmatprep.subr.mxu0 %v4082
    %5549 = vmatpush1.msra.mxu0 %v4081
    %5550 = vmatprep.subr.mxu0 %v4094
    %5551 = vmatpush1.msra.mxu0 %v4093
    %5552 = vmatprep.subr.mxu0 %v4106
    %5553 = vmatpush1.msra.mxu0 %v4105
    %5554 = vmatprep.subr.mxu0 %v4118
    %5555 = vmatpush1.msra.mxu0 %v4117
    %5556 = vmatprep.mubr.f32.mxu0 %v3350
    %5557 = vmatmul.mubr.f32.gmra.mrb[0].mxu0 %v3349
    %v5558 = vpop.f32.mrb[0].mxu0
    %v5559 = vadd.f32 %v5488, %v5558
    %v5560 = vpop.f32.mrb[0].mxu0
    %v5561 = vadd.f32 %v5490, %v5560
    %5562 = vdwg.mxu0
    %5563 = vmatprep.subr.mxu0 %v4130
    %5564 = vmatpush1.msra.mxu0 %v4129
    %5565 = vmatprep.subr.mxu0 %v4142
    %5566 = vmatpush1.msra.mxu0 %v4141
    %5567 = vmatprep.subr.mxu0 %v4154
    %5568 = vmatpush1.msra.mxu0 %v4153
    %5569 = vmatprep.subr.mxu0 %v4166
    %5570 = vmatpush1.msra.mxu0 %v4165
    %5571 = vmatprep.subr.mxu0 %v4178
    %5572 = vmatpush1.msra.mxu0 %v4177
    %5573 = vmatprep.subr.mxu0 %v4190
    %5574 = vmatpush1.msra.mxu0 %v4189
    %5575 = vmatprep.subr.mxu0 %v4202
    %5576 = vmatpush1.msra.mxu0 %v4201
    %5577 = vmatprep.subr.mxu0 %v4214
    %5578 = vmatpush1.msra.mxu0 %v4213
    %5579 = vmatprep.subr.mxu0 %v4226
    %5580 = vmatpush1.msra.mxu0 %v4225
    %5581 = vmatprep.subr.mxu0 %v4238
    %5582 = vmatpush1.msra.mxu0 %v4237
    %5583 = vmatprep.subr.mxu0 %v4250
    %5584 = vmatpush1.msra.mxu0 %v4249
    %5585 = vmatprep.subr.mxu0 %v4262
    %5586 = vmatpush1.msra.mxu0 %v4261
    %5587 = vmatprep.subr.mxu0 %v4274
    %5588 = vmatpush1.msra.mxu0 %v4273
    %5589 = vmatprep.subr.mxu0 %v4286
    %5590 = vmatpush1.msra.mxu0 %v4285
    %5591 = vmatprep.subr.mxu0 %v4298
    %5592 = vmatpush1.msra.mxu0 %v4297
    %5593 = vmatprep.subr.mxu0 %v4310
    %5594 = vmatpush1.msra.mxu0 %v4309
    %5595 = vmatprep.subr.mxu0 %v4322
    %5596 = vmatpush1.msra.mxu0 %v4321
    %5597 = vmatprep.subr.mxu0 %v4334
    %5598 = vmatpush1.msra.mxu0 %v4333
    %5599 = vmatprep.subr.mxu0 %v4346
    %5600 = vmatpush1.msra.mxu0 %v4345
    %5601 = vmatprep.subr.mxu0 %v4358
    %5602 = vmatpush1.msra.mxu0 %v4357
    %5603 = vmatprep.subr.mxu0 %v4370
    %5604 = vmatpush1.msra.mxu0 %v4369
    %5605 = vmatprep.subr.mxu0 %v4382
    %5606 = vmatpush1.msra.mxu0 %v4381
    %5607 = vmatprep.subr.mxu0 %v4394
    %5608 = vmatpush1.msra.mxu0 %v4393
    %5609 = vmatprep.subr.mxu0 %v4406
    %5610 = vmatpush1.msra.mxu0 %v4405
    %5611 = vmatprep.subr.mxu0 %v4418
    %5612 = vmatpush1.msra.mxu0 %v4417
    %5613 = vmatprep.subr.mxu0 %v4430
    %5614 = vmatpush1.msra.mxu0 %v4429
    %5615 = vmatprep.subr.mxu0 %v4442
    %5616 = vmatpush1.msra.mxu0 %v4441
    %5617 = vmatprep.subr.mxu0 %v4454
    %5618 = vmatpush1.msra.mxu0 %v4453
    %5619 = vmatprep.subr.mxu0 %v4466
    %5620 = vmatpush1.msra.mxu0 %v4465
    %5621 = vmatprep.subr.mxu0 %v4478
    %5622 = vmatpush1.msra.mxu0 %v4477
    %5623 = vmatprep.subr.mxu0 %v4490
    %5624 = vmatpush1.msra.mxu0 %v4489
    %5625 = vmatprep.subr.mxu0 %v4502
    %5626 = vmatpush1.msra.mxu0 %v4501
    %5627 = vmatprep.mubr.f32.mxu0 %v3352
    %5628 = vmatmul.mubr.f32.gmra.mrb[0].mxu0 %v3351
    %v5629 = vpop.f32.mrb[0].mxu0
    %v5630 = vadd.f32 %v5559, %v5629
    %v5631 = vpop.f32.mrb[0].mxu0
    %v5632 = vadd.f32 %v5561, %v5631
    %5633 = vdwg.mxu0
    %5634 = vmatprep.subr.mxu0 %v3364
    %5635 = vmatpush1.msra.mxu0 %v3363
    %5636 = vmatprep.subr.mxu0 %v3376
    %5637 = vmatpush1.msra.mxu0 %v3375
    %5638 = vmatprep.subr.mxu0 %v3388
    %5639 = vmatpush1.msra.mxu0 %v3387
    %5640 = vmatprep.subr.mxu0 %v3400
    %5641 = vmatpush1.msra.mxu0 %v3399
    %5642 = vmatprep.subr.mxu0 %v3412
    %5643 = vmatpush1.msra.mxu0 %v3411
    %5644 = vmatprep.subr.mxu0 %v3424
    %5645 = vmatpush1.msra.mxu0 %v3423
    %5646 = vmatprep.subr.mxu0 %v3436
    %5647 = vmatpush1.msra.mxu0 %v3435
    %5648 = vmatprep.subr.mxu0 %v3448
    %5649 = vmatpush1.msra.mxu0 %v3447
    %5650 = vmatprep.subr.mxu0 %v3460
    %5651 = vmatpush1.msra.mxu0 %v3459
    %5652 = vmatprep.subr.mxu0 %v3472
    %5653 = vmatpush1.msra.mxu0 %v3471
    %5654 = vmatprep.subr.mxu0 %v3484
    %5655 = vmatpush1.msra.mxu0 %v3483
    %5656 = vmatprep.subr.mxu0 %v3496
    %5657 = vmatpush1.msra.mxu0 %v3495
    %5658 = vmatprep.subr.mxu0 %v3508
    %5659 = vmatpush1.msra.mxu0 %v3507
    %5660 = vmatprep.subr.mxu0 %v3520
    %5661 = vmatpush1.msra.mxu0 %v3519
    %5662 = vmatprep.subr.mxu0 %v3532
    %5663 = vmatpush1.msra.mxu0 %v3531
    %5664 = vmatprep.subr.mxu0 %v3544
    %5665 = vmatpush1.msra.mxu0 %v3543
    %5666 = vmatprep.subr.mxu0 %v3556
    %5667 = vmatpush1.msra.mxu0 %v3555
    %5668 = vmatprep.subr.mxu0 %v3568
    %5669 = vmatpush1.msra.mxu0 %v3567
    %5670 = vmatprep.subr.mxu0 %v3580
    %5671 = vmatpush1.msra.mxu0 %v3579
    %5672 = vmatprep.subr.mxu0 %v3592
    %5673 = vmatpush1.msra.mxu0 %v3591
    %5674 = vmatprep.subr.mxu0 %v3604
    %5675 = vmatpush1.msra.mxu0 %v3603
    %5676 = vmatprep.subr.mxu0 %v3616
    %5677 = vmatpush1.msra.mxu0 %v3615
    %5678 = vmatprep.subr.mxu0 %v3628
    %5679 = vmatpush1.msra.mxu0 %v3627
    %5680 = vmatprep.subr.mxu0 %v3640
    %5681 = vmatpush1.msra.mxu0 %v3639
    %5682 = vmatprep.subr.mxu0 %v3652
    %5683 = vmatpush1.msra.mxu0 %v3651
    %5684 = vmatprep.subr.mxu0 %v3664
    %5685 = vmatpush1.msra.mxu0 %v3663
    %5686 = vmatprep.subr.mxu0 %v3676
    %5687 = vmatpush1.msra.mxu0 %v3675
    %5688 = vmatprep.subr.mxu0 %v3688
    %5689 = vmatpush1.msra.mxu0 %v3687
    %5690 = vmatprep.subr.mxu0 %v3700
    %5691 = vmatpush1.msra.mxu0 %v3699
    %5692 = vmatprep.subr.mxu0 %v3712
    %5693 = vmatpush1.msra.mxu0 %v3711
    %5694 = vmatprep.subr.mxu0 %v3724
    %5695 = vmatpush1.msra.mxu0 %v3723
    %5696 = vmatprep.subr.mxu0 %v3736
    %5697 = vmatpush1.msra.mxu0 %v3735
    %5698 = vmatprep.mubr.f32.mxu0 %v3348
    %5699 = vmatmul.mubr.f32.gmra.mrb[0].mxu0 %v3347
    %v5700 = vpop.f32.mrb[0].mxu0
    %v5701 = vadd.f32 %v4552, %v5700
    %v5702 = vpop.f32.mrb[0].mxu0
    %v5703 = vadd.f32 %v4556, %v5702
    %5704 = vdwg.mxu0
    %5705 = vmatprep.subr.mxu0 %v3748
    %5706 = vmatpush1.msra.mxu0 %v3747
    %5707 = vmatprep.subr.mxu0 %v3760
    %5708 = vmatpush1.msra.mxu0 %v3759
    %5709 = vmatprep.subr.mxu0 %v3772
    %5710 = vmatpush1.msra.mxu0 %v3771
    %5711 = vmatprep.subr.mxu0 %v3784
    %5712 = vmatpush1.msra.mxu0 %v3783
    %5713 = vmatprep.subr.mxu0 %v3796
    %5714 = vmatpush1.msra.mxu0 %v3795
    %5715 = vmatprep.subr.mxu0 %v3808
    %5716 = vmatpush1.msra.mxu0 %v3807
    %5717 = vmatprep.subr.mxu0 %v3820
    %5718 = vmatpush1.msra.mxu0 %v3819
    %5719 = vmatprep.subr.mxu0 %v3832
    %5720 = vmatpush1.msra.mxu0 %v3831
    %5721 = vmatprep.subr.mxu0 %v3844
    %5722 = vmatpush1.msra.mxu0 %v3843
    %5723 = vmatprep.subr.mxu0 %v3856
    %5724 = vmatpush1.msra.mxu0 %v3855
    %5725 = vmatprep.subr.mxu0 %v3868
    %5726 = vmatpush1.msra.mxu0 %v3867
    %5727 = vmatprep.subr.mxu0 %v3880
    %5728 = vmatpush1.msra.mxu0 %v3879
    %5729 = vmatprep.subr.mxu0 %v3892
    %5730 = vmatpush1.msra.mxu0 %v3891
    %5731 = vmatprep.subr.mxu0 %v3904
    %5732 = vmatpush1.msra.mxu0 %v3903
    %5733 = vmatprep.subr.mxu0 %v3916
    %5734 = vmatpush1.msra.mxu0 %v3915
    %5735 = vmatprep.subr.mxu0 %v3928
    %5736 = vmatpush1.msra.mxu0 %v3927
    %5737 = vmatprep.subr.mxu0 %v3940
    %5738 = vmatpush1.msra.mxu0 %v3939
    %5739 = vmatprep.subr.mxu0 %v3952
    %5740 = vmatpush1.msra.mxu0 %v3951
    %5741 = vmatprep.subr.mxu0 %v3964
    %5742 = vmatpush1.msra.mxu0 %v3963
    %5743 = vmatprep.subr.mxu0 %v3976
    %5744 = vmatpush1.msra.mxu0 %v3975
    %5745 = vmatprep.subr.mxu0 %v3988
    %5746 = vmatpush1.msra.mxu0 %v3987
    %5747 = vmatprep.subr.mxu0 %v4000
    %5748 = vmatpush1.msra.mxu0 %v3999
    %5749 = vmatprep.subr.mxu0 %v4012
    %5750 = vmatpush1.msra.mxu0 %v4011
    %5751 = vmatprep.subr.mxu0 %v4024
    %5752 = vmatpush1.msra.mxu0 %v4023
    %5753 = vmatprep.subr.mxu0 %v4036
    %5754 = vmatpush1.msra.mxu0 %v4035
    %5755 = vmatprep.subr.mxu0 %v4048
    %5756 = vmatpush1.msra.mxu0 %v4047
    %5757 = vmatprep.subr.mxu0 %v4060
    %5758 = vmatpush1.msra.mxu0 %v4059
    %5759 = vmatprep.subr.mxu0 %v4072
    %5760 = vmatpush1.msra.mxu0 %v4071
    %5761 = vmatprep.subr.mxu0 %v4084
    %5762 = vmatpush1.msra.mxu0 %v4083
    %5763 = vmatprep.subr.mxu0 %v4096
    %5764 = vmatpush1.msra.mxu0 %v4095
    %5765 = vmatprep.subr.mxu0 %v4108
    %5766 = vmatpush1.msra.mxu0 %v4107
    %5767 = vmatprep.subr.mxu0 %v4120
    %5768 = vmatpush1.msra.mxu0 %v4119
    %5769 = vmatprep.mubr.f32.mxu0 %v3350
    %5770 = vmatmul.mubr.f32.gmra.mrb[0].mxu0 %v3349
    %v5771 = vpop.f32.mrb[0].mxu0
    %v5772 = vadd.f32 %v5701, %v5771
    %v5773 = vpop.f32.mrb[0].mxu0
    %v5774 = vadd.f32 %v5703, %v5773
    %5775 = vdwg.mxu0
    %5776 = vmatprep.subr.mxu0 %v4132
    %5777 = vmatpush1.msra.mxu0 %v4131
    %5778 = vmatprep.subr.mxu0 %v4144
    %5779 = vmatpush1.msra.mxu0 %v4143
    %5780 = vmatprep.subr.mxu0 %v4156
    %5781 = vmatpush1.msra.mxu0 %v4155
    %5782 = vmatprep.subr.mxu0 %v4168
    %5783 = vmatpush1.msra.mxu0 %v4167
    %5784 = vmatprep.subr.mxu0 %v4180
    %5785 = vmatpush1.msra.mxu0 %v4179
    %5786 = vmatprep.subr.mxu0 %v4192
    %5787 = vmatpush1.msra.mxu0 %v4191
    %5788 = vmatprep.subr.mxu0 %v4204
    %5789 = vmatpush1.msra.mxu0 %v4203
    %5790 = vmatprep.subr.mxu0 %v4216
    %5791 = vmatpush1.msra.mxu0 %v4215
    %5792 = vmatprep.subr.mxu0 %v4228
    %5793 = vmatpush1.msra.mxu0 %v4227
    %5794 = vmatprep.subr.mxu0 %v4240
    %5795 = vmatpush1.msra.mxu0 %v4239
    %5796 = vmatprep.subr.mxu0 %v4252
    %5797 = vmatpush1.msra.mxu0 %v4251
    %5798 = vmatprep.subr.mxu0 %v4264
    %5799 = vmatpush1.msra.mxu0 %v4263
    %5800 = vmatprep.subr.mxu0 %v4276
    %5801 = vmatpush1.msra.mxu0 %v4275
    %5802 = vmatprep.subr.mxu0 %v4288
    %5803 = vmatpush1.msra.mxu0 %v4287
    %5804 = vmatprep.subr.mxu0 %v4300
    %5805 = vmatpush1.msra.mxu0 %v4299
    %5806 = vmatprep.subr.mxu0 %v4312
    %5807 = vmatpush1.msra.mxu0 %v4311
    %5808 = vmatprep.subr.mxu0 %v4324
    %5809 = vmatpush1.msra.mxu0 %v4323
    %5810 = vmatprep.subr.mxu0 %v4336
    %5811 = vmatpush1.msra.mxu0 %v4335
    %5812 = vmatprep.subr.mxu0 %v4348
    %5813 = vmatpush1.msra.mxu0 %v4347
    %5814 = vmatprep.subr.mxu0 %v4360
    %5815 = vmatpush1.msra.mxu0 %v4359
    %5816 = vmatprep.subr.mxu0 %v4372
    %5817 = vmatpush1.msra.mxu0 %v4371
    %5818 = vmatprep.subr.mxu0 %v4384
    %5819 = vmatpush1.msra.mxu0 %v4383
    %5820 = vmatprep.subr.mxu0 %v4396
    %5821 = vmatpush1.msra.mxu0 %v4395
    %5822 = vmatprep.subr.mxu0 %v4408
    %5823 = vmatpush1.msra.mxu0 %v4407
    %5824 = vmatprep.subr.mxu0 %v4420
    %5825 = vmatpush1.msra.mxu0 %v4419
    %5826 = vmatprep.subr.mxu0 %v4432
    %5827 = vmatpush1.msra.mxu0 %v4431
    %5828 = vmatprep.subr.mxu0 %v4444
    %5829 = vmatpush1.msra.mxu0 %v4443
    %5830 = vmatprep.subr.mxu0 %v4456
    %5831 = vmatpush1.msra.mxu0 %v4455
    %5832 = vmatprep.subr.mxu0 %v4468
    %5833 = vmatpush1.msra.mxu0 %v4467
    %5834 = vmatprep.subr.mxu0 %v4480
    %5835 = vmatpush1.msra.mxu0 %v4479
    %5836 = vmatprep.subr.mxu0 %v4492
    %5837 = vmatpush1.msra.mxu0 %v4491
    %5838 = vmatprep.subr.mxu0 %v4504
    %5839 = vmatpush1.msra.mxu0 %v4503
    %5840 = vmatprep.mubr.f32.mxu0 %v3352
    %5841 = vmatmul.mubr.f32.gmra.mrb[0].mxu0 %v3351
    %v5842 = vpop.f32.mrb[0].mxu0
    %v5843 = vadd.f32 %v5772, %v5842
    %v5844 = vpop.f32.mrb[0].mxu0
    %v5845 = vadd.f32 %v5774, %v5844
    %5846 = vdwg.mxu0
    %v5847 = vmax.f32 %v4778, 0.0
    %v5848 = vmax.f32 %v4780, 0.0
    %v5849 = vmax.f32 %v4991, 0.0
    %v5850 = vmax.f32 %v4993, 0.0
    %v5851 = vmax.f32 %v5204, 0.0
    %v5852 = vmax.f32 %v5206, 0.0
    %v5853 = vmax.f32 %v5417, 0.0
    %v5854 = vmax.f32 %v5419, 0.0
    %v5855 = vmax.f32 %v5630, 0.0
    %v5856 = vmax.f32 %v5632, 0.0
    %v5857 = vmax.f32 %v5843, 0.0
    %v5858 = vmax.f32 %v5845, 0.0
    %v5859 = vld [vmem:[#allocation12] sm:$0xff]
    %v5860 = vld [vmem:[#allocation12 + $0x8] sm:$0xff]
    %v5861 = vld [vmem:[#allocation12 + $0x10] sm:$0xff]
    %v5862 = vld [vmem:[#allocation12 + $0x18] sm:$0xff]
    %v5863 = vld [vmem:[#allocation12 + $0x20] sm:$0xff]
    %v5864 = vld [vmem:[#allocation12 + $0x28] sm:$0xff]
    %v5865 = vld [vmem:[#allocation12 + $0x30] sm:$0xff]
    %v5866 = vld [vmem:[#allocation12 + $0x38] sm:$0xff]
    %v5867 = vld [vmem:[#allocation12 + $0x40] sm:$0xff]
    %v5868 = vld [vmem:[#allocation12 + $0x48] sm:$0xff]
    %v5869 = vld [vmem:[#allocation12 + $0x50] sm:$0xff]
    %v5870 = vld [vmem:[#allocation12 + $0x58] sm:$0xff]
    %v5871 = vld [vmem:[#allocation12 + $0x60] sm:$0xff]
    %v5872 = vld [vmem:[#allocation12 + $0x68] sm:$0xff]
    %v5873 = vld [vmem:[#allocation12 + $0x70] sm:$0xff]
    %v5874 = vld [vmem:[#allocation12 + $0x78] sm:$0xff]
    %v5875 = vld [vmem:[#allocation12 + $0x80] sm:$0xff]
    %v5876 = vld [vmem:[#allocation12 + $0x88] sm:$0xff]
    %v5877 = vld [vmem:[#allocation12 + $0x90] sm:$0xff]
    %v5878 = vld [vmem:[#allocation12 + $0x98] sm:$0xff]
    %v5879 = vld [vmem:[#allocation12 + $0xa0] sm:$0xff]
    %v5880 = vld [vmem:[#allocation12 + $0xa8] sm:$0xff]
    %v5881 = vld [vmem:[#allocation12 + $0xb0] sm:$0xff]
    %v5882 = vld [vmem:[#allocation12 + $0xb8] sm:$0xff]
    %v5883 = vld [vmem:[#allocation12 + $0xc0] sm:$0xff]
    %v5884 = vld [vmem:[#allocation12 + $0xc8] sm:$0xff]
    %v5885 = vld [vmem:[#allocation12 + $0xd0] sm:$0xff]
    %v5886 = vld [vmem:[#allocation12 + $0xd8] sm:$0xff]
    %v5887 = vld [vmem:[#allocation12 + $0xe0] sm:$0xff]
    %v5888 = vld [vmem:[#allocation12 + $0xe8] sm:$0xff]
    %v5889 = vld [vmem:[#allocation12 + $0xf0] sm:$0xff]
    %v5890 = vld [vmem:[#allocation12 + $0xf8] sm:$0xff]
    %v5891 = vld [vmem:[#allocation12 + $0x100] sm:$0xff]
    %v5892 = vld [vmem:[#allocation12 + $0x108] sm:$0xff]
    %v5893 = vld [vmem:[#allocation12 + $0x110] sm:$0xff]
    %v5894 = vld [vmem:[#allocation12 + $0x118] sm:$0xff]
    %v5895 = vld [vmem:[#allocation12 + $0x120] sm:$0xff]
    %v5896 = vld [vmem:[#allocation12 + $0x128] sm:$0xff]
    %v5897 = vld [vmem:[#allocation12 + $0x130] sm:$0xff]
    %v5898 = vld [vmem:[#allocation12 + $0x138] sm:$0xff]
    %v5899 = vld [vmem:[#allocation12 + $0x140] sm:$0xff]
    %v5900 = vld [vmem:[#allocation12 + $0x148] sm:$0xff]
    %v5901 = vld [vmem:[#allocation12 + $0x150] sm:$0xff]
    %v5902 = vld [vmem:[#allocation12 + $0x158] sm:$0xff]
    %v5903 = vld [vmem:[#allocation12 + $0x160] sm:$0xff]
    %v5904 = vld [vmem:[#allocation12 + $0x168] sm:$0xff]
    %v5905 = vld [vmem:[#allocation12 + $0x170] sm:$0xff]
    %v5906 = vld [vmem:[#allocation12 + $0x178] sm:$0xff]
    %v5907 = vld [vmem:[#allocation12 + $0x180] sm:$0xff]
    %v5908 = vld [vmem:[#allocation12 + $0x188] sm:$0xff]
    %v5909 = vld [vmem:[#allocation12 + $0x190] sm:$0xff]
    %v5910 = vld [vmem:[#allocation12 + $0x198] sm:$0xff]
    %v5911 = vld [vmem:[#allocation12 + $0x1a0] sm:$0xff]
    %v5912 = vld [vmem:[#allocation12 + $0x1a8] sm:$0xff]
    %v5913 = vld [vmem:[#allocation12 + $0x1b0] sm:$0xff]
    %v5914 = vld [vmem:[#allocation12 + $0x1b8] sm:$0xff]
    %v5915 = vld [vmem:[#allocation12 + $0x1c0] sm:$0xff]
    %v5916 = vld [vmem:[#allocation12 + $0x1c8] sm:$0xff]
    %v5917 = vld [vmem:[#allocation12 + $0x1d0] sm:$0xff]
    %v5918 = vld [vmem:[#allocation12 + $0x1d8] sm:$0xff]
    %v5919 = vld [vmem:[#allocation12 + $0x1e0] sm:$0xff]
    %v5920 = vld [vmem:[#allocation12 + $0x1e8] sm:$0xff]
    %v5921 = vld [vmem:[#allocation12 + $0x1f0] sm:$0xff]
    %v5922 = vld [vmem:[#allocation12 + $0x1f8] sm:$0xff]
    %v5923 = vld [vmem:[#allocation12 + $0x200] sm:$0xff]
    %v5924 = vld [vmem:[#allocation12 + $0x208] sm:$0xff]
    %v5925 = vld [vmem:[#allocation12 + $0x210] sm:$0xff]
    %v5926 = vld [vmem:[#allocation12 + $0x218] sm:$0xff]
    %v5927 = vld [vmem:[#allocation12 + $0x220] sm:$0xff]
    %v5928 = vld [vmem:[#allocation12 + $0x228] sm:$0xff]
    %v5929 = vld [vmem:[#allocation12 + $0x230] sm:$0xff]
    %v5930 = vld [vmem:[#allocation12 + $0x238] sm:$0xff]
    %v5931 = vld [vmem:[#allocation12 + $0x240] sm:$0xff]
    %v5932 = vld [vmem:[#allocation12 + $0x248] sm:$0xff]
    %v5933 = vld [vmem:[#allocation12 + $0x250] sm:$0xff]
    %v5934 = vld [vmem:[#allocation12 + $0x258] sm:$0xff]
    %v5935 = vld [vmem:[#allocation12 + $0x260] sm:$0xff]
    %v5936 = vld [vmem:[#allocation12 + $0x268] sm:$0xff]
    %v5937 = vld [vmem:[#allocation12 + $0x270] sm:$0xff]
    %v5938 = vld [vmem:[#allocation12 + $0x278] sm:$0xff]
    %v5939 = vld [vmem:[#allocation12 + $0x280] sm:$0xff]
    %v5940 = vld [vmem:[#allocation12 + $0x288] sm:$0xff]
    %v5941 = vld [vmem:[#allocation12 + $0x290] sm:$0xff]
    %v5942 = vld [vmem:[#allocation12 + $0x298] sm:$0xff]
    %v5943 = vld [vmem:[#allocation12 + $0x2a0] sm:$0xff]
    %v5944 = vld [vmem:[#allocation12 + $0x2a8] sm:$0xff]
    %v5945 = vld [vmem:[#allocation12 + $0x2b0] sm:$0xff]
    %v5946 = vld [vmem:[#allocation12 + $0x2b8] sm:$0xff]
    %v5947 = vld [vmem:[#allocation12 + $0x2c0] sm:$0xff]
    %v5948 = vld [vmem:[#allocation12 + $0x2c8] sm:$0xff]
    %v5949 = vld [vmem:[#allocation12 + $0x2d0] sm:$0xff]
    %v5950 = vld [vmem:[#allocation12 + $0x2d8] sm:$0xff]
    %v5951 = vld [vmem:[#allocation12 + $0x2e0] sm:$0xff]
    %v5952 = vld [vmem:[#allocation12 + $0x2e8] sm:$0xff]
    %v5953 = vld [vmem:[#allocation12 + $0x2f0] sm:$0xff]
    %v5954 = vld [vmem:[#allocation12 + $0x2f8] sm:$0xff]
    %v5955 = vld [vmem:[#allocation12 + $0x300] sm:$0xff]
    %v5956 = vld [vmem:[#allocation12 + $0x308] sm:$0xff]
    %v5957 = vld [vmem:[#allocation12 + $0x310] sm:$0xff]
    %v5958 = vld [vmem:[#allocation12 + $0x318] sm:$0xff]
    %v5959 = vld [vmem:[#allocation12 + $0x320] sm:$0xff]
    %v5960 = vld [vmem:[#allocation12 + $0x328] sm:$0xff]
    %v5961 = vld [vmem:[#allocation12 + $0x330] sm:$0xff]
    %v5962 = vld [vmem:[#allocation12 + $0x338] sm:$0xff]
    %v5963 = vld [vmem:[#allocation12 + $0x340] sm:$0xff]
    %v5964 = vld [vmem:[#allocation12 + $0x348] sm:$0xff]
    %v5965 = vld [vmem:[#allocation12 + $0x350] sm:$0xff]
    %v5966 = vld [vmem:[#allocation12 + $0x358] sm:$0xff]
    %v5967 = vld [vmem:[#allocation12 + $0x360] sm:$0xff]
    %v5968 = vld [vmem:[#allocation12 + $0x368] sm:$0xff]
    %v5969 = vld [vmem:[#allocation12 + $0x370] sm:$0xff]
    %v5970 = vld [vmem:[#allocation12 + $0x378] sm:$0xff]
    %v5971 = vld [vmem:[#allocation12 + $0x380] sm:$0xff]
    %v5972 = vld [vmem:[#allocation12 + $0x388] sm:$0xff]
    %v5973 = vld [vmem:[#allocation12 + $0x390] sm:$0xff]
    %v5974 = vld [vmem:[#allocation12 + $0x398] sm:$0xff]
    %v5975 = vld [vmem:[#allocation12 + $0x3a0] sm:$0xff]
    %v5976 = vld [vmem:[#allocation12 + $0x3a8] sm:$0xff]
    %v5977 = vld [vmem:[#allocation12 + $0x3b0] sm:$0xff]
    %v5978 = vld [vmem:[#allocation12 + $0x3b8] sm:$0xff]
    %v5979 = vld [vmem:[#allocation12 + $0x3c0] sm:$0xff]
    %v5980 = vld [vmem:[#allocation12 + $0x3c8] sm:$0xff]
    %v5981 = vld [vmem:[#allocation12 + $0x3d0] sm:$0xff]
    %v5982 = vld [vmem:[#allocation12 + $0x3d8] sm:$0xff]
    %v5983 = vld [vmem:[#allocation12 + $0x3e0] sm:$0xff]
    %v5984 = vld [vmem:[#allocation12 + $0x3e8] sm:$0xff]
    %v5985 = vld [vmem:[#allocation12 + $0x3f0] sm:$0xff]
    %v5986 = vld [vmem:[#allocation12 + $0x3f8] sm:$0xff]
    %v5987 = vld [vmem:[#allocation12 + $0x400] sm:$0xff]
    %v5988 = vld [vmem:[#allocation12 + $0x408] sm:$0xff]
    %v5989 = vld [vmem:[#allocation12 + $0x410] sm:$0xff]
    %v5990 = vld [vmem:[#allocation12 + $0x418] sm:$0xff]
    %v5991 = vld [vmem:[#allocation12 + $0x420] sm:$0xff]
    %v5992 = vld [vmem:[#allocation12 + $0x428] sm:$0xff]
    %v5993 = vld [vmem:[#allocation12 + $0x430] sm:$0xff]
    %v5994 = vld [vmem:[#allocation12 + $0x438] sm:$0xff]
    %v5995 = vld [vmem:[#allocation12 + $0x440] sm:$0xff]
    %v5996 = vld [vmem:[#allocation12 + $0x448] sm:$0xff]
    %v5997 = vld [vmem:[#allocation12 + $0x450] sm:$0xff]
    %v5998 = vld [vmem:[#allocation12 + $0x458] sm:$0xff]
    %v5999 = vld [vmem:[#allocation12 + $0x460] sm:$0xff]
    %v6000 = vld [vmem:[#allocation12 + $0x468] sm:$0xff]
    %v6001 = vld [vmem:[#allocation12 + $0x470] sm:$0xff]
    %v6002 = vld [vmem:[#allocation12 + $0x478] sm:$0xff]
    %v6003 = vld [vmem:[#allocation12 + $0x480] sm:$0xff]
    %v6004 = vld [vmem:[#allocation12 + $0x488] sm:$0xff]
    %v6005 = vld [vmem:[#allocation12 + $0x490] sm:$0xff]
    %v6006 = vld [vmem:[#allocation12 + $0x498] sm:$0xff]
    %v6007 = vld [vmem:[#allocation12 + $0x4a0] sm:$0xff]
    %v6008 = vld [vmem:[#allocation12 + $0x4a8] sm:$0xff]
    %v6009 = vld [vmem:[#allocation12 + $0x4b0] sm:$0xff]
    %v6010 = vld [vmem:[#allocation12 + $0x4b8] sm:$0xff]
    %v6011 = vld [vmem:[#allocation12 + $0x4c0] sm:$0xff]
    %v6012 = vld [vmem:[#allocation12 + $0x4c8] sm:$0xff]
    %v6013 = vld [vmem:[#allocation12 + $0x4d0] sm:$0xff]
    %v6014 = vld [vmem:[#allocation12 + $0x4d8] sm:$0xff]
    %v6015 = vld [vmem:[#allocation12 + $0x4e0] sm:$0xff]
    %v6016 = vld [vmem:[#allocation12 + $0x4e8] sm:$0xff]
    %v6017 = vld [vmem:[#allocation12 + $0x4f0] sm:$0xff]
    %v6018 = vld [vmem:[#allocation12 + $0x4f8] sm:$0xff]
    %v6019 = vld [vmem:[#allocation12 + $0x500] sm:$0xff]
    %v6020 = vld [vmem:[#allocation12 + $0x508] sm:$0xff]
    %v6021 = vld [vmem:[#allocation12 + $0x510] sm:$0xff]
    %v6022 = vld [vmem:[#allocation12 + $0x518] sm:$0xff]
    %v6023 = vld [vmem:[#allocation12 + $0x520] sm:$0xff]
    %v6024 = vld [vmem:[#allocation12 + $0x528] sm:$0xff]
    %v6025 = vld [vmem:[#allocation12 + $0x530] sm:$0xff]
    %v6026 = vld [vmem:[#allocation12 + $0x538] sm:$0xff]
    %v6027 = vld [vmem:[#allocation12 + $0x540] sm:$0xff]
    %v6028 = vld [vmem:[#allocation12 + $0x548] sm:$0xff]
    %v6029 = vld [vmem:[#allocation12 + $0x550] sm:$0xff]
    %v6030 = vld [vmem:[#allocation12 + $0x558] sm:$0xff]
    %v6031 = vld [vmem:[#allocation12 + $0x560] sm:$0xff]
    %v6032 = vld [vmem:[#allocation12 + $0x568] sm:$0xff]
    %v6033 = vld [vmem:[#allocation12 + $0x570] sm:$0xff]
    %v6034 = vld [vmem:[#allocation12 + $0x578] sm:$0xff]
    %v6035 = vld [vmem:[#allocation12 + $0x580] sm:$0xff]
    %v6036 = vld [vmem:[#allocation12 + $0x588] sm:$0xff]
    %v6037 = vld [vmem:[#allocation12 + $0x590] sm:$0xff]
    %v6038 = vld [vmem:[#allocation12 + $0x598] sm:$0xff]
    %v6039 = vld [vmem:[#allocation12 + $0x5a0] sm:$0xff]
    %v6040 = vld [vmem:[#allocation12 + $0x5a8] sm:$0xff]
    %v6041 = vld [vmem:[#allocation12 + $0x5b0] sm:$0xff]
    %v6042 = vld [vmem:[#allocation12 + $0x5b8] sm:$0xff]
    %v6043 = vld [vmem:[#allocation12 + $0x5c0] sm:$0xff]
    %v6044 = vld [vmem:[#allocation12 + $0x5c8] sm:$0xff]
    %v6045 = vld [vmem:[#allocation12 + $0x5d0] sm:$0xff]
    %v6046 = vld [vmem:[#allocation12 + $0x5d8] sm:$0xff]
    %v6047 = vld [vmem:[#allocation12 + $0x5e0] sm:$0xff]
    %v6048 = vld [vmem:[#allocation12 + $0x5e8] sm:$0xff]
    %v6049 = vld [vmem:[#allocation12 + $0x5f0] sm:$0xff]
    %v6050 = vld [vmem:[#allocation12 + $0x5f8] sm:$0xff]
    %v6051 = vld [vmem:[#allocation12 + $0x600] sm:$0xff]
    %v6052 = vld [vmem:[#allocation12 + $0x608] sm:$0xff]
    %v6053 = vld [vmem:[#allocation12 + $0x610] sm:$0xff]
    %v6054 = vld [vmem:[#allocation12 + $0x618] sm:$0xff]
    %v6055 = vld [vmem:[#allocation12 + $0x620] sm:$0xff]
    %v6056 = vld [vmem:[#allocation12 + $0x628] sm:$0xff]
    %v6057 = vld [vmem:[#allocation12 + $0x630] sm:$0xff]
    %v6058 = vld [vmem:[#allocation12 + $0x638] sm:$0xff]
    %v6059 = vld [vmem:[#allocation12 + $0x640] sm:$0xff]
    %v6060 = vld [vmem:[#allocation12 + $0x648] sm:$0xff]
    %v6061 = vld [vmem:[#allocation12 + $0x650] sm:$0xff]
    %v6062 = vld [vmem:[#allocation12 + $0x658] sm:$0xff]
    %v6063 = vld [vmem:[#allocation12 + $0x660] sm:$0xff]
    %v6064 = vld [vmem:[#allocation12 + $0x668] sm:$0xff]
    %v6065 = vld [vmem:[#allocation12 + $0x670] sm:$0xff]
    %v6066 = vld [vmem:[#allocation12 + $0x678] sm:$0xff]
    %v6067 = vld [vmem:[#allocation12 + $0x680] sm:$0xff]
    %v6068 = vld [vmem:[#allocation12 + $0x688] sm:$0xff]
    %v6069 = vld [vmem:[#allocation12 + $0x690] sm:$0xff]
    %v6070 = vld [vmem:[#allocation12 + $0x698] sm:$0xff]
    %v6071 = vld [vmem:[#allocation12 + $0x6a0] sm:$0xff]
    %v6072 = vld [vmem:[#allocation12 + $0x6a8] sm:$0xff]
    %v6073 = vld [vmem:[#allocation12 + $0x6b0] sm:$0xff]
    %v6074 = vld [vmem:[#allocation12 + $0x6b8] sm:$0xff]
    %v6075 = vld [vmem:[#allocation12 + $0x6c0] sm:$0xff]
    %v6076 = vld [vmem:[#allocation12 + $0x6c8] sm:$0xff]
    %v6077 = vld [vmem:[#allocation12 + $0x6d0] sm:$0xff]
    %v6078 = vld [vmem:[#allocation12 + $0x6d8] sm:$0xff]
    %v6079 = vld [vmem:[#allocation12 + $0x6e0] sm:$0xff]
    %v6080 = vld [vmem:[#allocation12 + $0x6e8] sm:$0xff]
    %v6081 = vld [vmem:[#allocation12 + $0x6f0] sm:$0xff]
    %v6082 = vld [vmem:[#allocation12 + $0x6f8] sm:$0xff]
    %v6083 = vld [vmem:[#allocation12 + $0x700] sm:$0xff]
    %v6084 = vld [vmem:[#allocation12 + $0x708] sm:$0xff]
    %v6085 = vld [vmem:[#allocation12 + $0x710] sm:$0xff]
    %v6086 = vld [vmem:[#allocation12 + $0x718] sm:$0xff]
    %v6087 = vld [vmem:[#allocation12 + $0x720] sm:$0xff]
    %v6088 = vld [vmem:[#allocation12 + $0x728] sm:$0xff]
    %v6089 = vld [vmem:[#allocation12 + $0x730] sm:$0xff]
    %v6090 = vld [vmem:[#allocation12 + $0x738] sm:$0xff]
    %v6091 = vld [vmem:[#allocation12 + $0x740] sm:$0xff]
    %v6092 = vld [vmem:[#allocation12 + $0x748] sm:$0xff]
    %v6093 = vld [vmem:[#allocation12 + $0x750] sm:$0xff]
    %v6094 = vld [vmem:[#allocation12 + $0x758] sm:$0xff]
    %v6095 = vld [vmem:[#allocation12 + $0x760] sm:$0xff]
    %v6096 = vld [vmem:[#allocation12 + $0x768] sm:$0xff]
    %v6097 = vld [vmem:[#allocation12 + $0x770] sm:$0xff]
    %v6098 = vld [vmem:[#allocation12 + $0x778] sm:$0xff]
    %v6099 = vld [vmem:[#allocation12 + $0x780] sm:$0xff]
    %v6100 = vld [vmem:[#allocation12 + $0x788] sm:$0xff]
    %v6101 = vld [vmem:[#allocation12 + $0x790] sm:$0xff]
    %v6102 = vld [vmem:[#allocation12 + $0x798] sm:$0xff]
    %v6103 = vld [vmem:[#allocation12 + $0x7a0] sm:$0xff]
    %v6104 = vld [vmem:[#allocation12 + $0x7a8] sm:$0xff]
    %v6105 = vld [vmem:[#allocation12 + $0x7b0] sm:$0xff]
    %v6106 = vld [vmem:[#allocation12 + $0x7b8] sm:$0xff]
    %v6107 = vld [vmem:[#allocation12 + $0x7c0] sm:$0xff]
    %v6108 = vld [vmem:[#allocation12 + $0x7c8] sm:$0xff]
    %v6109 = vld [vmem:[#allocation12 + $0x7d0] sm:$0xff]
    %v6110 = vld [vmem:[#allocation12 + $0x7d8] sm:$0xff]
    %v6111 = vld [vmem:[#allocation12 + $0x7e0] sm:$0xff]
    %v6112 = vld [vmem:[#allocation12 + $0x7e8] sm:$0xff]
    %v6113 = vld [vmem:[#allocation12 + $0x7f0] sm:$0xff]
    %v6114 = vld [vmem:[#allocation12 + $0x7f8] sm:$0xff]
    %v6115 = vld [vmem:[#allocation12 + $0x800] sm:$0xff]
    %v6116 = vld [vmem:[#allocation12 + $0x808] sm:$0xff]
    %v6117 = vld [vmem:[#allocation12 + $0x810] sm:$0xff]
    %v6118 = vld [vmem:[#allocation12 + $0x818] sm:$0xff]
    %v6119 = vld [vmem:[#allocation12 + $0x820] sm:$0xff]
    %v6120 = vld [vmem:[#allocation12 + $0x828] sm:$0xff]
    %v6121 = vld [vmem:[#allocation12 + $0x830] sm:$0xff]
    %v6122 = vld [vmem:[#allocation12 + $0x838] sm:$0xff]
    %v6123 = vld [vmem:[#allocation12 + $0x840] sm:$0xff]
    %v6124 = vld [vmem:[#allocation12 + $0x848] sm:$0xff]
    %v6125 = vld [vmem:[#allocation12 + $0x850] sm:$0xff]
    %v6126 = vld [vmem:[#allocation12 + $0x858] sm:$0xff]
    %v6127 = vld [vmem:[#allocation12 + $0x860] sm:$0xff]
    %v6128 = vld [vmem:[#allocation12 + $0x868] sm:$0xff]
    %v6129 = vld [vmem:[#allocation12 + $0x870] sm:$0xff]
    %v6130 = vld [vmem:[#allocation12 + $0x878] sm:$0xff]
    %v6131 = vld [vmem:[#allocation12 + $0x880] sm:$0xff]
    %v6132 = vld [vmem:[#allocation12 + $0x888] sm:$0xff]
    %v6133 = vld [vmem:[#allocation12 + $0x890] sm:$0xff]
    %v6134 = vld [vmem:[#allocation12 + $0x898] sm:$0xff]
    %v6135 = vld [vmem:[#allocation12 + $0x8a0] sm:$0xff]
    %v6136 = vld [vmem:[#allocation12 + $0x8a8] sm:$0xff]
    %v6137 = vld [vmem:[#allocation12 + $0x8b0] sm:$0xff]
    %v6138 = vld [vmem:[#allocation12 + $0x8b8] sm:$0xff]
    %v6139 = vld [vmem:[#allocation12 + $0x8c0] sm:$0xff]
    %v6140 = vld [vmem:[#allocation12 + $0x8c8] sm:$0xff]
    %v6141 = vld [vmem:[#allocation12 + $0x8d0] sm:$0xff]
    %v6142 = vld [vmem:[#allocation12 + $0x8d8] sm:$0xff]
    %v6143 = vld [vmem:[#allocation12 + $0x8e0] sm:$0xff]
    %v6144 = vld [vmem:[#allocation12 + $0x8e8] sm:$0xff]
    %v6145 = vld [vmem:[#allocation12 + $0x8f0] sm:$0xff]
    %v6146 = vld [vmem:[#allocation12 + $0x8f8] sm:$0xff]
    %v6147 = vld [vmem:[#allocation12 + $0x900] sm:$0xff]
    %v6148 = vld [vmem:[#allocation12 + $0x908] sm:$0xff]
    %v6149 = vld [vmem:[#allocation12 + $0x910] sm:$0xff]
    %v6150 = vld [vmem:[#allocation12 + $0x918] sm:$0xff]
    %v6151 = vld [vmem:[#allocation12 + $0x920] sm:$0xff]
    %v6152 = vld [vmem:[#allocation12 + $0x928] sm:$0xff]
    %v6153 = vld [vmem:[#allocation12 + $0x930] sm:$0xff]
    %v6154 = vld [vmem:[#allocation12 + $0x938] sm:$0xff]
    %v6155 = vld [vmem:[#allocation12 + $0x940] sm:$0xff]
    %v6156 = vld [vmem:[#allocation12 + $0x948] sm:$0xff]
    %v6157 = vld [vmem:[#allocation12 + $0x950] sm:$0xff]
    %v6158 = vld [vmem:[#allocation12 + $0x958] sm:$0xff]
    %v6159 = vld [vmem:[#allocation12 + $0x960] sm:$0xff]
    %v6160 = vld [vmem:[#allocation12 + $0x968] sm:$0xff]
    %v6161 = vld [vmem:[#allocation12 + $0x970] sm:$0xff]
    %v6162 = vld [vmem:[#allocation12 + $0x978] sm:$0xff]
    %v6163 = vld [vmem:[#allocation12 + $0x980] sm:$0xff]
    %v6164 = vld [vmem:[#allocation12 + $0x988] sm:$0xff]
    %v6165 = vld [vmem:[#allocation12 + $0x990] sm:$0xff]
    %v6166 = vld [vmem:[#allocation12 + $0x998] sm:$0xff]
    %v6167 = vld [vmem:[#allocation12 + $0x9a0] sm:$0xff]
    %v6168 = vld [vmem:[#allocation12 + $0x9a8] sm:$0xff]
    %v6169 = vld [vmem:[#allocation12 + $0x9b0] sm:$0xff]
    %v6170 = vld [vmem:[#allocation12 + $0x9b8] sm:$0xff]
    %v6171 = vld [vmem:[#allocation12 + $0x9c0] sm:$0xff]
    %v6172 = vld [vmem:[#allocation12 + $0x9c8] sm:$0xff]
    %v6173 = vld [vmem:[#allocation12 + $0x9d0] sm:$0xff]
    %v6174 = vld [vmem:[#allocation12 + $0x9d8] sm:$0xff]
    %v6175 = vld [vmem:[#allocation12 + $0x9e0] sm:$0xff]
    %v6176 = vld [vmem:[#allocation12 + $0x9e8] sm:$0xff]
    %v6177 = vld [vmem:[#allocation12 + $0x9f0] sm:$0xff]
    %v6178 = vld [vmem:[#allocation12 + $0x9f8] sm:$0xff]
    %v6179 = vld [vmem:[#allocation12 + $0xa00] sm:$0xff]
    %v6180 = vld [vmem:[#allocation12 + $0xa08] sm:$0xff]
    %v6181 = vld [vmem:[#allocation12 + $0xa10] sm:$0xff]
    %v6182 = vld [vmem:[#allocation12 + $0xa18] sm:$0xff]
    %v6183 = vld [vmem:[#allocation12 + $0xa20] sm:$0xff]
    %v6184 = vld [vmem:[#allocation12 + $0xa28] sm:$0xff]
    %v6185 = vld [vmem:[#allocation12 + $0xa30] sm:$0xff]
    %v6186 = vld [vmem:[#allocation12 + $0xa38] sm:$0xff]
    %v6187 = vld [vmem:[#allocation12 + $0xa40] sm:$0xff]
    %v6188 = vld [vmem:[#allocation12 + $0xa48] sm:$0xff]
    %v6189 = vld [vmem:[#allocation12 + $0xa50] sm:$0xff]
    %v6190 = vld [vmem:[#allocation12 + $0xa58] sm:$0xff]
    %v6191 = vld [vmem:[#allocation12 + $0xa60] sm:$0xff]
    %v6192 = vld [vmem:[#allocation12 + $0xa68] sm:$0xff]
    %v6193 = vld [vmem:[#allocation12 + $0xa70] sm:$0xff]
    %v6194 = vld [vmem:[#allocation12 + $0xa78] sm:$0xff]
    %v6195 = vld [vmem:[#allocation12 + $0xa80] sm:$0xff]
    %v6196 = vld [vmem:[#allocation12 + $0xa88] sm:$0xff]
    %v6197 = vld [vmem:[#allocation12 + $0xa90] sm:$0xff]
    %v6198 = vld [vmem:[#allocation12 + $0xa98] sm:$0xff]
    %v6199 = vld [vmem:[#allocation12 + $0xaa0] sm:$0xff]
    %v6200 = vld [vmem:[#allocation12 + $0xaa8] sm:$0xff]
    %v6201 = vld [vmem:[#allocation12 + $0xab0] sm:$0xff]
    %v6202 = vld [vmem:[#allocation12 + $0xab8] sm:$0xff]
    %v6203 = vld [vmem:[#allocation12 + $0xac0] sm:$0xff]
    %v6204 = vld [vmem:[#allocation12 + $0xac8] sm:$0xff]
    %v6205 = vld [vmem:[#allocation12 + $0xad0] sm:$0xff]
    %v6206 = vld [vmem:[#allocation12 + $0xad8] sm:$0xff]
    %v6207 = vld [vmem:[#allocation12 + $0xae0] sm:$0xff]
    %v6208 = vld [vmem:[#allocation12 + $0xae8] sm:$0xff]
    %v6209 = vld [vmem:[#allocation12 + $0xaf0] sm:$0xff]
    %v6210 = vld [vmem:[#allocation12 + $0xaf8] sm:$0xff]
    %v6211 = vld [vmem:[#allocation12 + $0xb00] sm:$0xff]
    %v6212 = vld [vmem:[#allocation12 + $0xb08] sm:$0xff]
    %v6213 = vld [vmem:[#allocation12 + $0xb10] sm:$0xff]
    %v6214 = vld [vmem:[#allocation12 + $0xb18] sm:$0xff]
    %v6215 = vld [vmem:[#allocation12 + $0xb20] sm:$0xff]
    %v6216 = vld [vmem:[#allocation12 + $0xb28] sm:$0xff]
    %v6217 = vld [vmem:[#allocation12 + $0xb30] sm:$0xff]
    %v6218 = vld [vmem:[#allocation12 + $0xb38] sm:$0xff]
    %v6219 = vld [vmem:[#allocation12 + $0xb40] sm:$0xff]
    %v6220 = vld [vmem:[#allocation12 + $0xb48] sm:$0xff]
    %v6221 = vld [vmem:[#allocation12 + $0xb50] sm:$0xff]
    %v6222 = vld [vmem:[#allocation12 + $0xb58] sm:$0xff]
    %v6223 = vld [vmem:[#allocation12 + $0xb60] sm:$0xff]
    %v6224 = vld [vmem:[#allocation12 + $0xb68] sm:$0xff]
    %v6225 = vld [vmem:[#allocation12 + $0xb70] sm:$0xff]
    %v6226 = vld [vmem:[#allocation12 + $0xb78] sm:$0xff]
    %v6227 = vld [vmem:[#allocation12 + $0xb80] sm:$0xff]
    %v6228 = vld [vmem:[#allocation12 + $0xb88] sm:$0xff]
    %v6229 = vld [vmem:[#allocation12 + $0xb90] sm:$0xff]
    %v6230 = vld [vmem:[#allocation12 + $0xb98] sm:$0xff]
    %v6231 = vld [vmem:[#allocation12 + $0xba0] sm:$0xff]
    %v6232 = vld [vmem:[#allocation12 + $0xba8] sm:$0xff]
    %v6233 = vld [vmem:[#allocation12 + $0xbb0] sm:$0xff]
    %v6234 = vld [vmem:[#allocation12 + $0xbb8] sm:$0xff]
    %v6235 = vld [vmem:[#allocation12 + $0xbc0] sm:$0xff]
    %v6236 = vld [vmem:[#allocation12 + $0xbc8] sm:$0xff]
    %v6237 = vld [vmem:[#allocation12 + $0xbd0] sm:$0xff]
    %v6238 = vld [vmem:[#allocation12 + $0xbd8] sm:$0xff]
    %v6239 = vld [vmem:[#allocation12 + $0xbe0] sm:$0xff]
    %v6240 = vld [vmem:[#allocation12 + $0xbe8] sm:$0xff]
    %v6241 = vld [vmem:[#allocation12 + $0xbf0] sm:$0xff]
    %v6242 = vld [vmem:[#allocation12 + $0xbf8] sm:$0xff]
    %v6243 = vld [vmem:[#allocation13] sm:$0x3]
    %v6245 = vlaneseq
    %v6246 = vshrl.u32 %v6245, 7
    %v6247 = vsub.s32 0, %v6246
    %v6248 = vrot.slane %v6243, %v6247
    %v6249 = vlaneseq
    %v6250 = vshrl.u32 %v6249, 7
    %v6251 = vsub.s32 1, %v6250
    %v6252 = vrot.slane %v6243, %v6251
    %6255 = vmatprep.subr.mxu0 %v5860
    %6256 = vmatpush1.msra.mxu0 %v5859
    %6257 = vmatprep.subr.mxu0 %v5862
    %6258 = vmatpush1.msra.mxu0 %v5861
    %6259 = vmatprep.subr.mxu0 %v5864
    %6260 = vmatpush1.msra.mxu0 %v5863
    %6261 = vmatprep.subr.mxu0 %v5866
    %6262 = vmatpush1.msra.mxu0 %v5865
    %6263 = vmatprep.subr.mxu0 %v5868
    %6264 = vmatpush1.msra.mxu0 %v5867
    %6265 = vmatprep.subr.mxu0 %v5870
    %6266 = vmatpush1.msra.mxu0 %v5869
    %6267 = vmatprep.subr.mxu0 %v5872
    %6268 = vmatpush1.msra.mxu0 %v5871
    %6269 = vmatprep.subr.mxu0 %v5874
    %6270 = vmatpush1.msra.mxu0 %v5873
    %6271 = vmatprep.subr.mxu0 %v5876
    %6272 = vmatpush1.msra.mxu0 %v5875
    %6273 = vmatprep.subr.mxu0 %v5878
    %6274 = vmatpush1.msra.mxu0 %v5877
    %6275 = vmatprep.subr.mxu0 %v5880
    %6276 = vmatpush1.msra.mxu0 %v5879
    %6277 = vmatprep.subr.mxu0 %v5882
    %6278 = vmatpush1.msra.mxu0 %v5881
    %6279 = vmatprep.subr.mxu0 %v5884
    %6280 = vmatpush1.msra.mxu0 %v5883
    %6281 = vmatprep.subr.mxu0 %v5886
    %6282 = vmatpush1.msra.mxu0 %v5885
    %6283 = vmatprep.subr.mxu0 %v5888
    %6284 = vmatpush1.msra.mxu0 %v5887
    %6285 = vmatprep.subr.mxu0 %v5890
    %6286 = vmatpush1.msra.mxu0 %v5889
    %6287 = vmatprep.subr.mxu0 %v5892
    %6288 = vmatpush1.msra.mxu0 %v5891
    %6289 = vmatprep.subr.mxu0 %v5894
    %6290 = vmatpush1.msra.mxu0 %v5893
    %6291 = vmatprep.subr.mxu0 %v5896
    %6292 = vmatpush1.msra.mxu0 %v5895
    %6293 = vmatprep.subr.mxu0 %v5898
    %6294 = vmatpush1.msra.mxu0 %v5897
    %6295 = vmatprep.subr.mxu0 %v5900
    %6296 = vmatpush1.msra.mxu0 %v5899
    %6297 = vmatprep.subr.mxu0 %v5902
    %6298 = vmatpush1.msra.mxu0 %v5901
    %6299 = vmatprep.subr.mxu0 %v5904
    %6300 = vmatpush1.msra.mxu0 %v5903
    %6301 = vmatprep.subr.mxu0 %v5906
    %6302 = vmatpush1.msra.mxu0 %v5905
    %6303 = vmatprep.subr.mxu0 %v5908
    %6304 = vmatpush1.msra.mxu0 %v5907
    %6305 = vmatprep.subr.mxu0 %v5910
    %6306 = vmatpush1.msra.mxu0 %v5909
    %6307 = vmatprep.subr.mxu0 %v5912
    %6308 = vmatpush1.msra.mxu0 %v5911
    %6309 = vmatprep.subr.mxu0 %v5914
    %6310 = vmatpush1.msra.mxu0 %v5913
    %6311 = vmatprep.subr.mxu0 %v5916
    %6312 = vmatpush1.msra.mxu0 %v5915
    %6313 = vmatprep.subr.mxu0 %v5918
    %6314 = vmatpush1.msra.mxu0 %v5917
    %6315 = vmatprep.subr.mxu0 %v5920
    %6316 = vmatpush1.msra.mxu0 %v5919
    %6317 = vmatprep.subr.mxu0 %v5922
    %6318 = vmatpush1.msra.mxu0 %v5921
    %6319 = vmatprep.mubr.f32.mxu0 %v5848
    %6320 = vmatmul.mubr.f32.gmra.mrb[0].mxu0 %v5847
    %v6321 = vpop.f32.mrb[0].mxu0
    %v6322 = vadd.f32 %v6248, %v6321
    %v6323 = vpop.f32.mrb[0].mxu0
    %v6324 = vadd.f32 %v6252, %v6323
    %6325 = vdwg.mxu0
    %6326 = vmatprep.subr.mxu0 %v5924
    %6327 = vmatpush1.msra.mxu0 %v5923
    %6328 = vmatprep.subr.mxu0 %v5926
    %6329 = vmatpush1.msra.mxu0 %v5925
    %6330 = vmatprep.subr.mxu0 %v5928
    %6331 = vmatpush1.msra.mxu0 %v5927
    %6332 = vmatprep.subr.mxu0 %v5930
    %6333 = vmatpush1.msra.mxu0 %v5929
    %6334 = vmatprep.subr.mxu0 %v5932
    %6335 = vmatpush1.msra.mxu0 %v5931
    %6336 = vmatprep.subr.mxu0 %v5934
    %6337 = vmatpush1.msra.mxu0 %v5933
    %6338 = vmatprep.subr.mxu0 %v5936
    %6339 = vmatpush1.msra.mxu0 %v5935
    %6340 = vmatprep.subr.mxu0 %v5938
    %6341 = vmatpush1.msra.mxu0 %v5937
    %6342 = vmatprep.subr.mxu0 %v5940
    %6343 = vmatpush1.msra.mxu0 %v5939
    %6344 = vmatprep.subr.mxu0 %v5942
    %6345 = vmatpush1.msra.mxu0 %v5941
    %6346 = vmatprep.subr.mxu0 %v5944
    %6347 = vmatpush1.msra.mxu0 %v5943
    %6348 = vmatprep.subr.mxu0 %v5946
    %6349 = vmatpush1.msra.mxu0 %v5945
    %6350 = vmatprep.subr.mxu0 %v5948
    %6351 = vmatpush1.msra.mxu0 %v5947
    %6352 = vmatprep.subr.mxu0 %v5950
    %6353 = vmatpush1.msra.mxu0 %v5949
    %6354 = vmatprep.subr.mxu0 %v5952
    %6355 = vmatpush1.msra.mxu0 %v5951
    %6356 = vmatprep.subr.mxu0 %v5954
    %6357 = vmatpush1.msra.mxu0 %v5953
    %6358 = vmatprep.subr.mxu0 %v5956
    %6359 = vmatpush1.msra.mxu0 %v5955
    %6360 = vmatprep.subr.mxu0 %v5958
    %6361 = vmatpush1.msra.mxu0 %v5957
    %6362 = vmatprep.subr.mxu0 %v5960
    %6363 = vmatpush1.msra.mxu0 %v5959
    %6364 = vmatprep.subr.mxu0 %v5962
    %6365 = vmatpush1.msra.mxu0 %v5961
    %6366 = vmatprep.subr.mxu0 %v5964
    %6367 = vmatpush1.msra.mxu0 %v5963
    %6368 = vmatprep.subr.mxu0 %v5966
    %6369 = vmatpush1.msra.mxu0 %v5965
    %6370 = vmatprep.subr.mxu0 %v5968
    %6371 = vmatpush1.msra.mxu0 %v5967
    %6372 = vmatprep.subr.mxu0 %v5970
    %6373 = vmatpush1.msra.mxu0 %v5969
    %6374 = vmatprep.subr.mxu0 %v5972
    %6375 = vmatpush1.msra.mxu0 %v5971
    %6376 = vmatprep.subr.mxu0 %v5974
    %6377 = vmatpush1.msra.mxu0 %v5973
    %6378 = vmatprep.subr.mxu0 %v5976
    %6379 = vmatpush1.msra.mxu0 %v5975
    %6380 = vmatprep.subr.mxu0 %v5978
    %6381 = vmatpush1.msra.mxu0 %v5977
    %6382 = vmatprep.subr.mxu0 %v5980
    %6383 = vmatpush1.msra.mxu0 %v5979
    %6384 = vmatprep.subr.mxu0 %v5982
    %6385 = vmatpush1.msra.mxu0 %v5981
    %6386 = vmatprep.subr.mxu0 %v5984
    %6387 = vmatpush1.msra.mxu0 %v5983
    %6388 = vmatprep.subr.mxu0 %v5986
    %6389 = vmatpush1.msra.mxu0 %v5985
    %6390 = vmatprep.mubr.f32.mxu0 %v5850
    %6391 = vmatmul.mubr.f32.gmra.mrb[0].mxu0 %v5849
    %v6392 = vpop.f32.mrb[0].mxu0
    %v6393 = vadd.f32 %v6322, %v6392
    %v6394 = vpop.f32.mrb[0].mxu0
    %v6395 = vadd.f32 %v6324, %v6394
    %6396 = vdwg.mxu0
    %6397 = vmatprep.subr.mxu0 %v5988
    %6398 = vmatpush1.msra.mxu0 %v5987
    %6399 = vmatprep.subr.mxu0 %v5990
    %6400 = vmatpush1.msra.mxu0 %v5989
    %6401 = vmatprep.subr.mxu0 %v5992
    %6402 = vmatpush1.msra.mxu0 %v5991
    %6403 = vmatprep.subr.mxu0 %v5994
    %6404 = vmatpush1.msra.mxu0 %v5993
    %6405 = vmatprep.subr.mxu0 %v5996
    %6406 = vmatpush1.msra.mxu0 %v5995
    %6407 = vmatprep.subr.mxu0 %v5998
    %6408 = vmatpush1.msra.mxu0 %v5997
    %6409 = vmatprep.subr.mxu0 %v6000
    %6410 = vmatpush1.msra.mxu0 %v5999
    %6411 = vmatprep.subr.mxu0 %v6002
    %6412 = vmatpush1.msra.mxu0 %v6001
    %6413 = vmatprep.subr.mxu0 %v6004
    %6414 = vmatpush1.msra.mxu0 %v6003
    %6415 = vmatprep.subr.mxu0 %v6006
    %6416 = vmatpush1.msra.mxu0 %v6005
    %6417 = vmatprep.subr.mxu0 %v6008
    %6418 = vmatpush1.msra.mxu0 %v6007
    %6419 = vmatprep.subr.mxu0 %v6010
    %6420 = vmatpush1.msra.mxu0 %v6009
    %6421 = vmatprep.subr.mxu0 %v6012
    %6422 = vmatpush1.msra.mxu0 %v6011
    %6423 = vmatprep.subr.mxu0 %v6014
    %6424 = vmatpush1.msra.mxu0 %v6013
    %6425 = vmatprep.subr.mxu0 %v6016
    %6426 = vmatpush1.msra.mxu0 %v6015
    %6427 = vmatprep.subr.mxu0 %v6018
    %6428 = vmatpush1.msra.mxu0 %v6017
    %6429 = vmatprep.subr.mxu0 %v6020
    %6430 = vmatpush1.msra.mxu0 %v6019
    %6431 = vmatprep.subr.mxu0 %v6022
    %6432 = vmatpush1.msra.mxu0 %v6021
    %6433 = vmatprep.subr.mxu0 %v6024
    %6434 = vmatpush1.msra.mxu0 %v6023
    %6435 = vmatprep.subr.mxu0 %v6026
    %6436 = vmatpush1.msra.mxu0 %v6025
    %6437 = vmatprep.subr.mxu0 %v6028
    %6438 = vmatpush1.msra.mxu0 %v6027
    %6439 = vmatprep.subr.mxu0 %v6030
    %6440 = vmatpush1.msra.mxu0 %v6029
    %6441 = vmatprep.subr.mxu0 %v6032
    %6442 = vmatpush1.msra.mxu0 %v6031
    %6443 = vmatprep.subr.mxu0 %v6034
    %6444 = vmatpush1.msra.mxu0 %v6033
    %6445 = vmatprep.subr.mxu0 %v6036
    %6446 = vmatpush1.msra.mxu0 %v6035
    %6447 = vmatprep.subr.mxu0 %v6038
    %6448 = vmatpush1.msra.mxu0 %v6037
    %6449 = vmatprep.subr.mxu0 %v6040
    %6450 = vmatpush1.msra.mxu0 %v6039
    %6451 = vmatprep.subr.mxu0 %v6042
    %6452 = vmatpush1.msra.mxu0 %v6041
    %6453 = vmatprep.subr.mxu0 %v6044
    %6454 = vmatpush1.msra.mxu0 %v6043
    %6455 = vmatprep.subr.mxu0 %v6046
    %6456 = vmatpush1.msra.mxu0 %v6045
    %6457 = vmatprep.subr.mxu0 %v6048
    %6458 = vmatpush1.msra.mxu0 %v6047
    %6459 = vmatprep.subr.mxu0 %v6050
    %6460 = vmatpush1.msra.mxu0 %v6049
    %6461 = vmatprep.mubr.f32.mxu0 %v5852
    %6462 = vmatmul.mubr.f32.gmra.mrb[0].mxu0 %v5851
    %v6463 = vpop.f32.mrb[0].mxu0
    %v6464 = vadd.f32 %v6393, %v6463
    %v6465 = vpop.f32.mrb[0].mxu0
    %v6466 = vadd.f32 %v6395, %v6465
    %6467 = vdwg.mxu0
    %6468 = vmatprep.subr.mxu0 %v6052
    %6469 = vmatpush1.msra.mxu0 %v6051
    %6470 = vmatprep.subr.mxu0 %v6054
    %6471 = vmatpush1.msra.mxu0 %v6053
    %6472 = vmatprep.subr.mxu0 %v6056
    %6473 = vmatpush1.msra.mxu0 %v6055
    %6474 = vmatprep.subr.mxu0 %v6058
    %6475 = vmatpush1.msra.mxu0 %v6057
    %6476 = vmatprep.subr.mxu0 %v6060
    %6477 = vmatpush1.msra.mxu0 %v6059
    %6478 = vmatprep.subr.mxu0 %v6062
    %6479 = vmatpush1.msra.mxu0 %v6061
    %6480 = vmatprep.subr.mxu0 %v6064
    %6481 = vmatpush1.msra.mxu0 %v6063
    %6482 = vmatprep.subr.mxu0 %v6066
    %6483 = vmatpush1.msra.mxu0 %v6065
    %6484 = vmatprep.subr.mxu0 %v6068
    %6485 = vmatpush1.msra.mxu0 %v6067
    %6486 = vmatprep.subr.mxu0 %v6070
    %6487 = vmatpush1.msra.mxu0 %v6069
    %6488 = vmatprep.subr.mxu0 %v6072
    %6489 = vmatpush1.msra.mxu0 %v6071
    %6490 = vmatprep.subr.mxu0 %v6074
    %6491 = vmatpush1.msra.mxu0 %v6073
    %6492 = vmatprep.subr.mxu0 %v6076
    %6493 = vmatpush1.msra.mxu0 %v6075
    %6494 = vmatprep.subr.mxu0 %v6078
    %6495 = vmatpush1.msra.mxu0 %v6077
    %6496 = vmatprep.subr.mxu0 %v6080
    %6497 = vmatpush1.msra.mxu0 %v6079
    %6498 = vmatprep.subr.mxu0 %v6082
    %6499 = vmatpush1.msra.mxu0 %v6081
    %6500 = vmatprep.subr.mxu0 %v6084
    %6501 = vmatpush1.msra.mxu0 %v6083
    %6502 = vmatprep.subr.mxu0 %v6086
    %6503 = vmatpush1.msra.mxu0 %v6085
    %6504 = vmatprep.subr.mxu0 %v6088
    %6505 = vmatpush1.msra.mxu0 %v6087
    %6506 = vmatprep.subr.mxu0 %v6090
    %6507 = vmatpush1.msra.mxu0 %v6089
    %6508 = vmatprep.subr.mxu0 %v6092
    %6509 = vmatpush1.msra.mxu0 %v6091
    %6510 = vmatprep.subr.mxu0 %v6094
    %6511 = vmatpush1.msra.mxu0 %v6093
    %6512 = vmatprep.subr.mxu0 %v6096
    %6513 = vmatpush1.msra.mxu0 %v6095
    %6514 = vmatprep.subr.mxu0 %v6098
    %6515 = vmatpush1.msra.mxu0 %v6097
    %6516 = vmatprep.subr.mxu0 %v6100
    %6517 = vmatpush1.msra.mxu0 %v6099
    %6518 = vmatprep.subr.mxu0 %v6102
    %6519 = vmatpush1.msra.mxu0 %v6101
    %6520 = vmatprep.subr.mxu0 %v6104
    %6521 = vmatpush1.msra.mxu0 %v6103
    %6522 = vmatprep.subr.mxu0 %v6106
    %6523 = vmatpush1.msra.mxu0 %v6105
    %6524 = vmatprep.subr.mxu0 %v6108
    %6525 = vmatpush1.msra.mxu0 %v6107
    %6526 = vmatprep.subr.mxu0 %v6110
    %6527 = vmatpush1.msra.mxu0 %v6109
    %6528 = vmatprep.subr.mxu0 %v6112
    %6529 = vmatpush1.msra.mxu0 %v6111
    %6530 = vmatprep.subr.mxu0 %v6114
    %6531 = vmatpush1.msra.mxu0 %v6113
    %6532 = vmatprep.mubr.f32.mxu0 %v5854
    %6533 = vmatmul.mubr.f32.gmra.mrb[0].mxu0 %v5853
    %v6534 = vpop.f32.mrb[0].mxu0
    %v6535 = vadd.f32 %v6464, %v6534
    %v6536 = vpop.f32.mrb[0].mxu0
    %v6537 = vadd.f32 %v6466, %v6536
    %6538 = vdwg.mxu0
    %6539 = vmatprep.subr.mxu0 %v6116
    %6540 = vmatpush1.msra.mxu0 %v6115
    %6541 = vmatprep.subr.mxu0 %v6118
    %6542 = vmatpush1.msra.mxu0 %v6117
    %6543 = vmatprep.subr.mxu0 %v6120
    %6544 = vmatpush1.msra.mxu0 %v6119
    %6545 = vmatprep.subr.mxu0 %v6122
    %6546 = vmatpush1.msra.mxu0 %v6121
    %6547 = vmatprep.subr.mxu0 %v6124
    %6548 = vmatpush1.msra.mxu0 %v6123
    %6549 = vmatprep.subr.mxu0 %v6126
    %6550 = vmatpush1.msra.mxu0 %v6125
    %6551 = vmatprep.subr.mxu0 %v6128
    %6552 = vmatpush1.msra.mxu0 %v6127
    %6553 = vmatprep.subr.mxu0 %v6130
    %6554 = vmatpush1.msra.mxu0 %v6129
    %6555 = vmatprep.subr.mxu0 %v6132
    %6556 = vmatpush1.msra.mxu0 %v6131
    %6557 = vmatprep.subr.mxu0 %v6134
    %6558 = vmatpush1.msra.mxu0 %v6133
    %6559 = vmatprep.subr.mxu0 %v6136
    %6560 = vmatpush1.msra.mxu0 %v6135
    %6561 = vmatprep.subr.mxu0 %v6138
    %6562 = vmatpush1.msra.mxu0 %v6137
    %6563 = vmatprep.subr.mxu0 %v6140
    %6564 = vmatpush1.msra.mxu0 %v6139
    %6565 = vmatprep.subr.mxu0 %v6142
    %6566 = vmatpush1.msra.mxu0 %v6141
    %6567 = vmatprep.subr.mxu0 %v6144
    %6568 = vmatpush1.msra.mxu0 %v6143
    %6569 = vmatprep.subr.mxu0 %v6146
    %6570 = vmatpush1.msra.mxu0 %v6145
    %6571 = vmatprep.subr.mxu0 %v6148
    %6572 = vmatpush1.msra.mxu0 %v6147
    %6573 = vmatprep.subr.mxu0 %v6150
    %6574 = vmatpush1.msra.mxu0 %v6149
    %6575 = vmatprep.subr.mxu0 %v6152
    %6576 = vmatpush1.msra.mxu0 %v6151
    %6577 = vmatprep.subr.mxu0 %v6154
    %6578 = vmatpush1.msra.mxu0 %v6153
    %6579 = vmatprep.subr.mxu0 %v6156
    %6580 = vmatpush1.msra.mxu0 %v6155
    %6581 = vmatprep.subr.mxu0 %v6158
    %6582 = vmatpush1.msra.mxu0 %v6157
    %6583 = vmatprep.subr.mxu0 %v6160
    %6584 = vmatpush1.msra.mxu0 %v6159
    %6585 = vmatprep.subr.mxu0 %v6162
    %6586 = vmatpush1.msra.mxu0 %v6161
    %6587 = vmatprep.subr.mxu0 %v6164
    %6588 = vmatpush1.msra.mxu0 %v6163
    %6589 = vmatprep.subr.mxu0 %v6166
    %6590 = vmatpush1.msra.mxu0 %v6165
    %6591 = vmatprep.subr.mxu0 %v6168
    %6592 = vmatpush1.msra.mxu0 %v6167
    %6593 = vmatprep.subr.mxu0 %v6170
    %6594 = vmatpush1.msra.mxu0 %v6169
    %6595 = vmatprep.subr.mxu0 %v6172
    %6596 = vmatpush1.msra.mxu0 %v6171
    %6597 = vmatprep.subr.mxu0 %v6174
    %6598 = vmatpush1.msra.mxu0 %v6173
    %6599 = vmatprep.subr.mxu0 %v6176
    %6600 = vmatpush1.msra.mxu0 %v6175
    %6601 = vmatprep.subr.mxu0 %v6178
    %6602 = vmatpush1.msra.mxu0 %v6177
    %6603 = vmatprep.mubr.f32.mxu0 %v5856
    %6604 = vmatmul.mubr.f32.gmra.mrb[0].mxu0 %v5855
    %v6605 = vpop.f32.mrb[0].mxu0
    %v6606 = vadd.f32 %v6535, %v6605
    %v6607 = vpop.f32.mrb[0].mxu0
    %v6608 = vadd.f32 %v6537, %v6607
    %6609 = vdwg.mxu0
    %6610 = vmatprep.subr.mxu0 %v6180
    %6611 = vmatpush1.msra.mxu0 %v6179
    %6612 = vmatprep.subr.mxu0 %v6182
    %6613 = vmatpush1.msra.mxu0 %v6181
    %6614 = vmatprep.subr.mxu0 %v6184
    %6615 = vmatpush1.msra.mxu0 %v6183
    %6616 = vmatprep.subr.mxu0 %v6186
    %6617 = vmatpush1.msra.mxu0 %v6185
    %6618 = vmatprep.subr.mxu0 %v6188
    %6619 = vmatpush1.msra.mxu0 %v6187
    %6620 = vmatprep.subr.mxu0 %v6190
    %6621 = vmatpush1.msra.mxu0 %v6189
    %6622 = vmatprep.subr.mxu0 %v6192
    %6623 = vmatpush1.msra.mxu0 %v6191
    %6624 = vmatprep.subr.mxu0 %v6194
    %6625 = vmatpush1.msra.mxu0 %v6193
    %6626 = vmatprep.subr.mxu0 %v6196
    %6627 = vmatpush1.msra.mxu0 %v6195
    %6628 = vmatprep.subr.mxu0 %v6198
    %6629 = vmatpush1.msra.mxu0 %v6197
    %6630 = vmatprep.subr.mxu0 %v6200
    %6631 = vmatpush1.msra.mxu0 %v6199
    %6632 = vmatprep.subr.mxu0 %v6202
    %6633 = vmatpush1.msra.mxu0 %v6201
    %6634 = vmatprep.subr.mxu0 %v6204
    %6635 = vmatpush1.msra.mxu0 %v6203
    %6636 = vmatprep.subr.mxu0 %v6206
    %6637 = vmatpush1.msra.mxu0 %v6205
    %6638 = vmatprep.subr.mxu0 %v6208
    %6639 = vmatpush1.msra.mxu0 %v6207
    %6640 = vmatprep.subr.mxu0 %v6210
    %6641 = vmatpush1.msra.mxu0 %v6209
    %6642 = vmatprep.subr.mxu0 %v6212
    %6643 = vmatpush1.msra.mxu0 %v6211
    %6644 = vmatprep.subr.mxu0 %v6214
    %6645 = vmatpush1.msra.mxu0 %v6213
    %6646 = vmatprep.subr.mxu0 %v6216
    %6647 = vmatpush1.msra.mxu0 %v6215
    %6648 = vmatprep.subr.mxu0 %v6218
    %6649 = vmatpush1.msra.mxu0 %v6217
    %6650 = vmatprep.subr.mxu0 %v6220
    %6651 = vmatpush1.msra.mxu0 %v6219
    %6652 = vmatprep.subr.mxu0 %v6222
    %6653 = vmatpush1.msra.mxu0 %v6221
    %6654 = vmatprep.subr.mxu0 %v6224
    %6655 = vmatpush1.msra.mxu0 %v6223
    %6656 = vmatprep.subr.mxu0 %v6226
    %6657 = vmatpush1.msra.mxu0 %v6225
    %6658 = vmatprep.subr.mxu0 %v6228
    %6659 = vmatpush1.msra.mxu0 %v6227
    %6660 = vmatprep.subr.mxu0 %v6230
    %6661 = vmatpush1.msra.mxu0 %v6229
    %6662 = vmatprep.subr.mxu0 %v6232
    %6663 = vmatpush1.msra.mxu0 %v6231
    %6664 = vmatprep.subr.mxu0 %v6234
    %6665 = vmatpush1.msra.mxu0 %v6233
    %6666 = vmatprep.subr.mxu0 %v6236
    %6667 = vmatpush1.msra.mxu0 %v6235
    %6668 = vmatprep.subr.mxu0 %v6238
    %6669 = vmatpush1.msra.mxu0 %v6237
    %6670 = vmatprep.subr.mxu0 %v6240
    %6671 = vmatpush1.msra.mxu0 %v6239
    %6672 = vmatprep.subr.mxu0 %v6242
    %6673 = vmatpush1.msra.mxu0 %v6241
    %6674 = vmatprep.mubr.f32.mxu0 %v5858
    %6675 = vmatmul.mubr.f32.gmra.mrb[0].mxu0 %v5857
    %v6676 = vpop.f32.mrb[0].mxu0
    %v6677 = vadd.f32 %v6606, %v6676
    %v6678 = vpop.f32.mrb[0].mxu0
    %v6679 = vadd.f32 %v6608, %v6678
    %6680 = vdwg.mxu0
    %6681 = vst [vmem:[%s9] sm:$0xff] %v6677
    %6682 = vst [vmem:[%s9 + $0x8] sm:$0xff] %v6679
    // Predicated region
    $region70: #{hourglass_forward.1} parent=1 // pred_check
      _
    $region71: #{hourglass_forward.1} parent=1 // pred_check_branch
      %6684 = sbr.rel (0) target = $region73
    $region72: #{hourglass_forward.1} parent=1 // pred_region
      _
    $region73: #{hourglass_forward.1} parent=1 // pred_fallthru
      _
    // Predicated region
    $region74: #{hourglass_forward.1} parent=1 // pred_check
      _
    $region75: #{hourglass_forward.1} parent=1 // pred_check_branch
      %6686 = sbr.rel (0) target = $region77
    $region76: #{hourglass_forward.1} parent=1 // pred_region
      _
    $region77: #{hourglass_forward.1} parent=1 // pred_fallthru
      _
    %6687 = vsyncpa [#allocation3], 1
    %6688 = vsyncpa [#allocation5], 1
    %6689 = vsyncpa [#allocation8], 1
    %6690 = vsyncpa [#allocation11], 1
    %6691 = vsyncpa [#allocation14], 1

</llo_original>
